<compile_context>
chip_gen: v6e
topology: v6e:2x2x1
jax: 0.10.0
libtpu: 0.0.40
codegen_flags: <defaults>
</compile_context>

<pallas_src>
import functools
import math

import jax
import jax.numpy as jnp
from jax.experimental import pallas as pl
from jax.experimental.pallas import tpu as pltpu


# ----------------------------------------------------------------------------
# LSTM gate nonlinearity (PyTorch gate order i, f, g, o); gates: [B, 4H]
# ----------------------------------------------------------------------------
def _gates_to_hc(gates, c, H):
    i = jax.nn.sigmoid(gates[:, 0 * H:1 * H])
    f = jax.nn.sigmoid(gates[:, 1 * H:2 * H])
    g = jnp.tanh(gates[:, 2 * H:3 * H])
    o = jax.nn.sigmoid(gates[:, 3 * H:4 * H])
    c_new = f * c + i * g
    h_new = o * jnp.tanh(c_new)
    return h_new, c_new


# ----------------------------------------------------------------------------
# Single fused kernel: embedding + encoder + ref-projection + full decode loop
# ----------------------------------------------------------------------------
def lstm_tsp_kernel(coords_ref,          # [Bt, S, 2]
                    gumbel_ref,          # [Bt, n_steps, S]  host-generated noise
                    w_emb_ref,           # [2, E]
                    enc_w_ih_t_ref,      # [E, 4H]   (pre-transposed)
                    enc_w_hh_t_ref,      # [H, 4H]   (pre-transposed)
                    enc_b_ref,           # [1, 4H]   (b_ih + b_hh)
                    dec_w_ih_t_ref,      # [E, 4H]   (pre-transposed)
                    dec_w_hh_t_ref,      # [H, 4H]   (pre-transposed)
                    dec_b_ref,           # [1, 4H]
                    w_q_t_ref,           # [H, H]    (pre-transposed)
                    b_q_ref,             # [1, H]
                    w_ref_t_ref,         # [H, H]    (Conv1d k=1, pre-transposed)
                    b_refb_ref,          # [1, H]
                    v_ref,               # [1, H]
                    dec_start_ref,       # [1, E]
                    logp_ref,            # out [Bt, n_steps] f32
                    chosen_ref,          # out [Bt, n_steps] i32
                    *, start_index, tanh_clip, n_steps):
    Bt, S, _ = coords_ref.shape
    E = w_emb_ref.shape[1]
    H = w_q_t_ref.shape[0]

    coords = coords_ref[...]                                       # [Bt, S, 2]
    w_emb = w_emb_ref[...]                                         # [2, E]

    # ---- graph embedding: [Bt*S, 2] @ [2, E] -> [Bt, S, E] ------------------
    emb2d = jnp.dot(coords.reshape(Bt * S, 2), w_emb,
                    preferred_element_type=jnp.float32)            # [Bt*S, E]
    emb = emb2d.reshape(Bt, S, E)

    # ---- encoder LSTM; input projection hoisted out of the recurrence -------
    x_proj = (jnp.dot(emb2d, enc_w_ih_t_ref[...],
                      preferred_element_type=jnp.float32)
              + enc_b_ref[...]).reshape(Bt, S, 4 * H)               # [Bt, S, 4H]
    w_hh_t = enc_w_hh_t_ref[...]
    h = jnp.zeros((Bt, H), jnp.float32)
    c = jnp.zeros((Bt, H), jnp.float32)
    hs = []
    for t in range(S):                       # static, tiny S -> fully unrolled
        gates = x_proj[:, t, :] + jnp.dot(h, w_hh_t,
                                          preferred_element_type=jnp.float32)
        h, c = _gates_to_hc(gates, c, H)
        hs.append(h)                         # kept in registers, no VMEM scratch
    enc_out = jnp.stack(hs, axis=1)                                 # [Bt, S, H]

    # ---- pointer ref-projection (Conv1d(H,H,1)), hoisted out of decode ------
    refproj = (jnp.dot(enc_out.reshape(Bt * S, H), w_ref_t_ref[...],
                       preferred_element_type=jnp.float32)
               + b_refb_ref[...]).reshape(Bt, S, H)                 # [Bt, S, H]

    # ---- decode loop: LSTM cell + pointer attention + sampling --------------
    lane_ids = jax.lax.broadcasted_iota(jnp.int32, (Bt, S), 1)
    if start_index is None:
        dec_input = jnp.broadcast_to(dec_start_ref[...], (Bt, E))
        mask = jnp.zeros((Bt, S), jnp.float32)
    else:
        dec_input = emb[:, start_index, :]
        mask = (lane_ids == start_index).astype(jnp.float32)

    dec_w_ih_t = dec_w_ih_t_ref[...]
    dec_w_hh_t = dec_w_hh_t_ref[...]
    dec_b = dec_b_ref[...]
    w_q_t = w_q_t_ref[...]
    b_q = b_q_ref[...]
    v = v_ref[...]
    gumbel = gumbel_ref[...]
    neg_big = jnp.float32(-100000.0)

    logp_cols = []
    chosen_cols = []
    for t in range(n_steps):
        # decoder LSTM cell: two register-resident matmuls, no VMEM staging
        gates = (jnp.dot(dec_input, dec_w_ih_t,
                         preferred_element_type=jnp.float32)
                 + jnp.dot(h, dec_w_hh_t, preferred_element_type=jnp.float32)
                 + dec_b)
        h, c = _gates_to_hc(gates, c, H)

        # pointer attention: C * tanh( V . tanh(Wq h + Wref enc) )
        q = jnp.dot(h, w_q_t, preferred_element_type=jnp.float32) + b_q
        u = jnp.tanh(q[:, None, :] + refproj)                       # [Bt, S, H]
        scores = jnp.sum(u * v[None, :, :], axis=-1)                # [Bt, S]
        logits = tanh_clip * jnp.tanh(scores)
        masked = jnp.where(mask > 0.5, neg_big, logits)

        # log-softmax
        m = jnp.max(masked, axis=-1, keepdims=True)
        lse = m + jnp.log(jnp.sum(jnp.exp(masked - m), axis=-1, keepdims=True))
        logp = masked - lse

        # Gumbel-max categorical sample (host-generated noise)
        y = masked + gumbel[:, t, :]
        ymax = jnp.max(y, axis=-1, keepdims=True)
        chosen = jnp.min(jnp.where(y >= ymax, lane_ids, S),
                         axis=-1, keepdims=True)                    # [Bt, 1] i32

        oh = (lane_ids == chosen).astype(jnp.float32)               # [Bt, S]
        mask = jnp.maximum(mask, oh)

        # coordinate-space gather + re-embed (embedding is linear -> exact)
        chosen_coords = jnp.sum(oh[:, :, None] * coords, axis=1)    # [Bt, 2]
        dec_input = jnp.dot(chosen_coords, w_emb,
                            preferred_element_type=jnp.float32)     # [Bt, E]

        logp_cols.append(jnp.sum(logp * oh, axis=-1, keepdims=True))
        chosen_cols.append(chosen)

    # one dense store per output (instead of n_steps lane-1 masked stores)
    logp_ref[...] = jnp.concatenate(logp_cols, axis=1)
    chosen_ref[...] = jnp.concatenate(chosen_cols, axis=1)


# ----------------------------------------------------------------------------
# pallas_call wrapper
# ----------------------------------------------------------------------------
def _vmem_full():
    return pl.BlockSpec(memory_space=pltpu.MemorySpace.VMEM)


def _build_tsp_call(B_pad, S, E, H, *, n_steps, b_tile, start_index,
                    tanh_exploration):
    kern = functools.partial(lstm_tsp_kernel,
                             start_index=start_index,
                             tanh_clip=float(tanh_exploration),
                             n_steps=n_steps)
    grid = (B_pad // b_tile,)
    in_specs = [
        pl.BlockSpec((b_tile, S, 2), lambda b: (b, 0, 0)),          # coords
        pl.BlockSpec((b_tile, n_steps, S), lambda b: (b, 0, 0)),    # gumbel noise
    ] + [_vmem_full() for _ in range(13)]                           # weights
    out_specs = (
        pl.BlockSpec((b_tile, n_steps), lambda b: (b, 0)),
        pl.BlockSpec((b_tile, n_steps), lambda b: (b, 0)),
    )
    out_shape = (
        jax.ShapeDtypeStruct((B_pad, n_steps), jnp.float32),        # log-probs
        jax.ShapeDtypeStruct((B_pad, n_steps), jnp.int32),          # indices
    )
    return pl.pallas_call(
        kern,
        grid=grid,
        out_shape=out_shape,
        in_specs=in_specs,
        out_specs=out_specs,
        compiler_params=pltpu.CompilerParams(
            dimension_semantics=("parallel",),          # engage 2nd TC on v7x
            vmem_limit_bytes=32 * 1024 * 1024,          # raise v5e 16MiB default
        ),
    )


@functools.partial(jax.jit, static_argnames=("start_index", "tanh_exploration"))
def lstm_tsp_forward(coords, prepared, key, *, start_index, tanh_exploration):
    B, S, _ = coords.shape
    E = prepared['w_emb'].shape[1]
    H = prepared['w_q_t'].shape[0]
    n_steps = S if start_index is None else S - 1

    # pad batch to a sublane multiple (8); tile batch over the grid
    B_pad = max(8, ((B + 7) // 8) * 8)
    b_tile = min(B_pad, 128)
    B_pad = ((B_pad + b_tile - 1) // b_tile) * b_tile
    if B_pad != B:
        coords_p = jnp.zeros((B_pad, S, 2), jnp.float32).at[:B].set(coords)
    else:
        coords_p = coords

    # host-side Gumbel noise for the categorical sampler
    gumbel = jax.random.gumbel(key, (B_pad, n_steps, S), jnp.float32)

    call = _build_tsp_call(B_pad, S, E, H, n_steps=n_steps, b_tile=b_tile,
                           start_index=start_index,
                           tanh_exploration=tanh_exploration)
    logp, chosen = call(
        coords_p, gumbel,
        prepared['w_emb'], prepared['enc_w_ih_t'], prepared['enc_w_hh_t'],
        prepared['enc_b'], prepared['dec_w_ih_t'], prepared['dec_w_hh_t'],
        prepared['dec_b'], prepared['w_q_t'], prepared['b_q'],
        prepared['w_ref_t'], prepared['b_ref'], prepared['v'],
        prepared['dec_start'])

    logp = logp[:B]
    chosen = chosen[:B]
    if start_index is not None:
        start_col = jnp.full((B, 1), start_index, jnp.int32)
        chosen = jnp.concatenate([start_col, chosen], axis=1)
    return logp, chosen


# ----------------------------------------------------------------------------
# parameter init (PyTorch layout) + host-side prep (transpose once)
# ----------------------------------------------------------------------------
def init_params(key, embedding_size, hidden_size):
    E, H = embedding_size, hidden_size
    ks = jax.random.split(key, 16)

    def u(k, shape, bound):
        return jax.random.uniform(k, shape, jnp.float32, -bound, bound)

    ke = 1.0 / math.sqrt(E)
    kh = 1.0 / math.sqrt(H)
    p = {}
    p['w_emb'] = u(ks[0], (2, E), ke)                  # GraphEmbedding(2, E)
    p['dec_start'] = u(ks[1], (E,), ke)                # decoder_start_input
    p['enc_w_ih'] = u(ks[2], (4 * H, E), kh)           # encoder LSTM
    p['enc_w_hh'] = u(ks[3], (4 * H, H), kh)
    p['enc_b'] = u(ks[4], (1, 4 * H), kh) + u(ks[5], (1, 4 * H), kh)  # b_ih+b_hh
    p['dec_w_ih'] = u(ks[6], (4 * H, E), kh)           # decoder LSTM
    p['dec_w_hh'] = u(ks[7], (4 * H, H), kh)
    p['dec_b'] = u(ks[8], (1, 4 * H), kh) + u(ks[9], (1, 4 * H), kh)
    p['w_q'] = u(ks[10], (H, H), kh)                   # Attention.W_query
    p['b_q'] = u(ks[11], (1, H), kh)
    p['w_ref'] = u(ks[12], (H, H), kh)                 # Attention.W_ref (Conv1d k=1)
    p['b_ref'] = u(ks[13], (1, H), kh)
    p['v'] = u(ks[14], (1, H), kh)                     # Attention.V
    return p


def prepare_params(p):
    """Pre-transpose weights once on the host for the fused kernel."""
    return {
        'w_emb': p['w_emb'],                 # [2, E]
        'enc_w_ih_t': p['enc_w_ih'].T,       # [E, 4H]
        'enc_w_hh_t': p['enc_w_hh'].T,       # [H, 4H]
        'enc_b': p['enc_b'],                 # [1, 4H]
        'dec_w_ih_t': p['dec_w_ih'].T,       # [E, 4H]
        'dec_w_hh_t': p['dec_w_hh'].T,       # [H, 4H]
        'dec_b': p['dec_b'],                 # [1, 4H]
        'w_q_t': p['w_q'].T,                 # [H, H]
        'b_q': p['b_q'],                     # [1, H]
        'w_ref_t': p['w_ref'].T,             # [H, H]
        'b_ref': p['b_ref'],                 # [1, H]
        'v': p['v'],                         # [1, H]
        'dec_start': p['dec_start'][None, :],  # [1, E]
    }


if __name__ == "__main__":
    B, S, E, H = 4, 8, 32, 32
    start_index = 0
    tanh_exploration = 10.0

    key = jax.random.PRNGKey(0)
    pkey, xkey, gkey = jax.random.split(key, 3)
    params = init_params(pkey, E, H)
    prepared = prepare_params(params)
    coords = jax.random.uniform(xkey, (B, S, 2), jnp.float32)       # [B, S, 2]

    logprobs, indices = lstm_tsp_forward(
        coords, prepared, gkey,
        start_index=start_index, tanh_exploration=tanh_exploration)
    jax.block_until_ready((logprobs, indices))

    assert logprobs.shape == (B, S - 1), logprobs.shape
    assert indices.shape == (B, S), indices.shape
    assert bool(jnp.all(jnp.isfinite(logprobs))), "log-probs must be finite"
    assert bool(jnp.all(logprobs <= 0.0)), "log-probs must be <= 0"
    assert bool(jnp.all(jnp.sort(indices, axis=1)
                        == jnp.arange(S)[None, :])), "tour must visit every node once"
    print("KERNEL_OK")
</pallas_src>

<mosaic_0001>
module attributes {stable_mosaic.version = 11 : i64} {
  func.func @lstm_tsp_kernel(%arg0: i32, %arg1: memref<8x8x2xf32, #tpu.memory_space<vmem>>, %arg2: memref<8x7x8xf32, #tpu.memory_space<vmem>>, %arg3: memref<2x32xf32, #tpu.memory_space<vmem>>, %arg4: memref<32x128xf32, #tpu.memory_space<vmem>>, %arg5: memref<32x128xf32, #tpu.memory_space<vmem>>, %arg6: memref<1x128xf32, #tpu.memory_space<vmem>>, %arg7: memref<32x128xf32, #tpu.memory_space<vmem>>, %arg8: memref<32x128xf32, #tpu.memory_space<vmem>>, %arg9: memref<1x128xf32, #tpu.memory_space<vmem>>, %arg10: memref<32x32xf32, #tpu.memory_space<vmem>>, %arg11: memref<1x32xf32, #tpu.memory_space<vmem>>, %arg12: memref<32x32xf32, #tpu.memory_space<vmem>>, %arg13: memref<1x32xf32, #tpu.memory_space<vmem>>, %arg14: memref<1x32xf32, #tpu.memory_space<vmem>>, %arg15: memref<1x32xf32, #tpu.memory_space<vmem>>, %arg16: memref<8x7xf32, #tpu.memory_space<vmem>>, %arg17: memref<8x7xi32, #tpu.memory_space<vmem>>) attributes {dimension_semantics = [#tpu.dimension_semantics<parallel>], iteration_bounds = array<i64: 1>, scalar_prefetch = 0 : i64, scratch_operands = 0 : i64, tpu.core_type = #tpu.core_type<tc>, window_params = [{transform_indices = @transform_0, window_bounds = array<i64: 8, 8, 2>}, {transform_indices = @transform_1, window_bounds = array<i64: 8, 7, 8>}, {pipeline_mode = #tpu.pipeline_mode<synchronous>, transform_indices = @transform_2, window_bounds = array<i64: 2, 32>}, {pipeline_mode = #tpu.pipeline_mode<synchronous>, transform_indices = @transform_3, window_bounds = array<i64: 32, 128>}, {pipeline_mode = #tpu.pipeline_mode<synchronous>, transform_indices = @transform_4, window_bounds = array<i64: 32, 128>}, {pipeline_mode = #tpu.pipeline_mode<synchronous>, transform_indices = @transform_5, window_bounds = array<i64: 1, 128>}, {pipeline_mode = #tpu.pipeline_mode<synchronous>, transform_indices = @transform_6, window_bounds = array<i64: 32, 128>}, {pipeline_mode = #tpu.pipeline_mode<synchronous>, transform_indices = @transform_7, window_bounds = array<i64: 32, 128>}, {pipeline_mode = #tpu.pipeline_mode<synchronous>, transform_indices = @transform_8, window_bounds = array<i64: 1, 128>}, {pipeline_mode = #tpu.pipeline_mode<synchronous>, transform_indices = @transform_9, window_bounds = array<i64: 32, 32>}, {pipeline_mode = #tpu.pipeline_mode<synchronous>, transform_indices = @transform_10, window_bounds = array<i64: 1, 32>}, {pipeline_mode = #tpu.pipeline_mode<synchronous>, transform_indices = @transform_11, window_bounds = array<i64: 32, 32>}, {pipeline_mode = #tpu.pipeline_mode<synchronous>, transform_indices = @transform_12, window_bounds = array<i64: 1, 32>}, {pipeline_mode = #tpu.pipeline_mode<synchronous>, transform_indices = @transform_13, window_bounds = array<i64: 1, 32>}, {pipeline_mode = #tpu.pipeline_mode<synchronous>, transform_indices = @transform_14, window_bounds = array<i64: 1, 32>}, {transform_indices = @transform_15, window_bounds = array<i64: 8, 7>}, {transform_indices = @transform_16, window_bounds = array<i64: 8, 7>}]} {
    %c0 = arith.constant 0 : index
    %c0_0 = arith.constant 0 : index
    %c0_1 = arith.constant 0 : index
    %0 = vector.load %arg1[%c0, %c0_0, %c0_1] : memref<8x8x2xf32, #tpu.memory_space<vmem>>, vector<8x8x2xf32>
    %c0_2 = arith.constant 0 : index
    %c0_3 = arith.constant 0 : index
    %1 = vector.load %arg3[%c0_2, %c0_3] : memref<2x32xf32, #tpu.memory_space<vmem>>, vector<2x32xf32>
    %2 = vector.shape_cast %0 : vector<8x8x2xf32> to vector<64x2xf32>
    %cst = arith.constant dense<0.000000e+00> : vector<64x32xf32>
    %3 = tpu.matmul %2, %1, %cst {dimension_numbers = #tpu.dot_dimension_numbers<[1], [0], [0], [1], [0, 0, 1, 1], [], []>} : vector<64x2xf32>, vector<2x32xf32>, vector<64x32xf32> -> vector<64x32xf32>
    %4 = vector.shape_cast %3 : vector<64x32xf32> to vector<8x8x32xf32>
    %c0_4 = arith.constant 0 : index
    %c0_5 = arith.constant 0 : index
    %5 = vector.load %arg4[%c0_4, %c0_5] : memref<32x128xf32, #tpu.memory_space<vmem>>, vector<32x128xf32>
    %cst_6 = arith.constant dense<0.000000e+00> : vector<64x128xf32>
    %6 = tpu.matmul %3, %5, %cst_6 {dimension_numbers = #tpu.dot_dimension_numbers<[1], [0], [0], [1], [0, 0, 1, 1], [], []>} : vector<64x32xf32>, vector<32x128xf32>, vector<64x128xf32> -> vector<64x128xf32>
    %c0_7 = arith.constant 0 : index
    %c0_8 = arith.constant 0 : index
    %7 = vector.load %arg6[%c0_7, %c0_8] : memref<1x128xf32, #tpu.memory_space<vmem>>, vector<1x128xf32>
    %8 = vector.broadcast %7 : vector<1x128xf32> to vector<64x128xf32>
    %9 = arith.addf %6, %8 : vector<64x128xf32>
    %10 = vector.shape_cast %9 : vector<64x128xf32> to vector<8x8x128xf32>
    %c0_9 = arith.constant 0 : index
    %c0_10 = arith.constant 0 : index
    %11 = vector.load %arg5[%c0_9, %c0_10] : memref<32x128xf32, #tpu.memory_space<vmem>>, vector<32x128xf32>
    %cst_11 = arith.constant 0.000000e+00 : f32
    %12 = vector.broadcast %cst_11 : f32 to vector<8x32xf32>
    %cst_12 = arith.constant 0.000000e+00 : f32
    %13 = vector.broadcast %cst_12 : f32 to vector<8x32xf32>
    %14 = vector.extract_strided_slice %10 {offsets = [0, 0, 0], sizes = [8, 1, 128], strides = [1, 1, 1]} : vector<8x8x128xf32> to vector<8x1x128xf32>
    %15 = vector.shape_cast %14 : vector<8x1x128xf32> to vector<8x128xf32>
    %cst_13 = arith.constant dense<0.000000e+00> : vector<8x128xf32>
    %16 = tpu.matmul %12, %11, %cst_13 {dimension_numbers = #tpu.dot_dimension_numbers<[1], [0], [0], [1], [0, 0, 1, 1], [], []>} : vector<8x32xf32>, vector<32x128xf32>, vector<8x128xf32> -> vector<8x128xf32>
    %17 = arith.addf %15, %16 : vector<8x128xf32>
    %18 = vector.extract_strided_slice %17 {offsets = [0, 0], sizes = [8, 32], strides = [1, 1]} : vector<8x128xf32> to vector<8x32xf32>
    %19 = arith.negf %18 : vector<8x32xf32>
    %20 = math.exp %19 : vector<8x32xf32>
    %cst_14 = arith.constant 1.000000e+00 : f32
    %21 = vector.broadcast %cst_14 : f32 to vector<8x32xf32>
    %22 = arith.addf %21, %20 : vector<8x32xf32>
    %23 = arith.divf %21, %22 : vector<8x32xf32>
    %24 = vector.extract_strided_slice %17 {offsets = [0, 32], sizes = [8, 32], strides = [1, 1]} : vector<8x128xf32> to vector<8x32xf32>
    %25 = arith.negf %24 : vector<8x32xf32>
    %26 = math.exp %25 : vector<8x32xf32>
    %cst_15 = arith.constant 1.000000e+00 : f32
    %27 = vector.broadcast %cst_15 : f32 to vector<8x32xf32>
    %28 = arith.addf %27, %26 : vector<8x32xf32>
    %29 = arith.divf %27, %28 : vector<8x32xf32>
    %30 = vector.extract_strided_slice %17 {offsets = [0, 64], sizes = [8, 32], strides = [1, 1]} : vector<8x128xf32> to vector<8x32xf32>
    %31 = math.tanh %30 : vector<8x32xf32>
    %32 = vector.extract_strided_slice %17 {offsets = [0, 96], sizes = [8, 32], strides = [1, 1]} : vector<8x128xf32> to vector<8x32xf32>
    %33 = arith.negf %32 : vector<8x32xf32>
    %34 = math.exp %33 : vector<8x32xf32>
    %cst_16 = arith.constant 1.000000e+00 : f32
    %35 = vector.broadcast %cst_16 : f32 to vector<8x32xf32>
    %36 = arith.addf %35, %34 : vector<8x32xf32>
    %37 = arith.divf %35, %36 : vector<8x32xf32>
    %38 = arith.mulf %29, %13 : vector<8x32xf32>
    %39 = arith.mulf %23, %31 : vector<8x32xf32>
    %40 = arith.addf %38, %39 : vector<8x32xf32>
    %41 = math.tanh %40 : vector<8x32xf32>
    %42 = arith.mulf %37, %41 : vector<8x32xf32>
    %43 = vector.extract_strided_slice %10 {offsets = [0, 1, 0], sizes = [8, 1, 128], strides = [1, 1, 1]} : vector<8x8x128xf32> to vector<8x1x128xf32>
    %44 = vector.shape_cast %43 : vector<8x1x128xf32> to vector<8x128xf32>
    %cst_17 = arith.constant dense<0.000000e+00> : vector<8x128xf32>
    %45 = tpu.matmul %42, %11, %cst_17 {dimension_numbers = #tpu.dot_dimension_numbers<[1], [0], [0], [1], [0, 0, 1, 1], [], []>} : vector<8x32xf32>, vector<32x128xf32>, vector<8x128xf32> -> vector<8x128xf32>
    %46 = arith.addf %44, %45 : vector<8x128xf32>
    %47 = vector.extract_strided_slice %46 {offsets = [0, 0], sizes = [8, 32], strides = [1, 1]} : vector<8x128xf32> to vector<8x32xf32>
    %48 = arith.negf %47 : vector<8x32xf32>
    %49 = math.exp %48 : vector<8x32xf32>
    %cst_18 = arith.constant 1.000000e+00 : f32
    %50 = vector.broadcast %cst_18 : f32 to vector<8x32xf32>
    %51 = arith.addf %50, %49 : vector<8x32xf32>
    %52 = arith.divf %50, %51 : vector<8x32xf32>
    %53 = vector.extract_strided_slice %46 {offsets = [0, 32], sizes = [8, 32], strides = [1, 1]} : vector<8x128xf32> to vector<8x32xf32>
    %54 = arith.negf %53 : vector<8x32xf32>
    %55 = math.exp %54 : vector<8x32xf32>
    %cst_19 = arith.constant 1.000000e+00 : f32
    %56 = vector.broadcast %cst_19 : f32 to vector<8x32xf32>
    %57 = arith.addf %56, %55 : vector<8x32xf32>
    %58 = arith.divf %56, %57 : vector<8x32xf32>
    %59 = vector.extract_strided_slice %46 {offsets = [0, 64], sizes = [8, 32], strides = [1, 1]} : vector<8x128xf32> to vector<8x32xf32>
    %60 = math.tanh %59 : vector<8x32xf32>
    %61 = vector.extract_strided_slice %46 {offsets = [0, 96], sizes = [8, 32], strides = [1, 1]} : vector<8x128xf32> to vector<8x32xf32>
    %62 = arith.negf %61 : vector<8x32xf32>
    %63 = math.exp %62 : vector<8x32xf32>
    %cst_20 = arith.constant 1.000000e+00 : f32
    %64 = vector.broadcast %cst_20 : f32 to vector<8x32xf32>
    %65 = arith.addf %64, %63 : vector<8x32xf32>
    %66 = arith.divf %64, %65 : vector<8x32xf32>
    %67 = arith.mulf %58, %40 : vector<8x32xf32>
    %68 = arith.mulf %52, %60 : vector<8x32xf32>
    %69 = arith.addf %67, %68 : vector<8x32xf32>
    %70 = math.tanh %69 : vector<8x32xf32>
    %71 = arith.mulf %66, %70 : vector<8x32xf32>
    %72 = vector.extract_strided_slice %10 {offsets = [0, 2, 0], sizes = [8, 1, 128], strides = [1, 1, 1]} : vector<8x8x128xf32> to vector<8x1x128xf32>
    %73 = vector.shape_cast %72 : vector<8x1x128xf32> to vector<8x128xf32>
    %cst_21 = arith.constant dense<0.000000e+00> : vector<8x128xf32>
    %74 = tpu.matmul %71, %11, %cst_21 {dimension_numbers = #tpu.dot_dimension_numbers<[1], [0], [0], [1], [0, 0, 1, 1], [], []>} : vector<8x32xf32>, vector<32x128xf32>, vector<8x128xf32> -> vector<8x128xf32>
    %75 = arith.addf %73, %74 : vector<8x128xf32>
    %76 = vector.extract_strided_slice %75 {offsets = [0, 0], sizes = [8, 32], strides = [1, 1]} : vector<8x128xf32> to vector<8x32xf32>
    %77 = arith.negf %76 : vector<8x32xf32>
    %78 = math.exp %77 : vector<8x32xf32>
    %cst_22 = arith.constant 1.000000e+00 : f32
    %79 = vector.broadcast %cst_22 : f32 to vector<8x32xf32>
    %80 = arith.addf %79, %78 : vector<8x32xf32>
    %81 = arith.divf %79, %80 : vector<8x32xf32>
    %82 = vector.extract_strided_slice %75 {offsets = [0, 32], sizes = [8, 32], strides = [1, 1]} : vector<8x128xf32> to vector<8x32xf32>
    %83 = arith.negf %82 : vector<8x32xf32>
    %84 = math.exp %83 : vector<8x32xf32>
    %cst_23 = arith.constant 1.000000e+00 : f32
    %85 = vector.broadcast %cst_23 : f32 to vector<8x32xf32>
    %86 = arith.addf %85, %84 : vector<8x32xf32>
    %87 = arith.divf %85, %86 : vector<8x32xf32>
    %88 = vector.extract_strided_slice %75 {offsets = [0, 64], sizes = [8, 32], strides = [1, 1]} : vector<8x128xf32> to vector<8x32xf32>
    %89 = math.tanh %88 : vector<8x32xf32>
    %90 = vector.extract_strided_slice %75 {offsets = [0, 96], sizes = [8, 32], strides = [1, 1]} : vector<8x128xf32> to vector<8x32xf32>
    %91 = arith.negf %90 : vector<8x32xf32>
    %92 = math.exp %91 : vector<8x32xf32>
    %cst_24 = arith.constant 1.000000e+00 : f32
    %93 = vector.broadcast %cst_24 : f32 to vector<8x32xf32>
    %94 = arith.addf %93, %92 : vector<8x32xf32>
    %95 = arith.divf %93, %94 : vector<8x32xf32>
    %96 = arith.mulf %87, %69 : vector<8x32xf32>
    %97 = arith.mulf %81, %89 : vector<8x32xf32>
    %98 = arith.addf %96, %97 : vector<8x32xf32>
    %99 = math.tanh %98 : vector<8x32xf32>
    %100 = arith.mulf %95, %99 : vector<8x32xf32>
    %101 = vector.extract_strided_slice %10 {offsets = [0, 3, 0], sizes = [8, 1, 128], strides = [1, 1, 1]} : vector<8x8x128xf32> to vector<8x1x128xf32>
    %102 = vector.shape_cast %101 : vector<8x1x128xf32> to vector<8x128xf32>
    %cst_25 = arith.constant dense<0.000000e+00> : vector<8x128xf32>
    %103 = tpu.matmul %100, %11, %cst_25 {dimension_numbers = #tpu.dot_dimension_numbers<[1], [0], [0], [1], [0, 0, 1, 1], [], []>} : vector<8x32xf32>, vector<32x128xf32>, vector<8x128xf32> -> vector<8x128xf32>
    %104 = arith.addf %102, %103 : vector<8x128xf32>
    %105 = vector.extract_strided_slice %104 {offsets = [0, 0], sizes = [8, 32], strides = [1, 1]} : vector<8x128xf32> to vector<8x32xf32>
    %106 = arith.negf %105 : vector<8x32xf32>
    %107 = math.exp %106 : vector<8x32xf32>
    %cst_26 = arith.constant 1.000000e+00 : f32
    %108 = vector.broadcast %cst_26 : f32 to vector<8x32xf32>
    %109 = arith.addf %108, %107 : vector<8x32xf32>
    %110 = arith.divf %108, %109 : vector<8x32xf32>
    %111 = vector.extract_strided_slice %104 {offsets = [0, 32], sizes = [8, 32], strides = [1, 1]} : vector<8x128xf32> to vector<8x32xf32>
    %112 = arith.negf %111 : vector<8x32xf32>
    %113 = math.exp %112 : vector<8x32xf32>
    %cst_27 = arith.constant 1.000000e+00 : f32
    %114 = vector.broadcast %cst_27 : f32 to vector<8x32xf32>
    %115 = arith.addf %114, %113 : vector<8x32xf32>
    %116 = arith.divf %114, %115 : vector<8x32xf32>
    %117 = vector.extract_strided_slice %104 {offsets = [0, 64], sizes = [8, 32], strides = [1, 1]} : vector<8x128xf32> to vector<8x32xf32>
    %118 = math.tanh %117 : vector<8x32xf32>
    %119 = vector.extract_strided_slice %104 {offsets = [0, 96], sizes = [8, 32], strides = [1, 1]} : vector<8x128xf32> to vector<8x32xf32>
    %120 = arith.negf %119 : vector<8x32xf32>
    %121 = math.exp %120 : vector<8x32xf32>
    %cst_28 = arith.constant 1.000000e+00 : f32
    %122 = vector.broadcast %cst_28 : f32 to vector<8x32xf32>
    %123 = arith.addf %122, %121 : vector<8x32xf32>
    %124 = arith.divf %122, %123 : vector<8x32xf32>
    %125 = arith.mulf %116, %98 : vector<8x32xf32>
    %126 = arith.mulf %110, %118 : vector<8x32xf32>
    %127 = arith.addf %125, %126 : vector<8x32xf32>
    %128 = math.tanh %127 : vector<8x32xf32>
    %129 = arith.mulf %124, %128 : vector<8x32xf32>
    %130 = vector.extract_strided_slice %10 {offsets = [0, 4, 0], sizes = [8, 1, 128], strides = [1, 1, 1]} : vector<8x8x128xf32> to vector<8x1x128xf32>
    %131 = vector.shape_cast %130 : vector<8x1x128xf32> to vector<8x128xf32>
    %cst_29 = arith.constant dense<0.000000e+00> : vector<8x128xf32>
    %132 = tpu.matmul %129, %11, %cst_29 {dimension_numbers = #tpu.dot_dimension_numbers<[1], [0], [0], [1], [0, 0, 1, 1], [], []>} : vector<8x32xf32>, vector<32x128xf32>, vector<8x128xf32> -> vector<8x128xf32>
    %133 = arith.addf %131, %132 : vector<8x128xf32>
    %134 = vector.extract_strided_slice %133 {offsets = [0, 0], sizes = [8, 32], strides = [1, 1]} : vector<8x128xf32> to vector<8x32xf32>
    %135 = arith.negf %134 : vector<8x32xf32>
    %136 = math.exp %135 : vector<8x32xf32>
    %cst_30 = arith.constant 1.000000e+00 : f32
    %137 = vector.broadcast %cst_30 : f32 to vector<8x32xf32>
    %138 = arith.addf %137, %136 : vector<8x32xf32>
    %139 = arith.divf %137, %138 : vector<8x32xf32>
    %140 = vector.extract_strided_slice %133 {offsets = [0, 32], sizes = [8, 32], strides = [1, 1]} : vector<8x128xf32> to vector<8x32xf32>
    %141 = arith.negf %140 : vector<8x32xf32>
    %142 = math.exp %141 : vector<8x32xf32>
    %cst_31 = arith.constant 1.000000e+00 : f32
    %143 = vector.broadcast %cst_31 : f32 to vector<8x32xf32>
    %144 = arith.addf %143, %142 : vector<8x32xf32>
    %145 = arith.divf %143, %144 : vector<8x32xf32>
    %146 = vector.extract_strided_slice %133 {offsets = [0, 64], sizes = [8, 32], strides = [1, 1]} : vector<8x128xf32> to vector<8x32xf32>
    %147 = math.tanh %146 : vector<8x32xf32>
    %148 = vector.extract_strided_slice %133 {offsets = [0, 96], sizes = [8, 32], strides = [1, 1]} : vector<8x128xf32> to vector<8x32xf32>
    %149 = arith.negf %148 : vector<8x32xf32>
    %150 = math.exp %149 : vector<8x32xf32>
    %cst_32 = arith.constant 1.000000e+00 : f32
    %151 = vector.broadcast %cst_32 : f32 to vector<8x32xf32>
    %152 = arith.addf %151, %150 : vector<8x32xf32>
    %153 = arith.divf %151, %152 : vector<8x32xf32>
    %154 = arith.mulf %145, %127 : vector<8x32xf32>
    %155 = arith.mulf %139, %147 : vector<8x32xf32>
    %156 = arith.addf %154, %155 : vector<8x32xf32>
    %157 = math.tanh %156 : vector<8x32xf32>
    %158 = arith.mulf %153, %157 : vector<8x32xf32>
    %159 = vector.extract_strided_slice %10 {offsets = [0, 5, 0], sizes = [8, 1, 128], strides = [1, 1, 1]} : vector<8x8x128xf32> to vector<8x1x128xf32>
    %160 = vector.shape_cast %159 : vector<8x1x128xf32> to vector<8x128xf32>
    %cst_33 = arith.constant dense<0.000000e+00> : vector<8x128xf32>
    %161 = tpu.matmul %158, %11, %cst_33 {dimension_numbers = #tpu.dot_dimension_numbers<[1], [0], [0], [1], [0, 0, 1, 1], [], []>} : vector<8x32xf32>, vector<32x128xf32>, vector<8x128xf32> -> vector<8x128xf32>
    %162 = arith.addf %160, %161 : vector<8x128xf32>
    %163 = vector.extract_strided_slice %162 {offsets = [0, 0], sizes = [8, 32], strides = [1, 1]} : vector<8x128xf32> to vector<8x32xf32>
    %164 = arith.negf %163 : vector<8x32xf32>
    %165 = math.exp %164 : vector<8x32xf32>
    %cst_34 = arith.constant 1.000000e+00 : f32
    %166 = vector.broadcast %cst_34 : f32 to vector<8x32xf32>
    %167 = arith.addf %166, %165 : vector<8x32xf32>
    %168 = arith.divf %166, %167 : vector<8x32xf32>
    %169 = vector.extract_strided_slice %162 {offsets = [0, 32], sizes = [8, 32], strides = [1, 1]} : vector<8x128xf32> to vector<8x32xf32>
    %170 = arith.negf %169 : vector<8x32xf32>
    %171 = math.exp %170 : vector<8x32xf32>
    %cst_35 = arith.constant 1.000000e+00 : f32
    %172 = vector.broadcast %cst_35 : f32 to vector<8x32xf32>
    %173 = arith.addf %172, %171 : vector<8x32xf32>
    %174 = arith.divf %172, %173 : vector<8x32xf32>
    %175 = vector.extract_strided_slice %162 {offsets = [0, 64], sizes = [8, 32], strides = [1, 1]} : vector<8x128xf32> to vector<8x32xf32>
    %176 = math.tanh %175 : vector<8x32xf32>
    %177 = vector.extract_strided_slice %162 {offsets = [0, 96], sizes = [8, 32], strides = [1, 1]} : vector<8x128xf32> to vector<8x32xf32>
    %178 = arith.negf %177 : vector<8x32xf32>
    %179 = math.exp %178 : vector<8x32xf32>
    %cst_36 = arith.constant 1.000000e+00 : f32
    %180 = vector.broadcast %cst_36 : f32 to vector<8x32xf32>
    %181 = arith.addf %180, %179 : vector<8x32xf32>
    %182 = arith.divf %180, %181 : vector<8x32xf32>
    %183 = arith.mulf %174, %156 : vector<8x32xf32>
    %184 = arith.mulf %168, %176 : vector<8x32xf32>
    %185 = arith.addf %183, %184 : vector<8x32xf32>
    %186 = math.tanh %185 : vector<8x32xf32>
    %187 = arith.mulf %182, %186 : vector<8x32xf32>
    %188 = vector.extract_strided_slice %10 {offsets = [0, 6, 0], sizes = [8, 1, 128], strides = [1, 1, 1]} : vector<8x8x128xf32> to vector<8x1x128xf32>
    %189 = vector.shape_cast %188 : vector<8x1x128xf32> to vector<8x128xf32>
    %cst_37 = arith.constant dense<0.000000e+00> : vector<8x128xf32>
    %190 = tpu.matmul %187, %11, %cst_37 {dimension_numbers = #tpu.dot_dimension_numbers<[1], [0], [0], [1], [0, 0, 1, 1], [], []>} : vector<8x32xf32>, vector<32x128xf32>, vector<8x128xf32> -> vector<8x128xf32>
    %191 = arith.addf %189, %190 : vector<8x128xf32>
    %192 = vector.extract_strided_slice %191 {offsets = [0, 0], sizes = [8, 32], strides = [1, 1]} : vector<8x128xf32> to vector<8x32xf32>
    %193 = arith.negf %192 : vector<8x32xf32>
    %194 = math.exp %193 : vector<8x32xf32>
    %cst_38 = arith.constant 1.000000e+00 : f32
    %195 = vector.broadcast %cst_38 : f32 to vector<8x32xf32>
    %196 = arith.addf %195, %194 : vector<8x32xf32>
    %197 = arith.divf %195, %196 : vector<8x32xf32>
    %198 = vector.extract_strided_slice %191 {offsets = [0, 32], sizes = [8, 32], strides = [1, 1]} : vector<8x128xf32> to vector<8x32xf32>
    %199 = arith.negf %198 : vector<8x32xf32>
    %200 = math.exp %199 : vector<8x32xf32>
    %cst_39 = arith.constant 1.000000e+00 : f32
    %201 = vector.broadcast %cst_39 : f32 to vector<8x32xf32>
    %202 = arith.addf %201, %200 : vector<8x32xf32>
    %203 = arith.divf %201, %202 : vector<8x32xf32>
    %204 = vector.extract_strided_slice %191 {offsets = [0, 64], sizes = [8, 32], strides = [1, 1]} : vector<8x128xf32> to vector<8x32xf32>
    %205 = math.tanh %204 : vector<8x32xf32>
    %206 = vector.extract_strided_slice %191 {offsets = [0, 96], sizes = [8, 32], strides = [1, 1]} : vector<8x128xf32> to vector<8x32xf32>
    %207 = arith.negf %206 : vector<8x32xf32>
    %208 = math.exp %207 : vector<8x32xf32>
    %cst_40 = arith.constant 1.000000e+00 : f32
    %209 = vector.broadcast %cst_40 : f32 to vector<8x32xf32>
    %210 = arith.addf %209, %208 : vector<8x32xf32>
    %211 = arith.divf %209, %210 : vector<8x32xf32>
    %212 = arith.mulf %203, %185 : vector<8x32xf32>
    %213 = arith.mulf %197, %205 : vector<8x32xf32>
    %214 = arith.addf %212, %213 : vector<8x32xf32>
    %215 = math.tanh %214 : vector<8x32xf32>
    %216 = arith.mulf %211, %215 : vector<8x32xf32>
    %217 = vector.extract_strided_slice %10 {offsets = [0, 7, 0], sizes = [8, 1, 128], strides = [1, 1, 1]} : vector<8x8x128xf32> to vector<8x1x128xf32>
    %218 = vector.shape_cast %217 : vector<8x1x128xf32> to vector<8x128xf32>
    %cst_41 = arith.constant dense<0.000000e+00> : vector<8x128xf32>
    %219 = tpu.matmul %216, %11, %cst_41 {dimension_numbers = #tpu.dot_dimension_numbers<[1], [0], [0], [1], [0, 0, 1, 1], [], []>} : vector<8x32xf32>, vector<32x128xf32>, vector<8x128xf32> -> vector<8x128xf32>
    %220 = arith.addf %218, %219 : vector<8x128xf32>
    %221 = vector.extract_strided_slice %220 {offsets = [0, 0], sizes = [8, 32], strides = [1, 1]} : vector<8x128xf32> to vector<8x32xf32>
    %222 = arith.negf %221 : vector<8x32xf32>
    %223 = math.exp %222 : vector<8x32xf32>
    %cst_42 = arith.constant 1.000000e+00 : f32
    %224 = vector.broadcast %cst_42 : f32 to vector<8x32xf32>
    %225 = arith.addf %224, %223 : vector<8x32xf32>
    %226 = arith.divf %224, %225 : vector<8x32xf32>
    %227 = vector.extract_strided_slice %220 {offsets = [0, 32], sizes = [8, 32], strides = [1, 1]} : vector<8x128xf32> to vector<8x32xf32>
    %228 = arith.negf %227 : vector<8x32xf32>
    %229 = math.exp %228 : vector<8x32xf32>
    %cst_43 = arith.constant 1.000000e+00 : f32
    %230 = vector.broadcast %cst_43 : f32 to vector<8x32xf32>
    %231 = arith.addf %230, %229 : vector<8x32xf32>
    %232 = arith.divf %230, %231 : vector<8x32xf32>
    %233 = vector.extract_strided_slice %220 {offsets = [0, 64], sizes = [8, 32], strides = [1, 1]} : vector<8x128xf32> to vector<8x32xf32>
    %234 = math.tanh %233 : vector<8x32xf32>
    %235 = vector.extract_strided_slice %220 {offsets = [0, 96], sizes = [8, 32], strides = [1, 1]} : vector<8x128xf32> to vector<8x32xf32>
    %236 = arith.negf %235 : vector<8x32xf32>
    %237 = math.exp %236 : vector<8x32xf32>
    %cst_44 = arith.constant 1.000000e+00 : f32
    %238 = vector.broadcast %cst_44 : f32 to vector<8x32xf32>
    %239 = arith.addf %238, %237 : vector<8x32xf32>
    %240 = arith.divf %238, %239 : vector<8x32xf32>
    %241 = arith.mulf %232, %214 : vector<8x32xf32>
    %242 = arith.mulf %226, %234 : vector<8x32xf32>
    %243 = arith.addf %241, %242 : vector<8x32xf32>
    %244 = math.tanh %243 : vector<8x32xf32>
    %245 = arith.mulf %240, %244 : vector<8x32xf32>
    %246 = vector.shape_cast %42 : vector<8x32xf32> to vector<8x1x32xf32>
    %247 = vector.shape_cast %71 : vector<8x32xf32> to vector<8x1x32xf32>
    %248 = vector.shape_cast %100 : vector<8x32xf32> to vector<8x1x32xf32>
    %249 = vector.shape_cast %129 : vector<8x32xf32> to vector<8x1x32xf32>
    %250 = vector.shape_cast %158 : vector<8x32xf32> to vector<8x1x32xf32>
    %251 = vector.shape_cast %187 : vector<8x32xf32> to vector<8x1x32xf32>
    %252 = vector.shape_cast %216 : vector<8x32xf32> to vector<8x1x32xf32>
    %253 = vector.shape_cast %245 : vector<8x32xf32> to vector<8x1x32xf32>
    %254 = tpu.concatenate %246, %247, %248, %249, %250, %251, %252, %253 in 1 : vector<8x1x32xf32>, vector<8x1x32xf32>, vector<8x1x32xf32>, vector<8x1x32xf32>, vector<8x1x32xf32>, vector<8x1x32xf32>, vector<8x1x32xf32>, vector<8x1x32xf32> -> vector<8x8x32xf32>
    %255 = vector.shape_cast %254 : vector<8x8x32xf32> to vector<64x32xf32>
    %c0_45 = arith.constant 0 : index
    %c0_46 = arith.constant 0 : index
    %256 = vector.load %arg12[%c0_45, %c0_46] : memref<32x32xf32, #tpu.memory_space<vmem>>, vector<32x32xf32>
    %cst_47 = arith.constant dense<0.000000e+00> : vector<64x32xf32>
    %257 = tpu.matmul %255, %256, %cst_47 {dimension_numbers = #tpu.dot_dimension_numbers<[1], [0], [0], [1], [0, 0, 1, 1], [], []>} : vector<64x32xf32>, vector<32x32xf32>, vector<64x32xf32> -> vector<64x32xf32>
    %c0_48 = arith.constant 0 : index
    %c0_49 = arith.constant 0 : index
    %258 = vector.load %arg13[%c0_48, %c0_49] : memref<1x32xf32, #tpu.memory_space<vmem>>, vector<1x32xf32>
    %259 = vector.broadcast %258 : vector<1x32xf32> to vector<64x32xf32>
    %260 = arith.addf %257, %259 : vector<64x32xf32>
    %261 = vector.shape_cast %260 : vector<64x32xf32> to vector<8x8x32xf32>
    %262 = tpu.iota {dimensions = array<i32: 1>} : vector<8x8xi32>
    %263 = vector.extract_strided_slice %4 {offsets = [0, 0, 0], sizes = [8, 1, 32], strides = [1, 1, 1]} : vector<8x8x32xf32> to vector<8x1x32xf32>
    %264 = vector.shape_cast %263 : vector<8x1x32xf32> to vector<8x32xf32>
    %c0_i32 = arith.constant 0 : i32
    %265 = vector.broadcast %c0_i32 : i32 to vector<8x8xi32>
    %266 = arith.cmpi eq, %262, %265 : vector<8x8xi32>
    %267 = arith.extui %266 : vector<8x8xi1> to vector<8x8xi32>
    %268 = arith.sitofp %267 : vector<8x8xi32> to vector<8x8xf32>
    %c0_50 = arith.constant 0 : index
    %c0_51 = arith.constant 0 : index
    %269 = vector.load %arg7[%c0_50, %c0_51] : memref<32x128xf32, #tpu.memory_space<vmem>>, vector<32x128xf32>
    %c0_52 = arith.constant 0 : index
    %c0_53 = arith.constant 0 : index
    %270 = vector.load %arg8[%c0_52, %c0_53] : memref<32x128xf32, #tpu.memory_space<vmem>>, vector<32x128xf32>
    %c0_54 = arith.constant 0 : index
    %c0_55 = arith.constant 0 : index
    %271 = vector.load %arg9[%c0_54, %c0_55] : memref<1x128xf32, #tpu.memory_space<vmem>>, vector<1x128xf32>
    %c0_56 = arith.constant 0 : index
    %c0_57 = arith.constant 0 : index
    %272 = vector.load %arg10[%c0_56, %c0_57] : memref<32x32xf32, #tpu.memory_space<vmem>>, vector<32x32xf32>
    %c0_58 = arith.constant 0 : index
    %c0_59 = arith.constant 0 : index
    %273 = vector.load %arg11[%c0_58, %c0_59] : memref<1x32xf32, #tpu.memory_space<vmem>>, vector<1x32xf32>
    %c0_60 = arith.constant 0 : index
    %c0_61 = arith.constant 0 : index
    %274 = vector.load %arg14[%c0_60, %c0_61] : memref<1x32xf32, #tpu.memory_space<vmem>>, vector<1x32xf32>
    %c0_62 = arith.constant 0 : index
    %c0_63 = arith.constant 0 : index
    %c0_64 = arith.constant 0 : index
    %275 = vector.load %arg2[%c0_62, %c0_63, %c0_64] : memref<8x7x8xf32, #tpu.memory_space<vmem>>, vector<8x7x8xf32>
    %cst_65 = arith.constant dense<0.000000e+00> : vector<8x128xf32>
    %276 = tpu.matmul %264, %269, %cst_65 {dimension_numbers = #tpu.dot_dimension_numbers<[1], [0], [0], [1], [0, 0, 1, 1], [], []>} : vector<8x32xf32>, vector<32x128xf32>, vector<8x128xf32> -> vector<8x128xf32>
    %cst_66 = arith.constant dense<0.000000e+00> : vector<8x128xf32>
    %277 = tpu.matmul %245, %270, %cst_66 {dimension_numbers = #tpu.dot_dimension_numbers<[1], [0], [0], [1], [0, 0, 1, 1], [], []>} : vector<8x32xf32>, vector<32x128xf32>, vector<8x128xf32> -> vector<8x128xf32>
    %278 = arith.addf %276, %277 : vector<8x128xf32>
    %279 = vector.broadcast %271 : vector<1x128xf32> to vector<8x128xf32>
    %280 = arith.addf %278, %279 : vector<8x128xf32>
    %281 = vector.extract_strided_slice %280 {offsets = [0, 0], sizes = [8, 32], strides = [1, 1]} : vector<8x128xf32> to vector<8x32xf32>
    %282 = arith.negf %281 : vector<8x32xf32>
    %283 = math.exp %282 : vector<8x32xf32>
    %cst_67 = arith.constant 1.000000e+00 : f32
    %284 = vector.broadcast %cst_67 : f32 to vector<8x32xf32>
    %285 = arith.addf %284, %283 : vector<8x32xf32>
    %286 = arith.divf %284, %285 : vector<8x32xf32>
    %287 = vector.extract_strided_slice %280 {offsets = [0, 32], sizes = [8, 32], strides = [1, 1]} : vector<8x128xf32> to vector<8x32xf32>
    %288 = arith.negf %287 : vector<8x32xf32>
    %289 = math.exp %288 : vector<8x32xf32>
    %cst_68 = arith.constant 1.000000e+00 : f32
    %290 = vector.broadcast %cst_68 : f32 to vector<8x32xf32>
    %291 = arith.addf %290, %289 : vector<8x32xf32>
    %292 = arith.divf %290, %291 : vector<8x32xf32>
    %293 = vector.extract_strided_slice %280 {offsets = [0, 64], sizes = [8, 32], strides = [1, 1]} : vector<8x128xf32> to vector<8x32xf32>
    %294 = math.tanh %293 : vector<8x32xf32>
    %295 = vector.extract_strided_slice %280 {offsets = [0, 96], sizes = [8, 32], strides = [1, 1]} : vector<8x128xf32> to vector<8x32xf32>
    %296 = arith.negf %295 : vector<8x32xf32>
    %297 = math.exp %296 : vector<8x32xf32>
    %cst_69 = arith.constant 1.000000e+00 : f32
    %298 = vector.broadcast %cst_69 : f32 to vector<8x32xf32>
    %299 = arith.addf %298, %297 : vector<8x32xf32>
    %300 = arith.divf %298, %299 : vector<8x32xf32>
    %301 = arith.mulf %292, %243 : vector<8x32xf32>
    %302 = arith.mulf %286, %294 : vector<8x32xf32>
    %303 = arith.addf %301, %302 : vector<8x32xf32>
    %304 = math.tanh %303 : vector<8x32xf32>
    %305 = arith.mulf %300, %304 : vector<8x32xf32>
    %cst_70 = arith.constant dense<0.000000e+00> : vector<8x32xf32>
    %306 = tpu.matmul %305, %272, %cst_70 {dimension_numbers = #tpu.dot_dimension_numbers<[1], [0], [0], [1], [0, 0, 1, 1], [], []>} : vector<8x32xf32>, vector<32x32xf32>, vector<8x32xf32> -> vector<8x32xf32>
    %307 = vector.broadcast %273 : vector<1x32xf32> to vector<8x32xf32>
    %308 = arith.addf %306, %307 : vector<8x32xf32>
    %309 = vector.shape_cast %308 : vector<8x32xf32> to vector<8x1x32xf32>
    %310 = vector.broadcast %309 : vector<8x1x32xf32> to vector<8x8x32xf32>
    %311 = arith.addf %310, %261 : vector<8x8x32xf32>
    %312 = math.tanh %311 : vector<8x8x32xf32>
    %313 = vector.shape_cast %274 : vector<1x32xf32> to vector<1x1x32xf32>
    %314 = vector.broadcast %313 : vector<1x1x32xf32> to vector<8x8x32xf32>
    %315 = arith.mulf %312, %314 : vector<8x8x32xf32>
    %cst_71 = arith.constant dense<0.000000e+00> : vector<8x8xf32>
    %316 = vector.multi_reduction <add>, %315, %cst_71 [2] : vector<8x8x32xf32> to vector<8x8xf32>
    %317 = math.tanh %316 : vector<8x8xf32>
    %cst_72 = arith.constant 1.000000e+01 : f32
    %318 = vector.broadcast %cst_72 : f32 to vector<8x8xf32>
    %319 = arith.mulf %318, %317 : vector<8x8xf32>
    %cst_73 = arith.constant 5.000000e-01 : f32
    %320 = vector.broadcast %cst_73 : f32 to vector<8x8xf32>
    %321 = arith.cmpf ogt, %268, %320 : vector<8x8xf32>
    %cst_74 = arith.constant -1.000000e+05 : f32
    %322 = vector.broadcast %cst_74 : f32 to vector<8x8xf32>
    %323 = arith.select %321, %322, %319 : vector<8x8xi1>, vector<8x8xf32>
    %cst_75 = arith.constant dense<0xFF800000> : vector<8xf32>
    %324 = vector.multi_reduction <maximumf>, %323, %cst_75 [1] : vector<8x8xf32> to vector<8xf32>
    %325 = vector.shape_cast %324 : vector<8xf32> to vector<8x1xf32>
    %326 = vector.broadcast %325 : vector<8x1xf32> to vector<8x8xf32>
    %327 = arith.subf %323, %326 : vector<8x8xf32>
    %328 = math.exp %327 : vector<8x8xf32>
    %cst_76 = arith.constant dense<0.000000e+00> : vector<8xf32>
    %329 = vector.multi_reduction <add>, %328, %cst_76 [1] : vector<8x8xf32> to vector<8xf32>
    %330 = vector.shape_cast %329 : vector<8xf32> to vector<8x1xf32>
    %331 = math.log %330 : vector<8x1xf32>
    %332 = arith.addf %325, %331 : vector<8x1xf32>
    %333 = vector.broadcast %332 : vector<8x1xf32> to vector<8x8xf32>
    %334 = arith.subf %323, %333 : vector<8x8xf32>
    %335 = vector.extract_strided_slice %275 {offsets = [0, 0, 0], sizes = [8, 1, 8], strides = [1, 1, 1]} : vector<8x7x8xf32> to vector<8x1x8xf32>
    %336 = vector.shape_cast %335 : vector<8x1x8xf32> to vector<8x8xf32>
    %337 = arith.addf %323, %336 : vector<8x8xf32>
    %cst_77 = arith.constant dense<0xFF800000> : vector<8xf32>
    %338 = vector.multi_reduction <maximumf>, %337, %cst_77 [1] : vector<8x8xf32> to vector<8xf32>
    %339 = vector.shape_cast %338 : vector<8xf32> to vector<8x1xf32>
    %340 = vector.broadcast %339 : vector<8x1xf32> to vector<8x8xf32>
    %341 = arith.cmpf oge, %337, %340 : vector<8x8xf32>
    %c8_i32 = arith.constant 8 : i32
    %342 = vector.broadcast %c8_i32 : i32 to vector<8x8xi32>
    %343 = arith.select %341, %262, %342 : vector<8x8xi1>, vector<8x8xi32>
    %cst_78 = arith.constant dense<2147483647> : vector<8xi32>
    %344 = vector.multi_reduction <minsi>, %343, %cst_78 [1] : vector<8x8xi32> to vector<8xi32>
    %345 = vector.shape_cast %344 : vector<8xi32> to vector<8x1xi32>
    %346 = vector.broadcast %345 : vector<8x1xi32> to vector<8x8xi32>
    %347 = arith.cmpi eq, %262, %346 : vector<8x8xi32>
    %348 = arith.extui %347 : vector<8x8xi1> to vector<8x8xi32>
    %349 = arith.sitofp %348 : vector<8x8xi32> to vector<8x8xf32>
    %350 = arith.maximumf %268, %349 : vector<8x8xf32>
    %351 = vector.shape_cast %349 : vector<8x8xf32> to vector<8x8x1xf32>
    %352 = vector.broadcast %351 : vector<8x8x1xf32> to vector<8x8x2xf32>
    %353 = arith.mulf %352, %0 : vector<8x8x2xf32>
    %cst_79 = arith.constant dense<0.000000e+00> : vector<8x2xf32>
    %354 = vector.multi_reduction <add>, %353, %cst_79 [1] : vector<8x8x2xf32> to vector<8x2xf32>
    %cst_80 = arith.constant dense<0.000000e+00> : vector<8x32xf32>
    %355 = tpu.matmul %354, %1, %cst_80 {dimension_numbers = #tpu.dot_dimension_numbers<[1], [0], [0], [1], [0, 0, 1, 1], [], []>} : vector<8x2xf32>, vector<2x32xf32>, vector<8x32xf32> -> vector<8x32xf32>
    %356 = arith.mulf %334, %349 : vector<8x8xf32>
    %cst_81 = arith.constant dense<0.000000e+00> : vector<8xf32>
    %357 = vector.multi_reduction <add>, %356, %cst_81 [1] : vector<8x8xf32> to vector<8xf32>
    %358 = vector.shape_cast %357 : vector<8xf32> to vector<8x1xf32>
    %cst_82 = arith.constant dense<0.000000e+00> : vector<8x128xf32>
    %359 = tpu.matmul %355, %269, %cst_82 {dimension_numbers = #tpu.dot_dimension_numbers<[1], [0], [0], [1], [0, 0, 1, 1], [], []>} : vector<8x32xf32>, vector<32x128xf32>, vector<8x128xf32> -> vector<8x128xf32>
    %cst_83 = arith.constant dense<0.000000e+00> : vector<8x128xf32>
    %360 = tpu.matmul %305, %270, %cst_83 {dimension_numbers = #tpu.dot_dimension_numbers<[1], [0], [0], [1], [0, 0, 1, 1], [], []>} : vector<8x32xf32>, vector<32x128xf32>, vector<8x128xf32> -> vector<8x128xf32>
    %361 = arith.addf %359, %360 : vector<8x128xf32>
    %362 = vector.broadcast %271 : vector<1x128xf32> to vector<8x128xf32>
    %363 = arith.addf %361, %362 : vector<8x128xf32>
    %364 = vector.extract_strided_slice %363 {offsets = [0, 0], sizes = [8, 32], strides = [1, 1]} : vector<8x128xf32> to vector<8x32xf32>
    %365 = arith.negf %364 : vector<8x32xf32>
    %366 = math.exp %365 : vector<8x32xf32>
    %cst_84 = arith.constant 1.000000e+00 : f32
    %367 = vector.broadcast %cst_84 : f32 to vector<8x32xf32>
    %368 = arith.addf %367, %366 : vector<8x32xf32>
    %369 = arith.divf %367, %368 : vector<8x32xf32>
    %370 = vector.extract_strided_slice %363 {offsets = [0, 32], sizes = [8, 32], strides = [1, 1]} : vector<8x128xf32> to vector<8x32xf32>
    %371 = arith.negf %370 : vector<8x32xf32>
    %372 = math.exp %371 : vector<8x32xf32>
    %cst_85 = arith.constant 1.000000e+00 : f32
    %373 = vector.broadcast %cst_85 : f32 to vector<8x32xf32>
    %374 = arith.addf %373, %372 : vector<8x32xf32>
    %375 = arith.divf %373, %374 : vector<8x32xf32>
    %376 = vector.extract_strided_slice %363 {offsets = [0, 64], sizes = [8, 32], strides = [1, 1]} : vector<8x128xf32> to vector<8x32xf32>
    %377 = math.tanh %376 : vector<8x32xf32>
    %378 = vector.extract_strided_slice %363 {offsets = [0, 96], sizes = [8, 32], strides = [1, 1]} : vector<8x128xf32> to vector<8x32xf32>
    %379 = arith.negf %378 : vector<8x32xf32>
    %380 = math.exp %379 : vector<8x32xf32>
    %cst_86 = arith.constant 1.000000e+00 : f32
    %381 = vector.broadcast %cst_86 : f32 to vector<8x32xf32>
    %382 = arith.addf %381, %380 : vector<8x32xf32>
    %383 = arith.divf %381, %382 : vector<8x32xf32>
    %384 = arith.mulf %375, %303 : vector<8x32xf32>
    %385 = arith.mulf %369, %377 : vector<8x32xf32>
    %386 = arith.addf %384, %385 : vector<8x32xf32>
    %387 = math.tanh %386 : vector<8x32xf32>
    %388 = arith.mulf %383, %387 : vector<8x32xf32>
    %cst_87 = arith.constant dense<0.000000e+00> : vector<8x32xf32>
    %389 = tpu.matmul %388, %272, %cst_87 {dimension_numbers = #tpu.dot_dimension_numbers<[1], [0], [0], [1], [0, 0, 1, 1], [], []>} : vector<8x32xf32>, vector<32x32xf32>, vector<8x32xf32> -> vector<8x32xf32>
    %390 = vector.broadcast %273 : vector<1x32xf32> to vector<8x32xf32>
    %391 = arith.addf %389, %390 : vector<8x32xf32>
    %392 = vector.shape_cast %391 : vector<8x32xf32> to vector<8x1x32xf32>
    %393 = vector.broadcast %392 : vector<8x1x32xf32> to vector<8x8x32xf32>
    %394 = arith.addf %393, %261 : vector<8x8x32xf32>
    %395 = math.tanh %394 : vector<8x8x32xf32>
    %396 = vector.shape_cast %274 : vector<1x32xf32> to vector<1x1x32xf32>
    %397 = vector.broadcast %396 : vector<1x1x32xf32> to vector<8x8x32xf32>
    %398 = arith.mulf %395, %397 : vector<8x8x32xf32>
    %cst_88 = arith.constant dense<0.000000e+00> : vector<8x8xf32>
    %399 = vector.multi_reduction <add>, %398, %cst_88 [2] : vector<8x8x32xf32> to vector<8x8xf32>
    %400 = math.tanh %399 : vector<8x8xf32>
    %cst_89 = arith.constant 1.000000e+01 : f32
    %401 = vector.broadcast %cst_89 : f32 to vector<8x8xf32>
    %402 = arith.mulf %401, %400 : vector<8x8xf32>
    %cst_90 = arith.constant 5.000000e-01 : f32
    %403 = vector.broadcast %cst_90 : f32 to vector<8x8xf32>
    %404 = arith.cmpf ogt, %350, %403 : vector<8x8xf32>
    %cst_91 = arith.constant -1.000000e+05 : f32
    %405 = vector.broadcast %cst_91 : f32 to vector<8x8xf32>
    %406 = arith.select %404, %405, %402 : vector<8x8xi1>, vector<8x8xf32>
    %cst_92 = arith.constant dense<0xFF800000> : vector<8xf32>
    %407 = vector.multi_reduction <maximumf>, %406, %cst_92 [1] : vector<8x8xf32> to vector<8xf32>
    %408 = vector.shape_cast %407 : vector<8xf32> to vector<8x1xf32>
    %409 = vector.broadcast %408 : vector<8x1xf32> to vector<8x8xf32>
    %410 = arith.subf %406, %409 : vector<8x8xf32>
    %411 = math.exp %410 : vector<8x8xf32>
    %cst_93 = arith.constant dense<0.000000e+00> : vector<8xf32>
    %412 = vector.multi_reduction <add>, %411, %cst_93 [1] : vector<8x8xf32> to vector<8xf32>
    %413 = vector.shape_cast %412 : vector<8xf32> to vector<8x1xf32>
    %414 = math.log %413 : vector<8x1xf32>
    %415 = arith.addf %408, %414 : vector<8x1xf32>
    %416 = vector.broadcast %415 : vector<8x1xf32> to vector<8x8xf32>
    %417 = arith.subf %406, %416 : vector<8x8xf32>
    %418 = vector.extract_strided_slice %275 {offsets = [0, 1, 0], sizes = [8, 1, 8], strides = [1, 1, 1]} : vector<8x7x8xf32> to vector<8x1x8xf32>
    %419 = vector.shape_cast %418 : vector<8x1x8xf32> to vector<8x8xf32>
    %420 = arith.addf %406, %419 : vector<8x8xf32>
    %cst_94 = arith.constant dense<0xFF800000> : vector<8xf32>
    %421 = vector.multi_reduction <maximumf>, %420, %cst_94 [1] : vector<8x8xf32> to vector<8xf32>
    %422 = vector.shape_cast %421 : vector<8xf32> to vector<8x1xf32>
    %423 = vector.broadcast %422 : vector<8x1xf32> to vector<8x8xf32>
    %424 = arith.cmpf oge, %420, %423 : vector<8x8xf32>
    %c8_i32_95 = arith.constant 8 : i32
    %425 = vector.broadcast %c8_i32_95 : i32 to vector<8x8xi32>
    %426 = arith.select %424, %262, %425 : vector<8x8xi1>, vector<8x8xi32>
    %cst_96 = arith.constant dense<2147483647> : vector<8xi32>
    %427 = vector.multi_reduction <minsi>, %426, %cst_96 [1] : vector<8x8xi32> to vector<8xi32>
    %428 = vector.shape_cast %427 : vector<8xi32> to vector<8x1xi32>
    %429 = vector.broadcast %428 : vector<8x1xi32> to vector<8x8xi32>
    %430 = arith.cmpi eq, %262, %429 : vector<8x8xi32>
    %431 = arith.extui %430 : vector<8x8xi1> to vector<8x8xi32>
    %432 = arith.sitofp %431 : vector<8x8xi32> to vector<8x8xf32>
    %433 = arith.maximumf %350, %432 : vector<8x8xf32>
    %434 = vector.shape_cast %432 : vector<8x8xf32> to vector<8x8x1xf32>
    %435 = vector.broadcast %434 : vector<8x8x1xf32> to vector<8x8x2xf32>
    %436 = arith.mulf %435, %0 : vector<8x8x2xf32>
    %cst_97 = arith.constant dense<0.000000e+00> : vector<8x2xf32>
    %437 = vector.multi_reduction <add>, %436, %cst_97 [1] : vector<8x8x2xf32> to vector<8x2xf32>
    %cst_98 = arith.constant dense<0.000000e+00> : vector<8x32xf32>
    %438 = tpu.matmul %437, %1, %cst_98 {dimension_numbers = #tpu.dot_dimension_numbers<[1], [0], [0], [1], [0, 0, 1, 1], [], []>} : vector<8x2xf32>, vector<2x32xf32>, vector<8x32xf32> -> vector<8x32xf32>
    %439 = arith.mulf %417, %432 : vector<8x8xf32>
    %cst_99 = arith.constant dense<0.000000e+00> : vector<8xf32>
    %440 = vector.multi_reduction <add>, %439, %cst_99 [1] : vector<8x8xf32> to vector<8xf32>
    %441 = vector.shape_cast %440 : vector<8xf32> to vector<8x1xf32>
    %cst_100 = arith.constant dense<0.000000e+00> : vector<8x128xf32>
    %442 = tpu.matmul %438, %269, %cst_100 {dimension_numbers = #tpu.dot_dimension_numbers<[1], [0], [0], [1], [0, 0, 1, 1], [], []>} : vector<8x32xf32>, vector<32x128xf32>, vector<8x128xf32> -> vector<8x128xf32>
    %cst_101 = arith.constant dense<0.000000e+00> : vector<8x128xf32>
    %443 = tpu.matmul %388, %270, %cst_101 {dimension_numbers = #tpu.dot_dimension_numbers<[1], [0], [0], [1], [0, 0, 1, 1], [], []>} : vector<8x32xf32>, vector<32x128xf32>, vector<8x128xf32> -> vector<8x128xf32>
    %444 = arith.addf %442, %443 : vector<8x128xf32>
    %445 = vector.broadcast %271 : vector<1x128xf32> to vector<8x128xf32>
    %446 = arith.addf %444, %445 : vector<8x128xf32>
    %447 = vector.extract_strided_slice %446 {offsets = [0, 0], sizes = [8, 32], strides = [1, 1]} : vector<8x128xf32> to vector<8x32xf32>
    %448 = arith.negf %447 : vector<8x32xf32>
    %449 = math.exp %448 : vector<8x32xf32>
    %cst_102 = arith.constant 1.000000e+00 : f32
    %450 = vector.broadcast %cst_102 : f32 to vector<8x32xf32>
    %451 = arith.addf %450, %449 : vector<8x32xf32>
    %452 = arith.divf %450, %451 : vector<8x32xf32>
    %453 = vector.extract_strided_slice %446 {offsets = [0, 32], sizes = [8, 32], strides = [1, 1]} : vector<8x128xf32> to vector<8x32xf32>
    %454 = arith.negf %453 : vector<8x32xf32>
    %455 = math.exp %454 : vector<8x32xf32>
    %cst_103 = arith.constant 1.000000e+00 : f32
    %456 = vector.broadcast %cst_103 : f32 to vector<8x32xf32>
    %457 = arith.addf %456, %455 : vector<8x32xf32>
    %458 = arith.divf %456, %457 : vector<8x32xf32>
    %459 = vector.extract_strided_slice %446 {offsets = [0, 64], sizes = [8, 32], strides = [1, 1]} : vector<8x128xf32> to vector<8x32xf32>
    %460 = math.tanh %459 : vector<8x32xf32>
    %461 = vector.extract_strided_slice %446 {offsets = [0, 96], sizes = [8, 32], strides = [1, 1]} : vector<8x128xf32> to vector<8x32xf32>
    %462 = arith.negf %461 : vector<8x32xf32>
    %463 = math.exp %462 : vector<8x32xf32>
    %cst_104 = arith.constant 1.000000e+00 : f32
    %464 = vector.broadcast %cst_104 : f32 to vector<8x32xf32>
    %465 = arith.addf %464, %463 : vector<8x32xf32>
    %466 = arith.divf %464, %465 : vector<8x32xf32>
    %467 = arith.mulf %458, %386 : vector<8x32xf32>
    %468 = arith.mulf %452, %460 : vector<8x32xf32>
    %469 = arith.addf %467, %468 : vector<8x32xf32>
    %470 = math.tanh %469 : vector<8x32xf32>
    %471 = arith.mulf %466, %470 : vector<8x32xf32>
    %cst_105 = arith.constant dense<0.000000e+00> : vector<8x32xf32>
    %472 = tpu.matmul %471, %272, %cst_105 {dimension_numbers = #tpu.dot_dimension_numbers<[1], [0], [0], [1], [0, 0, 1, 1], [], []>} : vector<8x32xf32>, vector<32x32xf32>, vector<8x32xf32> -> vector<8x32xf32>
    %473 = vector.broadcast %273 : vector<1x32xf32> to vector<8x32xf32>
    %474 = arith.addf %472, %473 : vector<8x32xf32>
    %475 = vector.shape_cast %474 : vector<8x32xf32> to vector<8x1x32xf32>
    %476 = vector.broadcast %475 : vector<8x1x32xf32> to vector<8x8x32xf32>
    %477 = arith.addf %476, %261 : vector<8x8x32xf32>
    %478 = math.tanh %477 : vector<8x8x32xf32>
    %479 = vector.shape_cast %274 : vector<1x32xf32> to vector<1x1x32xf32>
    %480 = vector.broadcast %479 : vector<1x1x32xf32> to vector<8x8x32xf32>
    %481 = arith.mulf %478, %480 : vector<8x8x32xf32>
    %cst_106 = arith.constant dense<0.000000e+00> : vector<8x8xf32>
    %482 = vector.multi_reduction <add>, %481, %cst_106 [2] : vector<8x8x32xf32> to vector<8x8xf32>
    %483 = math.tanh %482 : vector<8x8xf32>
    %cst_107 = arith.constant 1.000000e+01 : f32
    %484 = vector.broadcast %cst_107 : f32 to vector<8x8xf32>
    %485 = arith.mulf %484, %483 : vector<8x8xf32>
    %cst_108 = arith.constant 5.000000e-01 : f32
    %486 = vector.broadcast %cst_108 : f32 to vector<8x8xf32>
    %487 = arith.cmpf ogt, %433, %486 : vector<8x8xf32>
    %cst_109 = arith.constant -1.000000e+05 : f32
    %488 = vector.broadcast %cst_109 : f32 to vector<8x8xf32>
    %489 = arith.select %487, %488, %485 : vector<8x8xi1>, vector<8x8xf32>
    %cst_110 = arith.constant dense<0xFF800000> : vector<8xf32>
    %490 = vector.multi_reduction <maximumf>, %489, %cst_110 [1] : vector<8x8xf32> to vector<8xf32>
    %491 = vector.shape_cast %490 : vector<8xf32> to vector<8x1xf32>
    %492 = vector.broadcast %491 : vector<8x1xf32> to vector<8x8xf32>
    %493 = arith.subf %489, %492 : vector<8x8xf32>
    %494 = math.exp %493 : vector<8x8xf32>
    %cst_111 = arith.constant dense<0.000000e+00> : vector<8xf32>
    %495 = vector.multi_reduction <add>, %494, %cst_111 [1] : vector<8x8xf32> to vector<8xf32>
    %496 = vector.shape_cast %495 : vector<8xf32> to vector<8x1xf32>
    %497 = math.log %496 : vector<8x1xf32>
    %498 = arith.addf %491, %497 : vector<8x1xf32>
    %499 = vector.broadcast %498 : vector<8x1xf32> to vector<8x8xf32>
    %500 = arith.subf %489, %499 : vector<8x8xf32>
    %501 = vector.extract_strided_slice %275 {offsets = [0, 2, 0], sizes = [8, 1, 8], strides = [1, 1, 1]} : vector<8x7x8xf32> to vector<8x1x8xf32>
    %502 = vector.shape_cast %501 : vector<8x1x8xf32> to vector<8x8xf32>
    %503 = arith.addf %489, %502 : vector<8x8xf32>
    %cst_112 = arith.constant dense<0xFF800000> : vector<8xf32>
    %504 = vector.multi_reduction <maximumf>, %503, %cst_112 [1] : vector<8x8xf32> to vector<8xf32>
    %505 = vector.shape_cast %504 : vector<8xf32> to vector<8x1xf32>
    %506 = vector.broadcast %505 : vector<8x1xf32> to vector<8x8xf32>
    %507 = arith.cmpf oge, %503, %506 : vector<8x8xf32>
    %c8_i32_113 = arith.constant 8 : i32
    %508 = vector.broadcast %c8_i32_113 : i32 to vector<8x8xi32>
    %509 = arith.select %507, %262, %508 : vector<8x8xi1>, vector<8x8xi32>
    %cst_114 = arith.constant dense<2147483647> : vector<8xi32>
    %510 = vector.multi_reduction <minsi>, %509, %cst_114 [1] : vector<8x8xi32> to vector<8xi32>
    %511 = vector.shape_cast %510 : vector<8xi32> to vector<8x1xi32>
    %512 = vector.broadcast %511 : vector<8x1xi32> to vector<8x8xi32>
    %513 = arith.cmpi eq, %262, %512 : vector<8x8xi32>
    %514 = arith.extui %513 : vector<8x8xi1> to vector<8x8xi32>
    %515 = arith.sitofp %514 : vector<8x8xi32> to vector<8x8xf32>
    %516 = arith.maximumf %433, %515 : vector<8x8xf32>
    %517 = vector.shape_cast %515 : vector<8x8xf32> to vector<8x8x1xf32>
    %518 = vector.broadcast %517 : vector<8x8x1xf32> to vector<8x8x2xf32>
    %519 = arith.mulf %518, %0 : vector<8x8x2xf32>
    %cst_115 = arith.constant dense<0.000000e+00> : vector<8x2xf32>
    %520 = vector.multi_reduction <add>, %519, %cst_115 [1] : vector<8x8x2xf32> to vector<8x2xf32>
    %cst_116 = arith.constant dense<0.000000e+00> : vector<8x32xf32>
    %521 = tpu.matmul %520, %1, %cst_116 {dimension_numbers = #tpu.dot_dimension_numbers<[1], [0], [0], [1], [0, 0, 1, 1], [], []>} : vector<8x2xf32>, vector<2x32xf32>, vector<8x32xf32> -> vector<8x32xf32>
    %522 = arith.mulf %500, %515 : vector<8x8xf32>
    %cst_117 = arith.constant dense<0.000000e+00> : vector<8xf32>
    %523 = vector.multi_reduction <add>, %522, %cst_117 [1] : vector<8x8xf32> to vector<8xf32>
    %524 = vector.shape_cast %523 : vector<8xf32> to vector<8x1xf32>
    %cst_118 = arith.constant dense<0.000000e+00> : vector<8x128xf32>
    %525 = tpu.matmul %521, %269, %cst_118 {dimension_numbers = #tpu.dot_dimension_numbers<[1], [0], [0], [1], [0, 0, 1, 1], [], []>} : vector<8x32xf32>, vector<32x128xf32>, vector<8x128xf32> -> vector<8x128xf32>
    %cst_119 = arith.constant dense<0.000000e+00> : vector<8x128xf32>
    %526 = tpu.matmul %471, %270, %cst_119 {dimension_numbers = #tpu.dot_dimension_numbers<[1], [0], [0], [1], [0, 0, 1, 1], [], []>} : vector<8x32xf32>, vector<32x128xf32>, vector<8x128xf32> -> vector<8x128xf32>
    %527 = arith.addf %525, %526 : vector<8x128xf32>
    %528 = vector.broadcast %271 : vector<1x128xf32> to vector<8x128xf32>
    %529 = arith.addf %527, %528 : vector<8x128xf32>
    %530 = vector.extract_strided_slice %529 {offsets = [0, 0], sizes = [8, 32], strides = [1, 1]} : vector<8x128xf32> to vector<8x32xf32>
    %531 = arith.negf %530 : vector<8x32xf32>
    %532 = math.exp %531 : vector<8x32xf32>
    %cst_120 = arith.constant 1.000000e+00 : f32
    %533 = vector.broadcast %cst_120 : f32 to vector<8x32xf32>
    %534 = arith.addf %533, %532 : vector<8x32xf32>
    %535 = arith.divf %533, %534 : vector<8x32xf32>
    %536 = vector.extract_strided_slice %529 {offsets = [0, 32], sizes = [8, 32], strides = [1, 1]} : vector<8x128xf32> to vector<8x32xf32>
    %537 = arith.negf %536 : vector<8x32xf32>
    %538 = math.exp %537 : vector<8x32xf32>
    %cst_121 = arith.constant 1.000000e+00 : f32
    %539 = vector.broadcast %cst_121 : f32 to vector<8x32xf32>
    %540 = arith.addf %539, %538 : vector<8x32xf32>
    %541 = arith.divf %539, %540 : vector<8x32xf32>
    %542 = vector.extract_strided_slice %529 {offsets = [0, 64], sizes = [8, 32], strides = [1, 1]} : vector<8x128xf32> to vector<8x32xf32>
    %543 = math.tanh %542 : vector<8x32xf32>
    %544 = vector.extract_strided_slice %529 {offsets = [0, 96], sizes = [8, 32], strides = [1, 1]} : vector<8x128xf32> to vector<8x32xf32>
    %545 = arith.negf %544 : vector<8x32xf32>
    %546 = math.exp %545 : vector<8x32xf32>
    %cst_122 = arith.constant 1.000000e+00 : f32
    %547 = vector.broadcast %cst_122 : f32 to vector<8x32xf32>
    %548 = arith.addf %547, %546 : vector<8x32xf32>
    %549 = arith.divf %547, %548 : vector<8x32xf32>
    %550 = arith.mulf %541, %469 : vector<8x32xf32>
    %551 = arith.mulf %535, %543 : vector<8x32xf32>
    %552 = arith.addf %550, %551 : vector<8x32xf32>
    %553 = math.tanh %552 : vector<8x32xf32>
    %554 = arith.mulf %549, %553 : vector<8x32xf32>
    %cst_123 = arith.constant dense<0.000000e+00> : vector<8x32xf32>
    %555 = tpu.matmul %554, %272, %cst_123 {dimension_numbers = #tpu.dot_dimension_numbers<[1], [0], [0], [1], [0, 0, 1, 1], [], []>} : vector<8x32xf32>, vector<32x32xf32>, vector<8x32xf32> -> vector<8x32xf32>
    %556 = vector.broadcast %273 : vector<1x32xf32> to vector<8x32xf32>
    %557 = arith.addf %555, %556 : vector<8x32xf32>
    %558 = vector.shape_cast %557 : vector<8x32xf32> to vector<8x1x32xf32>
    %559 = vector.broadcast %558 : vector<8x1x32xf32> to vector<8x8x32xf32>
    %560 = arith.addf %559, %261 : vector<8x8x32xf32>
    %561 = math.tanh %560 : vector<8x8x32xf32>
    %562 = vector.shape_cast %274 : vector<1x32xf32> to vector<1x1x32xf32>
    %563 = vector.broadcast %562 : vector<1x1x32xf32> to vector<8x8x32xf32>
    %564 = arith.mulf %561, %563 : vector<8x8x32xf32>
    %cst_124 = arith.constant dense<0.000000e+00> : vector<8x8xf32>
    %565 = vector.multi_reduction <add>, %564, %cst_124 [2] : vector<8x8x32xf32> to vector<8x8xf32>
    %566 = math.tanh %565 : vector<8x8xf32>
    %cst_125 = arith.constant 1.000000e+01 : f32
    %567 = vector.broadcast %cst_125 : f32 to vector<8x8xf32>
    %568 = arith.mulf %567, %566 : vector<8x8xf32>
    %cst_126 = arith.constant 5.000000e-01 : f32
    %569 = vector.broadcast %cst_126 : f32 to vector<8x8xf32>
    %570 = arith.cmpf ogt, %516, %569 : vector<8x8xf32>
    %cst_127 = arith.constant -1.000000e+05 : f32
    %571 = vector.broadcast %cst_127 : f32 to vector<8x8xf32>
    %572 = arith.select %570, %571, %568 : vector<8x8xi1>, vector<8x8xf32>
    %cst_128 = arith.constant dense<0xFF800000> : vector<8xf32>
    %573 = vector.multi_reduction <maximumf>, %572, %cst_128 [1] : vector<8x8xf32> to vector<8xf32>
    %574 = vector.shape_cast %573 : vector<8xf32> to vector<8x1xf32>
    %575 = vector.broadcast %574 : vector<8x1xf32> to vector<8x8xf32>
    %576 = arith.subf %572, %575 : vector<8x8xf32>
    %577 = math.exp %576 : vector<8x8xf32>
    %cst_129 = arith.constant dense<0.000000e+00> : vector<8xf32>
    %578 = vector.multi_reduction <add>, %577, %cst_129 [1] : vector<8x8xf32> to vector<8xf32>
    %579 = vector.shape_cast %578 : vector<8xf32> to vector<8x1xf32>
    %580 = math.log %579 : vector<8x1xf32>
    %581 = arith.addf %574, %580 : vector<8x1xf32>
    %582 = vector.broadcast %581 : vector<8x1xf32> to vector<8x8xf32>
    %583 = arith.subf %572, %582 : vector<8x8xf32>
    %584 = vector.extract_strided_slice %275 {offsets = [0, 3, 0], sizes = [8, 1, 8], strides = [1, 1, 1]} : vector<8x7x8xf32> to vector<8x1x8xf32>
    %585 = vector.shape_cast %584 : vector<8x1x8xf32> to vector<8x8xf32>
    %586 = arith.addf %572, %585 : vector<8x8xf32>
    %cst_130 = arith.constant dense<0xFF800000> : vector<8xf32>
    %587 = vector.multi_reduction <maximumf>, %586, %cst_130 [1] : vector<8x8xf32> to vector<8xf32>
    %588 = vector.shape_cast %587 : vector<8xf32> to vector<8x1xf32>
    %589 = vector.broadcast %588 : vector<8x1xf32> to vector<8x8xf32>
    %590 = arith.cmpf oge, %586, %589 : vector<8x8xf32>
    %c8_i32_131 = arith.constant 8 : i32
    %591 = vector.broadcast %c8_i32_131 : i32 to vector<8x8xi32>
    %592 = arith.select %590, %262, %591 : vector<8x8xi1>, vector<8x8xi32>
    %cst_132 = arith.constant dense<2147483647> : vector<8xi32>
    %593 = vector.multi_reduction <minsi>, %592, %cst_132 [1] : vector<8x8xi32> to vector<8xi32>
    %594 = vector.shape_cast %593 : vector<8xi32> to vector<8x1xi32>
    %595 = vector.broadcast %594 : vector<8x1xi32> to vector<8x8xi32>
    %596 = arith.cmpi eq, %262, %595 : vector<8x8xi32>
    %597 = arith.extui %596 : vector<8x8xi1> to vector<8x8xi32>
    %598 = arith.sitofp %597 : vector<8x8xi32> to vector<8x8xf32>
    %599 = arith.maximumf %516, %598 : vector<8x8xf32>
    %600 = vector.shape_cast %598 : vector<8x8xf32> to vector<8x8x1xf32>
    %601 = vector.broadcast %600 : vector<8x8x1xf32> to vector<8x8x2xf32>
    %602 = arith.mulf %601, %0 : vector<8x8x2xf32>
    %cst_133 = arith.constant dense<0.000000e+00> : vector<8x2xf32>
    %603 = vector.multi_reduction <add>, %602, %cst_133 [1] : vector<8x8x2xf32> to vector<8x2xf32>
    %cst_134 = arith.constant dense<0.000000e+00> : vector<8x32xf32>
    %604 = tpu.matmul %603, %1, %cst_134 {dimension_numbers = #tpu.dot_dimension_numbers<[1], [0], [0], [1], [0, 0, 1, 1], [], []>} : vector<8x2xf32>, vector<2x32xf32>, vector<8x32xf32> -> vector<8x32xf32>
    %605 = arith.mulf %583, %598 : vector<8x8xf32>
    %cst_135 = arith.constant dense<0.000000e+00> : vector<8xf32>
    %606 = vector.multi_reduction <add>, %605, %cst_135 [1] : vector<8x8xf32> to vector<8xf32>
    %607 = vector.shape_cast %606 : vector<8xf32> to vector<8x1xf32>
    %cst_136 = arith.constant dense<0.000000e+00> : vector<8x128xf32>
    %608 = tpu.matmul %604, %269, %cst_136 {dimension_numbers = #tpu.dot_dimension_numbers<[1], [0], [0], [1], [0, 0, 1, 1], [], []>} : vector<8x32xf32>, vector<32x128xf32>, vector<8x128xf32> -> vector<8x128xf32>
    %cst_137 = arith.constant dense<0.000000e+00> : vector<8x128xf32>
    %609 = tpu.matmul %554, %270, %cst_137 {dimension_numbers = #tpu.dot_dimension_numbers<[1], [0], [0], [1], [0, 0, 1, 1], [], []>} : vector<8x32xf32>, vector<32x128xf32>, vector<8x128xf32> -> vector<8x128xf32>
    %610 = arith.addf %608, %609 : vector<8x128xf32>
    %611 = vector.broadcast %271 : vector<1x128xf32> to vector<8x128xf32>
    %612 = arith.addf %610, %611 : vector<8x128xf32>
    %613 = vector.extract_strided_slice %612 {offsets = [0, 0], sizes = [8, 32], strides = [1, 1]} : vector<8x128xf32> to vector<8x32xf32>
    %614 = arith.negf %613 : vector<8x32xf32>
    %615 = math.exp %614 : vector<8x32xf32>
    %cst_138 = arith.constant 1.000000e+00 : f32
    %616 = vector.broadcast %cst_138 : f32 to vector<8x32xf32>
    %617 = arith.addf %616, %615 : vector<8x32xf32>
    %618 = arith.divf %616, %617 : vector<8x32xf32>
    %619 = vector.extract_strided_slice %612 {offsets = [0, 32], sizes = [8, 32], strides = [1, 1]} : vector<8x128xf32> to vector<8x32xf32>
    %620 = arith.negf %619 : vector<8x32xf32>
    %621 = math.exp %620 : vector<8x32xf32>
    %cst_139 = arith.constant 1.000000e+00 : f32
    %622 = vector.broadcast %cst_139 : f32 to vector<8x32xf32>
    %623 = arith.addf %622, %621 : vector<8x32xf32>
    %624 = arith.divf %622, %623 : vector<8x32xf32>
    %625 = vector.extract_strided_slice %612 {offsets = [0, 64], sizes = [8, 32], strides = [1, 1]} : vector<8x128xf32> to vector<8x32xf32>
    %626 = math.tanh %625 : vector<8x32xf32>
    %627 = vector.extract_strided_slice %612 {offsets = [0, 96], sizes = [8, 32], strides = [1, 1]} : vector<8x128xf32> to vector<8x32xf32>
    %628 = arith.negf %627 : vector<8x32xf32>
    %629 = math.exp %628 : vector<8x32xf32>
    %cst_140 = arith.constant 1.000000e+00 : f32
    %630 = vector.broadcast %cst_140 : f32 to vector<8x32xf32>
    %631 = arith.addf %630, %629 : vector<8x32xf32>
    %632 = arith.divf %630, %631 : vector<8x32xf32>
    %633 = arith.mulf %624, %552 : vector<8x32xf32>
    %634 = arith.mulf %618, %626 : vector<8x32xf32>
    %635 = arith.addf %633, %634 : vector<8x32xf32>
    %636 = math.tanh %635 : vector<8x32xf32>
    %637 = arith.mulf %632, %636 : vector<8x32xf32>
    %cst_141 = arith.constant dense<0.000000e+00> : vector<8x32xf32>
    %638 = tpu.matmul %637, %272, %cst_141 {dimension_numbers = #tpu.dot_dimension_numbers<[1], [0], [0], [1], [0, 0, 1, 1], [], []>} : vector<8x32xf32>, vector<32x32xf32>, vector<8x32xf32> -> vector<8x32xf32>
    %639 = vector.broadcast %273 : vector<1x32xf32> to vector<8x32xf32>
    %640 = arith.addf %638, %639 : vector<8x32xf32>
    %641 = vector.shape_cast %640 : vector<8x32xf32> to vector<8x1x32xf32>
    %642 = vector.broadcast %641 : vector<8x1x32xf32> to vector<8x8x32xf32>
    %643 = arith.addf %642, %261 : vector<8x8x32xf32>
    %644 = math.tanh %643 : vector<8x8x32xf32>
    %645 = vector.shape_cast %274 : vector<1x32xf32> to vector<1x1x32xf32>
    %646 = vector.broadcast %645 : vector<1x1x32xf32> to vector<8x8x32xf32>
    %647 = arith.mulf %644, %646 : vector<8x8x32xf32>
    %cst_142 = arith.constant dense<0.000000e+00> : vector<8x8xf32>
    %648 = vector.multi_reduction <add>, %647, %cst_142 [2] : vector<8x8x32xf32> to vector<8x8xf32>
    %649 = math.tanh %648 : vector<8x8xf32>
    %cst_143 = arith.constant 1.000000e+01 : f32
    %650 = vector.broadcast %cst_143 : f32 to vector<8x8xf32>
    %651 = arith.mulf %650, %649 : vector<8x8xf32>
    %cst_144 = arith.constant 5.000000e-01 : f32
    %652 = vector.broadcast %cst_144 : f32 to vector<8x8xf32>
    %653 = arith.cmpf ogt, %599, %652 : vector<8x8xf32>
    %cst_145 = arith.constant -1.000000e+05 : f32
    %654 = vector.broadcast %cst_145 : f32 to vector<8x8xf32>
    %655 = arith.select %653, %654, %651 : vector<8x8xi1>, vector<8x8xf32>
    %cst_146 = arith.constant dense<0xFF800000> : vector<8xf32>
    %656 = vector.multi_reduction <maximumf>, %655, %cst_146 [1] : vector<8x8xf32> to vector<8xf32>
    %657 = vector.shape_cast %656 : vector<8xf32> to vector<8x1xf32>
    %658 = vector.broadcast %657 : vector<8x1xf32> to vector<8x8xf32>
    %659 = arith.subf %655, %658 : vector<8x8xf32>
    %660 = math.exp %659 : vector<8x8xf32>
    %cst_147 = arith.constant dense<0.000000e+00> : vector<8xf32>
    %661 = vector.multi_reduction <add>, %660, %cst_147 [1] : vector<8x8xf32> to vector<8xf32>
    %662 = vector.shape_cast %661 : vector<8xf32> to vector<8x1xf32>
    %663 = math.log %662 : vector<8x1xf32>
    %664 = arith.addf %657, %663 : vector<8x1xf32>
    %665 = vector.broadcast %664 : vector<8x1xf32> to vector<8x8xf32>
    %666 = arith.subf %655, %665 : vector<8x8xf32>
    %667 = vector.extract_strided_slice %275 {offsets = [0, 4, 0], sizes = [8, 1, 8], strides = [1, 1, 1]} : vector<8x7x8xf32> to vector<8x1x8xf32>
    %668 = vector.shape_cast %667 : vector<8x1x8xf32> to vector<8x8xf32>
    %669 = arith.addf %655, %668 : vector<8x8xf32>
    %cst_148 = arith.constant dense<0xFF800000> : vector<8xf32>
    %670 = vector.multi_reduction <maximumf>, %669, %cst_148 [1] : vector<8x8xf32> to vector<8xf32>
    %671 = vector.shape_cast %670 : vector<8xf32> to vector<8x1xf32>
    %672 = vector.broadcast %671 : vector<8x1xf32> to vector<8x8xf32>
    %673 = arith.cmpf oge, %669, %672 : vector<8x8xf32>
    %c8_i32_149 = arith.constant 8 : i32
    %674 = vector.broadcast %c8_i32_149 : i32 to vector<8x8xi32>
    %675 = arith.select %673, %262, %674 : vector<8x8xi1>, vector<8x8xi32>
    %cst_150 = arith.constant dense<2147483647> : vector<8xi32>
    %676 = vector.multi_reduction <minsi>, %675, %cst_150 [1] : vector<8x8xi32> to vector<8xi32>
    %677 = vector.shape_cast %676 : vector<8xi32> to vector<8x1xi32>
    %678 = vector.broadcast %677 : vector<8x1xi32> to vector<8x8xi32>
    %679 = arith.cmpi eq, %262, %678 : vector<8x8xi32>
    %680 = arith.extui %679 : vector<8x8xi1> to vector<8x8xi32>
    %681 = arith.sitofp %680 : vector<8x8xi32> to vector<8x8xf32>
    %682 = arith.maximumf %599, %681 : vector<8x8xf32>
    %683 = vector.shape_cast %681 : vector<8x8xf32> to vector<8x8x1xf32>
    %684 = vector.broadcast %683 : vector<8x8x1xf32> to vector<8x8x2xf32>
    %685 = arith.mulf %684, %0 : vector<8x8x2xf32>
    %cst_151 = arith.constant dense<0.000000e+00> : vector<8x2xf32>
    %686 = vector.multi_reduction <add>, %685, %cst_151 [1] : vector<8x8x2xf32> to vector<8x2xf32>
    %cst_152 = arith.constant dense<0.000000e+00> : vector<8x32xf32>
    %687 = tpu.matmul %686, %1, %cst_152 {dimension_numbers = #tpu.dot_dimension_numbers<[1], [0], [0], [1], [0, 0, 1, 1], [], []>} : vector<8x2xf32>, vector<2x32xf32>, vector<8x32xf32> -> vector<8x32xf32>
    %688 = arith.mulf %666, %681 : vector<8x8xf32>
    %cst_153 = arith.constant dense<0.000000e+00> : vector<8xf32>
    %689 = vector.multi_reduction <add>, %688, %cst_153 [1] : vector<8x8xf32> to vector<8xf32>
    %690 = vector.shape_cast %689 : vector<8xf32> to vector<8x1xf32>
    %cst_154 = arith.constant dense<0.000000e+00> : vector<8x128xf32>
    %691 = tpu.matmul %687, %269, %cst_154 {dimension_numbers = #tpu.dot_dimension_numbers<[1], [0], [0], [1], [0, 0, 1, 1], [], []>} : vector<8x32xf32>, vector<32x128xf32>, vector<8x128xf32> -> vector<8x128xf32>
    %cst_155 = arith.constant dense<0.000000e+00> : vector<8x128xf32>
    %692 = tpu.matmul %637, %270, %cst_155 {dimension_numbers = #tpu.dot_dimension_numbers<[1], [0], [0], [1], [0, 0, 1, 1], [], []>} : vector<8x32xf32>, vector<32x128xf32>, vector<8x128xf32> -> vector<8x128xf32>
    %693 = arith.addf %691, %692 : vector<8x128xf32>
    %694 = vector.broadcast %271 : vector<1x128xf32> to vector<8x128xf32>
    %695 = arith.addf %693, %694 : vector<8x128xf32>
    %696 = vector.extract_strided_slice %695 {offsets = [0, 0], sizes = [8, 32], strides = [1, 1]} : vector<8x128xf32> to vector<8x32xf32>
    %697 = arith.negf %696 : vector<8x32xf32>
    %698 = math.exp %697 : vector<8x32xf32>
    %cst_156 = arith.constant 1.000000e+00 : f32
    %699 = vector.broadcast %cst_156 : f32 to vector<8x32xf32>
    %700 = arith.addf %699, %698 : vector<8x32xf32>
    %701 = arith.divf %699, %700 : vector<8x32xf32>
    %702 = vector.extract_strided_slice %695 {offsets = [0, 32], sizes = [8, 32], strides = [1, 1]} : vector<8x128xf32> to vector<8x32xf32>
    %703 = arith.negf %702 : vector<8x32xf32>
    %704 = math.exp %703 : vector<8x32xf32>
    %cst_157 = arith.constant 1.000000e+00 : f32
    %705 = vector.broadcast %cst_157 : f32 to vector<8x32xf32>
    %706 = arith.addf %705, %704 : vector<8x32xf32>
    %707 = arith.divf %705, %706 : vector<8x32xf32>
    %708 = vector.extract_strided_slice %695 {offsets = [0, 64], sizes = [8, 32], strides = [1, 1]} : vector<8x128xf32> to vector<8x32xf32>
    %709 = math.tanh %708 : vector<8x32xf32>
    %710 = vector.extract_strided_slice %695 {offsets = [0, 96], sizes = [8, 32], strides = [1, 1]} : vector<8x128xf32> to vector<8x32xf32>
    %711 = arith.negf %710 : vector<8x32xf32>
    %712 = math.exp %711 : vector<8x32xf32>
    %cst_158 = arith.constant 1.000000e+00 : f32
    %713 = vector.broadcast %cst_158 : f32 to vector<8x32xf32>
    %714 = arith.addf %713, %712 : vector<8x32xf32>
    %715 = arith.divf %713, %714 : vector<8x32xf32>
    %716 = arith.mulf %707, %635 : vector<8x32xf32>
    %717 = arith.mulf %701, %709 : vector<8x32xf32>
    %718 = arith.addf %716, %717 : vector<8x32xf32>
    %719 = math.tanh %718 : vector<8x32xf32>
    %720 = arith.mulf %715, %719 : vector<8x32xf32>
    %cst_159 = arith.constant dense<0.000000e+00> : vector<8x32xf32>
    %721 = tpu.matmul %720, %272, %cst_159 {dimension_numbers = #tpu.dot_dimension_numbers<[1], [0], [0], [1], [0, 0, 1, 1], [], []>} : vector<8x32xf32>, vector<32x32xf32>, vector<8x32xf32> -> vector<8x32xf32>
    %722 = vector.broadcast %273 : vector<1x32xf32> to vector<8x32xf32>
    %723 = arith.addf %721, %722 : vector<8x32xf32>
    %724 = vector.shape_cast %723 : vector<8x32xf32> to vector<8x1x32xf32>
    %725 = vector.broadcast %724 : vector<8x1x32xf32> to vector<8x8x32xf32>
    %726 = arith.addf %725, %261 : vector<8x8x32xf32>
    %727 = math.tanh %726 : vector<8x8x32xf32>
    %728 = vector.shape_cast %274 : vector<1x32xf32> to vector<1x1x32xf32>
    %729 = vector.broadcast %728 : vector<1x1x32xf32> to vector<8x8x32xf32>
    %730 = arith.mulf %727, %729 : vector<8x8x32xf32>
    %cst_160 = arith.constant dense<0.000000e+00> : vector<8x8xf32>
    %731 = vector.multi_reduction <add>, %730, %cst_160 [2] : vector<8x8x32xf32> to vector<8x8xf32>
    %732 = math.tanh %731 : vector<8x8xf32>
    %cst_161 = arith.constant 1.000000e+01 : f32
    %733 = vector.broadcast %cst_161 : f32 to vector<8x8xf32>
    %734 = arith.mulf %733, %732 : vector<8x8xf32>
    %cst_162 = arith.constant 5.000000e-01 : f32
    %735 = vector.broadcast %cst_162 : f32 to vector<8x8xf32>
    %736 = arith.cmpf ogt, %682, %735 : vector<8x8xf32>
    %cst_163 = arith.constant -1.000000e+05 : f32
    %737 = vector.broadcast %cst_163 : f32 to vector<8x8xf32>
    %738 = arith.select %736, %737, %734 : vector<8x8xi1>, vector<8x8xf32>
    %cst_164 = arith.constant dense<0xFF800000> : vector<8xf32>
    %739 = vector.multi_reduction <maximumf>, %738, %cst_164 [1] : vector<8x8xf32> to vector<8xf32>
    %740 = vector.shape_cast %739 : vector<8xf32> to vector<8x1xf32>
    %741 = vector.broadcast %740 : vector<8x1xf32> to vector<8x8xf32>
    %742 = arith.subf %738, %741 : vector<8x8xf32>
    %743 = math.exp %742 : vector<8x8xf32>
    %cst_165 = arith.constant dense<0.000000e+00> : vector<8xf32>
    %744 = vector.multi_reduction <add>, %743, %cst_165 [1] : vector<8x8xf32> to vector<8xf32>
    %745 = vector.shape_cast %744 : vector<8xf32> to vector<8x1xf32>
    %746 = math.log %745 : vector<8x1xf32>
    %747 = arith.addf %740, %746 : vector<8x1xf32>
    %748 = vector.broadcast %747 : vector<8x1xf32> to vector<8x8xf32>
    %749 = arith.subf %738, %748 : vector<8x8xf32>
    %750 = vector.extract_strided_slice %275 {offsets = [0, 5, 0], sizes = [8, 1, 8], strides = [1, 1, 1]} : vector<8x7x8xf32> to vector<8x1x8xf32>
    %751 = vector.shape_cast %750 : vector<8x1x8xf32> to vector<8x8xf32>
    %752 = arith.addf %738, %751 : vector<8x8xf32>
    %cst_166 = arith.constant dense<0xFF800000> : vector<8xf32>
    %753 = vector.multi_reduction <maximumf>, %752, %cst_166 [1] : vector<8x8xf32> to vector<8xf32>
    %754 = vector.shape_cast %753 : vector<8xf32> to vector<8x1xf32>
    %755 = vector.broadcast %754 : vector<8x1xf32> to vector<8x8xf32>
    %756 = arith.cmpf oge, %752, %755 : vector<8x8xf32>
    %c8_i32_167 = arith.constant 8 : i32
    %757 = vector.broadcast %c8_i32_167 : i32 to vector<8x8xi32>
    %758 = arith.select %756, %262, %757 : vector<8x8xi1>, vector<8x8xi32>
    %cst_168 = arith.constant dense<2147483647> : vector<8xi32>
    %759 = vector.multi_reduction <minsi>, %758, %cst_168 [1] : vector<8x8xi32> to vector<8xi32>
    %760 = vector.shape_cast %759 : vector<8xi32> to vector<8x1xi32>
    %761 = vector.broadcast %760 : vector<8x1xi32> to vector<8x8xi32>
    %762 = arith.cmpi eq, %262, %761 : vector<8x8xi32>
    %763 = arith.extui %762 : vector<8x8xi1> to vector<8x8xi32>
    %764 = arith.sitofp %763 : vector<8x8xi32> to vector<8x8xf32>
    %765 = arith.maximumf %682, %764 : vector<8x8xf32>
    %766 = vector.shape_cast %764 : vector<8x8xf32> to vector<8x8x1xf32>
    %767 = vector.broadcast %766 : vector<8x8x1xf32> to vector<8x8x2xf32>
    %768 = arith.mulf %767, %0 : vector<8x8x2xf32>
    %cst_169 = arith.constant dense<0.000000e+00> : vector<8x2xf32>
    %769 = vector.multi_reduction <add>, %768, %cst_169 [1] : vector<8x8x2xf32> to vector<8x2xf32>
    %cst_170 = arith.constant dense<0.000000e+00> : vector<8x32xf32>
    %770 = tpu.matmul %769, %1, %cst_170 {dimension_numbers = #tpu.dot_dimension_numbers<[1], [0], [0], [1], [0, 0, 1, 1], [], []>} : vector<8x2xf32>, vector<2x32xf32>, vector<8x32xf32> -> vector<8x32xf32>
    %771 = arith.mulf %749, %764 : vector<8x8xf32>
    %cst_171 = arith.constant dense<0.000000e+00> : vector<8xf32>
    %772 = vector.multi_reduction <add>, %771, %cst_171 [1] : vector<8x8xf32> to vector<8xf32>
    %773 = vector.shape_cast %772 : vector<8xf32> to vector<8x1xf32>
    %cst_172 = arith.constant dense<0.000000e+00> : vector<8x128xf32>
    %774 = tpu.matmul %770, %269, %cst_172 {dimension_numbers = #tpu.dot_dimension_numbers<[1], [0], [0], [1], [0, 0, 1, 1], [], []>} : vector<8x32xf32>, vector<32x128xf32>, vector<8x128xf32> -> vector<8x128xf32>
    %cst_173 = arith.constant dense<0.000000e+00> : vector<8x128xf32>
    %775 = tpu.matmul %720, %270, %cst_173 {dimension_numbers = #tpu.dot_dimension_numbers<[1], [0], [0], [1], [0, 0, 1, 1], [], []>} : vector<8x32xf32>, vector<32x128xf32>, vector<8x128xf32> -> vector<8x128xf32>
    %776 = arith.addf %774, %775 : vector<8x128xf32>
    %777 = vector.broadcast %271 : vector<1x128xf32> to vector<8x128xf32>
    %778 = arith.addf %776, %777 : vector<8x128xf32>
    %779 = vector.extract_strided_slice %778 {offsets = [0, 0], sizes = [8, 32], strides = [1, 1]} : vector<8x128xf32> to vector<8x32xf32>
    %780 = arith.negf %779 : vector<8x32xf32>
    %781 = math.exp %780 : vector<8x32xf32>
    %cst_174 = arith.constant 1.000000e+00 : f32
    %782 = vector.broadcast %cst_174 : f32 to vector<8x32xf32>
    %783 = arith.addf %782, %781 : vector<8x32xf32>
    %784 = arith.divf %782, %783 : vector<8x32xf32>
    %785 = vector.extract_strided_slice %778 {offsets = [0, 32], sizes = [8, 32], strides = [1, 1]} : vector<8x128xf32> to vector<8x32xf32>
    %786 = arith.negf %785 : vector<8x32xf32>
    %787 = math.exp %786 : vector<8x32xf32>
    %cst_175 = arith.constant 1.000000e+00 : f32
    %788 = vector.broadcast %cst_175 : f32 to vector<8x32xf32>
    %789 = arith.addf %788, %787 : vector<8x32xf32>
    %790 = arith.divf %788, %789 : vector<8x32xf32>
    %791 = vector.extract_strided_slice %778 {offsets = [0, 64], sizes = [8, 32], strides = [1, 1]} : vector<8x128xf32> to vector<8x32xf32>
    %792 = math.tanh %791 : vector<8x32xf32>
    %793 = vector.extract_strided_slice %778 {offsets = [0, 96], sizes = [8, 32], strides = [1, 1]} : vector<8x128xf32> to vector<8x32xf32>
    %794 = arith.negf %793 : vector<8x32xf32>
    %795 = math.exp %794 : vector<8x32xf32>
    %cst_176 = arith.constant 1.000000e+00 : f32
    %796 = vector.broadcast %cst_176 : f32 to vector<8x32xf32>
    %797 = arith.addf %796, %795 : vector<8x32xf32>
    %798 = arith.divf %796, %797 : vector<8x32xf32>
    %799 = arith.mulf %790, %718 : vector<8x32xf32>
    %800 = arith.mulf %784, %792 : vector<8x32xf32>
    %801 = arith.addf %799, %800 : vector<8x32xf32>
    %802 = math.tanh %801 : vector<8x32xf32>
    %803 = arith.mulf %798, %802 : vector<8x32xf32>
    %cst_177 = arith.constant dense<0.000000e+00> : vector<8x32xf32>
    %804 = tpu.matmul %803, %272, %cst_177 {dimension_numbers = #tpu.dot_dimension_numbers<[1], [0], [0], [1], [0, 0, 1, 1], [], []>} : vector<8x32xf32>, vector<32x32xf32>, vector<8x32xf32> -> vector<8x32xf32>
    %805 = vector.broadcast %273 : vector<1x32xf32> to vector<8x32xf32>
    %806 = arith.addf %804, %805 : vector<8x32xf32>
    %807 = vector.shape_cast %806 : vector<8x32xf32> to vector<8x1x32xf32>
    %808 = vector.broadcast %807 : vector<8x1x32xf32> to vector<8x8x32xf32>
    %809 = arith.addf %808, %261 : vector<8x8x32xf32>
    %810 = math.tanh %809 : vector<8x8x32xf32>
    %811 = vector.shape_cast %274 : vector<1x32xf32> to vector<1x1x32xf32>
    %812 = vector.broadcast %811 : vector<1x1x32xf32> to vector<8x8x32xf32>
    %813 = arith.mulf %810, %812 : vector<8x8x32xf32>
    %cst_178 = arith.constant dense<0.000000e+00> : vector<8x8xf32>
    %814 = vector.multi_reduction <add>, %813, %cst_178 [2] : vector<8x8x32xf32> to vector<8x8xf32>
    %815 = math.tanh %814 : vector<8x8xf32>
    %cst_179 = arith.constant 1.000000e+01 : f32
    %816 = vector.broadcast %cst_179 : f32 to vector<8x8xf32>
    %817 = arith.mulf %816, %815 : vector<8x8xf32>
    %cst_180 = arith.constant 5.000000e-01 : f32
    %818 = vector.broadcast %cst_180 : f32 to vector<8x8xf32>
    %819 = arith.cmpf ogt, %765, %818 : vector<8x8xf32>
    %cst_181 = arith.constant -1.000000e+05 : f32
    %820 = vector.broadcast %cst_181 : f32 to vector<8x8xf32>
    %821 = arith.select %819, %820, %817 : vector<8x8xi1>, vector<8x8xf32>
    %cst_182 = arith.constant dense<0xFF800000> : vector<8xf32>
    %822 = vector.multi_reduction <maximumf>, %821, %cst_182 [1] : vector<8x8xf32> to vector<8xf32>
    %823 = vector.shape_cast %822 : vector<8xf32> to vector<8x1xf32>
    %824 = vector.broadcast %823 : vector<8x1xf32> to vector<8x8xf32>
    %825 = arith.subf %821, %824 : vector<8x8xf32>
    %826 = math.exp %825 : vector<8x8xf32>
    %cst_183 = arith.constant dense<0.000000e+00> : vector<8xf32>
    %827 = vector.multi_reduction <add>, %826, %cst_183 [1] : vector<8x8xf32> to vector<8xf32>
    %828 = vector.shape_cast %827 : vector<8xf32> to vector<8x1xf32>
    %829 = math.log %828 : vector<8x1xf32>
    %830 = arith.addf %823, %829 : vector<8x1xf32>
    %831 = vector.broadcast %830 : vector<8x1xf32> to vector<8x8xf32>
    %832 = arith.subf %821, %831 : vector<8x8xf32>
    %833 = vector.extract_strided_slice %275 {offsets = [0, 6, 0], sizes = [8, 1, 8], strides = [1, 1, 1]} : vector<8x7x8xf32> to vector<8x1x8xf32>
    %834 = vector.shape_cast %833 : vector<8x1x8xf32> to vector<8x8xf32>
    %835 = arith.addf %821, %834 : vector<8x8xf32>
    %cst_184 = arith.constant dense<0xFF800000> : vector<8xf32>
    %836 = vector.multi_reduction <maximumf>, %835, %cst_184 [1] : vector<8x8xf32> to vector<8xf32>
    %837 = vector.shape_cast %836 : vector<8xf32> to vector<8x1xf32>
    %838 = vector.broadcast %837 : vector<8x1xf32> to vector<8x8xf32>
    %839 = arith.cmpf oge, %835, %838 : vector<8x8xf32>
    %c8_i32_185 = arith.constant 8 : i32
    %840 = vector.broadcast %c8_i32_185 : i32 to vector<8x8xi32>
    %841 = arith.select %839, %262, %840 : vector<8x8xi1>, vector<8x8xi32>
    %cst_186 = arith.constant dense<2147483647> : vector<8xi32>
    %842 = vector.multi_reduction <minsi>, %841, %cst_186 [1] : vector<8x8xi32> to vector<8xi32>
    %843 = vector.shape_cast %842 : vector<8xi32> to vector<8x1xi32>
    %844 = vector.broadcast %843 : vector<8x1xi32> to vector<8x8xi32>
    %845 = arith.cmpi eq, %262, %844 : vector<8x8xi32>
    %846 = arith.extui %845 : vector<8x8xi1> to vector<8x8xi32>
    %847 = arith.sitofp %846 : vector<8x8xi32> to vector<8x8xf32>
    %848 = arith.mulf %832, %847 : vector<8x8xf32>
    %cst_187 = arith.constant dense<0.000000e+00> : vector<8xf32>
    %849 = vector.multi_reduction <add>, %848, %cst_187 [1] : vector<8x8xf32> to vector<8xf32>
    %850 = vector.shape_cast %849 : vector<8xf32> to vector<8x1xf32>
    %851 = tpu.concatenate %358, %441, %524, %607, %690, %773, %850 in 1 : vector<8x1xf32>, vector<8x1xf32>, vector<8x1xf32>, vector<8x1xf32>, vector<8x1xf32>, vector<8x1xf32>, vector<8x1xf32> -> vector<8x7xf32>
    %c0_188 = arith.constant 0 : index
    %c0_189 = arith.constant 0 : index
    %852 = vector.load %arg16[%c0_188, %c0_189] : memref<8x7xf32, #tpu.memory_space<vmem>>, vector<8x7xf32>
    tpu.vector_store %arg16[%c0_188, %c0_189], %851 {strides = array<i32>} : memref<8x7xf32, #tpu.memory_space<vmem>>, vector<8x7xf32>,
    %853 = tpu.concatenate %345, %428, %511, %594, %677, %760, %843 in 1 : vector<8x1xi32>, vector<8x1xi32>, vector<8x1xi32>, vector<8x1xi32>, vector<8x1xi32>, vector<8x1xi32>, vector<8x1xi32> -> vector<8x7xi32>
    %c0_190 = arith.constant 0 : index
    %c0_191 = arith.constant 0 : index
    %854 = vector.load %arg17[%c0_190, %c0_191] : memref<8x7xi32, #tpu.memory_space<vmem>>, vector<8x7xi32>
    tpu.vector_store %arg17[%c0_190, %c0_191], %853 {strides = array<i32>} : memref<8x7xi32, #tpu.memory_space<vmem>>, vector<8x7xi32>,
    return
  }
  func.func @transform_0(%arg0: i32) -> (i32, i32, i32) {
    %c0_i32 = arith.constant 0 : i32
    %c0_i32_0 = arith.constant 0 : i32
    %c0_i32_1 = arith.constant 0 : i32
    return %arg0, %c0_i32, %c0_i32_0 : i32, i32, i32
  }
  func.func @transform_1(%arg0: i32) -> (i32, i32, i32) {
    %c0_i32 = arith.constant 0 : i32
    %c0_i32_0 = arith.constant 0 : i32
    %c0_i32_1 = arith.constant 0 : i32
    return %arg0, %c0_i32, %c0_i32_0 : i32, i32, i32
  }
  func.func @transform_2(%arg0: i32) -> (i32, i32) {
    %c0_i32 = arith.constant 0 : i32
    %c0_i32_0 = arith.constant 0 : i32
    %c0_i32_1 = arith.constant 0 : i32
    return %c0_i32, %c0_i32_0 : i32, i32
  }
  func.func @transform_3(%arg0: i32) -> (i32, i32) {
    %c0_i32 = arith.constant 0 : i32
    %c0_i32_0 = arith.constant 0 : i32
    %c0_i32_1 = arith.constant 0 : i32
    return %c0_i32, %c0_i32_0 : i32, i32
  }
  func.func @transform_4(%arg0: i32) -> (i32, i32) {
    %c0_i32 = arith.constant 0 : i32
    %c0_i32_0 = arith.constant 0 : i32
    %c0_i32_1 = arith.constant 0 : i32
    return %c0_i32, %c0_i32_0 : i32, i32
  }
  func.func @transform_5(%arg0: i32) -> (i32, i32) {
    %c0_i32 = arith.constant 0 : i32
    %c0_i32_0 = arith.constant 0 : i32
    %c0_i32_1 = arith.constant 0 : i32
    return %c0_i32, %c0_i32_0 : i32, i32
  }
  func.func @transform_6(%arg0: i32) -> (i32, i32) {
    %c0_i32 = arith.constant 0 : i32
    %c0_i32_0 = arith.constant 0 : i32
    %c0_i32_1 = arith.constant 0 : i32
    return %c0_i32, %c0_i32_0 : i32, i32
  }
  func.func @transform_7(%arg0: i32) -> (i32, i32) {
    %c0_i32 = arith.constant 0 : i32
    %c0_i32_0 = arith.constant 0 : i32
    %c0_i32_1 = arith.constant 0 : i32
    return %c0_i32, %c0_i32_0 : i32, i32
  }
  func.func @transform_8(%arg0: i32) -> (i32, i32) {
    %c0_i32 = arith.constant 0 : i32
    %c0_i32_0 = arith.constant 0 : i32
    %c0_i32_1 = arith.constant 0 : i32
    return %c0_i32, %c0_i32_0 : i32, i32
  }
  func.func @transform_9(%arg0: i32) -> (i32, i32) {
    %c0_i32 = arith.constant 0 : i32
    %c0_i32_0 = arith.constant 0 : i32
    %c0_i32_1 = arith.constant 0 : i32
    return %c0_i32, %c0_i32_0 : i32, i32
  }
  func.func @transform_10(%arg0: i32) -> (i32, i32) {
    %c0_i32 = arith.constant 0 : i32
    %c0_i32_0 = arith.constant 0 : i32
    %c0_i32_1 = arith.constant 0 : i32
    return %c0_i32, %c0_i32_0 : i32, i32
  }
  func.func @transform_11(%arg0: i32) -> (i32, i32) {
    %c0_i32 = arith.constant 0 : i32
    %c0_i32_0 = arith.constant 0 : i32
    %c0_i32_1 = arith.constant 0 : i32
    return %c0_i32, %c0_i32_0 : i32, i32
  }
  func.func @transform_12(%arg0: i32) -> (i32, i32) {
    %c0_i32 = arith.constant 0 : i32
    %c0_i32_0 = arith.constant 0 : i32
    %c0_i32_1 = arith.constant 0 : i32
    return %c0_i32, %c0_i32_0 : i32, i32
  }
  func.func @transform_13(%arg0: i32) -> (i32, i32) {
    %c0_i32 = arith.constant 0 : i32
    %c0_i32_0 = arith.constant 0 : i32
    %c0_i32_1 = arith.constant 0 : i32
    return %c0_i32, %c0_i32_0 : i32, i32
  }
  func.func @transform_14(%arg0: i32) -> (i32, i32) {
    %c0_i32 = arith.constant 0 : i32
    %c0_i32_0 = arith.constant 0 : i32
    %c0_i32_1 = arith.constant 0 : i32
    return %c0_i32, %c0_i32_0 : i32, i32
  }
  func.func @transform_15(%arg0: i32) -> (i32, i32) {
    %c0_i32 = arith.constant 0 : i32
    %c0_i32_0 = arith.constant 0 : i32
    return %arg0, %c0_i32 : i32, i32
  }
  func.func @transform_16(%arg0: i32) -> (i32, i32) {
    %c0_i32 = arith.constant 0 : i32
    %c0_i32_0 = arith.constant 0 : i32
    return %arg0, %c0_i32 : i32, i32
  }
}

</mosaic_0001>

<llo_original>
// kernel: lstm_tsp_forward.1
$region0: #{lstm_tsp_forward.1}
  #allocation0 [shape = 'u32[]', space=smem, size = 0x4, offset = 0x4, fixed_abs, tag = 'smem constant byte address 0x4 - core index']
  #allocation1 [shape = 'u32[144,128]{1,0:T(1,128)}', space=vmem, size = 0x12000, scoped, tag = 'internal scratch']
  %s0 = inlined_call_operand.vmem [shape: f32[8,8,2], index: 0, kind: input, shape index: {}]
  %s1 = inlined_call_operand.vmem [shape: f32[8,7,8], index: 1, kind: input, shape index: {}]
  %s2 = inlined_call_operand.vmem [shape: f32[2,32], index: 2, kind: input, shape index: {}]
  %s3 = inlined_call_operand.vmem [shape: f32[32,128], index: 3, kind: input, shape index: {}]
  %s4 = inlined_call_operand.vmem [shape: f32[32,128], index: 4, kind: input, shape index: {}]
  %s5 = inlined_call_operand.vmem [shape: f32[1,128], index: 5, kind: input, shape index: {}]
  %s6 = inlined_call_operand.vmem [shape: f32[32,128], index: 6, kind: input, shape index: {}]
  %s7 = inlined_call_operand.vmem [shape: f32[32,128], index: 7, kind: input, shape index: {}]
  %s8 = inlined_call_operand.vmem [shape: f32[1,128], index: 8, kind: input, shape index: {}]
  %s9 = inlined_call_operand.vmem [shape: f32[32,32], index: 9, kind: input, shape index: {}]
  %s10 = inlined_call_operand.vmem [shape: f32[1,32], index: 10, kind: input, shape index: {}]
  %s11 = inlined_call_operand.vmem [shape: f32[32,32], index: 11, kind: input, shape index: {}]
  %s12 = inlined_call_operand.vmem [shape: f32[1,32], index: 12, kind: input, shape index: {}]
  %s13 = inlined_call_operand.vmem [shape: f32[1,32], index: 13, kind: input, shape index: {}]
  %s14 = inlined_call_operand.vmem [shape: f32[1,32], index: 14, kind: input, shape index: {}]
  %s15 = inlined_call_operand.vmem [shape: f32[8,7], index: 15, kind: output, shape index: {0}]
  %s16 = inlined_call_operand.vmem [shape: s32[8,7], index: 16, kind: output, shape index: {1}]
  %17 = xla_tuple %s15, %s16
  %s18 = sld [smem:[#allocation0]]
  $region78: #{lstm_tsp_forward.1} parent=0
    _
  %s20 = ssub.s32 1, %s18
  %s21 = scalar_select 0, %s20, %s18
  // Predicated region
  $region2: #{lstm_tsp_forward.1} parent=0 // pred_check
    _
  $region3: #{lstm_tsp_forward.1} parent=0 // pred_check_branch
    %23 = sbr.rel (0) target = $region5
  $region4: #{lstm_tsp_forward.1} parent=0 // pred_region
    _
  $region5: #{lstm_tsp_forward.1} parent=0 // pred_fallthru
    _
  // Predicated region
  $region6: #{lstm_tsp_forward.1} parent=0 // pred_check
    _
  $region7: #{lstm_tsp_forward.1} parent=0 // pred_check_branch
    %25 = sbr.rel (0) target = $region9
  $region8: #{lstm_tsp_forward.1} parent=0 // pred_region
    _
  $region9: #{lstm_tsp_forward.1} parent=0 // pred_fallthru
    _
  // Predicated region
  $region10: #{lstm_tsp_forward.1} parent=0 // pred_check
    _
  $region11: #{lstm_tsp_forward.1} parent=0 // pred_check_branch
    %27 = sbr.rel (0) target = $region13
  $region12: #{lstm_tsp_forward.1} parent=0 // pred_region
    _
  $region13: #{lstm_tsp_forward.1} parent=0 // pred_fallthru
    _
  // Predicated region
  $region14: #{lstm_tsp_forward.1} parent=0 // pred_check
    _
  $region15: #{lstm_tsp_forward.1} parent=0 // pred_check_branch
    %29 = sbr.rel (0) target = $region17
  $region16: #{lstm_tsp_forward.1} parent=0 // pred_region
    _
  $region17: #{lstm_tsp_forward.1} parent=0 // pred_fallthru
    _
  // Predicated region
  $region18: #{lstm_tsp_forward.1} parent=0 // pred_check
    _
  $region19: #{lstm_tsp_forward.1} parent=0 // pred_check_branch
    %31 = sbr.rel (0) target = $region21
  $region20: #{lstm_tsp_forward.1} parent=0 // pred_region
    _
  $region21: #{lstm_tsp_forward.1} parent=0 // pred_fallthru
    _
  // Predicated region
  $region22: #{lstm_tsp_forward.1} parent=0 // pred_check
    _
  $region23: #{lstm_tsp_forward.1} parent=0 // pred_check_branch
    %33 = sbr.rel (0) target = $region25
  $region24: #{lstm_tsp_forward.1} parent=0 // pred_region
    _
  $region25: #{lstm_tsp_forward.1} parent=0 // pred_fallthru
    _
  // Predicated region
  $region26: #{lstm_tsp_forward.1} parent=0 // pred_check
    _
  $region27: #{lstm_tsp_forward.1} parent=0 // pred_check_branch
    %35 = sbr.rel (0) target = $region29
  $region28: #{lstm_tsp_forward.1} parent=0 // pred_region
    _
  $region29: #{lstm_tsp_forward.1} parent=0 // pred_fallthru
    _
  // Predicated region
  $region30: #{lstm_tsp_forward.1} parent=0 // pred_check
    _
  $region31: #{lstm_tsp_forward.1} parent=0 // pred_check_branch
    %37 = sbr.rel (0) target = $region33
  $region32: #{lstm_tsp_forward.1} parent=0 // pred_region
    _
  $region33: #{lstm_tsp_forward.1} parent=0 // pred_fallthru
    _
  // Predicated region
  $region34: #{lstm_tsp_forward.1} parent=0 // pred_check
    _
  $region35: #{lstm_tsp_forward.1} parent=0 // pred_check_branch
    %39 = sbr.rel (0) target = $region37
  $region36: #{lstm_tsp_forward.1} parent=0 // pred_region
    _
  $region37: #{lstm_tsp_forward.1} parent=0 // pred_fallthru
    _
  // Predicated region
  $region38: #{lstm_tsp_forward.1} parent=0 // pred_check
    _
  $region39: #{lstm_tsp_forward.1} parent=0 // pred_check_branch
    %41 = sbr.rel (0) target = $region41
  $region40: #{lstm_tsp_forward.1} parent=0 // pred_region
    _
  $region41: #{lstm_tsp_forward.1} parent=0 // pred_fallthru
    _
  // Predicated region
  $region42: #{lstm_tsp_forward.1} parent=0 // pred_check
    _
  $region43: #{lstm_tsp_forward.1} parent=0 // pred_check_branch
    %43 = sbr.rel (0) target = $region45
  $region44: #{lstm_tsp_forward.1} parent=0 // pred_region
    _
  $region45: #{lstm_tsp_forward.1} parent=0 // pred_fallthru
    _
  // Predicated region
  $region46: #{lstm_tsp_forward.1} parent=0 // pred_check
    _
  $region47: #{lstm_tsp_forward.1} parent=0 // pred_check_branch
    %45 = sbr.rel (0) target = $region49
  $region48: #{lstm_tsp_forward.1} parent=0 // pred_region
    _
  $region49: #{lstm_tsp_forward.1} parent=0 // pred_fallthru
    _
  // Predicated region
  $region50: #{lstm_tsp_forward.1} parent=0 // pred_check
    _
  $region51: #{lstm_tsp_forward.1} parent=0 // pred_check_branch
    %47 = sbr.rel (0) target = $region53
  $region52: #{lstm_tsp_forward.1} parent=0 // pred_region
    _
  $region53: #{lstm_tsp_forward.1} parent=0 // pred_fallthru
    _
  // Predicated region
  $region54: #{lstm_tsp_forward.1} parent=0 // pred_check
    _
  $region55: #{lstm_tsp_forward.1} parent=0 // pred_check_branch
    %49 = sbr.rel (0) target = $region57
  $region56: #{lstm_tsp_forward.1} parent=0 // pred_region
    _
  $region57: #{lstm_tsp_forward.1} parent=0 // pred_fallthru
    _
  // Predicated region
  $region58: #{lstm_tsp_forward.1} parent=0 // pred_check
    _
  $region59: #{lstm_tsp_forward.1} parent=0 // pred_check_branch
    %51 = sbr.rel (0) target = $region61
  $region60: #{lstm_tsp_forward.1} parent=0 // pred_region
    _
  $region61: #{lstm_tsp_forward.1} parent=0 // pred_fallthru
    _
  %v52 = vld [vmem:[%s0] sm:$0xff]
  %v53 = vld [vmem:[%s0 + $0x8] sm:$0xff]
  %v54 = vld [vmem:[%s0 + $0x10] sm:$0xff]
  %v55 = vld [vmem:[%s0 + $0x18] sm:$0xff]
  %v56 = vld [vmem:[%s0 + $0x20] sm:$0xff]
  %v57 = vld [vmem:[%s0 + $0x28] sm:$0xff]
  %v58 = vld [vmem:[%s0 + $0x30] sm:$0xff]
  %v59 = vld [vmem:[%s0 + $0x38] sm:$0xff]
  %v60 = vld [vmem:[%s2] sm:$0x3]
  %vm61 = vcmask 15360
  %v63 = vsel %vm61, %v52, 0
  %v66 = vsel %vm61, %v53, 0
  %v69 = vsel %vm61, %v54, 0
  %v72 = vsel %vm61, %v55, 0
  %v75 = vsel %vm61, %v56, 0
  %v78 = vsel %vm61, %v57, 0
  %v81 = vsel %vm61, %v58, 0
  %v84 = vsel %vm61, %v59, 0
  %vm86 = vcmask 1041408
  %v88 = vsel %vm86, %v60, 0
  %90 = vmatprep.subr.mxu0 0.0
  %91 = vmatpush1.msra.mxu0 0.0
  %92 = vmatprep.subr.mxu0 0.0
  %93 = vmatpush1.msra.mxu0 0.0
  %94 = vmatprep.subr.mxu0 0.0
  %95 = vmatpush1.msra.mxu0 0.0
  %96 = vmatprep.subr.mxu0 0.0
  %97 = vmatpush1.msra.mxu0 0.0
  %98 = vmatprep.subr.mxu0 0.0
  %99 = vmatpush1.msra.mxu0 0.0
  %100 = vmatprep.subr.mxu0 0.0
  %101 = vmatpush1.msra.mxu0 0.0
  %102 = vmatprep.subr.mxu0 0.0
  %103 = vmatpush1.msra.mxu0 0.0
  %104 = vmatprep.subr.mxu0 0.0
  %105 = vmatpush1.msra.mxu0 0.0
  %106 = vmatprep.subr.mxu0 0.0
  %107 = vmatpush1.msra.mxu0 0.0
  %108 = vmatprep.subr.mxu0 0.0
  %109 = vmatpush1.msra.mxu0 0.0
  %110 = vmatprep.subr.mxu0 0.0
  %111 = vmatpush1.msra.mxu0 0.0
  %112 = vmatprep.subr.mxu0 0.0
  %113 = vmatpush1.msra.mxu0 0.0
  %114 = vmatprep.subr.mxu0 0.0
  %115 = vmatpush1.msra.mxu0 0.0
  %116 = vmatprep.subr.mxu0 0.0
  %117 = vmatpush1.msra.mxu0 0.0
  %118 = vmatprep.subr.mxu0 0.0
  %119 = vmatpush1.msra.mxu0 0.0
  %120 = vmatprep.subr.mxu0 0.0
  %121 = vmatpush1.msra.mxu0 %v88
  %122 = vmatprep.subr.mxu0 0.0
  %123 = vmatpush2.msra.mxu0 0.0
  %124 = vmatprep.subr.mxu0 0.0
  %125 = vmatpush2.msra.mxu0 0.0
  %126 = vmatprep.subr.mxu0 0.0
  %127 = vmatpush2.msra.mxu0 0.0
  %128 = vmatprep.subr.mxu0 0.0
  %129 = vmatpush2.msra.mxu0 0.0
  %130 = vmatprep.subr.mxu0 0.0
  %131 = vmatpush2.msra.mxu0 0.0
  %132 = vmatprep.subr.mxu0 0.0
  %133 = vmatpush2.msra.mxu0 0.0
  %134 = vmatprep.subr.mxu0 0.0
  %135 = vmatpush2.msra.mxu0 0.0
  %136 = vmatprep.subr.mxu0 0.0
  %137 = vmatpush2.msra.mxu0 0.0
  %138 = vmatprep.subr.mxu0 0.0
  %139 = vmatpush2.msra.mxu0 0.0
  %140 = vmatprep.subr.mxu0 0.0
  %141 = vmatpush2.msra.mxu0 0.0
  %142 = vmatprep.subr.mxu0 0.0
  %143 = vmatpush2.msra.mxu0 0.0
  %144 = vmatprep.subr.mxu0 0.0
  %145 = vmatpush2.msra.mxu0 0.0
  %146 = vmatprep.subr.mxu0 0.0
  %147 = vmatpush2.msra.mxu0 0.0
  %148 = vmatprep.subr.mxu0 0.0
  %149 = vmatpush2.msra.mxu0 0.0
  %150 = vmatprep.subr.mxu0 0.0
  %151 = vmatpush2.msra.mxu0 0.0
  %152 = vmatprep.subr.mxu0 0.0
  %153 = vmatpush2.msra.mxu0 0.0
  %154 = vmatprep.mubr.f32.mxu0 0.0
  %155 = vmatmul.mubr.f32.gmra.mxu0 %v63
  %v156 = vpop.f32.mrf.mxu0
  %v157 = vadd.f32 0.0, %v156
  %v158 = vpop.f32.mrf.mxu0
  %159 = vmatprep.mubr.f32.mxu0 0.0
  %160 = vmatmul.mubr.f32.gmra.mxu0 %v66
  %v161 = vpop.f32.mrf.mxu0
  %v162 = vadd.f32 0.0, %v161
  %v163 = vpop.f32.mrf.mxu0
  %164 = vmatprep.mubr.f32.mxu0 0.0
  %165 = vmatmul.mubr.f32.gmra.mxu0 %v69
  %v166 = vpop.f32.mrf.mxu0
  %v167 = vadd.f32 0.0, %v166
  %v168 = vpop.f32.mrf.mxu0
  %169 = vmatprep.mubr.f32.mxu0 0.0
  %170 = vmatmul.mubr.f32.gmra.mxu0 %v72
  %v171 = vpop.f32.mrf.mxu0
  %v172 = vadd.f32 0.0, %v171
  %v173 = vpop.f32.mrf.mxu0
  %174 = vmatprep.mubr.f32.mxu0 0.0
  %175 = vmatmul.mubr.f32.gmra.mxu0 %v75
  %v176 = vpop.f32.mrf.mxu0
  %v177 = vadd.f32 0.0, %v176
  %v178 = vpop.f32.mrf.mxu0
  %179 = vmatprep.mubr.f32.mxu0 0.0
  %180 = vmatmul.mubr.f32.gmra.mxu0 %v78
  %v181 = vpop.f32.mrf.mxu0
  %v182 = vadd.f32 0.0, %v181
  %v183 = vpop.f32.mrf.mxu0
  %184 = vmatprep.mubr.f32.mxu0 0.0
  %185 = vmatmul.mubr.f32.gmra.mxu0 %v81
  %v186 = vpop.f32.mrf.mxu0
  %v187 = vadd.f32 0.0, %v186
  %v188 = vpop.f32.mrf.mxu0
  %189 = vmatprep.mubr.f32.mxu0 0.0
  %190 = vmatmul.mubr.f32.gmra.mxu0 %v84
  %v191 = vpop.f32.mrf.mxu0
  %v192 = vadd.f32 0.0, %v191
  %v193 = vpop.f32.mrf.mxu0
  %194 = vdwg.mxu0
  %v195 = vld [vmem:[%s3] sm:$0xff]
  %v196 = vld [vmem:[%s3 + $0x8] sm:$0xff]
  %v197 = vld [vmem:[%s3 + $0x10] sm:$0xff]
  %v198 = vld [vmem:[%s3 + $0x18] sm:$0xff]
  %v199 = vld [vmem:[%s5] sm:$0x1]
  %v201 = vlaneseq
  %v202 = vshrl.u32 %v201, 7
  %v203 = vsub.s32 0, %v202
  %v204 = vrot.slane %v199, %v203
  %vm206 = vcmask 261120
  %v208 = vsel %vm206, %v157, 0
  %v211 = vsel %vm206, %v162, 0
  %v214 = vsel %vm206, %v167, 0
  %v217 = vsel %vm206, %v172, 0
  %v220 = vsel %vm206, %v177, 0
  %v223 = vsel %vm206, %v182, 0
  %v226 = vsel %vm206, %v187, 0
  %v229 = vsel %vm206, %v192, 0
  %231 = vmatprep.subr.mxu0 0.0
  %232 = vmatpush1.msra.mxu0 0.0
  %233 = vmatprep.subr.mxu0 0.0
  %234 = vmatpush1.msra.mxu0 0.0
  %235 = vmatprep.subr.mxu0 0.0
  %236 = vmatpush1.msra.mxu0 0.0
  %237 = vmatprep.subr.mxu0 0.0
  %238 = vmatpush1.msra.mxu0 0.0
  %239 = vmatprep.subr.mxu0 0.0
  %240 = vmatpush1.msra.mxu0 0.0
  %241 = vmatprep.subr.mxu0 0.0
  %242 = vmatpush1.msra.mxu0 0.0
  %243 = vmatprep.subr.mxu0 0.0
  %244 = vmatpush1.msra.mxu0 0.0
  %245 = vmatprep.subr.mxu0 0.0
  %246 = vmatpush1.msra.mxu0 0.0
  %247 = vmatprep.subr.mxu0 0.0
  %248 = vmatpush1.msra.mxu0 0.0
  %249 = vmatprep.subr.mxu0 0.0
  %250 = vmatpush1.msra.mxu0 0.0
  %251 = vmatprep.subr.mxu0 0.0
  %252 = vmatpush1.msra.mxu0 0.0
  %253 = vmatprep.subr.mxu0 0.0
  %254 = vmatpush1.msra.mxu0 0.0
  %255 = vmatprep.subr.mxu0 0.0
  %256 = vmatpush1.msra.mxu0 %v198
  %257 = vmatprep.subr.mxu0 0.0
  %258 = vmatpush1.msra.mxu0 %v197
  %259 = vmatprep.subr.mxu0 0.0
  %260 = vmatpush1.msra.mxu0 %v196
  %261 = vmatprep.subr.mxu0 0.0
  %262 = vmatpush1.msra.mxu0 %v195
  %263 = vmatprep.subr.mxu0 0.0
  %264 = vmatpush2.msra.mxu0 0.0
  %265 = vmatprep.subr.mxu0 0.0
  %266 = vmatpush2.msra.mxu0 0.0
  %267 = vmatprep.subr.mxu0 0.0
  %268 = vmatpush2.msra.mxu0 0.0
  %269 = vmatprep.subr.mxu0 0.0
  %270 = vmatpush2.msra.mxu0 0.0
  %271 = vmatprep.subr.mxu0 0.0
  %272 = vmatpush2.msra.mxu0 0.0
  %273 = vmatprep.subr.mxu0 0.0
  %274 = vmatpush2.msra.mxu0 0.0
  %275 = vmatprep.subr.mxu0 0.0
  %276 = vmatpush2.msra.mxu0 0.0
  %277 = vmatprep.subr.mxu0 0.0
  %278 = vmatpush2.msra.mxu0 0.0
  %279 = vmatprep.subr.mxu0 0.0
  %280 = vmatpush2.msra.mxu0 0.0
  %281 = vmatprep.subr.mxu0 0.0
  %282 = vmatpush2.msra.mxu0 0.0
  %283 = vmatprep.subr.mxu0 0.0
  %284 = vmatpush2.msra.mxu0 0.0
  %285 = vmatprep.subr.mxu0 0.0
  %286 = vmatpush2.msra.mxu0 0.0
  %287 = vmatprep.subr.mxu0 0.0
  %288 = vmatpush2.msra.mxu0 0.0
  %289 = vmatprep.subr.mxu0 0.0
  %290 = vmatpush2.msra.mxu0 0.0
  %291 = vmatprep.subr.mxu0 0.0
  %292 = vmatpush2.msra.mxu0 0.0
  %293 = vmatprep.subr.mxu0 0.0
  %294 = vmatpush2.msra.mxu0 0.0
  %295 = vmatprep.mubr.f32.mxu0 0.0
  %296 = vmatmul.mubr.f32.gmra.mxu0 %v208
  %v297 = vpop.f32.mrf.mxu0
  %v298 = vadd.f32 %v204, %v297
  %v299 = vpop.f32.mrf.mxu0
  %300 = vmatprep.mubr.f32.mxu0 0.0
  %301 = vmatmul.mubr.f32.gmra.mxu0 %v211
  %v302 = vpop.f32.mrf.mxu0
  %v303 = vadd.f32 %v204, %v302
  %v304 = vpop.f32.mrf.mxu0
  %305 = vmatprep.mubr.f32.mxu0 0.0
  %306 = vmatmul.mubr.f32.gmra.mxu0 %v214
  %v307 = vpop.f32.mrf.mxu0
  %v308 = vadd.f32 %v204, %v307
  %v309 = vpop.f32.mrf.mxu0
  %310 = vmatprep.mubr.f32.mxu0 0.0
  %311 = vmatmul.mubr.f32.gmra.mxu0 %v217
  %v312 = vpop.f32.mrf.mxu0
  %v313 = vadd.f32 %v204, %v312
  %v314 = vpop.f32.mrf.mxu0
  %315 = vmatprep.mubr.f32.mxu0 0.0
  %316 = vmatmul.mubr.f32.gmra.mxu0 %v220
  %v317 = vpop.f32.mrf.mxu0
  %v318 = vadd.f32 %v204, %v317
  %v319 = vpop.f32.mrf.mxu0
  %320 = vmatprep.mubr.f32.mxu0 0.0
  %321 = vmatmul.mubr.f32.gmra.mxu0 %v223
  %v322 = vpop.f32.mrf.mxu0
  %v323 = vadd.f32 %v204, %v322
  %v324 = vpop.f32.mrf.mxu0
  %325 = vmatprep.mubr.f32.mxu0 0.0
  %326 = vmatmul.mubr.f32.gmra.mxu0 %v226
  %v327 = vpop.f32.mrf.mxu0
  %v328 = vadd.f32 %v204, %v327
  %v329 = vpop.f32.mrf.mxu0
  %330 = vmatprep.mubr.f32.mxu0 0.0
  %331 = vmatmul.mubr.f32.gmra.mxu0 %v229
  %v332 = vpop.f32.mrf.mxu0
  %v333 = vadd.f32 %v204, %v332
  %v334 = vpop.f32.mrf.mxu0
  %335 = vdwg.mxu0
  %v336 = vld [vmem:[%s4] sm:$0xff]
  %v337 = vld [vmem:[%s4 + $0x8] sm:$0xff]
  %v338 = vld [vmem:[%s4 + $0x10] sm:$0xff]
  %v339 = vld [vmem:[%s4 + $0x18] sm:$0xff]
  %v341 = vsel %vm206, 0.0, 0
  %343 = vmatprep.subr.mxu0 0.0
  %344 = vmatpush1.msra.mxu0 0.0
  %345 = vmatprep.subr.mxu0 0.0
  %346 = vmatpush1.msra.mxu0 0.0
  %347 = vmatprep.subr.mxu0 0.0
  %348 = vmatpush1.msra.mxu0 0.0
  %349 = vmatprep.subr.mxu0 0.0
  %350 = vmatpush1.msra.mxu0 0.0
  %351 = vmatprep.subr.mxu0 0.0
  %352 = vmatpush1.msra.mxu0 0.0
  %353 = vmatprep.subr.mxu0 0.0
  %354 = vmatpush1.msra.mxu0 0.0
  %355 = vmatprep.subr.mxu0 0.0
  %356 = vmatpush1.msra.mxu0 0.0
  %357 = vmatprep.subr.mxu0 0.0
  %358 = vmatpush1.msra.mxu0 0.0
  %359 = vmatprep.subr.mxu0 0.0
  %360 = vmatpush1.msra.mxu0 0.0
  %361 = vmatprep.subr.mxu0 0.0
  %362 = vmatpush1.msra.mxu0 0.0
  %363 = vmatprep.subr.mxu0 0.0
  %364 = vmatpush1.msra.mxu0 0.0
  %365 = vmatprep.subr.mxu0 0.0
  %366 = vmatpush1.msra.mxu0 0.0
  %367 = vmatprep.subr.mxu0 0.0
  %368 = vmatpush1.msra.mxu0 %v339
  %369 = vmatprep.subr.mxu0 0.0
  %370 = vmatpush1.msra.mxu0 %v338
  %371 = vmatprep.subr.mxu0 0.0
  %372 = vmatpush1.msra.mxu0 %v337
  %373 = vmatprep.subr.mxu0 0.0
  %374 = vmatpush1.msra.mxu0 %v336
  %375 = vmatprep.subr.mxu0 0.0
  %376 = vmatpush2.msra.mxu0 0.0
  %377 = vmatprep.subr.mxu0 0.0
  %378 = vmatpush2.msra.mxu0 0.0
  %379 = vmatprep.subr.mxu0 0.0
  %380 = vmatpush2.msra.mxu0 0.0
  %381 = vmatprep.subr.mxu0 0.0
  %382 = vmatpush2.msra.mxu0 0.0
  %383 = vmatprep.subr.mxu0 0.0
  %384 = vmatpush2.msra.mxu0 0.0
  %385 = vmatprep.subr.mxu0 0.0
  %386 = vmatpush2.msra.mxu0 0.0
  %387 = vmatprep.subr.mxu0 0.0
  %388 = vmatpush2.msra.mxu0 0.0
  %389 = vmatprep.subr.mxu0 0.0
  %390 = vmatpush2.msra.mxu0 0.0
  %391 = vmatprep.subr.mxu0 0.0
  %392 = vmatpush2.msra.mxu0 0.0
  %393 = vmatprep.subr.mxu0 0.0
  %394 = vmatpush2.msra.mxu0 0.0
  %395 = vmatprep.subr.mxu0 0.0
  %396 = vmatpush2.msra.mxu0 0.0
  %397 = vmatprep.subr.mxu0 0.0
  %398 = vmatpush2.msra.mxu0 0.0
  %399 = vmatprep.subr.mxu0 0.0
  %400 = vmatpush2.msra.mxu0 0.0
  %401 = vmatprep.subr.mxu0 0.0
  %402 = vmatpush2.msra.mxu0 0.0
  %403 = vmatprep.subr.mxu0 0.0
  %404 = vmatpush2.msra.mxu0 0.0
  %405 = vmatprep.subr.mxu0 0.0
  %406 = vmatpush2.msra.mxu0 0.0
  %407 = vmatprep.mubr.f32.mxu0 0.0
  %408 = vmatmul.mubr.f32.gmra.mxu0 %v341
  %v409 = vpop.f32.mrf.mxu0
  %v410 = vadd.f32 0.0, %v409
  %v411 = vpop.f32.mrf.mxu0
  %412 = vdwg.mxu0
  %v414 = vrot.slane %v410, 1
  %v415 = vrot.slane %v410, 2
  %v416 = vrot.slane %v410, 3
  %v417 = vrot.slane %v410, 4
  %v418 = vrot.slane %v410, 5
  %v419 = vrot.slane %v410, 6
  %v420 = vrot.slane %v410, 7
  %v429 = vadd.f32 %v298, %v410
  %v430 = vadd.f32 %v303, %v414
  %v431 = vadd.f32 %v308, %v415
  %v432 = vadd.f32 %v313, %v416
  %v433 = vadd.f32 %v318, %v417
  %v434 = vadd.f32 %v323, %v418
  %v435 = vadd.f32 %v328, %v419
  %v436 = vadd.f32 %v333, %v420
  %v437 = vxor.u32 %v429, 2147483648
  %v438 = vxor.u32 %v430, 2147483648
  %v439 = vxor.u32 %v431, 2147483648
  %v440 = vxor.u32 %v432, 2147483648
  %v441 = vxor.u32 %v433, 2147483648
  %v442 = vxor.u32 %v434, 2147483648
  %v443 = vxor.u32 %v435, 2147483648
  %v444 = vxor.u32 %v436, 2147483648
  %v445 = vmul.f32 %v437, 1.442695
  %v446 = vpow.pop %v445
  %v447 = vmul.f32 %v438, 1.442695
  %v448 = vpow.pop %v447
  %v449 = vmul.f32 %v439, 1.442695
  %v450 = vpow.pop %v449
  %v451 = vmul.f32 %v440, 1.442695
  %v452 = vpow.pop %v451
  %v453 = vmul.f32 %v441, 1.442695
  %v454 = vpow.pop %v453
  %v455 = vmul.f32 %v442, 1.442695
  %v456 = vpow.pop %v455
  %v457 = vmul.f32 %v443, 1.442695
  %v458 = vpow.pop %v457
  %v459 = vmul.f32 %v444, 1.442695
  %v460 = vpow.pop %v459
  %v461 = vadd.f32 %v446, 1.0
  %v462 = vadd.f32 %v448, 1.0
  %v463 = vadd.f32 %v450, 1.0
  %v464 = vadd.f32 %v452, 1.0
  %v465 = vadd.f32 %v454, 1.0
  %v466 = vadd.f32 %v456, 1.0
  %v467 = vadd.f32 %v458, 1.0
  %v468 = vadd.f32 %v460, 1.0
  %v469 = vrcp.pop %v461
  %v470 = vmul.f32 1.0, %v469
  %v471 = vrcp.pop %v462
  %v472 = vmul.f32 1.0, %v471
  %v473 = vrcp.pop %v463
  %v474 = vmul.f32 1.0, %v473
  %v475 = vrcp.pop %v464
  %v476 = vmul.f32 1.0, %v475
  %v477 = vrcp.pop %v465
  %v478 = vmul.f32 1.0, %v477
  %v479 = vrcp.pop %v466
  %v480 = vmul.f32 1.0, %v479
  %v481 = vrcp.pop %v467
  %v482 = vmul.f32 1.0, %v481
  %v483 = vrcp.pop %v468
  %v484 = vmul.f32 1.0, %v483
  %v485 = vtanh.pop %v429
  %v486 = vtanh.pop %v430
  %v487 = vtanh.pop %v431
  %v488 = vtanh.pop %v432
  %v489 = vtanh.pop %v433
  %v490 = vtanh.pop %v434
  %v491 = vtanh.pop %v435
  %v492 = vtanh.pop %v436
  %v493 = vmul.f32 %v470, 0.0
  %v494 = vmul.f32 %v472, 0.0
  %v495 = vmul.f32 %v474, 0.0
  %v496 = vmul.f32 %v476, 0.0
  %v497 = vmul.f32 %v478, 0.0
  %v498 = vmul.f32 %v480, 0.0
  %v499 = vmul.f32 %v482, 0.0
  %v500 = vmul.f32 %v484, 0.0
  %509 = vrot.lane.b32.xlu0 %v485, 64
  %v510 = vpop.permute.xlu0 %509
  %511 = vrot.lane.b32.xlu0 %v486, 64
  %v512 = vpop.permute.xlu0 %511
  %513 = vrot.lane.b32.xlu0 %v487, 64
  %v514 = vpop.permute.xlu0 %513
  %515 = vrot.lane.b32.xlu0 %v488, 64
  %v516 = vpop.permute.xlu0 %515
  %517 = vrot.lane.b32.xlu0 %v489, 64
  %v518 = vpop.permute.xlu0 %517
  %519 = vrot.lane.b32.xlu0 %v490, 64
  %v520 = vpop.permute.xlu0 %519
  %521 = vrot.lane.b32.xlu0 %v491, 64
  %v522 = vpop.permute.xlu0 %521
  %523 = vrot.lane.b32.xlu0 %v492, 64
  %v524 = vpop.permute.xlu0 %523
  %v533 = vmul.f32 %v470, %v510
  %v534 = vmul.f32 %v472, %v512
  %v535 = vmul.f32 %v474, %v514
  %v536 = vmul.f32 %v476, %v516
  %v537 = vmul.f32 %v478, %v518
  %v538 = vmul.f32 %v480, %v520
  %v539 = vmul.f32 %v482, %v522
  %v540 = vmul.f32 %v484, %v524
  %549 = vrot.lane.b32.xlu0 %v533, 32
  %v550 = vpop.permute.xlu0 %549
  %551 = vrot.lane.b32.xlu0 %v534, 32
  %v552 = vpop.permute.xlu0 %551
  %553 = vrot.lane.b32.xlu0 %v535, 32
  %v554 = vpop.permute.xlu0 %553
  %555 = vrot.lane.b32.xlu0 %v536, 32
  %v556 = vpop.permute.xlu0 %555
  %557 = vrot.lane.b32.xlu0 %v537, 32
  %v558 = vpop.permute.xlu0 %557
  %559 = vrot.lane.b32.xlu0 %v538, 32
  %v560 = vpop.permute.xlu0 %559
  %561 = vrot.lane.b32.xlu0 %v539, 32
  %v562 = vpop.permute.xlu0 %561
  %563 = vrot.lane.b32.xlu0 %v540, 32
  %v564 = vpop.permute.xlu0 %563
  %v573 = vadd.f32 %v493, %v550
  %v574 = vadd.f32 %v494, %v552
  %v575 = vadd.f32 %v495, %v554
  %v576 = vadd.f32 %v496, %v556
  %v577 = vadd.f32 %v497, %v558
  %v578 = vadd.f32 %v498, %v560
  %v579 = vadd.f32 %v499, %v562
  %v580 = vadd.f32 %v500, %v564
  %v581 = vtanh.pop %v573
  %v582 = vtanh.pop %v574
  %v583 = vtanh.pop %v575
  %v584 = vtanh.pop %v576
  %v585 = vtanh.pop %v577
  %v586 = vtanh.pop %v578
  %v587 = vtanh.pop %v579
  %v588 = vtanh.pop %v580
  %597 = vrot.lane.b32.xlu0 %v581, 64
  %v598 = vpop.permute.xlu0 %597
  %599 = vrot.lane.b32.xlu0 %v582, 64
  %v600 = vpop.permute.xlu0 %599
  %601 = vrot.lane.b32.xlu0 %v583, 64
  %v602 = vpop.permute.xlu0 %601
  %603 = vrot.lane.b32.xlu0 %v584, 64
  %v604 = vpop.permute.xlu0 %603
  %605 = vrot.lane.b32.xlu0 %v585, 64
  %v606 = vpop.permute.xlu0 %605
  %607 = vrot.lane.b32.xlu0 %v586, 64
  %v608 = vpop.permute.xlu0 %607
  %609 = vrot.lane.b32.xlu0 %v587, 64
  %v610 = vpop.permute.xlu0 %609
  %611 = vrot.lane.b32.xlu0 %v588, 64
  %v612 = vpop.permute.xlu0 %611
  %v621 = vmul.f32 %v470, %v598
  %v622 = vmul.f32 %v472, %v600
  %v623 = vmul.f32 %v474, %v602
  %v624 = vmul.f32 %v476, %v604
  %v625 = vmul.f32 %v478, %v606
  %v626 = vmul.f32 %v480, %v608
  %v627 = vmul.f32 %v482, %v610
  %v628 = vmul.f32 %v484, %v612
  %v637 = vrot.slane %v622, 7
  %vm638 = vcmask 1041409
  %v639 = vsel %vm638, %v637, %v621
  %v640 = vrot.slane %v623, 6
  %vm641 = vcmask 1042434
  %v642 = vsel %vm641, %v640, %v639
  %v643 = vrot.slane %v624, 5
  %vm644 = vcmask 1043459
  %v645 = vsel %vm644, %v643, %v642
  %v646 = vrot.slane %v625, 4
  %vm647 = vcmask 1044484
  %v648 = vsel %vm647, %v646, %v645
  %v649 = vrot.slane %v626, 3
  %vm650 = vcmask 1045509
  %v651 = vsel %vm650, %v649, %v648
  %v652 = vrot.slane %v627, 2
  %vm653 = vcmask 1046534
  %v654 = vsel %vm653, %v652, %v651
  %v655 = vrot.slane %v628, 1
  %vm656 = vcmask 1047559
  %v657 = vsel %vm656, %v655, %v654
  %658 = vrot.lane.b32.xlu0 %v657, 32
  %v659 = vpop.permute.xlu0 %658
  %v660 = vsel %vm206, %v659, 0
  %662 = vmatprep.subr.mxu0 0.0
  %663 = vmatpush1.msra.mxu0 0.0
  %664 = vmatprep.subr.mxu0 0.0
  %665 = vmatpush1.msra.mxu0 0.0
  %666 = vmatprep.subr.mxu0 0.0
  %667 = vmatpush1.msra.mxu0 0.0
  %668 = vmatprep.subr.mxu0 0.0
  %669 = vmatpush1.msra.mxu0 0.0
  %670 = vmatprep.subr.mxu0 0.0
  %671 = vmatpush1.msra.mxu0 0.0
  %672 = vmatprep.subr.mxu0 0.0
  %673 = vmatpush1.msra.mxu0 0.0
  %674 = vmatprep.subr.mxu0 0.0
  %675 = vmatpush1.msra.mxu0 0.0
  %676 = vmatprep.subr.mxu0 0.0
  %677 = vmatpush1.msra.mxu0 0.0
  %678 = vmatprep.subr.mxu0 0.0
  %679 = vmatpush1.msra.mxu0 0.0
  %680 = vmatprep.subr.mxu0 0.0
  %681 = vmatpush1.msra.mxu0 0.0
  %682 = vmatprep.subr.mxu0 0.0
  %683 = vmatpush1.msra.mxu0 0.0
  %684 = vmatprep.subr.mxu0 0.0
  %685 = vmatpush1.msra.mxu0 0.0
  %686 = vmatprep.subr.mxu0 0.0
  %687 = vmatpush1.msra.mxu0 %v339
  %688 = vmatprep.subr.mxu0 0.0
  %689 = vmatpush1.msra.mxu0 %v338
  %690 = vmatprep.subr.mxu0 0.0
  %691 = vmatpush1.msra.mxu0 %v337
  %692 = vmatprep.subr.mxu0 0.0
  %693 = vmatpush1.msra.mxu0 %v336
  %694 = vmatprep.subr.mxu0 0.0
  %695 = vmatpush2.msra.mxu0 0.0
  %696 = vmatprep.subr.mxu0 0.0
  %697 = vmatpush2.msra.mxu0 0.0
  %698 = vmatprep.subr.mxu0 0.0
  %699 = vmatpush2.msra.mxu0 0.0
  %700 = vmatprep.subr.mxu0 0.0
  %701 = vmatpush2.msra.mxu0 0.0
  %702 = vmatprep.subr.mxu0 0.0
  %703 = vmatpush2.msra.mxu0 0.0
  %704 = vmatprep.subr.mxu0 0.0
  %705 = vmatpush2.msra.mxu0 0.0
  %706 = vmatprep.subr.mxu0 0.0
  %707 = vmatpush2.msra.mxu0 0.0
  %708 = vmatprep.subr.mxu0 0.0
  %709 = vmatpush2.msra.mxu0 0.0
  %710 = vmatprep.subr.mxu0 0.0
  %711 = vmatpush2.msra.mxu0 0.0
  %712 = vmatprep.subr.mxu0 0.0
  %713 = vmatpush2.msra.mxu0 0.0
  %714 = vmatprep.subr.mxu0 0.0
  %715 = vmatpush2.msra.mxu0 0.0
  %716 = vmatprep.subr.mxu0 0.0
  %717 = vmatpush2.msra.mxu0 0.0
  %718 = vmatprep.subr.mxu0 0.0
  %719 = vmatpush2.msra.mxu0 0.0
  %720 = vmatprep.subr.mxu0 0.0
  %721 = vmatpush2.msra.mxu0 0.0
  %722 = vmatprep.subr.mxu0 0.0
  %723 = vmatpush2.msra.mxu0 0.0
  %724 = vmatprep.subr.mxu0 0.0
  %725 = vmatpush2.msra.mxu0 0.0
  %726 = vmatprep.mubr.f32.mxu0 0.0
  %727 = vmatmul.mubr.f32.gmra.mxu0 %v660
  %v728 = vpop.f32.mrf.mxu0
  %v729 = vadd.f32 0.0, %v728
  %v730 = vpop.f32.mrf.mxu0
  %731 = vdwg.mxu0
  %v733 = vrot.slane %v729, 7
  %v734 = vrot.slane %v729, 1
  %v735 = vrot.slane %v729, 2
  %v736 = vrot.slane %v729, 3
  %v737 = vrot.slane %v729, 4
  %v738 = vrot.slane %v729, 5
  %v739 = vrot.slane %v729, 6
  %v748 = vadd.f32 %v298, %v733
  %v749 = vadd.f32 %v303, %v729
  %v750 = vadd.f32 %v308, %v734
  %v751 = vadd.f32 %v313, %v735
  %v752 = vadd.f32 %v318, %v736
  %v753 = vadd.f32 %v323, %v737
  %v754 = vadd.f32 %v328, %v738
  %v755 = vadd.f32 %v333, %v739
  %v756 = vxor.u32 %v748, 2147483648
  %v757 = vxor.u32 %v749, 2147483648
  %v758 = vxor.u32 %v750, 2147483648
  %v759 = vxor.u32 %v751, 2147483648
  %v760 = vxor.u32 %v752, 2147483648
  %v761 = vxor.u32 %v753, 2147483648
  %v762 = vxor.u32 %v754, 2147483648
  %v763 = vxor.u32 %v755, 2147483648
  %v764 = vmul.f32 %v756, 1.442695
  %v765 = vpow.pop %v764
  %v766 = vmul.f32 %v757, 1.442695
  %v767 = vpow.pop %v766
  %v768 = vmul.f32 %v758, 1.442695
  %v769 = vpow.pop %v768
  %v770 = vmul.f32 %v759, 1.442695
  %v771 = vpow.pop %v770
  %v772 = vmul.f32 %v760, 1.442695
  %v773 = vpow.pop %v772
  %v774 = vmul.f32 %v761, 1.442695
  %v775 = vpow.pop %v774
  %v776 = vmul.f32 %v762, 1.442695
  %v777 = vpow.pop %v776
  %v778 = vmul.f32 %v763, 1.442695
  %v779 = vpow.pop %v778
  %v780 = vadd.f32 %v765, 1.0
  %v781 = vadd.f32 %v767, 1.0
  %v782 = vadd.f32 %v769, 1.0
  %v783 = vadd.f32 %v771, 1.0
  %v784 = vadd.f32 %v773, 1.0
  %v785 = vadd.f32 %v775, 1.0
  %v786 = vadd.f32 %v777, 1.0
  %v787 = vadd.f32 %v779, 1.0
  %v788 = vrcp.pop %v780
  %v789 = vmul.f32 1.0, %v788
  %v790 = vrcp.pop %v781
  %v791 = vmul.f32 1.0, %v790
  %v792 = vrcp.pop %v782
  %v793 = vmul.f32 1.0, %v792
  %v794 = vrcp.pop %v783
  %v795 = vmul.f32 1.0, %v794
  %v796 = vrcp.pop %v784
  %v797 = vmul.f32 1.0, %v796
  %v798 = vrcp.pop %v785
  %v799 = vmul.f32 1.0, %v798
  %v800 = vrcp.pop %v786
  %v801 = vmul.f32 1.0, %v800
  %v802 = vrcp.pop %v787
  %v803 = vmul.f32 1.0, %v802
  %v804 = vtanh.pop %v748
  %v805 = vtanh.pop %v749
  %v806 = vtanh.pop %v750
  %v807 = vtanh.pop %v751
  %v808 = vtanh.pop %v752
  %v809 = vtanh.pop %v753
  %v810 = vtanh.pop %v754
  %v811 = vtanh.pop %v755
  %v820 = vrot.slane %v573, 7
  %v821 = vrot.slane %v574, 7
  %v822 = vrot.slane %v575, 7
  %v823 = vrot.slane %v576, 7
  %v824 = vrot.slane %v577, 7
  %v825 = vrot.slane %v578, 7
  %v826 = vrot.slane %v579, 7
  %v827 = vrot.slane %v580, 7
  %v836 = vmul.f32 %v789, %v820
  %v837 = vmul.f32 %v791, %v821
  %v838 = vmul.f32 %v793, %v822
  %v839 = vmul.f32 %v795, %v823
  %v840 = vmul.f32 %v797, %v824
  %v841 = vmul.f32 %v799, %v825
  %v842 = vmul.f32 %v801, %v826
  %v843 = vmul.f32 %v803, %v827
  %852 = vrot.lane.b32.xlu0 %v804, 64
  %v853 = vpop.permute.xlu0 %852
  %854 = vrot.lane.b32.xlu0 %v805, 64
  %v855 = vpop.permute.xlu0 %854
  %856 = vrot.lane.b32.xlu0 %v806, 64
  %v857 = vpop.permute.xlu0 %856
  %858 = vrot.lane.b32.xlu0 %v807, 64
  %v859 = vpop.permute.xlu0 %858
  %860 = vrot.lane.b32.xlu0 %v808, 64
  %v861 = vpop.permute.xlu0 %860
  %862 = vrot.lane.b32.xlu0 %v809, 64
  %v863 = vpop.permute.xlu0 %862
  %864 = vrot.lane.b32.xlu0 %v810, 64
  %v865 = vpop.permute.xlu0 %864
  %866 = vrot.lane.b32.xlu0 %v811, 64
  %v867 = vpop.permute.xlu0 %866
  %v876 = vmul.f32 %v789, %v853
  %v877 = vmul.f32 %v791, %v855
  %v878 = vmul.f32 %v793, %v857
  %v879 = vmul.f32 %v795, %v859
  %v880 = vmul.f32 %v797, %v861
  %v881 = vmul.f32 %v799, %v863
  %v882 = vmul.f32 %v801, %v865
  %v883 = vmul.f32 %v803, %v867
  %892 = vrot.lane.b32.xlu0 %v876, 32
  %v893 = vpop.permute.xlu0 %892
  %894 = vrot.lane.b32.xlu0 %v877, 32
  %v895 = vpop.permute.xlu0 %894
  %896 = vrot.lane.b32.xlu0 %v878, 32
  %v897 = vpop.permute.xlu0 %896
  %898 = vrot.lane.b32.xlu0 %v879, 32
  %v899 = vpop.permute.xlu0 %898
  %900 = vrot.lane.b32.xlu0 %v880, 32
  %v901 = vpop.permute.xlu0 %900
  %902 = vrot.lane.b32.xlu0 %v881, 32
  %v903 = vpop.permute.xlu0 %902
  %904 = vrot.lane.b32.xlu0 %v882, 32
  %v905 = vpop.permute.xlu0 %904
  %906 = vrot.lane.b32.xlu0 %v883, 32
  %v907 = vpop.permute.xlu0 %906
  %v916 = vadd.f32 %v836, %v893
  %v917 = vadd.f32 %v837, %v895
  %v918 = vadd.f32 %v838, %v897
  %v919 = vadd.f32 %v839, %v899
  %v920 = vadd.f32 %v840, %v901
  %v921 = vadd.f32 %v841, %v903
  %v922 = vadd.f32 %v842, %v905
  %v923 = vadd.f32 %v843, %v907
  %v924 = vtanh.pop %v916
  %v925 = vtanh.pop %v917
  %v926 = vtanh.pop %v918
  %v927 = vtanh.pop %v919
  %v928 = vtanh.pop %v920
  %v929 = vtanh.pop %v921
  %v930 = vtanh.pop %v922
  %v931 = vtanh.pop %v923
  %940 = vrot.lane.b32.xlu0 %v924, 64
  %v941 = vpop.permute.xlu0 %940
  %942 = vrot.lane.b32.xlu0 %v925, 64
  %v943 = vpop.permute.xlu0 %942
  %944 = vrot.lane.b32.xlu0 %v926, 64
  %v945 = vpop.permute.xlu0 %944
  %946 = vrot.lane.b32.xlu0 %v927, 64
  %v947 = vpop.permute.xlu0 %946
  %948 = vrot.lane.b32.xlu0 %v928, 64
  %v949 = vpop.permute.xlu0 %948
  %950 = vrot.lane.b32.xlu0 %v929, 64
  %v951 = vpop.permute.xlu0 %950
  %952 = vrot.lane.b32.xlu0 %v930, 64
  %v953 = vpop.permute.xlu0 %952
  %954 = vrot.lane.b32.xlu0 %v931, 64
  %v955 = vpop.permute.xlu0 %954
  %v964 = vmul.f32 %v789, %v941
  %v965 = vmul.f32 %v791, %v943
  %v966 = vmul.f32 %v793, %v945
  %v967 = vmul.f32 %v795, %v947
  %v968 = vmul.f32 %v797, %v949
  %v969 = vmul.f32 %v799, %v951
  %v970 = vmul.f32 %v801, %v953
  %v971 = vmul.f32 %v803, %v955
  %v980 = vrot.slane %v964, 1
  %v981 = vsel %vm638, %v965, %v980
  %v982 = vrot.slane %v966, 7
  %v983 = vsel %vm641, %v982, %v981
  %v984 = vrot.slane %v967, 6
  %v985 = vsel %vm644, %v984, %v983
  %v986 = vrot.slane %v968, 5
  %v987 = vsel %vm647, %v986, %v985
  %v988 = vrot.slane %v969, 4
  %v989 = vsel %vm650, %v988, %v987
  %v990 = vrot.slane %v970, 3
  %v991 = vsel %vm653, %v990, %v989
  %v992 = vrot.slane %v971, 2
  %v993 = vsel %vm656, %v992, %v991
  %994 = vrot.lane.b32.xlu0 %v993, 32
  %v995 = vpop.permute.xlu0 %994
  %v996 = vsel %vm206, %v995, 0
  %998 = vmatprep.subr.mxu0 0.0
  %999 = vmatpush1.msra.mxu0 0.0
  %1000 = vmatprep.subr.mxu0 0.0
  %1001 = vmatpush1.msra.mxu0 0.0
  %1002 = vmatprep.subr.mxu0 0.0
  %1003 = vmatpush1.msra.mxu0 0.0
  %1004 = vmatprep.subr.mxu0 0.0
  %1005 = vmatpush1.msra.mxu0 0.0
  %1006 = vmatprep.subr.mxu0 0.0
  %1007 = vmatpush1.msra.mxu0 0.0
  %1008 = vmatprep.subr.mxu0 0.0
  %1009 = vmatpush1.msra.mxu0 0.0
  %1010 = vmatprep.subr.mxu0 0.0
  %1011 = vmatpush1.msra.mxu0 0.0
  %1012 = vmatprep.subr.mxu0 0.0
  %1013 = vmatpush1.msra.mxu0 0.0
  %1014 = vmatprep.subr.mxu0 0.0
  %1015 = vmatpush1.msra.mxu0 0.0
  %1016 = vmatprep.subr.mxu0 0.0
  %1017 = vmatpush1.msra.mxu0 0.0
  %1018 = vmatprep.subr.mxu0 0.0
  %1019 = vmatpush1.msra.mxu0 0.0
  %1020 = vmatprep.subr.mxu0 0.0
  %1021 = vmatpush1.msra.mxu0 0.0
  %1022 = vmatprep.subr.mxu0 0.0
  %1023 = vmatpush1.msra.mxu0 %v339
  %1024 = vmatprep.subr.mxu0 0.0
  %1025 = vmatpush1.msra.mxu0 %v338
  %1026 = vmatprep.subr.mxu0 0.0
  %1027 = vmatpush1.msra.mxu0 %v337
  %1028 = vmatprep.subr.mxu0 0.0
  %1029 = vmatpush1.msra.mxu0 %v336
  %1030 = vmatprep.subr.mxu0 0.0
  %1031 = vmatpush2.msra.mxu0 0.0
  %1032 = vmatprep.subr.mxu0 0.0
  %1033 = vmatpush2.msra.mxu0 0.0
  %1034 = vmatprep.subr.mxu0 0.0
  %1035 = vmatpush2.msra.mxu0 0.0
  %1036 = vmatprep.subr.mxu0 0.0
  %1037 = vmatpush2.msra.mxu0 0.0
  %1038 = vmatprep.subr.mxu0 0.0
  %1039 = vmatpush2.msra.mxu0 0.0
  %1040 = vmatprep.subr.mxu0 0.0
  %1041 = vmatpush2.msra.mxu0 0.0
  %1042 = vmatprep.subr.mxu0 0.0
  %1043 = vmatpush2.msra.mxu0 0.0
  %1044 = vmatprep.subr.mxu0 0.0
  %1045 = vmatpush2.msra.mxu0 0.0
  %1046 = vmatprep.subr.mxu0 0.0
  %1047 = vmatpush2.msra.mxu0 0.0
  %1048 = vmatprep.subr.mxu0 0.0
  %1049 = vmatpush2.msra.mxu0 0.0
  %1050 = vmatprep.subr.mxu0 0.0
  %1051 = vmatpush2.msra.mxu0 0.0
  %1052 = vmatprep.subr.mxu0 0.0
  %1053 = vmatpush2.msra.mxu0 0.0
  %1054 = vmatprep.subr.mxu0 0.0
  %1055 = vmatpush2.msra.mxu0 0.0
  %1056 = vmatprep.subr.mxu0 0.0
  %1057 = vmatpush2.msra.mxu0 0.0
  %1058 = vmatprep.subr.mxu0 0.0
  %1059 = vmatpush2.msra.mxu0 0.0
  %1060 = vmatprep.subr.mxu0 0.0
  %1061 = vmatpush2.msra.mxu0 0.0
  %1062 = vmatprep.mubr.f32.mxu0 0.0
  %1063 = vmatmul.mubr.f32.gmra.mxu0 %v996
  %v1064 = vpop.f32.mrf.mxu0
  %v1065 = vadd.f32 0.0, %v1064
  %v1066 = vpop.f32.mrf.mxu0
  %1067 = vdwg.mxu0
  %v1069 = vrot.slane %v1065, 6
  %v1070 = vrot.slane %v1065, 7
  %v1071 = vrot.slane %v1065, 1
  %v1072 = vrot.slane %v1065, 2
  %v1073 = vrot.slane %v1065, 3
  %v1074 = vrot.slane %v1065, 4
  %v1075 = vrot.slane %v1065, 5
  %v1084 = vadd.f32 %v298, %v1069
  %v1085 = vadd.f32 %v303, %v1070
  %v1086 = vadd.f32 %v308, %v1065
  %v1087 = vadd.f32 %v313, %v1071
  %v1088 = vadd.f32 %v318, %v1072
  %v1089 = vadd.f32 %v323, %v1073
  %v1090 = vadd.f32 %v328, %v1074
  %v1091 = vadd.f32 %v333, %v1075
  %v1092 = vxor.u32 %v1084, 2147483648
  %v1093 = vxor.u32 %v1085, 2147483648
  %v1094 = vxor.u32 %v1086, 2147483648
  %v1095 = vxor.u32 %v1087, 2147483648
  %v1096 = vxor.u32 %v1088, 2147483648
  %v1097 = vxor.u32 %v1089, 2147483648
  %v1098 = vxor.u32 %v1090, 2147483648
  %v1099 = vxor.u32 %v1091, 2147483648
  %v1100 = vmul.f32 %v1092, 1.442695
  %v1101 = vpow.pop %v1100
  %v1102 = vmul.f32 %v1093, 1.442695
  %v1103 = vpow.pop %v1102
  %v1104 = vmul.f32 %v1094, 1.442695
  %v1105 = vpow.pop %v1104
  %v1106 = vmul.f32 %v1095, 1.442695
  %v1107 = vpow.pop %v1106
  %v1108 = vmul.f32 %v1096, 1.442695
  %v1109 = vpow.pop %v1108
  %v1110 = vmul.f32 %v1097, 1.442695
  %v1111 = vpow.pop %v1110
  %v1112 = vmul.f32 %v1098, 1.442695
  %v1113 = vpow.pop %v1112
  %v1114 = vmul.f32 %v1099, 1.442695
  %v1115 = vpow.pop %v1114
  %v1116 = vadd.f32 %v1101, 1.0
  %v1117 = vadd.f32 %v1103, 1.0
  %v1118 = vadd.f32 %v1105, 1.0
  %v1119 = vadd.f32 %v1107, 1.0
  %v1120 = vadd.f32 %v1109, 1.0
  %v1121 = vadd.f32 %v1111, 1.0
  %v1122 = vadd.f32 %v1113, 1.0
  %v1123 = vadd.f32 %v1115, 1.0
  %v1124 = vrcp.pop %v1116
  %v1125 = vmul.f32 1.0, %v1124
  %v1126 = vrcp.pop %v1117
  %v1127 = vmul.f32 1.0, %v1126
  %v1128 = vrcp.pop %v1118
  %v1129 = vmul.f32 1.0, %v1128
  %v1130 = vrcp.pop %v1119
  %v1131 = vmul.f32 1.0, %v1130
  %v1132 = vrcp.pop %v1120
  %v1133 = vmul.f32 1.0, %v1132
  %v1134 = vrcp.pop %v1121
  %v1135 = vmul.f32 1.0, %v1134
  %v1136 = vrcp.pop %v1122
  %v1137 = vmul.f32 1.0, %v1136
  %v1138 = vrcp.pop %v1123
  %v1139 = vmul.f32 1.0, %v1138
  %v1140 = vtanh.pop %v1084
  %v1141 = vtanh.pop %v1085
  %v1142 = vtanh.pop %v1086
  %v1143 = vtanh.pop %v1087
  %v1144 = vtanh.pop %v1088
  %v1145 = vtanh.pop %v1089
  %v1146 = vtanh.pop %v1090
  %v1147 = vtanh.pop %v1091
  %v1156 = vrot.slane %v916, 7
  %v1157 = vrot.slane %v917, 7
  %v1158 = vrot.slane %v918, 7
  %v1159 = vrot.slane %v919, 7
  %v1160 = vrot.slane %v920, 7
  %v1161 = vrot.slane %v921, 7
  %v1162 = vrot.slane %v922, 7
  %v1163 = vrot.slane %v923, 7
  %v1172 = vmul.f32 %v1125, %v1156
  %v1173 = vmul.f32 %v1127, %v1157
  %v1174 = vmul.f32 %v1129, %v1158
  %v1175 = vmul.f32 %v1131, %v1159
  %v1176 = vmul.f32 %v1133, %v1160
  %v1177 = vmul.f32 %v1135, %v1161
  %v1178 = vmul.f32 %v1137, %v1162
  %v1179 = vmul.f32 %v1139, %v1163
  %1188 = vrot.lane.b32.xlu0 %v1140, 64
  %v1189 = vpop.permute.xlu0 %1188
  %1190 = vrot.lane.b32.xlu0 %v1141, 64
  %v1191 = vpop.permute.xlu0 %1190
  %1192 = vrot.lane.b32.xlu0 %v1142, 64
  %v1193 = vpop.permute.xlu0 %1192
  %1194 = vrot.lane.b32.xlu0 %v1143, 64
  %v1195 = vpop.permute.xlu0 %1194
  %1196 = vrot.lane.b32.xlu0 %v1144, 64
  %v1197 = vpop.permute.xlu0 %1196
  %1198 = vrot.lane.b32.xlu0 %v1145, 64
  %v1199 = vpop.permute.xlu0 %1198
  %1200 = vrot.lane.b32.xlu0 %v1146, 64
  %v1201 = vpop.permute.xlu0 %1200
  %1202 = vrot.lane.b32.xlu0 %v1147, 64
  %v1203 = vpop.permute.xlu0 %1202
  %v1212 = vmul.f32 %v1125, %v1189
  %v1213 = vmul.f32 %v1127, %v1191
  %v1214 = vmul.f32 %v1129, %v1193
  %v1215 = vmul.f32 %v1131, %v1195
  %v1216 = vmul.f32 %v1133, %v1197
  %v1217 = vmul.f32 %v1135, %v1199
  %v1218 = vmul.f32 %v1137, %v1201
  %v1219 = vmul.f32 %v1139, %v1203
  %1228 = vrot.lane.b32.xlu0 %v1212, 32
  %v1229 = vpop.permute.xlu0 %1228
  %1230 = vrot.lane.b32.xlu0 %v1213, 32
  %v1231 = vpop.permute.xlu0 %1230
  %1232 = vrot.lane.b32.xlu0 %v1214, 32
  %v1233 = vpop.permute.xlu0 %1232
  %1234 = vrot.lane.b32.xlu0 %v1215, 32
  %v1235 = vpop.permute.xlu0 %1234
  %1236 = vrot.lane.b32.xlu0 %v1216, 32
  %v1237 = vpop.permute.xlu0 %1236
  %1238 = vrot.lane.b32.xlu0 %v1217, 32
  %v1239 = vpop.permute.xlu0 %1238
  %1240 = vrot.lane.b32.xlu0 %v1218, 32
  %v1241 = vpop.permute.xlu0 %1240
  %1242 = vrot.lane.b32.xlu0 %v1219, 32
  %v1243 = vpop.permute.xlu0 %1242
  %v1252 = vadd.f32 %v1172, %v1229
  %v1253 = vadd.f32 %v1173, %v1231
  %v1254 = vadd.f32 %v1174, %v1233
  %v1255 = vadd.f32 %v1175, %v1235
  %v1256 = vadd.f32 %v1176, %v1237
  %v1257 = vadd.f32 %v1177, %v1239
  %v1258 = vadd.f32 %v1178, %v1241
  %v1259 = vadd.f32 %v1179, %v1243
  %v1260 = vtanh.pop %v1252
  %v1261 = vtanh.pop %v1253
  %v1262 = vtanh.pop %v1254
  %v1263 = vtanh.pop %v1255
  %v1264 = vtanh.pop %v1256
  %v1265 = vtanh.pop %v1257
  %v1266 = vtanh.pop %v1258
  %v1267 = vtanh.pop %v1259
  %1276 = vrot.lane.b32.xlu0 %v1260, 64
  %v1277 = vpop.permute.xlu0 %1276
  %1278 = vrot.lane.b32.xlu0 %v1261, 64
  %v1279 = vpop.permute.xlu0 %1278
  %1280 = vrot.lane.b32.xlu0 %v1262, 64
  %v1281 = vpop.permute.xlu0 %1280
  %1282 = vrot.lane.b32.xlu0 %v1263, 64
  %v1283 = vpop.permute.xlu0 %1282
  %1284 = vrot.lane.b32.xlu0 %v1264, 64
  %v1285 = vpop.permute.xlu0 %1284
  %1286 = vrot.lane.b32.xlu0 %v1265, 64
  %v1287 = vpop.permute.xlu0 %1286
  %1288 = vrot.lane.b32.xlu0 %v1266, 64
  %v1289 = vpop.permute.xlu0 %1288
  %1290 = vrot.lane.b32.xlu0 %v1267, 64
  %v1291 = vpop.permute.xlu0 %1290
  %v1300 = vmul.f32 %v1125, %v1277
  %v1301 = vmul.f32 %v1127, %v1279
  %v1302 = vmul.f32 %v1129, %v1281
  %v1303 = vmul.f32 %v1131, %v1283
  %v1304 = vmul.f32 %v1133, %v1285
  %v1305 = vmul.f32 %v1135, %v1287
  %v1306 = vmul.f32 %v1137, %v1289
  %v1307 = vmul.f32 %v1139, %v1291
  %v1316 = vrot.slane %v1300, 2
  %v1317 = vrot.slane %v1301, 1
  %v1318 = vsel %vm638, %v1317, %v1316
  %v1319 = vsel %vm641, %v1302, %v1318
  %v1320 = vrot.slane %v1303, 7
  %v1321 = vsel %vm644, %v1320, %v1319
  %v1322 = vrot.slane %v1304, 6
  %v1323 = vsel %vm647, %v1322, %v1321
  %v1324 = vrot.slane %v1305, 5
  %v1325 = vsel %vm650, %v1324, %v1323
  %v1326 = vrot.slane %v1306, 4
  %v1327 = vsel %vm653, %v1326, %v1325
  %v1328 = vrot.slane %v1307, 3
  %v1329 = vsel %vm656, %v1328, %v1327
  %1330 = vrot.lane.b32.xlu0 %v1329, 32
  %v1331 = vpop.permute.xlu0 %1330
  %v1332 = vsel %vm206, %v1331, 0
  %1334 = vmatprep.subr.mxu0 0.0
  %1335 = vmatpush1.msra.mxu0 0.0
  %1336 = vmatprep.subr.mxu0 0.0
  %1337 = vmatpush1.msra.mxu0 0.0
  %1338 = vmatprep.subr.mxu0 0.0
  %1339 = vmatpush1.msra.mxu0 0.0
  %1340 = vmatprep.subr.mxu0 0.0
  %1341 = vmatpush1.msra.mxu0 0.0
  %1342 = vmatprep.subr.mxu0 0.0
  %1343 = vmatpush1.msra.mxu0 0.0
  %1344 = vmatprep.subr.mxu0 0.0
  %1345 = vmatpush1.msra.mxu0 0.0
  %1346 = vmatprep.subr.mxu0 0.0
  %1347 = vmatpush1.msra.mxu0 0.0
  %1348 = vmatprep.subr.mxu0 0.0
  %1349 = vmatpush1.msra.mxu0 0.0
  %1350 = vmatprep.subr.mxu0 0.0
  %1351 = vmatpush1.msra.mxu0 0.0
  %1352 = vmatprep.subr.mxu0 0.0
  %1353 = vmatpush1.msra.mxu0 0.0
  %1354 = vmatprep.subr.mxu0 0.0
  %1355 = vmatpush1.msra.mxu0 0.0
  %1356 = vmatprep.subr.mxu0 0.0
  %1357 = vmatpush1.msra.mxu0 0.0
  %1358 = vmatprep.subr.mxu0 0.0
  %1359 = vmatpush1.msra.mxu0 %v339
  %1360 = vmatprep.subr.mxu0 0.0
  %1361 = vmatpush1.msra.mxu0 %v338
  %1362 = vmatprep.subr.mxu0 0.0
  %1363 = vmatpush1.msra.mxu0 %v337
  %1364 = vmatprep.subr.mxu0 0.0
  %1365 = vmatpush1.msra.mxu0 %v336
  %1366 = vmatprep.subr.mxu0 0.0
  %1367 = vmatpush2.msra.mxu0 0.0
  %1368 = vmatprep.subr.mxu0 0.0
  %1369 = vmatpush2.msra.mxu0 0.0
  %1370 = vmatprep.subr.mxu0 0.0
  %1371 = vmatpush2.msra.mxu0 0.0
  %1372 = vmatprep.subr.mxu0 0.0
  %1373 = vmatpush2.msra.mxu0 0.0
  %1374 = vmatprep.subr.mxu0 0.0
  %1375 = vmatpush2.msra.mxu0 0.0
  %1376 = vmatprep.subr.mxu0 0.0
  %1377 = vmatpush2.msra.mxu0 0.0
  %1378 = vmatprep.subr.mxu0 0.0
  %1379 = vmatpush2.msra.mxu0 0.0
  %1380 = vmatprep.subr.mxu0 0.0
  %1381 = vmatpush2.msra.mxu0 0.0
  %1382 = vmatprep.subr.mxu0 0.0
  %1383 = vmatpush2.msra.mxu0 0.0
  %1384 = vmatprep.subr.mxu0 0.0
  %1385 = vmatpush2.msra.mxu0 0.0
  %1386 = vmatprep.subr.mxu0 0.0
  %1387 = vmatpush2.msra.mxu0 0.0
  %1388 = vmatprep.subr.mxu0 0.0
  %1389 = vmatpush2.msra.mxu0 0.0
  %1390 = vmatprep.subr.mxu0 0.0
  %1391 = vmatpush2.msra.mxu0 0.0
  %1392 = vmatprep.subr.mxu0 0.0
  %1393 = vmatpush2.msra.mxu0 0.0
  %1394 = vmatprep.subr.mxu0 0.0
  %1395 = vmatpush2.msra.mxu0 0.0
  %1396 = vmatprep.subr.mxu0 0.0
  %1397 = vmatpush2.msra.mxu0 0.0
  %1398 = vmatprep.mubr.f32.mxu0 0.0
  %1399 = vmatmul.mubr.f32.gmra.mxu0 %v1332
  %v1400 = vpop.f32.mrf.mxu0
  %v1401 = vadd.f32 0.0, %v1400
  %v1402 = vpop.f32.mrf.mxu0
  %1403 = vdwg.mxu0
  %v1405 = vrot.slane %v1401, 5
  %v1406 = vrot.slane %v1401, 6
  %v1407 = vrot.slane %v1401, 7
  %v1408 = vrot.slane %v1401, 1
  %v1409 = vrot.slane %v1401, 2
  %v1410 = vrot.slane %v1401, 3
  %v1411 = vrot.slane %v1401, 4
  %v1420 = vadd.f32 %v298, %v1405
  %v1421 = vadd.f32 %v303, %v1406
  %v1422 = vadd.f32 %v308, %v1407
  %v1423 = vadd.f32 %v313, %v1401
  %v1424 = vadd.f32 %v318, %v1408
  %v1425 = vadd.f32 %v323, %v1409
  %v1426 = vadd.f32 %v328, %v1410
  %v1427 = vadd.f32 %v333, %v1411
  %v1428 = vxor.u32 %v1420, 2147483648
  %v1429 = vxor.u32 %v1421, 2147483648
  %v1430 = vxor.u32 %v1422, 2147483648
  %v1431 = vxor.u32 %v1423, 2147483648
  %v1432 = vxor.u32 %v1424, 2147483648
  %v1433 = vxor.u32 %v1425, 2147483648
  %v1434 = vxor.u32 %v1426, 2147483648
  %v1435 = vxor.u32 %v1427, 2147483648
  %v1436 = vmul.f32 %v1428, 1.442695
  %v1437 = vpow.pop %v1436
  %v1438 = vmul.f32 %v1429, 1.442695
  %v1439 = vpow.pop %v1438
  %v1440 = vmul.f32 %v1430, 1.442695
  %v1441 = vpow.pop %v1440
  %v1442 = vmul.f32 %v1431, 1.442695
  %v1443 = vpow.pop %v1442
  %v1444 = vmul.f32 %v1432, 1.442695
  %v1445 = vpow.pop %v1444
  %v1446 = vmul.f32 %v1433, 1.442695
  %v1447 = vpow.pop %v1446
  %v1448 = vmul.f32 %v1434, 1.442695
  %v1449 = vpow.pop %v1448
  %v1450 = vmul.f32 %v1435, 1.442695
  %v1451 = vpow.pop %v1450
  %v1452 = vadd.f32 %v1437, 1.0
  %v1453 = vadd.f32 %v1439, 1.0
  %v1454 = vadd.f32 %v1441, 1.0
  %v1455 = vadd.f32 %v1443, 1.0
  %v1456 = vadd.f32 %v1445, 1.0
  %v1457 = vadd.f32 %v1447, 1.0
  %v1458 = vadd.f32 %v1449, 1.0
  %v1459 = vadd.f32 %v1451, 1.0
  %v1460 = vrcp.pop %v1452
  %v1461 = vmul.f32 1.0, %v1460
  %v1462 = vrcp.pop %v1453
  %v1463 = vmul.f32 1.0, %v1462
  %v1464 = vrcp.pop %v1454
  %v1465 = vmul.f32 1.0, %v1464
  %v1466 = vrcp.pop %v1455
  %v1467 = vmul.f32 1.0, %v1466
  %v1468 = vrcp.pop %v1456
  %v1469 = vmul.f32 1.0, %v1468
  %v1470 = vrcp.pop %v1457
  %v1471 = vmul.f32 1.0, %v1470
  %v1472 = vrcp.pop %v1458
  %v1473 = vmul.f32 1.0, %v1472
  %v1474 = vrcp.pop %v1459
  %v1475 = vmul.f32 1.0, %v1474
  %v1476 = vtanh.pop %v1420
  %v1477 = vtanh.pop %v1421
  %v1478 = vtanh.pop %v1422
  %v1479 = vtanh.pop %v1423
  %v1480 = vtanh.pop %v1424
  %v1481 = vtanh.pop %v1425
  %v1482 = vtanh.pop %v1426
  %v1483 = vtanh.pop %v1427
  %v1492 = vrot.slane %v1252, 7
  %v1493 = vrot.slane %v1253, 7
  %v1494 = vrot.slane %v1254, 7
  %v1495 = vrot.slane %v1255, 7
  %v1496 = vrot.slane %v1256, 7
  %v1497 = vrot.slane %v1257, 7
  %v1498 = vrot.slane %v1258, 7
  %v1499 = vrot.slane %v1259, 7
  %v1508 = vmul.f32 %v1461, %v1492
  %v1509 = vmul.f32 %v1463, %v1493
  %v1510 = vmul.f32 %v1465, %v1494
  %v1511 = vmul.f32 %v1467, %v1495
  %v1512 = vmul.f32 %v1469, %v1496
  %v1513 = vmul.f32 %v1471, %v1497
  %v1514 = vmul.f32 %v1473, %v1498
  %v1515 = vmul.f32 %v1475, %v1499
  %1524 = vrot.lane.b32.xlu0 %v1476, 64
  %v1525 = vpop.permute.xlu0 %1524
  %1526 = vrot.lane.b32.xlu0 %v1477, 64
  %v1527 = vpop.permute.xlu0 %1526
  %1528 = vrot.lane.b32.xlu0 %v1478, 64
  %v1529 = vpop.permute.xlu0 %1528
  %1530 = vrot.lane.b32.xlu0 %v1479, 64
  %v1531 = vpop.permute.xlu0 %1530
  %1532 = vrot.lane.b32.xlu0 %v1480, 64
  %v1533 = vpop.permute.xlu0 %1532
  %1534 = vrot.lane.b32.xlu0 %v1481, 64
  %v1535 = vpop.permute.xlu0 %1534
  %1536 = vrot.lane.b32.xlu0 %v1482, 64
  %v1537 = vpop.permute.xlu0 %1536
  %1538 = vrot.lane.b32.xlu0 %v1483, 64
  %v1539 = vpop.permute.xlu0 %1538
  %v1548 = vmul.f32 %v1461, %v1525
  %v1549 = vmul.f32 %v1463, %v1527
  %v1550 = vmul.f32 %v1465, %v1529
  %v1551 = vmul.f32 %v1467, %v1531
  %v1552 = vmul.f32 %v1469, %v1533
  %v1553 = vmul.f32 %v1471, %v1535
  %v1554 = vmul.f32 %v1473, %v1537
  %v1555 = vmul.f32 %v1475, %v1539
  %1564 = vrot.lane.b32.xlu0 %v1548, 32
  %v1565 = vpop.permute.xlu0 %1564
  %1566 = vrot.lane.b32.xlu0 %v1549, 32
  %v1567 = vpop.permute.xlu0 %1566
  %1568 = vrot.lane.b32.xlu0 %v1550, 32
  %v1569 = vpop.permute.xlu0 %1568
  %1570 = vrot.lane.b32.xlu0 %v1551, 32
  %v1571 = vpop.permute.xlu0 %1570
  %1572 = vrot.lane.b32.xlu0 %v1552, 32
  %v1573 = vpop.permute.xlu0 %1572
  %1574 = vrot.lane.b32.xlu0 %v1553, 32
  %v1575 = vpop.permute.xlu0 %1574
  %1576 = vrot.lane.b32.xlu0 %v1554, 32
  %v1577 = vpop.permute.xlu0 %1576
  %1578 = vrot.lane.b32.xlu0 %v1555, 32
  %v1579 = vpop.permute.xlu0 %1578
  %v1588 = vadd.f32 %v1508, %v1565
  %v1589 = vadd.f32 %v1509, %v1567
  %v1590 = vadd.f32 %v1510, %v1569
  %v1591 = vadd.f32 %v1511, %v1571
  %v1592 = vadd.f32 %v1512, %v1573
  %v1593 = vadd.f32 %v1513, %v1575
  %v1594 = vadd.f32 %v1514, %v1577
  %v1595 = vadd.f32 %v1515, %v1579
  %v1596 = vtanh.pop %v1588
  %v1597 = vtanh.pop %v1589
  %v1598 = vtanh.pop %v1590
  %v1599 = vtanh.pop %v1591
  %v1600 = vtanh.pop %v1592
  %v1601 = vtanh.pop %v1593
  %v1602 = vtanh.pop %v1594
  %v1603 = vtanh.pop %v1595
  %1612 = vrot.lane.b32.xlu0 %v1596, 64
  %v1613 = vpop.permute.xlu0 %1612
  %1614 = vrot.lane.b32.xlu0 %v1597, 64
  %v1615 = vpop.permute.xlu0 %1614
  %1616 = vrot.lane.b32.xlu0 %v1598, 64
  %v1617 = vpop.permute.xlu0 %1616
  %1618 = vrot.lane.b32.xlu0 %v1599, 64
  %v1619 = vpop.permute.xlu0 %1618
  %1620 = vrot.lane.b32.xlu0 %v1600, 64
  %v1621 = vpop.permute.xlu0 %1620
  %1622 = vrot.lane.b32.xlu0 %v1601, 64
  %v1623 = vpop.permute.xlu0 %1622
  %1624 = vrot.lane.b32.xlu0 %v1602, 64
  %v1625 = vpop.permute.xlu0 %1624
  %1626 = vrot.lane.b32.xlu0 %v1603, 64
  %v1627 = vpop.permute.xlu0 %1626
  %v1636 = vmul.f32 %v1461, %v1613
  %v1637 = vmul.f32 %v1463, %v1615
  %v1638 = vmul.f32 %v1465, %v1617
  %v1639 = vmul.f32 %v1467, %v1619
  %v1640 = vmul.f32 %v1469, %v1621
  %v1641 = vmul.f32 %v1471, %v1623
  %v1642 = vmul.f32 %v1473, %v1625
  %v1643 = vmul.f32 %v1475, %v1627
  %v1652 = vrot.slane %v1636, 3
  %v1653 = vrot.slane %v1637, 2
  %v1654 = vsel %vm638, %v1653, %v1652
  %v1655 = vrot.slane %v1638, 1
  %v1656 = vsel %vm641, %v1655, %v1654
  %v1657 = vsel %vm644, %v1639, %v1656
  %v1658 = vrot.slane %v1640, 7
  %v1659 = vsel %vm647, %v1658, %v1657
  %v1660 = vrot.slane %v1641, 6
  %v1661 = vsel %vm650, %v1660, %v1659
  %v1662 = vrot.slane %v1642, 5
  %v1663 = vsel %vm653, %v1662, %v1661
  %v1664 = vrot.slane %v1643, 4
  %v1665 = vsel %vm656, %v1664, %v1663
  %1666 = vrot.lane.b32.xlu0 %v1665, 32
  %v1667 = vpop.permute.xlu0 %1666
  %v1668 = vsel %vm206, %v1667, 0
  %1670 = vmatprep.subr.mxu0 0.0
  %1671 = vmatpush1.msra.mxu0 0.0
  %1672 = vmatprep.subr.mxu0 0.0
  %1673 = vmatpush1.msra.mxu0 0.0
  %1674 = vmatprep.subr.mxu0 0.0
  %1675 = vmatpush1.msra.mxu0 0.0
  %1676 = vmatprep.subr.mxu0 0.0
  %1677 = vmatpush1.msra.mxu0 0.0
  %1678 = vmatprep.subr.mxu0 0.0
  %1679 = vmatpush1.msra.mxu0 0.0
  %1680 = vmatprep.subr.mxu0 0.0
  %1681 = vmatpush1.msra.mxu0 0.0
  %1682 = vmatprep.subr.mxu0 0.0
  %1683 = vmatpush1.msra.mxu0 0.0
  %1684 = vmatprep.subr.mxu0 0.0
  %1685 = vmatpush1.msra.mxu0 0.0
  %1686 = vmatprep.subr.mxu0 0.0
  %1687 = vmatpush1.msra.mxu0 0.0
  %1688 = vmatprep.subr.mxu0 0.0
  %1689 = vmatpush1.msra.mxu0 0.0
  %1690 = vmatprep.subr.mxu0 0.0
  %1691 = vmatpush1.msra.mxu0 0.0
  %1692 = vmatprep.subr.mxu0 0.0
  %1693 = vmatpush1.msra.mxu0 0.0
  %1694 = vmatprep.subr.mxu0 0.0
  %1695 = vmatpush1.msra.mxu0 %v339
  %1696 = vmatprep.subr.mxu0 0.0
  %1697 = vmatpush1.msra.mxu0 %v338
  %1698 = vmatprep.subr.mxu0 0.0
  %1699 = vmatpush1.msra.mxu0 %v337
  %1700 = vmatprep.subr.mxu0 0.0
  %1701 = vmatpush1.msra.mxu0 %v336
  %1702 = vmatprep.subr.mxu0 0.0
  %1703 = vmatpush2.msra.mxu0 0.0
  %1704 = vmatprep.subr.mxu0 0.0
  %1705 = vmatpush2.msra.mxu0 0.0
  %1706 = vmatprep.subr.mxu0 0.0
  %1707 = vmatpush2.msra.mxu0 0.0
  %1708 = vmatprep.subr.mxu0 0.0
  %1709 = vmatpush2.msra.mxu0 0.0
  %1710 = vmatprep.subr.mxu0 0.0
  %1711 = vmatpush2.msra.mxu0 0.0
  %1712 = vmatprep.subr.mxu0 0.0
  %1713 = vmatpush2.msra.mxu0 0.0
  %1714 = vmatprep.subr.mxu0 0.0
  %1715 = vmatpush2.msra.mxu0 0.0
  %1716 = vmatprep.subr.mxu0 0.0
  %1717 = vmatpush2.msra.mxu0 0.0
  %1718 = vmatprep.subr.mxu0 0.0
  %1719 = vmatpush2.msra.mxu0 0.0
  %1720 = vmatprep.subr.mxu0 0.0
  %1721 = vmatpush2.msra.mxu0 0.0
  %1722 = vmatprep.subr.mxu0 0.0
  %1723 = vmatpush2.msra.mxu0 0.0
  %1724 = vmatprep.subr.mxu0 0.0
  %1725 = vmatpush2.msra.mxu0 0.0
  %1726 = vmatprep.subr.mxu0 0.0
  %1727 = vmatpush2.msra.mxu0 0.0
  %1728 = vmatprep.subr.mxu0 0.0
  %1729 = vmatpush2.msra.mxu0 0.0
  %1730 = vmatprep.subr.mxu0 0.0
  %1731 = vmatpush2.msra.mxu0 0.0
  %1732 = vmatprep.subr.mxu0 0.0
  %1733 = vmatpush2.msra.mxu0 0.0
  %1734 = vmatprep.mubr.f32.mxu0 0.0
  %1735 = vmatmul.mubr.f32.gmra.mxu0 %v1668
  %v1736 = vpop.f32.mrf.mxu0
  %v1737 = vadd.f32 0.0, %v1736
  %v1738 = vpop.f32.mrf.mxu0
  %1739 = vdwg.mxu0
  %v1741 = vrot.slane %v1737, 4
  %v1742 = vrot.slane %v1737, 5
  %v1743 = vrot.slane %v1737, 6
  %v1744 = vrot.slane %v1737, 7
  %v1745 = vrot.slane %v1737, 1
  %v1746 = vrot.slane %v1737, 2
  %v1747 = vrot.slane %v1737, 3
  %v1756 = vadd.f32 %v298, %v1741
  %v1757 = vadd.f32 %v303, %v1742
  %v1758 = vadd.f32 %v308, %v1743
  %v1759 = vadd.f32 %v313, %v1744
  %v1760 = vadd.f32 %v318, %v1737
  %v1761 = vadd.f32 %v323, %v1745
  %v1762 = vadd.f32 %v328, %v1746
  %v1763 = vadd.f32 %v333, %v1747
  %v1764 = vxor.u32 %v1756, 2147483648
  %v1765 = vxor.u32 %v1757, 2147483648
  %v1766 = vxor.u32 %v1758, 2147483648
  %v1767 = vxor.u32 %v1759, 2147483648
  %v1768 = vxor.u32 %v1760, 2147483648
  %v1769 = vxor.u32 %v1761, 2147483648
  %v1770 = vxor.u32 %v1762, 2147483648
  %v1771 = vxor.u32 %v1763, 2147483648
  %v1772 = vmul.f32 %v1764, 1.442695
  %v1773 = vpow.pop %v1772
  %v1774 = vmul.f32 %v1765, 1.442695
  %v1775 = vpow.pop %v1774
  %v1776 = vmul.f32 %v1766, 1.442695
  %v1777 = vpow.pop %v1776
  %v1778 = vmul.f32 %v1767, 1.442695
  %v1779 = vpow.pop %v1778
  %v1780 = vmul.f32 %v1768, 1.442695
  %v1781 = vpow.pop %v1780
  %v1782 = vmul.f32 %v1769, 1.442695
  %v1783 = vpow.pop %v1782
  %v1784 = vmul.f32 %v1770, 1.442695
  %v1785 = vpow.pop %v1784
  %v1786 = vmul.f32 %v1771, 1.442695
  %v1787 = vpow.pop %v1786
  %v1788 = vadd.f32 %v1773, 1.0
  %v1789 = vadd.f32 %v1775, 1.0
  %v1790 = vadd.f32 %v1777, 1.0
  %v1791 = vadd.f32 %v1779, 1.0
  %v1792 = vadd.f32 %v1781, 1.0
  %v1793 = vadd.f32 %v1783, 1.0
  %v1794 = vadd.f32 %v1785, 1.0
  %v1795 = vadd.f32 %v1787, 1.0
  %v1796 = vrcp.pop %v1788
  %v1797 = vmul.f32 1.0, %v1796
  %v1798 = vrcp.pop %v1789
  %v1799 = vmul.f32 1.0, %v1798
  %v1800 = vrcp.pop %v1790
  %v1801 = vmul.f32 1.0, %v1800
  %v1802 = vrcp.pop %v1791
  %v1803 = vmul.f32 1.0, %v1802
  %v1804 = vrcp.pop %v1792
  %v1805 = vmul.f32 1.0, %v1804
  %v1806 = vrcp.pop %v1793
  %v1807 = vmul.f32 1.0, %v1806
  %v1808 = vrcp.pop %v1794
  %v1809 = vmul.f32 1.0, %v1808
  %v1810 = vrcp.pop %v1795
  %v1811 = vmul.f32 1.0, %v1810
  %v1812 = vtanh.pop %v1756
  %v1813 = vtanh.pop %v1757
  %v1814 = vtanh.pop %v1758
  %v1815 = vtanh.pop %v1759
  %v1816 = vtanh.pop %v1760
  %v1817 = vtanh.pop %v1761
  %v1818 = vtanh.pop %v1762
  %v1819 = vtanh.pop %v1763
  %v1828 = vrot.slane %v1588, 7
  %v1829 = vrot.slane %v1589, 7
  %v1830 = vrot.slane %v1590, 7
  %v1831 = vrot.slane %v1591, 7
  %v1832 = vrot.slane %v1592, 7
  %v1833 = vrot.slane %v1593, 7
  %v1834 = vrot.slane %v1594, 7
  %v1835 = vrot.slane %v1595, 7
  %v1844 = vmul.f32 %v1797, %v1828
  %v1845 = vmul.f32 %v1799, %v1829
  %v1846 = vmul.f32 %v1801, %v1830
  %v1847 = vmul.f32 %v1803, %v1831
  %v1848 = vmul.f32 %v1805, %v1832
  %v1849 = vmul.f32 %v1807, %v1833
  %v1850 = vmul.f32 %v1809, %v1834
  %v1851 = vmul.f32 %v1811, %v1835
  %1860 = vrot.lane.b32.xlu0 %v1812, 64
  %v1861 = vpop.permute.xlu0 %1860
  %1862 = vrot.lane.b32.xlu0 %v1813, 64
  %v1863 = vpop.permute.xlu0 %1862
  %1864 = vrot.lane.b32.xlu0 %v1814, 64
  %v1865 = vpop.permute.xlu0 %1864
  %1866 = vrot.lane.b32.xlu0 %v1815, 64
  %v1867 = vpop.permute.xlu0 %1866
  %1868 = vrot.lane.b32.xlu0 %v1816, 64
  %v1869 = vpop.permute.xlu0 %1868
  %1870 = vrot.lane.b32.xlu0 %v1817, 64
  %v1871 = vpop.permute.xlu0 %1870
  %1872 = vrot.lane.b32.xlu0 %v1818, 64
  %v1873 = vpop.permute.xlu0 %1872
  %1874 = vrot.lane.b32.xlu0 %v1819, 64
  %v1875 = vpop.permute.xlu0 %1874
  %v1884 = vmul.f32 %v1797, %v1861
  %v1885 = vmul.f32 %v1799, %v1863
  %v1886 = vmul.f32 %v1801, %v1865
  %v1887 = vmul.f32 %v1803, %v1867
  %v1888 = vmul.f32 %v1805, %v1869
  %v1889 = vmul.f32 %v1807, %v1871
  %v1890 = vmul.f32 %v1809, %v1873
  %v1891 = vmul.f32 %v1811, %v1875
  %1900 = vrot.lane.b32.xlu0 %v1884, 32
  %v1901 = vpop.permute.xlu0 %1900
  %1902 = vrot.lane.b32.xlu0 %v1885, 32
  %v1903 = vpop.permute.xlu0 %1902
  %1904 = vrot.lane.b32.xlu0 %v1886, 32
  %v1905 = vpop.permute.xlu0 %1904
  %1906 = vrot.lane.b32.xlu0 %v1887, 32
  %v1907 = vpop.permute.xlu0 %1906
  %1908 = vrot.lane.b32.xlu0 %v1888, 32
  %v1909 = vpop.permute.xlu0 %1908
  %1910 = vrot.lane.b32.xlu0 %v1889, 32
  %v1911 = vpop.permute.xlu0 %1910
  %1912 = vrot.lane.b32.xlu0 %v1890, 32
  %v1913 = vpop.permute.xlu0 %1912
  %1914 = vrot.lane.b32.xlu0 %v1891, 32
  %v1915 = vpop.permute.xlu0 %1914
  %v1924 = vadd.f32 %v1844, %v1901
  %v1925 = vadd.f32 %v1845, %v1903
  %v1926 = vadd.f32 %v1846, %v1905
  %v1927 = vadd.f32 %v1847, %v1907
  %v1928 = vadd.f32 %v1848, %v1909
  %v1929 = vadd.f32 %v1849, %v1911
  %v1930 = vadd.f32 %v1850, %v1913
  %v1931 = vadd.f32 %v1851, %v1915
  %v1932 = vtanh.pop %v1924
  %v1933 = vtanh.pop %v1925
  %v1934 = vtanh.pop %v1926
  %v1935 = vtanh.pop %v1927
  %v1936 = vtanh.pop %v1928
  %v1937 = vtanh.pop %v1929
  %v1938 = vtanh.pop %v1930
  %v1939 = vtanh.pop %v1931
  %1948 = vrot.lane.b32.xlu0 %v1932, 64
  %v1949 = vpop.permute.xlu0 %1948
  %1950 = vrot.lane.b32.xlu0 %v1933, 64
  %v1951 = vpop.permute.xlu0 %1950
  %1952 = vrot.lane.b32.xlu0 %v1934, 64
  %v1953 = vpop.permute.xlu0 %1952
  %1954 = vrot.lane.b32.xlu0 %v1935, 64
  %v1955 = vpop.permute.xlu0 %1954
  %1956 = vrot.lane.b32.xlu0 %v1936, 64
  %v1957 = vpop.permute.xlu0 %1956
  %1958 = vrot.lane.b32.xlu0 %v1937, 64
  %v1959 = vpop.permute.xlu0 %1958
  %1960 = vrot.lane.b32.xlu0 %v1938, 64
  %v1961 = vpop.permute.xlu0 %1960
  %1962 = vrot.lane.b32.xlu0 %v1939, 64
  %v1963 = vpop.permute.xlu0 %1962
  %v1972 = vmul.f32 %v1797, %v1949
  %v1973 = vmul.f32 %v1799, %v1951
  %v1974 = vmul.f32 %v1801, %v1953
  %v1975 = vmul.f32 %v1803, %v1955
  %v1976 = vmul.f32 %v1805, %v1957
  %v1977 = vmul.f32 %v1807, %v1959
  %v1978 = vmul.f32 %v1809, %v1961
  %v1979 = vmul.f32 %v1811, %v1963
  %v1988 = vrot.slane %v1972, 4
  %v1989 = vrot.slane %v1973, 3
  %v1990 = vsel %vm638, %v1989, %v1988
  %v1991 = vrot.slane %v1974, 2
  %v1992 = vsel %vm641, %v1991, %v1990
  %v1993 = vrot.slane %v1975, 1
  %v1994 = vsel %vm644, %v1993, %v1992
  %v1995 = vsel %vm647, %v1976, %v1994
  %v1996 = vrot.slane %v1977, 7
  %v1997 = vsel %vm650, %v1996, %v1995
  %v1998 = vrot.slane %v1978, 6
  %v1999 = vsel %vm653, %v1998, %v1997
  %v2000 = vrot.slane %v1979, 5
  %v2001 = vsel %vm656, %v2000, %v1999
  %2002 = vrot.lane.b32.xlu0 %v2001, 32
  %v2003 = vpop.permute.xlu0 %2002
  %v2004 = vsel %vm206, %v2003, 0
  %2006 = vmatprep.subr.mxu0 0.0
  %2007 = vmatpush1.msra.mxu0 0.0
  %2008 = vmatprep.subr.mxu0 0.0
  %2009 = vmatpush1.msra.mxu0 0.0
  %2010 = vmatprep.subr.mxu0 0.0
  %2011 = vmatpush1.msra.mxu0 0.0
  %2012 = vmatprep.subr.mxu0 0.0
  %2013 = vmatpush1.msra.mxu0 0.0
  %2014 = vmatprep.subr.mxu0 0.0
  %2015 = vmatpush1.msra.mxu0 0.0
  %2016 = vmatprep.subr.mxu0 0.0
  %2017 = vmatpush1.msra.mxu0 0.0
  %2018 = vmatprep.subr.mxu0 0.0
  %2019 = vmatpush1.msra.mxu0 0.0
  %2020 = vmatprep.subr.mxu0 0.0
  %2021 = vmatpush1.msra.mxu0 0.0
  %2022 = vmatprep.subr.mxu0 0.0
  %2023 = vmatpush1.msra.mxu0 0.0
  %2024 = vmatprep.subr.mxu0 0.0
  %2025 = vmatpush1.msra.mxu0 0.0
  %2026 = vmatprep.subr.mxu0 0.0
  %2027 = vmatpush1.msra.mxu0 0.0
  %2028 = vmatprep.subr.mxu0 0.0
  %2029 = vmatpush1.msra.mxu0 0.0
  %2030 = vmatprep.subr.mxu0 0.0
  %2031 = vmatpush1.msra.mxu0 %v339
  %2032 = vmatprep.subr.mxu0 0.0
  %2033 = vmatpush1.msra.mxu0 %v338
  %2034 = vmatprep.subr.mxu0 0.0
  %2035 = vmatpush1.msra.mxu0 %v337
  %2036 = vmatprep.subr.mxu0 0.0
  %2037 = vmatpush1.msra.mxu0 %v336
  %2038 = vmatprep.subr.mxu0 0.0
  %2039 = vmatpush2.msra.mxu0 0.0
  %2040 = vmatprep.subr.mxu0 0.0
  %2041 = vmatpush2.msra.mxu0 0.0
  %2042 = vmatprep.subr.mxu0 0.0
  %2043 = vmatpush2.msra.mxu0 0.0
  %2044 = vmatprep.subr.mxu0 0.0
  %2045 = vmatpush2.msra.mxu0 0.0
  %2046 = vmatprep.subr.mxu0 0.0
  %2047 = vmatpush2.msra.mxu0 0.0
  %2048 = vmatprep.subr.mxu0 0.0
  %2049 = vmatpush2.msra.mxu0 0.0
  %2050 = vmatprep.subr.mxu0 0.0
  %2051 = vmatpush2.msra.mxu0 0.0
  %2052 = vmatprep.subr.mxu0 0.0
  %2053 = vmatpush2.msra.mxu0 0.0
  %2054 = vmatprep.subr.mxu0 0.0
  %2055 = vmatpush2.msra.mxu0 0.0
  %2056 = vmatprep.subr.mxu0 0.0
  %2057 = vmatpush2.msra.mxu0 0.0
  %2058 = vmatprep.subr.mxu0 0.0
  %2059 = vmatpush2.msra.mxu0 0.0
  %2060 = vmatprep.subr.mxu0 0.0
  %2061 = vmatpush2.msra.mxu0 0.0
  %2062 = vmatprep.subr.mxu0 0.0
  %2063 = vmatpush2.msra.mxu0 0.0
  %2064 = vmatprep.subr.mxu0 0.0
  %2065 = vmatpush2.msra.mxu0 0.0
  %2066 = vmatprep.subr.mxu0 0.0
  %2067 = vmatpush2.msra.mxu0 0.0
  %2068 = vmatprep.subr.mxu0 0.0
  %2069 = vmatpush2.msra.mxu0 0.0
  %2070 = vmatprep.mubr.f32.mxu0 0.0
  %2071 = vmatmul.mubr.f32.gmra.mxu0 %v2004
  %v2072 = vpop.f32.mrf.mxu0
  %v2073 = vadd.f32 0.0, %v2072
  %v2074 = vpop.f32.mrf.mxu0
  %2075 = vdwg.mxu0
  %v2077 = vrot.slane %v2073, 3
  %v2078 = vrot.slane %v2073, 4
  %v2079 = vrot.slane %v2073, 5
  %v2080 = vrot.slane %v2073, 6
  %v2081 = vrot.slane %v2073, 7
  %v2082 = vrot.slane %v2073, 1
  %v2083 = vrot.slane %v2073, 2
  %v2092 = vadd.f32 %v298, %v2077
  %v2093 = vadd.f32 %v303, %v2078
  %v2094 = vadd.f32 %v308, %v2079
  %v2095 = vadd.f32 %v313, %v2080
  %v2096 = vadd.f32 %v318, %v2081
  %v2097 = vadd.f32 %v323, %v2073
  %v2098 = vadd.f32 %v328, %v2082
  %v2099 = vadd.f32 %v333, %v2083
  %v2100 = vxor.u32 %v2092, 2147483648
  %v2101 = vxor.u32 %v2093, 2147483648
  %v2102 = vxor.u32 %v2094, 2147483648
  %v2103 = vxor.u32 %v2095, 2147483648
  %v2104 = vxor.u32 %v2096, 2147483648
  %v2105 = vxor.u32 %v2097, 2147483648
  %v2106 = vxor.u32 %v2098, 2147483648
  %v2107 = vxor.u32 %v2099, 2147483648
  %v2108 = vmul.f32 %v2100, 1.442695
  %v2109 = vpow.pop %v2108
  %v2110 = vmul.f32 %v2101, 1.442695
  %v2111 = vpow.pop %v2110
  %v2112 = vmul.f32 %v2102, 1.442695
  %v2113 = vpow.pop %v2112
  %v2114 = vmul.f32 %v2103, 1.442695
  %v2115 = vpow.pop %v2114
  %v2116 = vmul.f32 %v2104, 1.442695
  %v2117 = vpow.pop %v2116
  %v2118 = vmul.f32 %v2105, 1.442695
  %v2119 = vpow.pop %v2118
  %v2120 = vmul.f32 %v2106, 1.442695
  %v2121 = vpow.pop %v2120
  %v2122 = vmul.f32 %v2107, 1.442695
  %v2123 = vpow.pop %v2122
  %v2124 = vadd.f32 %v2109, 1.0
  %v2125 = vadd.f32 %v2111, 1.0
  %v2126 = vadd.f32 %v2113, 1.0
  %v2127 = vadd.f32 %v2115, 1.0
  %v2128 = vadd.f32 %v2117, 1.0
  %v2129 = vadd.f32 %v2119, 1.0
  %v2130 = vadd.f32 %v2121, 1.0
  %v2131 = vadd.f32 %v2123, 1.0
  %v2132 = vrcp.pop %v2124
  %v2133 = vmul.f32 1.0, %v2132
  %v2134 = vrcp.pop %v2125
  %v2135 = vmul.f32 1.0, %v2134
  %v2136 = vrcp.pop %v2126
  %v2137 = vmul.f32 1.0, %v2136
  %v2138 = vrcp.pop %v2127
  %v2139 = vmul.f32 1.0, %v2138
  %v2140 = vrcp.pop %v2128
  %v2141 = vmul.f32 1.0, %v2140
  %v2142 = vrcp.pop %v2129
  %v2143 = vmul.f32 1.0, %v2142
  %v2144 = vrcp.pop %v2130
  %v2145 = vmul.f32 1.0, %v2144
  %v2146 = vrcp.pop %v2131
  %v2147 = vmul.f32 1.0, %v2146
  %v2148 = vtanh.pop %v2092
  %v2149 = vtanh.pop %v2093
  %v2150 = vtanh.pop %v2094
  %v2151 = vtanh.pop %v2095
  %v2152 = vtanh.pop %v2096
  %v2153 = vtanh.pop %v2097
  %v2154 = vtanh.pop %v2098
  %v2155 = vtanh.pop %v2099
  %v2164 = vrot.slane %v1924, 7
  %v2165 = vrot.slane %v1925, 7
  %v2166 = vrot.slane %v1926, 7
  %v2167 = vrot.slane %v1927, 7
  %v2168 = vrot.slane %v1928, 7
  %v2169 = vrot.slane %v1929, 7
  %v2170 = vrot.slane %v1930, 7
  %v2171 = vrot.slane %v1931, 7
  %v2180 = vmul.f32 %v2133, %v2164
  %v2181 = vmul.f32 %v2135, %v2165
  %v2182 = vmul.f32 %v2137, %v2166
  %v2183 = vmul.f32 %v2139, %v2167
  %v2184 = vmul.f32 %v2141, %v2168
  %v2185 = vmul.f32 %v2143, %v2169
  %v2186 = vmul.f32 %v2145, %v2170
  %v2187 = vmul.f32 %v2147, %v2171
  %2196 = vrot.lane.b32.xlu0 %v2148, 64
  %v2197 = vpop.permute.xlu0 %2196
  %2198 = vrot.lane.b32.xlu0 %v2149, 64
  %v2199 = vpop.permute.xlu0 %2198
  %2200 = vrot.lane.b32.xlu0 %v2150, 64
  %v2201 = vpop.permute.xlu0 %2200
  %2202 = vrot.lane.b32.xlu0 %v2151, 64
  %v2203 = vpop.permute.xlu0 %2202
  %2204 = vrot.lane.b32.xlu0 %v2152, 64
  %v2205 = vpop.permute.xlu0 %2204
  %2206 = vrot.lane.b32.xlu0 %v2153, 64
  %v2207 = vpop.permute.xlu0 %2206
  %2208 = vrot.lane.b32.xlu0 %v2154, 64
  %v2209 = vpop.permute.xlu0 %2208
  %2210 = vrot.lane.b32.xlu0 %v2155, 64
  %v2211 = vpop.permute.xlu0 %2210
  %v2220 = vmul.f32 %v2133, %v2197
  %v2221 = vmul.f32 %v2135, %v2199
  %v2222 = vmul.f32 %v2137, %v2201
  %v2223 = vmul.f32 %v2139, %v2203
  %v2224 = vmul.f32 %v2141, %v2205
  %v2225 = vmul.f32 %v2143, %v2207
  %v2226 = vmul.f32 %v2145, %v2209
  %v2227 = vmul.f32 %v2147, %v2211
  %2236 = vrot.lane.b32.xlu0 %v2220, 32
  %v2237 = vpop.permute.xlu0 %2236
  %2238 = vrot.lane.b32.xlu0 %v2221, 32
  %v2239 = vpop.permute.xlu0 %2238
  %2240 = vrot.lane.b32.xlu0 %v2222, 32
  %v2241 = vpop.permute.xlu0 %2240
  %2242 = vrot.lane.b32.xlu0 %v2223, 32
  %v2243 = vpop.permute.xlu0 %2242
  %2244 = vrot.lane.b32.xlu0 %v2224, 32
  %v2245 = vpop.permute.xlu0 %2244
  %2246 = vrot.lane.b32.xlu0 %v2225, 32
  %v2247 = vpop.permute.xlu0 %2246
  %2248 = vrot.lane.b32.xlu0 %v2226, 32
  %v2249 = vpop.permute.xlu0 %2248
  %2250 = vrot.lane.b32.xlu0 %v2227, 32
  %v2251 = vpop.permute.xlu0 %2250
  %v2260 = vadd.f32 %v2180, %v2237
  %v2261 = vadd.f32 %v2181, %v2239
  %v2262 = vadd.f32 %v2182, %v2241
  %v2263 = vadd.f32 %v2183, %v2243
  %v2264 = vadd.f32 %v2184, %v2245
  %v2265 = vadd.f32 %v2185, %v2247
  %v2266 = vadd.f32 %v2186, %v2249
  %v2267 = vadd.f32 %v2187, %v2251
  %v2268 = vtanh.pop %v2260
  %v2269 = vtanh.pop %v2261
  %v2270 = vtanh.pop %v2262
  %v2271 = vtanh.pop %v2263
  %v2272 = vtanh.pop %v2264
  %v2273 = vtanh.pop %v2265
  %v2274 = vtanh.pop %v2266
  %v2275 = vtanh.pop %v2267
  %2284 = vrot.lane.b32.xlu0 %v2268, 64
  %v2285 = vpop.permute.xlu0 %2284
  %2286 = vrot.lane.b32.xlu0 %v2269, 64
  %v2287 = vpop.permute.xlu0 %2286
  %2288 = vrot.lane.b32.xlu0 %v2270, 64
  %v2289 = vpop.permute.xlu0 %2288
  %2290 = vrot.lane.b32.xlu0 %v2271, 64
  %v2291 = vpop.permute.xlu0 %2290
  %2292 = vrot.lane.b32.xlu0 %v2272, 64
  %v2293 = vpop.permute.xlu0 %2292
  %2294 = vrot.lane.b32.xlu0 %v2273, 64
  %v2295 = vpop.permute.xlu0 %2294
  %2296 = vrot.lane.b32.xlu0 %v2274, 64
  %v2297 = vpop.permute.xlu0 %2296
  %2298 = vrot.lane.b32.xlu0 %v2275, 64
  %v2299 = vpop.permute.xlu0 %2298
  %v2308 = vmul.f32 %v2133, %v2285
  %v2309 = vmul.f32 %v2135, %v2287
  %v2310 = vmul.f32 %v2137, %v2289
  %v2311 = vmul.f32 %v2139, %v2291
  %v2312 = vmul.f32 %v2141, %v2293
  %v2313 = vmul.f32 %v2143, %v2295
  %v2314 = vmul.f32 %v2145, %v2297
  %v2315 = vmul.f32 %v2147, %v2299
  %v2324 = vrot.slane %v2308, 5
  %v2325 = vrot.slane %v2309, 4
  %v2326 = vsel %vm638, %v2325, %v2324
  %v2327 = vrot.slane %v2310, 3
  %v2328 = vsel %vm641, %v2327, %v2326
  %v2329 = vrot.slane %v2311, 2
  %v2330 = vsel %vm644, %v2329, %v2328
  %v2331 = vrot.slane %v2312, 1
  %v2332 = vsel %vm647, %v2331, %v2330
  %v2333 = vsel %vm650, %v2313, %v2332
  %v2334 = vrot.slane %v2314, 7
  %v2335 = vsel %vm653, %v2334, %v2333
  %v2336 = vrot.slane %v2315, 6
  %v2337 = vsel %vm656, %v2336, %v2335
  %2338 = vrot.lane.b32.xlu0 %v2337, 32
  %v2339 = vpop.permute.xlu0 %2338
  %v2340 = vsel %vm206, %v2339, 0
  %2342 = vmatprep.subr.mxu0 0.0
  %2343 = vmatpush1.msra.mxu0 0.0
  %2344 = vmatprep.subr.mxu0 0.0
  %2345 = vmatpush1.msra.mxu0 0.0
  %2346 = vmatprep.subr.mxu0 0.0
  %2347 = vmatpush1.msra.mxu0 0.0
  %2348 = vmatprep.subr.mxu0 0.0
  %2349 = vmatpush1.msra.mxu0 0.0
  %2350 = vmatprep.subr.mxu0 0.0
  %2351 = vmatpush1.msra.mxu0 0.0
  %2352 = vmatprep.subr.mxu0 0.0
  %2353 = vmatpush1.msra.mxu0 0.0
  %2354 = vmatprep.subr.mxu0 0.0
  %2355 = vmatpush1.msra.mxu0 0.0
  %2356 = vmatprep.subr.mxu0 0.0
  %2357 = vmatpush1.msra.mxu0 0.0
  %2358 = vmatprep.subr.mxu0 0.0
  %2359 = vmatpush1.msra.mxu0 0.0
  %2360 = vmatprep.subr.mxu0 0.0
  %2361 = vmatpush1.msra.mxu0 0.0
  %2362 = vmatprep.subr.mxu0 0.0
  %2363 = vmatpush1.msra.mxu0 0.0
  %2364 = vmatprep.subr.mxu0 0.0
  %2365 = vmatpush1.msra.mxu0 0.0
  %2366 = vmatprep.subr.mxu0 0.0
  %2367 = vmatpush1.msra.mxu0 %v339
  %2368 = vmatprep.subr.mxu0 0.0
  %2369 = vmatpush1.msra.mxu0 %v338
  %2370 = vmatprep.subr.mxu0 0.0
  %2371 = vmatpush1.msra.mxu0 %v337
  %2372 = vmatprep.subr.mxu0 0.0
  %2373 = vmatpush1.msra.mxu0 %v336
  %2374 = vmatprep.subr.mxu0 0.0
  %2375 = vmatpush2.msra.mxu0 0.0
  %2376 = vmatprep.subr.mxu0 0.0
  %2377 = vmatpush2.msra.mxu0 0.0
  %2378 = vmatprep.subr.mxu0 0.0
  %2379 = vmatpush2.msra.mxu0 0.0
  %2380 = vmatprep.subr.mxu0 0.0
  %2381 = vmatpush2.msra.mxu0 0.0
  %2382 = vmatprep.subr.mxu0 0.0
  %2383 = vmatpush2.msra.mxu0 0.0
  %2384 = vmatprep.subr.mxu0 0.0
  %2385 = vmatpush2.msra.mxu0 0.0
  %2386 = vmatprep.subr.mxu0 0.0
  %2387 = vmatpush2.msra.mxu0 0.0
  %2388 = vmatprep.subr.mxu0 0.0
  %2389 = vmatpush2.msra.mxu0 0.0
  %2390 = vmatprep.subr.mxu0 0.0
  %2391 = vmatpush2.msra.mxu0 0.0
  %2392 = vmatprep.subr.mxu0 0.0
  %2393 = vmatpush2.msra.mxu0 0.0
  %2394 = vmatprep.subr.mxu0 0.0
  %2395 = vmatpush2.msra.mxu0 0.0
  %2396 = vmatprep.subr.mxu0 0.0
  %2397 = vmatpush2.msra.mxu0 0.0
  %2398 = vmatprep.subr.mxu0 0.0
  %2399 = vmatpush2.msra.mxu0 0.0
  %2400 = vmatprep.subr.mxu0 0.0
  %2401 = vmatpush2.msra.mxu0 0.0
  %2402 = vmatprep.subr.mxu0 0.0
  %2403 = vmatpush2.msra.mxu0 0.0
  %2404 = vmatprep.subr.mxu0 0.0
  %2405 = vmatpush2.msra.mxu0 0.0
  %2406 = vmatprep.mubr.f32.mxu0 0.0
  %2407 = vmatmul.mubr.f32.gmra.mxu0 %v2340
  %v2408 = vpop.f32.mrf.mxu0
  %v2409 = vadd.f32 0.0, %v2408
  %v2410 = vpop.f32.mrf.mxu0
  %2411 = vdwg.mxu0
  %v2413 = vrot.slane %v2409, 2
  %v2414 = vrot.slane %v2409, 3
  %v2415 = vrot.slane %v2409, 4
  %v2416 = vrot.slane %v2409, 5
  %v2417 = vrot.slane %v2409, 6
  %v2418 = vrot.slane %v2409, 7
  %v2419 = vrot.slane %v2409, 1
  %v2428 = vadd.f32 %v298, %v2413
  %v2429 = vadd.f32 %v303, %v2414
  %v2430 = vadd.f32 %v308, %v2415
  %v2431 = vadd.f32 %v313, %v2416
  %v2432 = vadd.f32 %v318, %v2417
  %v2433 = vadd.f32 %v323, %v2418
  %v2434 = vadd.f32 %v328, %v2409
  %v2435 = vadd.f32 %v333, %v2419
  %v2436 = vxor.u32 %v2428, 2147483648
  %v2437 = vxor.u32 %v2429, 2147483648
  %v2438 = vxor.u32 %v2430, 2147483648
  %v2439 = vxor.u32 %v2431, 2147483648
  %v2440 = vxor.u32 %v2432, 2147483648
  %v2441 = vxor.u32 %v2433, 2147483648
  %v2442 = vxor.u32 %v2434, 2147483648
  %v2443 = vxor.u32 %v2435, 2147483648
  %v2444 = vmul.f32 %v2436, 1.442695
  %v2445 = vpow.pop %v2444
  %v2446 = vmul.f32 %v2437, 1.442695
  %v2447 = vpow.pop %v2446
  %v2448 = vmul.f32 %v2438, 1.442695
  %v2449 = vpow.pop %v2448
  %v2450 = vmul.f32 %v2439, 1.442695
  %v2451 = vpow.pop %v2450
  %v2452 = vmul.f32 %v2440, 1.442695
  %v2453 = vpow.pop %v2452
  %v2454 = vmul.f32 %v2441, 1.442695
  %v2455 = vpow.pop %v2454
  %v2456 = vmul.f32 %v2442, 1.442695
  %v2457 = vpow.pop %v2456
  %v2458 = vmul.f32 %v2443, 1.442695
  %v2459 = vpow.pop %v2458
  %v2460 = vadd.f32 %v2445, 1.0
  %v2461 = vadd.f32 %v2447, 1.0
  %v2462 = vadd.f32 %v2449, 1.0
  %v2463 = vadd.f32 %v2451, 1.0
  %v2464 = vadd.f32 %v2453, 1.0
  %v2465 = vadd.f32 %v2455, 1.0
  %v2466 = vadd.f32 %v2457, 1.0
  %v2467 = vadd.f32 %v2459, 1.0
  %v2468 = vrcp.pop %v2460
  %v2469 = vmul.f32 1.0, %v2468
  %v2470 = vrcp.pop %v2461
  %v2471 = vmul.f32 1.0, %v2470
  %v2472 = vrcp.pop %v2462
  %v2473 = vmul.f32 1.0, %v2472
  %v2474 = vrcp.pop %v2463
  %v2475 = vmul.f32 1.0, %v2474
  %v2476 = vrcp.pop %v2464
  %v2477 = vmul.f32 1.0, %v2476
  %v2478 = vrcp.pop %v2465
  %v2479 = vmul.f32 1.0, %v2478
  %v2480 = vrcp.pop %v2466
  %v2481 = vmul.f32 1.0, %v2480
  %v2482 = vrcp.pop %v2467
  %v2483 = vmul.f32 1.0, %v2482
  %v2484 = vtanh.pop %v2428
  %v2485 = vtanh.pop %v2429
  %v2486 = vtanh.pop %v2430
  %v2487 = vtanh.pop %v2431
  %v2488 = vtanh.pop %v2432
  %v2489 = vtanh.pop %v2433
  %v2490 = vtanh.pop %v2434
  %v2491 = vtanh.pop %v2435
  %v2500 = vrot.slane %v2260, 7
  %v2501 = vrot.slane %v2261, 7
  %v2502 = vrot.slane %v2262, 7
  %v2503 = vrot.slane %v2263, 7
  %v2504 = vrot.slane %v2264, 7
  %v2505 = vrot.slane %v2265, 7
  %v2506 = vrot.slane %v2266, 7
  %v2507 = vrot.slane %v2267, 7
  %v2516 = vmul.f32 %v2469, %v2500
  %v2517 = vmul.f32 %v2471, %v2501
  %v2518 = vmul.f32 %v2473, %v2502
  %v2519 = vmul.f32 %v2475, %v2503
  %v2520 = vmul.f32 %v2477, %v2504
  %v2521 = vmul.f32 %v2479, %v2505
  %v2522 = vmul.f32 %v2481, %v2506
  %v2523 = vmul.f32 %v2483, %v2507
  %2532 = vrot.lane.b32.xlu0 %v2484, 64
  %v2533 = vpop.permute.xlu0 %2532
  %2534 = vrot.lane.b32.xlu0 %v2485, 64
  %v2535 = vpop.permute.xlu0 %2534
  %2536 = vrot.lane.b32.xlu0 %v2486, 64
  %v2537 = vpop.permute.xlu0 %2536
  %2538 = vrot.lane.b32.xlu0 %v2487, 64
  %v2539 = vpop.permute.xlu0 %2538
  %2540 = vrot.lane.b32.xlu0 %v2488, 64
  %v2541 = vpop.permute.xlu0 %2540
  %2542 = vrot.lane.b32.xlu0 %v2489, 64
  %v2543 = vpop.permute.xlu0 %2542
  %2544 = vrot.lane.b32.xlu0 %v2490, 64
  %v2545 = vpop.permute.xlu0 %2544
  %2546 = vrot.lane.b32.xlu0 %v2491, 64
  %v2547 = vpop.permute.xlu0 %2546
  %v2556 = vmul.f32 %v2469, %v2533
  %v2557 = vmul.f32 %v2471, %v2535
  %v2558 = vmul.f32 %v2473, %v2537
  %v2559 = vmul.f32 %v2475, %v2539
  %v2560 = vmul.f32 %v2477, %v2541
  %v2561 = vmul.f32 %v2479, %v2543
  %v2562 = vmul.f32 %v2481, %v2545
  %v2563 = vmul.f32 %v2483, %v2547
  %2572 = vrot.lane.b32.xlu0 %v2556, 32
  %v2573 = vpop.permute.xlu0 %2572
  %2574 = vrot.lane.b32.xlu0 %v2557, 32
  %v2575 = vpop.permute.xlu0 %2574
  %2576 = vrot.lane.b32.xlu0 %v2558, 32
  %v2577 = vpop.permute.xlu0 %2576
  %2578 = vrot.lane.b32.xlu0 %v2559, 32
  %v2579 = vpop.permute.xlu0 %2578
  %2580 = vrot.lane.b32.xlu0 %v2560, 32
  %v2581 = vpop.permute.xlu0 %2580
  %2582 = vrot.lane.b32.xlu0 %v2561, 32
  %v2583 = vpop.permute.xlu0 %2582
  %2584 = vrot.lane.b32.xlu0 %v2562, 32
  %v2585 = vpop.permute.xlu0 %2584
  %2586 = vrot.lane.b32.xlu0 %v2563, 32
  %v2587 = vpop.permute.xlu0 %2586
  %v2596 = vadd.f32 %v2516, %v2573
  %v2597 = vadd.f32 %v2517, %v2575
  %v2598 = vadd.f32 %v2518, %v2577
  %v2599 = vadd.f32 %v2519, %v2579
  %v2600 = vadd.f32 %v2520, %v2581
  %v2601 = vadd.f32 %v2521, %v2583
  %v2602 = vadd.f32 %v2522, %v2585
  %v2603 = vadd.f32 %v2523, %v2587
  %v2604 = vtanh.pop %v2596
  %v2605 = vtanh.pop %v2597
  %v2606 = vtanh.pop %v2598
  %v2607 = vtanh.pop %v2599
  %v2608 = vtanh.pop %v2600
  %v2609 = vtanh.pop %v2601
  %v2610 = vtanh.pop %v2602
  %v2611 = vtanh.pop %v2603
  %2620 = vrot.lane.b32.xlu0 %v2604, 64
  %v2621 = vpop.permute.xlu0 %2620
  %2622 = vrot.lane.b32.xlu0 %v2605, 64
  %v2623 = vpop.permute.xlu0 %2622
  %2624 = vrot.lane.b32.xlu0 %v2606, 64
  %v2625 = vpop.permute.xlu0 %2624
  %2626 = vrot.lane.b32.xlu0 %v2607, 64
  %v2627 = vpop.permute.xlu0 %2626
  %2628 = vrot.lane.b32.xlu0 %v2608, 64
  %v2629 = vpop.permute.xlu0 %2628
  %2630 = vrot.lane.b32.xlu0 %v2609, 64
  %v2631 = vpop.permute.xlu0 %2630
  %2632 = vrot.lane.b32.xlu0 %v2610, 64
  %v2633 = vpop.permute.xlu0 %2632
  %2634 = vrot.lane.b32.xlu0 %v2611, 64
  %v2635 = vpop.permute.xlu0 %2634
  %v2644 = vmul.f32 %v2469, %v2621
  %v2645 = vmul.f32 %v2471, %v2623
  %v2646 = vmul.f32 %v2473, %v2625
  %v2647 = vmul.f32 %v2475, %v2627
  %v2648 = vmul.f32 %v2477, %v2629
  %v2649 = vmul.f32 %v2479, %v2631
  %v2650 = vmul.f32 %v2481, %v2633
  %v2651 = vmul.f32 %v2483, %v2635
  %v2660 = vrot.slane %v2644, 6
  %v2661 = vrot.slane %v2645, 5
  %v2662 = vsel %vm638, %v2661, %v2660
  %v2663 = vrot.slane %v2646, 4
  %v2664 = vsel %vm641, %v2663, %v2662
  %v2665 = vrot.slane %v2647, 3
  %v2666 = vsel %vm644, %v2665, %v2664
  %v2667 = vrot.slane %v2648, 2
  %v2668 = vsel %vm647, %v2667, %v2666
  %v2669 = vrot.slane %v2649, 1
  %v2670 = vsel %vm650, %v2669, %v2668
  %v2671 = vsel %vm653, %v2650, %v2670
  %v2672 = vrot.slane %v2651, 7
  %v2673 = vsel %vm656, %v2672, %v2671
  %2674 = vrot.lane.b32.xlu0 %v2673, 32
  %v2675 = vpop.permute.xlu0 %2674
  %v2676 = vsel %vm206, %v2675, 0
  %2678 = vmatprep.subr.mxu0 0.0
  %2679 = vmatpush1.msra.mxu0 0.0
  %2680 = vmatprep.subr.mxu0 0.0
  %2681 = vmatpush1.msra.mxu0 0.0
  %2682 = vmatprep.subr.mxu0 0.0
  %2683 = vmatpush1.msra.mxu0 0.0
  %2684 = vmatprep.subr.mxu0 0.0
  %2685 = vmatpush1.msra.mxu0 0.0
  %2686 = vmatprep.subr.mxu0 0.0
  %2687 = vmatpush1.msra.mxu0 0.0
  %2688 = vmatprep.subr.mxu0 0.0
  %2689 = vmatpush1.msra.mxu0 0.0
  %2690 = vmatprep.subr.mxu0 0.0
  %2691 = vmatpush1.msra.mxu0 0.0
  %2692 = vmatprep.subr.mxu0 0.0
  %2693 = vmatpush1.msra.mxu0 0.0
  %2694 = vmatprep.subr.mxu0 0.0
  %2695 = vmatpush1.msra.mxu0 0.0
  %2696 = vmatprep.subr.mxu0 0.0
  %2697 = vmatpush1.msra.mxu0 0.0
  %2698 = vmatprep.subr.mxu0 0.0
  %2699 = vmatpush1.msra.mxu0 0.0
  %2700 = vmatprep.subr.mxu0 0.0
  %2701 = vmatpush1.msra.mxu0 0.0
  %2702 = vmatprep.subr.mxu0 0.0
  %2703 = vmatpush1.msra.mxu0 %v339
  %2704 = vmatprep.subr.mxu0 0.0
  %2705 = vmatpush1.msra.mxu0 %v338
  %2706 = vmatprep.subr.mxu0 0.0
  %2707 = vmatpush1.msra.mxu0 %v337
  %2708 = vmatprep.subr.mxu0 0.0
  %2709 = vmatpush1.msra.mxu0 %v336
  %2710 = vmatprep.subr.mxu0 0.0
  %2711 = vmatpush2.msra.mxu0 0.0
  %2712 = vmatprep.subr.mxu0 0.0
  %2713 = vmatpush2.msra.mxu0 0.0
  %2714 = vmatprep.subr.mxu0 0.0
  %2715 = vmatpush2.msra.mxu0 0.0
  %2716 = vmatprep.subr.mxu0 0.0
  %2717 = vmatpush2.msra.mxu0 0.0
  %2718 = vmatprep.subr.mxu0 0.0
  %2719 = vmatpush2.msra.mxu0 0.0
  %2720 = vmatprep.subr.mxu0 0.0
  %2721 = vmatpush2.msra.mxu0 0.0
  %2722 = vmatprep.subr.mxu0 0.0
  %2723 = vmatpush2.msra.mxu0 0.0
  %2724 = vmatprep.subr.mxu0 0.0
  %2725 = vmatpush2.msra.mxu0 0.0
  %2726 = vmatprep.subr.mxu0 0.0
  %2727 = vmatpush2.msra.mxu0 0.0
  %2728 = vmatprep.subr.mxu0 0.0
  %2729 = vmatpush2.msra.mxu0 0.0
  %2730 = vmatprep.subr.mxu0 0.0
  %2731 = vmatpush2.msra.mxu0 0.0
  %2732 = vmatprep.subr.mxu0 0.0
  %2733 = vmatpush2.msra.mxu0 0.0
  %2734 = vmatprep.subr.mxu0 0.0
  %2735 = vmatpush2.msra.mxu0 0.0
  %2736 = vmatprep.subr.mxu0 0.0
  %2737 = vmatpush2.msra.mxu0 0.0
  %2738 = vmatprep.subr.mxu0 0.0
  %2739 = vmatpush2.msra.mxu0 0.0
  %2740 = vmatprep.subr.mxu0 0.0
  %2741 = vmatpush2.msra.mxu0 0.0
  %2742 = vmatprep.mubr.f32.mxu0 0.0
  %2743 = vmatmul.mubr.f32.gmra.mxu0 %v2676
  %v2744 = vpop.f32.mrf.mxu0
  %v2745 = vadd.f32 0.0, %v2744
  %v2746 = vpop.f32.mrf.mxu0
  %2747 = vdwg.mxu0
  %v2749 = vrot.slane %v2745, 1
  %v2750 = vrot.slane %v2745, 2
  %v2751 = vrot.slane %v2745, 3
  %v2752 = vrot.slane %v2745, 4
  %v2753 = vrot.slane %v2745, 5
  %v2754 = vrot.slane %v2745, 6
  %v2755 = vrot.slane %v2745, 7
  %v2764 = vadd.f32 %v298, %v2749
  %v2765 = vadd.f32 %v303, %v2750
  %v2766 = vadd.f32 %v308, %v2751
  %v2767 = vadd.f32 %v313, %v2752
  %v2768 = vadd.f32 %v318, %v2753
  %v2769 = vadd.f32 %v323, %v2754
  %v2770 = vadd.f32 %v328, %v2755
  %v2771 = vadd.f32 %v333, %v2745
  %v2772 = vxor.u32 %v2764, 2147483648
  %v2773 = vxor.u32 %v2765, 2147483648
  %v2774 = vxor.u32 %v2766, 2147483648
  %v2775 = vxor.u32 %v2767, 2147483648
  %v2776 = vxor.u32 %v2768, 2147483648
  %v2777 = vxor.u32 %v2769, 2147483648
  %v2778 = vxor.u32 %v2770, 2147483648
  %v2779 = vxor.u32 %v2771, 2147483648
  %v2780 = vmul.f32 %v2772, 1.442695
  %v2781 = vpow.pop %v2780
  %v2782 = vmul.f32 %v2773, 1.442695
  %v2783 = vpow.pop %v2782
  %v2784 = vmul.f32 %v2774, 1.442695
  %v2785 = vpow.pop %v2784
  %v2786 = vmul.f32 %v2775, 1.442695
  %v2787 = vpow.pop %v2786
  %v2788 = vmul.f32 %v2776, 1.442695
  %v2789 = vpow.pop %v2788
  %v2790 = vmul.f32 %v2777, 1.442695
  %v2791 = vpow.pop %v2790
  %v2792 = vmul.f32 %v2778, 1.442695
  %v2793 = vpow.pop %v2792
  %v2794 = vmul.f32 %v2779, 1.442695
  %v2795 = vpow.pop %v2794
  %v2796 = vadd.f32 %v2781, 1.0
  %v2797 = vadd.f32 %v2783, 1.0
  %v2798 = vadd.f32 %v2785, 1.0
  %v2799 = vadd.f32 %v2787, 1.0
  %v2800 = vadd.f32 %v2789, 1.0
  %v2801 = vadd.f32 %v2791, 1.0
  %v2802 = vadd.f32 %v2793, 1.0
  %v2803 = vadd.f32 %v2795, 1.0
  %v2804 = vrcp.pop %v2796
  %v2805 = vmul.f32 1.0, %v2804
  %v2806 = vrcp.pop %v2797
  %v2807 = vmul.f32 1.0, %v2806
  %v2808 = vrcp.pop %v2798
  %v2809 = vmul.f32 1.0, %v2808
  %v2810 = vrcp.pop %v2799
  %v2811 = vmul.f32 1.0, %v2810
  %v2812 = vrcp.pop %v2800
  %v2813 = vmul.f32 1.0, %v2812
  %v2814 = vrcp.pop %v2801
  %v2815 = vmul.f32 1.0, %v2814
  %v2816 = vrcp.pop %v2802
  %v2817 = vmul.f32 1.0, %v2816
  %v2818 = vrcp.pop %v2803
  %v2819 = vmul.f32 1.0, %v2818
  %v2820 = vtanh.pop %v2764
  %v2821 = vtanh.pop %v2765
  %v2822 = vtanh.pop %v2766
  %v2823 = vtanh.pop %v2767
  %v2824 = vtanh.pop %v2768
  %v2825 = vtanh.pop %v2769
  %v2826 = vtanh.pop %v2770
  %v2827 = vtanh.pop %v2771
  %v2836 = vrot.slane %v2596, 7
  %v2837 = vrot.slane %v2597, 7
  %v2838 = vrot.slane %v2598, 7
  %v2839 = vrot.slane %v2599, 7
  %v2840 = vrot.slane %v2600, 7
  %v2841 = vrot.slane %v2601, 7
  %v2842 = vrot.slane %v2602, 7
  %v2843 = vrot.slane %v2603, 7
  %v2852 = vmul.f32 %v2805, %v2836
  %v2853 = vmul.f32 %v2807, %v2837
  %v2854 = vmul.f32 %v2809, %v2838
  %v2855 = vmul.f32 %v2811, %v2839
  %v2856 = vmul.f32 %v2813, %v2840
  %v2857 = vmul.f32 %v2815, %v2841
  %v2858 = vmul.f32 %v2817, %v2842
  %v2859 = vmul.f32 %v2819, %v2843
  %2868 = vrot.lane.b32.xlu0 %v2820, 64
  %v2869 = vpop.permute.xlu0 %2868
  %2870 = vrot.lane.b32.xlu0 %v2821, 64
  %v2871 = vpop.permute.xlu0 %2870
  %2872 = vrot.lane.b32.xlu0 %v2822, 64
  %v2873 = vpop.permute.xlu0 %2872
  %2874 = vrot.lane.b32.xlu0 %v2823, 64
  %v2875 = vpop.permute.xlu0 %2874
  %2876 = vrot.lane.b32.xlu0 %v2824, 64
  %v2877 = vpop.permute.xlu0 %2876
  %2878 = vrot.lane.b32.xlu0 %v2825, 64
  %v2879 = vpop.permute.xlu0 %2878
  %2880 = vrot.lane.b32.xlu0 %v2826, 64
  %v2881 = vpop.permute.xlu0 %2880
  %2882 = vrot.lane.b32.xlu0 %v2827, 64
  %v2883 = vpop.permute.xlu0 %2882
  %v2892 = vmul.f32 %v2805, %v2869
  %v2893 = vmul.f32 %v2807, %v2871
  %v2894 = vmul.f32 %v2809, %v2873
  %v2895 = vmul.f32 %v2811, %v2875
  %v2896 = vmul.f32 %v2813, %v2877
  %v2897 = vmul.f32 %v2815, %v2879
  %v2898 = vmul.f32 %v2817, %v2881
  %v2899 = vmul.f32 %v2819, %v2883
  %2908 = vrot.lane.b32.xlu0 %v2892, 32
  %v2909 = vpop.permute.xlu0 %2908
  %2910 = vrot.lane.b32.xlu0 %v2893, 32
  %v2911 = vpop.permute.xlu0 %2910
  %2912 = vrot.lane.b32.xlu0 %v2894, 32
  %v2913 = vpop.permute.xlu0 %2912
  %2914 = vrot.lane.b32.xlu0 %v2895, 32
  %v2915 = vpop.permute.xlu0 %2914
  %2916 = vrot.lane.b32.xlu0 %v2896, 32
  %v2917 = vpop.permute.xlu0 %2916
  %2918 = vrot.lane.b32.xlu0 %v2897, 32
  %v2919 = vpop.permute.xlu0 %2918
  %2920 = vrot.lane.b32.xlu0 %v2898, 32
  %v2921 = vpop.permute.xlu0 %2920
  %2922 = vrot.lane.b32.xlu0 %v2899, 32
  %v2923 = vpop.permute.xlu0 %2922
  %v2932 = vadd.f32 %v2852, %v2909
  %v2933 = vadd.f32 %v2853, %v2911
  %v2934 = vadd.f32 %v2854, %v2913
  %v2935 = vadd.f32 %v2855, %v2915
  %v2936 = vadd.f32 %v2856, %v2917
  %v2937 = vadd.f32 %v2857, %v2919
  %v2938 = vadd.f32 %v2858, %v2921
  %v2939 = vadd.f32 %v2859, %v2923
  %v2940 = vtanh.pop %v2932
  %v2941 = vtanh.pop %v2933
  %v2942 = vtanh.pop %v2934
  %v2943 = vtanh.pop %v2935
  %v2944 = vtanh.pop %v2936
  %v2945 = vtanh.pop %v2937
  %v2946 = vtanh.pop %v2938
  %v2947 = vtanh.pop %v2939
  %2956 = vrot.lane.b32.xlu0 %v2940, 64
  %v2957 = vpop.permute.xlu0 %2956
  %2958 = vrot.lane.b32.xlu0 %v2941, 64
  %v2959 = vpop.permute.xlu0 %2958
  %2960 = vrot.lane.b32.xlu0 %v2942, 64
  %v2961 = vpop.permute.xlu0 %2960
  %2962 = vrot.lane.b32.xlu0 %v2943, 64
  %v2963 = vpop.permute.xlu0 %2962
  %2964 = vrot.lane.b32.xlu0 %v2944, 64
  %v2965 = vpop.permute.xlu0 %2964
  %2966 = vrot.lane.b32.xlu0 %v2945, 64
  %v2967 = vpop.permute.xlu0 %2966
  %2968 = vrot.lane.b32.xlu0 %v2946, 64
  %v2969 = vpop.permute.xlu0 %2968
  %2970 = vrot.lane.b32.xlu0 %v2947, 64
  %v2971 = vpop.permute.xlu0 %2970
  %v2980 = vmul.f32 %v2805, %v2957
  %v2981 = vmul.f32 %v2807, %v2959
  %v2982 = vmul.f32 %v2809, %v2961
  %v2983 = vmul.f32 %v2811, %v2963
  %v2984 = vmul.f32 %v2813, %v2965
  %v2985 = vmul.f32 %v2815, %v2967
  %v2986 = vmul.f32 %v2817, %v2969
  %v2987 = vmul.f32 %v2819, %v2971
  %vm2988 = vcmask 1040384
  %v2989 = vsel %vm2988, %v621, %v964
  %v2990 = vsel %vm2988, %v622, %v965
  %v2991 = vsel %vm2988, %v623, %v966
  %v2992 = vsel %vm2988, %v624, %v967
  %v2993 = vsel %vm2988, %v625, %v968
  %v2994 = vsel %vm2988, %v626, %v969
  %v2995 = vsel %vm2988, %v627, %v970
  %v2996 = vsel %vm2988, %v628, %v971
  %v2997 = vsel %vm86, %v2989, %v1300
  %v2998 = vsel %vm86, %v2990, %v1301
  %v2999 = vsel %vm86, %v2991, %v1302
  %v3000 = vsel %vm86, %v2992, %v1303
  %v3001 = vsel %vm86, %v2993, %v1304
  %v3002 = vsel %vm86, %v2994, %v1305
  %v3003 = vsel %vm86, %v2995, %v1306
  %v3004 = vsel %vm86, %v2996, %v1307
  %vm3005 = vcmask 1042432
  %v3006 = vsel %vm3005, %v2997, %v1636
  %v3007 = vsel %vm3005, %v2998, %v1637
  %v3008 = vsel %vm3005, %v2999, %v1638
  %v3009 = vsel %vm3005, %v3000, %v1639
  %v3010 = vsel %vm3005, %v3001, %v1640
  %v3011 = vsel %vm3005, %v3002, %v1641
  %v3012 = vsel %vm3005, %v3003, %v1642
  %v3013 = vsel %vm3005, %v3004, %v1643
  %vm3014 = vcmask 1043456
  %v3015 = vsel %vm3014, %v3006, %v1972
  %v3016 = vsel %vm3014, %v3007, %v1973
  %v3017 = vsel %vm3014, %v3008, %v1974
  %v3018 = vsel %vm3014, %v3009, %v1975
  %v3019 = vsel %vm3014, %v3010, %v1976
  %v3020 = vsel %vm3014, %v3011, %v1977
  %v3021 = vsel %vm3014, %v3012, %v1978
  %v3022 = vsel %vm3014, %v3013, %v1979
  %vm3023 = vcmask 1044480
  %v3024 = vsel %vm3023, %v3015, %v2308
  %v3025 = vsel %vm3023, %v3016, %v2309
  %v3026 = vsel %vm3023, %v3017, %v2310
  %v3027 = vsel %vm3023, %v3018, %v2311
  %v3028 = vsel %vm3023, %v3019, %v2312
  %v3029 = vsel %vm3023, %v3020, %v2313
  %v3030 = vsel %vm3023, %v3021, %v2314
  %v3031 = vsel %vm3023, %v3022, %v2315
  %vm3032 = vcmask 1045504
  %v3033 = vsel %vm3032, %v3024, %v2644
  %v3034 = vsel %vm3032, %v3025, %v2645
  %v3035 = vsel %vm3032, %v3026, %v2646
  %v3036 = vsel %vm3032, %v3027, %v2647
  %v3037 = vsel %vm3032, %v3028, %v2648
  %v3038 = vsel %vm3032, %v3029, %v2649
  %v3039 = vsel %vm3032, %v3030, %v2650
  %v3040 = vsel %vm3032, %v3031, %v2651
  %vm3041 = vcmask 1046528
  %v3042 = vsel %vm3041, %v3033, %v2980
  %v3043 = vsel %vm3041, %v3034, %v2981
  %v3044 = vsel %vm3041, %v3035, %v2982
  %v3045 = vsel %vm3041, %v3036, %v2983
  %v3046 = vsel %vm3041, %v3037, %v2984
  %v3047 = vsel %vm3041, %v3038, %v2985
  %v3048 = vsel %vm3041, %v3039, %v2986
  %v3049 = vsel %vm3041, %v3040, %v2987
  %v3050 = vld [vmem:[%s11] sm:$0xff]
  %v3051 = vld [vmem:[%s11 + $0x8] sm:$0xff]
  %v3052 = vld [vmem:[%s11 + $0x10] sm:$0xff]
  %v3053 = vld [vmem:[%s11 + $0x18] sm:$0xff]
  %v3054 = vld [vmem:[%s12] sm:$0x1]
  %v3056 = vlaneseq
  %v3057 = vshrl.u32 %v3056, 7
  %v3058 = vsub.s32 0, %v3057
  %v3059 = vrot.slane %v3054, %v3058
  %3069 = vrot.lane.b32.xlu0 %v3042, 32
  %v3070 = vpop.permute.xlu0 %3069
  %3071 = vrot.lane.b32.xlu0 %v3043, 32
  %v3072 = vpop.permute.xlu0 %3071
  %3073 = vrot.lane.b32.xlu0 %v3044, 32
  %v3074 = vpop.permute.xlu0 %3073
  %3075 = vrot.lane.b32.xlu0 %v3045, 32
  %v3076 = vpop.permute.xlu0 %3075
  %3077 = vrot.lane.b32.xlu0 %v3046, 32
  %v3078 = vpop.permute.xlu0 %3077
  %3079 = vrot.lane.b32.xlu0 %v3047, 32
  %v3080 = vpop.permute.xlu0 %3079
  %3081 = vrot.lane.b32.xlu0 %v3048, 32
  %v3082 = vpop.permute.xlu0 %3081
  %3083 = vrot.lane.b32.xlu0 %v3049, 32
  %v3084 = vpop.permute.xlu0 %3083
  %v3085 = vsel %vm206, %v3070, 0
  %v3087 = vsel %vm206, %v3072, 0
  %v3089 = vsel %vm206, %v3074, 0
  %v3091 = vsel %vm206, %v3076, 0
  %v3093 = vsel %vm206, %v3078, 0
  %v3095 = vsel %vm206, %v3080, 0
  %v3097 = vsel %vm206, %v3082, 0
  %v3099 = vsel %vm206, %v3084, 0
  %3101 = vmatprep.subr.mxu0 0.0
  %3102 = vmatpush1.msra.mxu0 0.0
  %3103 = vmatprep.subr.mxu0 0.0
  %3104 = vmatpush1.msra.mxu0 0.0
  %3105 = vmatprep.subr.mxu0 0.0
  %3106 = vmatpush1.msra.mxu0 0.0
  %3107 = vmatprep.subr.mxu0 0.0
  %3108 = vmatpush1.msra.mxu0 0.0
  %3109 = vmatprep.subr.mxu0 0.0
  %3110 = vmatpush1.msra.mxu0 0.0
  %3111 = vmatprep.subr.mxu0 0.0
  %3112 = vmatpush1.msra.mxu0 0.0
  %3113 = vmatprep.subr.mxu0 0.0
  %3114 = vmatpush1.msra.mxu0 0.0
  %3115 = vmatprep.subr.mxu0 0.0
  %3116 = vmatpush1.msra.mxu0 0.0
  %3117 = vmatprep.subr.mxu0 0.0
  %3118 = vmatpush1.msra.mxu0 0.0
  %3119 = vmatprep.subr.mxu0 0.0
  %3120 = vmatpush1.msra.mxu0 0.0
  %3121 = vmatprep.subr.mxu0 0.0
  %3122 = vmatpush1.msra.mxu0 0.0
  %3123 = vmatprep.subr.mxu0 0.0
  %3124 = vmatpush1.msra.mxu0 0.0
  %3125 = vmatprep.subr.mxu0 0.0
  %3126 = vmatpush1.msra.mxu0 %v3053
  %3127 = vmatprep.subr.mxu0 0.0
  %3128 = vmatpush1.msra.mxu0 %v3052
  %3129 = vmatprep.subr.mxu0 0.0
  %3130 = vmatpush1.msra.mxu0 %v3051
  %3131 = vmatprep.subr.mxu0 0.0
  %3132 = vmatpush1.msra.mxu0 %v3050
  %3133 = vmatprep.subr.mxu0 0.0
  %3134 = vmatpush2.msra.mxu0 0.0
  %3135 = vmatprep.subr.mxu0 0.0
  %3136 = vmatpush2.msra.mxu0 0.0
  %3137 = vmatprep.subr.mxu0 0.0
  %3138 = vmatpush2.msra.mxu0 0.0
  %3139 = vmatprep.subr.mxu0 0.0
  %3140 = vmatpush2.msra.mxu0 0.0
  %3141 = vmatprep.subr.mxu0 0.0
  %3142 = vmatpush2.msra.mxu0 0.0
  %3143 = vmatprep.subr.mxu0 0.0
  %3144 = vmatpush2.msra.mxu0 0.0
  %3145 = vmatprep.subr.mxu0 0.0
  %3146 = vmatpush2.msra.mxu0 0.0
  %3147 = vmatprep.subr.mxu0 0.0
  %3148 = vmatpush2.msra.mxu0 0.0
  %3149 = vmatprep.subr.mxu0 0.0
  %3150 = vmatpush2.msra.mxu0 0.0
  %3151 = vmatprep.subr.mxu0 0.0
  %3152 = vmatpush2.msra.mxu0 0.0
  %3153 = vmatprep.subr.mxu0 0.0
  %3154 = vmatpush2.msra.mxu0 0.0
  %3155 = vmatprep.subr.mxu0 0.0
  %3156 = vmatpush2.msra.mxu0 0.0
  %3157 = vmatprep.subr.mxu0 0.0
  %3158 = vmatpush2.msra.mxu0 0.0
  %3159 = vmatprep.subr.mxu0 0.0
  %3160 = vmatpush2.msra.mxu0 0.0
  %3161 = vmatprep.subr.mxu0 0.0
  %3162 = vmatpush2.msra.mxu0 0.0
  %3163 = vmatprep.subr.mxu0 0.0
  %3164 = vmatpush2.msra.mxu0 0.0
  %3165 = vmatprep.mubr.f32.mxu0 0.0
  %3166 = vmatmul.mubr.f32.gmra.mxu0 %v3085
  %v3167 = vpop.f32.mrf.mxu0
  %v3168 = vadd.f32 %v3059, %v3167
  %v3169 = vpop.f32.mrf.mxu0
  %3170 = vmatprep.mubr.f32.mxu0 0.0
  %3171 = vmatmul.mubr.f32.gmra.mxu0 %v3087
  %v3172 = vpop.f32.mrf.mxu0
  %v3173 = vadd.f32 %v3059, %v3172
  %v3174 = vpop.f32.mrf.mxu0
  %3175 = vmatprep.mubr.f32.mxu0 0.0
  %3176 = vmatmul.mubr.f32.gmra.mxu0 %v3089
  %v3177 = vpop.f32.mrf.mxu0
  %v3178 = vadd.f32 %v3059, %v3177
  %v3179 = vpop.f32.mrf.mxu0
  %3180 = vmatprep.mubr.f32.mxu0 0.0
  %3181 = vmatmul.mubr.f32.gmra.mxu0 %v3091
  %v3182 = vpop.f32.mrf.mxu0
  %v3183 = vadd.f32 %v3059, %v3182
  %v3184 = vpop.f32.mrf.mxu0
  %3185 = vmatprep.mubr.f32.mxu0 0.0
  %3186 = vmatmul.mubr.f32.gmra.mxu0 %v3093
  %v3187 = vpop.f32.mrf.mxu0
  %v3188 = vadd.f32 %v3059, %v3187
  %v3189 = vpop.f32.mrf.mxu0
  %3190 = vmatprep.mubr.f32.mxu0 0.0
  %3191 = vmatmul.mubr.f32.gmra.mxu0 %v3095
  %v3192 = vpop.f32.mrf.mxu0
  %v3193 = vadd.f32 %v3059, %v3192
  %v3194 = vpop.f32.mrf.mxu0
  %3195 = vmatprep.mubr.f32.mxu0 0.0
  %3196 = vmatmul.mubr.f32.gmra.mxu0 %v3097
  %v3197 = vpop.f32.mrf.mxu0
  %v3198 = vadd.f32 %v3059, %v3197
  %v3199 = vpop.f32.mrf.mxu0
  %3200 = vmatprep.mubr.f32.mxu0 0.0
  %3201 = vmatmul.mubr.f32.gmra.mxu0 %v3099
  %v3202 = vpop.f32.mrf.mxu0
  %v3203 = vadd.f32 %v3059, %v3202
  %v3204 = vpop.f32.mrf.mxu0
  %3205 = vdwg.mxu0
  %v3206 = vlaneseq
  %v3207 = vand.u32 %v3206, 127
  %vm3208 = vcmp.eq.s32.totalorder %v3207, 0
  %v3209 = vsel %vm3208, 1, 0
  %v3210 = vcvt.s32.f32 %v3209
  %v3211 = vld [vmem:[%s6] sm:$0xff]
  %v3212 = vld [vmem:[%s6 + $0x8] sm:$0xff]
  %v3213 = vld [vmem:[%s6 + $0x10] sm:$0xff]
  %v3214 = vld [vmem:[%s6 + $0x18] sm:$0xff]
  %v3215 = vld [vmem:[%s7] sm:$0xff]
  %v3216 = vld [vmem:[%s7 + $0x8] sm:$0xff]
  %v3217 = vld [vmem:[%s7 + $0x10] sm:$0xff]
  %v3218 = vld [vmem:[%s7 + $0x18] sm:$0xff]
  %v3219 = vld [vmem:[%s8] sm:$0x1]
  %v3220 = vld [vmem:[%s9] sm:$0xff]
  %v3221 = vld [vmem:[%s9 + $0x8] sm:$0xff]
  %v3222 = vld [vmem:[%s9 + $0x10] sm:$0xff]
  %v3223 = vld [vmem:[%s9 + $0x18] sm:$0xff]
  %v3224 = vld [vmem:[%s10] sm:$0x1]
  %v3225 = vld [vmem:[%s13] sm:$0x1]
  %v3226 = vld [vmem:[%s1] sm:$0x7f]
  %v3227 = vld [vmem:[%s1 + $0x8] sm:$0x7f]
  %v3228 = vld [vmem:[%s1 + $0x10] sm:$0x7f]
  %v3229 = vld [vmem:[%s1 + $0x18] sm:$0x7f]
  %v3230 = vld [vmem:[%s1 + $0x20] sm:$0x7f]
  %v3231 = vld [vmem:[%s1 + $0x28] sm:$0x7f]
  %v3232 = vld [vmem:[%s1 + $0x30] sm:$0x7f]
  %v3233 = vld [vmem:[%s1 + $0x38] sm:$0x7f]
  %v3242 = vrot.slane %v2980, 7
  %v3243 = vrot.slane %v2981, 6
  %v3244 = vsel %vm638, %v3243, %v3242
  %v3245 = vrot.slane %v2982, 5
  %v3246 = vsel %vm641, %v3245, %v3244
  %v3247 = vrot.slane %v2983, 4
  %v3248 = vsel %vm644, %v3247, %v3246
  %v3249 = vrot.slane %v2984, 3
  %v3250 = vsel %vm647, %v3249, %v3248
  %v3251 = vrot.slane %v2985, 2
  %v3252 = vsel %vm650, %v3251, %v3250
  %v3253 = vrot.slane %v2986, 1
  %v3254 = vsel %vm653, %v3253, %v3252
  %v3255 = vsel %vm656, %v2987, %v3254
  %3256 = vrot.lane.b32.xlu0 %v3255, 32
  %v3257 = vpop.permute.xlu0 %3256
  %v3258 = vsel %vm206, %v3257, 0
  %3260 = vmatprep.subr.mxu0 0.0
  %3261 = vmatpush1.msra.mxu0 0.0
  %3262 = vmatprep.subr.mxu0 0.0
  %3263 = vmatpush1.msra.mxu0 0.0
  %3264 = vmatprep.subr.mxu0 0.0
  %3265 = vmatpush1.msra.mxu0 0.0
  %3266 = vmatprep.subr.mxu0 0.0
  %3267 = vmatpush1.msra.mxu0 0.0
  %3268 = vmatprep.subr.mxu0 0.0
  %3269 = vmatpush1.msra.mxu0 0.0
  %3270 = vmatprep.subr.mxu0 0.0
  %3271 = vmatpush1.msra.mxu0 0.0
  %3272 = vmatprep.subr.mxu0 0.0
  %3273 = vmatpush1.msra.mxu0 0.0
  %3274 = vmatprep.subr.mxu0 0.0
  %3275 = vmatpush1.msra.mxu0 0.0
  %3276 = vmatprep.subr.mxu0 0.0
  %3277 = vmatpush1.msra.mxu0 0.0
  %3278 = vmatprep.subr.mxu0 0.0
  %3279 = vmatpush1.msra.mxu0 0.0
  %3280 = vmatprep.subr.mxu0 0.0
  %3281 = vmatpush1.msra.mxu0 0.0
  %3282 = vmatprep.subr.mxu0 0.0
  %3283 = vmatpush1.msra.mxu0 0.0
  %3284 = vmatprep.subr.mxu0 0.0
  %3285 = vmatpush1.msra.mxu0 %v3218
  %3286 = vmatprep.subr.mxu0 0.0
  %3287 = vmatpush1.msra.mxu0 %v3217
  %3288 = vmatprep.subr.mxu0 0.0
  %3289 = vmatpush1.msra.mxu0 %v3216
  %3290 = vmatprep.subr.mxu0 0.0
  %3291 = vmatpush1.msra.mxu0 %v3215
  %3292 = vmatprep.subr.mxu0 0.0
  %3293 = vmatpush2.msra.mxu0 0.0
  %3294 = vmatprep.subr.mxu0 0.0
  %3295 = vmatpush2.msra.mxu0 0.0
  %3296 = vmatprep.subr.mxu0 0.0
  %3297 = vmatpush2.msra.mxu0 0.0
  %3298 = vmatprep.subr.mxu0 0.0
  %3299 = vmatpush2.msra.mxu0 0.0
  %3300 = vmatprep.subr.mxu0 0.0
  %3301 = vmatpush2.msra.mxu0 0.0
  %3302 = vmatprep.subr.mxu0 0.0
  %3303 = vmatpush2.msra.mxu0 0.0
  %3304 = vmatprep.subr.mxu0 0.0
  %3305 = vmatpush2.msra.mxu0 0.0
  %3306 = vmatprep.subr.mxu0 0.0
  %3307 = vmatpush2.msra.mxu0 0.0
  %3308 = vmatprep.subr.mxu0 0.0
  %3309 = vmatpush2.msra.mxu0 0.0
  %3310 = vmatprep.subr.mxu0 0.0
  %3311 = vmatpush2.msra.mxu0 0.0
  %3312 = vmatprep.subr.mxu0 0.0
  %3313 = vmatpush2.msra.mxu0 0.0
  %3314 = vmatprep.subr.mxu0 0.0
  %3315 = vmatpush2.msra.mxu0 0.0
  %3316 = vmatprep.subr.mxu0 0.0
  %3317 = vmatpush2.msra.mxu0 0.0
  %3318 = vmatprep.subr.mxu0 0.0
  %3319 = vmatpush2.msra.mxu0 0.0
  %3320 = vmatprep.subr.mxu0 0.0
  %3321 = vmatpush2.msra.mxu0 0.0
  %3322 = vmatprep.subr.mxu0 0.0
  %3323 = vmatpush2.msra.mxu0 0.0
  %3324 = vmatprep.mubr.f32.mxu0 0.0
  %3325 = vmatmul.mubr.f32.gmra.mxu0 %v3258
  %v3326 = vpop.f32.mrf.mxu0
  %v3327 = vadd.f32 0.0, %v3326
  %v3328 = vpop.f32.mrf.mxu0
  %3329 = vdwg.mxu0
  %v3330 = vrot.slane %v162, 7
  %v3331 = vsel %vm638, %v3330, %v157
  %v3332 = vrot.slane %v167, 6
  %v3333 = vsel %vm641, %v3332, %v3331
  %v3334 = vrot.slane %v172, 5
  %v3335 = vsel %vm644, %v3334, %v3333
  %v3336 = vrot.slane %v177, 4
  %v3337 = vsel %vm647, %v3336, %v3335
  %v3338 = vrot.slane %v182, 3
  %v3339 = vsel %vm650, %v3338, %v3337
  %v3340 = vrot.slane %v187, 2
  %v3341 = vsel %vm653, %v3340, %v3339
  %v3342 = vrot.slane %v192, 1
  %v3343 = vsel %vm656, %v3342, %v3341
  %v3344 = vsel %vm206, %v3343, 0
  %3346 = vmatprep.subr.mxu0 0.0
  %3347 = vmatpush1.msra.mxu0 0.0
  %3348 = vmatprep.subr.mxu0 0.0
  %3349 = vmatpush1.msra.mxu0 0.0
  %3350 = vmatprep.subr.mxu0 0.0
  %3351 = vmatpush1.msra.mxu0 0.0
  %3352 = vmatprep.subr.mxu0 0.0
  %3353 = vmatpush1.msra.mxu0 0.0
  %3354 = vmatprep.subr.mxu0 0.0
  %3355 = vmatpush1.msra.mxu0 0.0
  %3356 = vmatprep.subr.mxu0 0.0
  %3357 = vmatpush1.msra.mxu0 0.0
  %3358 = vmatprep.subr.mxu0 0.0
  %3359 = vmatpush1.msra.mxu0 0.0
  %3360 = vmatprep.subr.mxu0 0.0
  %3361 = vmatpush1.msra.mxu0 0.0
  %3362 = vmatprep.subr.mxu0 0.0
  %3363 = vmatpush1.msra.mxu0 0.0
  %3364 = vmatprep.subr.mxu0 0.0
  %3365 = vmatpush1.msra.mxu0 0.0
  %3366 = vmatprep.subr.mxu0 0.0
  %3367 = vmatpush1.msra.mxu0 0.0
  %3368 = vmatprep.subr.mxu0 0.0
  %3369 = vmatpush1.msra.mxu0 0.0
  %3370 = vmatprep.subr.mxu0 0.0
  %3371 = vmatpush1.msra.mxu0 %v3214
  %3372 = vmatprep.subr.mxu0 0.0
  %3373 = vmatpush1.msra.mxu0 %v3213
  %3374 = vmatprep.subr.mxu0 0.0
  %3375 = vmatpush1.msra.mxu0 %v3212
  %3376 = vmatprep.subr.mxu0 0.0
  %3377 = vmatpush1.msra.mxu0 %v3211
  %3378 = vmatprep.subr.mxu0 0.0
  %3379 = vmatpush2.msra.mxu0 0.0
  %3380 = vmatprep.subr.mxu0 0.0
  %3381 = vmatpush2.msra.mxu0 0.0
  %3382 = vmatprep.subr.mxu0 0.0
  %3383 = vmatpush2.msra.mxu0 0.0
  %3384 = vmatprep.subr.mxu0 0.0
  %3385 = vmatpush2.msra.mxu0 0.0
  %3386 = vmatprep.subr.mxu0 0.0
  %3387 = vmatpush2.msra.mxu0 0.0
  %3388 = vmatprep.subr.mxu0 0.0
  %3389 = vmatpush2.msra.mxu0 0.0
  %3390 = vmatprep.subr.mxu0 0.0
  %3391 = vmatpush2.msra.mxu0 0.0
  %3392 = vmatprep.subr.mxu0 0.0
  %3393 = vmatpush2.msra.mxu0 0.0
  %3394 = vmatprep.subr.mxu0 0.0
  %3395 = vmatpush2.msra.mxu0 0.0
  %3396 = vmatprep.subr.mxu0 0.0
  %3397 = vmatpush2.msra.mxu0 0.0
  %3398 = vmatprep.subr.mxu0 0.0
  %3399 = vmatpush2.msra.mxu0 0.0
  %3400 = vmatprep.subr.mxu0 0.0
  %3401 = vmatpush2.msra.mxu0 0.0
  %3402 = vmatprep.subr.mxu0 0.0
  %3403 = vmatpush2.msra.mxu0 0.0
  %3404 = vmatprep.subr.mxu0 0.0
  %3405 = vmatpush2.msra.mxu0 0.0
  %3406 = vmatprep.subr.mxu0 0.0
  %3407 = vmatpush2.msra.mxu0 0.0
  %3408 = vmatprep.subr.mxu0 0.0
  %3409 = vmatpush2.msra.mxu0 0.0
  %3410 = vmatprep.mubr.f32.mxu0 0.0
  %3411 = vmatmul.mubr.f32.gmra.mxu0 %v3344
  %v3412 = vpop.f32.mrf.mxu0
  %v3413 = vadd.f32 %v3327, %v3412
  %v3414 = vpop.f32.mrf.mxu0
  %3415 = vdwg.mxu0
  %v3417 = vlaneseq
  %v3418 = vshrl.u32 %v3417, 7
  %v3419 = vsub.s32 0, %v3418
  %v3420 = vrot.slane %v3219, %v3419
  %v3422 = vadd.f32 %v3413, %v3420
  %v3423 = vxor.u32 %v3422, 2147483648
  %v3424 = vmul.f32 %v3423, 1.442695
  %v3425 = vpow.pop %v3424
  %v3426 = vadd.f32 %v3425, 1.0
  %v3427 = vrcp.pop %v3426
  %v3428 = vmul.f32 1.0, %v3427
  %v3429 = vtanh.pop %v3422
  %v3438 = vrot.slane %v2932, 7
  %v3439 = vrot.slane %v2933, 6
  %v3440 = vsel %vm638, %v3439, %v3438
  %v3441 = vrot.slane %v2934, 5
  %v3442 = vsel %vm641, %v3441, %v3440
  %v3443 = vrot.slane %v2935, 4
  %v3444 = vsel %vm644, %v3443, %v3442
  %v3445 = vrot.slane %v2936, 3
  %v3446 = vsel %vm647, %v3445, %v3444
  %v3447 = vrot.slane %v2937, 2
  %v3448 = vsel %vm650, %v3447, %v3446
  %v3449 = vrot.slane %v2938, 1
  %v3450 = vsel %vm653, %v3449, %v3448
  %v3451 = vsel %vm656, %v2939, %v3450
  %v3453 = vmul.f32 %v3428, %v3451
  %3455 = vrot.lane.b32.xlu0 %v3429, 64
  %v3456 = vpop.permute.xlu0 %3455
  %v3458 = vmul.f32 %v3428, %v3456
  %3460 = vrot.lane.b32.xlu0 %v3458, 32
  %v3461 = vpop.permute.xlu0 %3460
  %v3463 = vadd.f32 %v3453, %v3461
  %v3464 = vtanh.pop %v3463
  %3466 = vrot.lane.b32.xlu0 %v3464, 64
  %v3467 = vpop.permute.xlu0 %3466
  %v3469 = vmul.f32 %v3428, %v3467
  %v3471 = vlaneseq
  %v3472 = vshrl.u32 %v3471, 7
  %v3473 = vsub.s32 0, %v3472
  %v3474 = vrot.slane %v3224, %v3473
  %3477 = vrot.lane.b32.xlu0 %v3469, 32
  %v3478 = vpop.permute.xlu0 %3477
  %v3479 = vsel %vm206, %v3478, 0
  %3481 = vmatprep.subr.mxu0 0.0
  %3482 = vmatpush1.msra.mxu0 0.0
  %3483 = vmatprep.subr.mxu0 0.0
  %3484 = vmatpush1.msra.mxu0 0.0
  %3485 = vmatprep.subr.mxu0 0.0
  %3486 = vmatpush1.msra.mxu0 0.0
  %3487 = vmatprep.subr.mxu0 0.0
  %3488 = vmatpush1.msra.mxu0 0.0
  %3489 = vmatprep.subr.mxu0 0.0
  %3490 = vmatpush1.msra.mxu0 0.0
  %3491 = vmatprep.subr.mxu0 0.0
  %3492 = vmatpush1.msra.mxu0 0.0
  %3493 = vmatprep.subr.mxu0 0.0
  %3494 = vmatpush1.msra.mxu0 0.0
  %3495 = vmatprep.subr.mxu0 0.0
  %3496 = vmatpush1.msra.mxu0 0.0
  %3497 = vmatprep.subr.mxu0 0.0
  %3498 = vmatpush1.msra.mxu0 0.0
  %3499 = vmatprep.subr.mxu0 0.0
  %3500 = vmatpush1.msra.mxu0 0.0
  %3501 = vmatprep.subr.mxu0 0.0
  %3502 = vmatpush1.msra.mxu0 0.0
  %3503 = vmatprep.subr.mxu0 0.0
  %3504 = vmatpush1.msra.mxu0 0.0
  %3505 = vmatprep.subr.mxu0 0.0
  %3506 = vmatpush1.msra.mxu0 %v3223
  %3507 = vmatprep.subr.mxu0 0.0
  %3508 = vmatpush1.msra.mxu0 %v3222
  %3509 = vmatprep.subr.mxu0 0.0
  %3510 = vmatpush1.msra.mxu0 %v3221
  %3511 = vmatprep.subr.mxu0 0.0
  %3512 = vmatpush1.msra.mxu0 %v3220
  %3513 = vmatprep.subr.mxu0 0.0
  %3514 = vmatpush2.msra.mxu0 0.0
  %3515 = vmatprep.subr.mxu0 0.0
  %3516 = vmatpush2.msra.mxu0 0.0
  %3517 = vmatprep.subr.mxu0 0.0
  %3518 = vmatpush2.msra.mxu0 0.0
  %3519 = vmatprep.subr.mxu0 0.0
  %3520 = vmatpush2.msra.mxu0 0.0
  %3521 = vmatprep.subr.mxu0 0.0
  %3522 = vmatpush2.msra.mxu0 0.0
  %3523 = vmatprep.subr.mxu0 0.0
  %3524 = vmatpush2.msra.mxu0 0.0
  %3525 = vmatprep.subr.mxu0 0.0
  %3526 = vmatpush2.msra.mxu0 0.0
  %3527 = vmatprep.subr.mxu0 0.0
  %3528 = vmatpush2.msra.mxu0 0.0
  %3529 = vmatprep.subr.mxu0 0.0
  %3530 = vmatpush2.msra.mxu0 0.0
  %3531 = vmatprep.subr.mxu0 0.0
  %3532 = vmatpush2.msra.mxu0 0.0
  %3533 = vmatprep.subr.mxu0 0.0
  %3534 = vmatpush2.msra.mxu0 0.0
  %3535 = vmatprep.subr.mxu0 0.0
  %3536 = vmatpush2.msra.mxu0 0.0
  %3537 = vmatprep.subr.mxu0 0.0
  %3538 = vmatpush2.msra.mxu0 0.0
  %3539 = vmatprep.subr.mxu0 0.0
  %3540 = vmatpush2.msra.mxu0 0.0
  %3541 = vmatprep.subr.mxu0 0.0
  %3542 = vmatpush2.msra.mxu0 0.0
  %3543 = vmatprep.subr.mxu0 0.0
  %3544 = vmatpush2.msra.mxu0 0.0
  %3545 = vmatprep.mubr.f32.mxu0 0.0
  %3546 = vmatmul.mubr.f32.gmra.mxu0 %v3479
  %v3547 = vpop.f32.mrf.mxu0
  %v3548 = vadd.f32 %v3474, %v3547
  %v3549 = vpop.f32.mrf.mxu0
  %3550 = vdwg.mxu0
  %v3552 = vcombine.high %v3548, %v3548
  %v3554 = vunpack.c.l.s4 1966171168
  %v3555 = vunpack.c.0.s8 %v3554
  %v3556 = vlaneseq
  %v3557 = vshrl.u32 %v3556, 7
  %v3558 = vsub.s32 %v3555, %v3557
  %v3559 = vrot.slane %v3548, %v3558
  %v3561 = vunpack.c.l.s4 1966171168
  %v3562 = vunpack.c.0.s8 %v3561
  %v3563 = vlaneseq
  %v3564 = vshrl.u32 %v3563, 7
  %v3565 = vsub.s32 %v3562, %v3564
  %v3566 = vrot.slane %v3552, %v3565
  %v3567 = vcombine.high %v3559, %v3559
  %v3568 = vcombine.high %v3566, %v3566
  %v3570 = vunpack.c.l.s4 1966171168
  %v3571 = vunpack.c.0.s8 %v3570
  %v3572 = vlaneseq
  %v3573 = vshrl.u32 %v3572, 7
  %v3574 = vsub.s32 %v3571, %v3573
  %v3575 = vrot.slane %v3559, %v3574
  %v3577 = vunpack.c.l.s4 1966171168
  %v3578 = vunpack.c.0.s8 %v3577
  %v3579 = vlaneseq
  %v3580 = vshrl.u32 %v3579, 7
  %v3581 = vsub.s32 %v3578, %v3580
  %v3582 = vrot.slane %v3566, %v3581
  %v3584 = vunpack.c.l.s4 1966171168
  %v3585 = vunpack.c.0.s8 %v3584
  %v3586 = vlaneseq
  %v3587 = vshrl.u32 %v3586, 7
  %v3588 = vsub.s32 %v3585, %v3587
  %v3589 = vrot.slane %v3567, %v3588
  %v3591 = vunpack.c.l.s4 1966171168
  %v3592 = vunpack.c.0.s8 %v3591
  %v3593 = vlaneseq
  %v3594 = vshrl.u32 %v3593, 7
  %v3595 = vsub.s32 %v3592, %v3594
  %v3596 = vrot.slane %v3568, %v3595
  %v3597 = vcombine.high %v3575, %v3575
  %v3598 = vcombine.high %v3582, %v3582
  %v3599 = vcombine.high %v3589, %v3589
  %v3600 = vcombine.high %v3596, %v3596
  %v3601 = vlaneseq
  %v3602 = vshrl.u32 %v3601, 7
  %v3603 = vsub.s32 0, %v3602
  %v3604 = vrot.slane %v3575, %v3603
  %v3605 = vlaneseq
  %v3606 = vshrl.u32 %v3605, 7
  %v3607 = vsub.s32 0, %v3606
  %v3608 = vrot.slane %v3589, %v3607
  %v3609 = vlaneseq
  %v3610 = vshrl.u32 %v3609, 7
  %v3611 = vsub.s32 0, %v3610
  %v3612 = vrot.slane %v3597, %v3611
  %v3613 = vlaneseq
  %v3614 = vshrl.u32 %v3613, 7
  %v3615 = vsub.s32 0, %v3614
  %v3616 = vrot.slane %v3599, %v3615
  %v3617 = vlaneseq
  %v3618 = vshrl.u32 %v3617, 7
  %v3619 = vsub.s32 0, %v3618
  %v3620 = vrot.slane %v3582, %v3619
  %v3621 = vlaneseq
  %v3622 = vshrl.u32 %v3621, 7
  %v3623 = vsub.s32 0, %v3622
  %v3624 = vrot.slane %v3596, %v3623
  %v3625 = vlaneseq
  %v3626 = vshrl.u32 %v3625, 7
  %v3627 = vsub.s32 0, %v3626
  %v3628 = vrot.slane %v3598, %v3627
  %v3629 = vlaneseq
  %v3630 = vshrl.u32 %v3629, 7
  %v3631 = vsub.s32 0, %v3630
  %v3632 = vrot.slane %v3600, %v3631
  %v3641 = vadd.f32 %v3604, %v3168
  %v3642 = vadd.f32 %v3608, %v3173
  %v3643 = vadd.f32 %v3612, %v3178
  %v3644 = vadd.f32 %v3616, %v3183
  %v3645 = vadd.f32 %v3620, %v3188
  %v3646 = vadd.f32 %v3624, %v3193
  %v3647 = vadd.f32 %v3628, %v3198
  %v3648 = vadd.f32 %v3632, %v3203
  %v3649 = vtanh.pop %v3641
  %v3650 = vtanh.pop %v3642
  %v3651 = vtanh.pop %v3643
  %v3652 = vtanh.pop %v3644
  %v3653 = vtanh.pop %v3645
  %v3654 = vtanh.pop %v3646
  %v3655 = vtanh.pop %v3647
  %v3656 = vtanh.pop %v3648
  %v3658 = vlaneseq
  %v3659 = vshrl.u32 %v3658, 7
  %v3660 = vsub.s32 0, %v3659
  %v3661 = vrot.slane %v3225, %v3660
  %v3663 = vmul.f32 %v3649, %v3661
  %v3664 = vmul.f32 %v3650, %v3661
  %v3665 = vmul.f32 %v3651, %v3661
  %v3666 = vmul.f32 %v3652, %v3661
  %v3667 = vmul.f32 %v3653, %v3661
  %v3668 = vmul.f32 %v3654, %v3661
  %v3669 = vmul.f32 %v3655, %v3661
  %v3670 = vmul.f32 %v3656, %v3661
  %v3671 = vsel %vm206, %v3663, 0.0
  %3672 = vadd.xlane.f32.xlu0 %v3671
  %v3673 = vpop.xlane.xlu0 %3672
  %v3674 = vsel %vm206, %v3664, 0.0
  %3675 = vadd.xlane.f32.xlu0 %v3674
  %v3676 = vpop.xlane.xlu0 %3675
  %v3677 = vsel %vm206, %v3665, 0.0
  %3678 = vadd.xlane.f32.xlu0 %v3677
  %v3679 = vpop.xlane.xlu0 %3678
  %v3680 = vsel %vm206, %v3666, 0.0
  %3681 = vadd.xlane.f32.xlu0 %v3680
  %v3682 = vpop.xlane.xlu0 %3681
  %v3683 = vsel %vm206, %v3667, 0.0
  %3684 = vadd.xlane.f32.xlu0 %v3683
  %v3685 = vpop.xlane.xlu0 %3684
  %v3686 = vsel %vm206, %v3668, 0.0
  %3687 = vadd.xlane.f32.xlu0 %v3686
  %v3688 = vpop.xlane.xlu0 %3687
  %v3689 = vsel %vm206, %v3669, 0.0
  %3690 = vadd.xlane.f32.xlu0 %v3689
  %v3691 = vpop.xlane.xlu0 %3690
  %v3692 = vsel %vm206, %v3670, 0.0
  %3693 = vadd.xlane.f32.xlu0 %v3692
  %v3694 = vpop.xlane.xlu0 %3693
  %v3695 = vtanh.pop %v3673
  %v3696 = vtanh.pop %v3676
  %v3697 = vtanh.pop %v3679
  %v3698 = vtanh.pop %v3682
  %v3699 = vtanh.pop %v3685
  %v3700 = vtanh.pop %v3688
  %v3701 = vtanh.pop %v3691
  %v3702 = vtanh.pop %v3694
  %v3703 = vmul.f32 %v3695, 10.0
  %v3704 = vmul.f32 %v3696, 10.0
  %v3705 = vmul.f32 %v3697, 10.0
  %v3706 = vmul.f32 %v3698, 10.0
  %v3707 = vmul.f32 %v3699, 10.0
  %v3708 = vmul.f32 %v3700, 10.0
  %v3709 = vmul.f32 %v3701, 10.0
  %v3710 = vmul.f32 %v3702, 10.0
  %vm3711 = vcmp.gt.f32.partialorder %v3210, 0.5
  %v3720 = vlaneseq
  %v3721 = vshrl.u32 %v3720, 7
  %v3722 = vsub.s32 %v3207, %v3721
  %v3723 = vrot.slane %v3703, %v3722
  %v3724 = vlaneseq
  %v3725 = vshrl.u32 %v3724, 7
  %v3726 = vsub.s32 %v3207, %v3725
  %v3727 = vrot.slane %v3704, %v3726
  %v3728 = vlaneseq
  %v3729 = vshrl.u32 %v3728, 7
  %v3730 = vsub.s32 %v3207, %v3729
  %v3731 = vrot.slane %v3705, %v3730
  %v3732 = vlaneseq
  %v3733 = vshrl.u32 %v3732, 7
  %v3734 = vsub.s32 %v3207, %v3733
  %v3735 = vrot.slane %v3706, %v3734
  %v3736 = vlaneseq
  %v3737 = vshrl.u32 %v3736, 7
  %v3738 = vsub.s32 %v3207, %v3737
  %v3739 = vrot.slane %v3707, %v3738
  %v3740 = vlaneseq
  %v3741 = vshrl.u32 %v3740, 7
  %v3742 = vsub.s32 %v3207, %v3741
  %v3743 = vrot.slane %v3708, %v3742
  %v3744 = vlaneseq
  %v3745 = vshrl.u32 %v3744, 7
  %v3746 = vsub.s32 %v3207, %v3745
  %v3747 = vrot.slane %v3709, %v3746
  %v3748 = vlaneseq
  %v3749 = vshrl.u32 %v3748, 7
  %v3750 = vsub.s32 %v3207, %v3749
  %v3751 = vrot.slane %v3710, %v3750
  %v3752 = vsel %vm638, %v3727, %v3723
  %v3753 = vsel %vm641, %v3731, %v3752
  %v3754 = vsel %vm644, %v3735, %v3753
  %v3755 = vsel %vm647, %v3739, %v3754
  %v3756 = vsel %vm650, %v3743, %v3755
  %v3757 = vsel %vm653, %v3747, %v3756
  %v3758 = vsel %vm656, %v3751, %v3757
  %v3760 = vsel %vm3711, -100000.0, %v3758
  %vm3761 = vcmask 64512
  %v3762 = vsel %vm3761, %v3760, -inf
  %3763 = vmax.xlane.f32.xlu0 %v3762
  %v3764 = vpop.xlane.xlu0 %3763
  %v3765 = vsub.f32 %v3760, %v3764
  %v3766 = vmul.f32 %v3765, 1.442695
  %v3767 = vpow.pop %v3766
  %v3768 = vsel %vm3761, %v3767, 0.0
  %3769 = vadd.xlane.f32.xlu0 %v3768
  %v3770 = vpop.xlane.xlu0 %3769
  %v3771 = vlog2.pop %v3770
  %v3772 = vmul.f32 %v3771, 0.6931472
  %v3773 = vadd.f32 %v3764, %v3772
  %v3774 = vsub.f32 %v3760, %v3773
  %v3783 = vrot.slane %v3227, 7
  %v3784 = vsel %vm638, %v3783, %v3226
  %v3785 = vrot.slane %v3228, 6
  %v3786 = vsel %vm641, %v3785, %v3784
  %v3787 = vrot.slane %v3229, 5
  %v3788 = vsel %vm644, %v3787, %v3786
  %v3789 = vrot.slane %v3230, 4
  %v3790 = vsel %vm647, %v3789, %v3788
  %v3791 = vrot.slane %v3231, 3
  %v3792 = vsel %vm650, %v3791, %v3790
  %v3793 = vrot.slane %v3232, 2
  %v3794 = vsel %vm653, %v3793, %v3792
  %v3795 = vrot.slane %v3233, 1
  %v3796 = vsel %vm656, %v3795, %v3794
  %v3798 = vadd.f32 %v3760, %v3796
  %v3799 = vsel %vm3761, %v3798, -inf
  %3800 = vmax.xlane.f32.xlu0 %v3799
  %v3801 = vpop.xlane.xlu0 %3800
  %vm3802 = vcmp.ge.f32.partialorder %v3798, %v3801
  %v3803 = vsel %vm3802, %v3207, 8
  %v3804 = vsel %vm3761, %v3803, 2147483647
  %v3805 = vand.u32 %v3804, 65535
  %v3806 = vshra.s32 %v3804, 16
  %v3807 = vcvt.s32.f32 %v3805
  %v3808 = vcvt.s32.f32 %v3806
  %3809 = vmin.xlane.f32.xlu0 %v3808
  %v3810 = vpop.xlane.xlu0 %3809
  %vm3811 = vcmp.eq.f32.partialorder %v3808, %v3810
  %v3812 = vsel %vm3811, %v3807, inf
  %3813 = vmin.xlane.f32.xlu0 %v3812
  %v3814 = vpop.xlane.xlu0 %3813
  %v3815 = vcvt.f32.s32 %v3814
  %v3816 = vcvt.f32.s32 %v3810
  %v3817 = vshll.u32 %v3816, 16
  %v3818 = vadd.s32 %v3817, %v3815
  %vm3819 = vcmp.eq.s32.totalorder %v3207, %v3818
  %v3820 = vsel %vm3819, 1, 0
  %v3821 = vcvt.s32.f32 %v3820
  %v3822 = vmax.f32 %v3210, %v3821
  %v3823 = vlaneseq
  %v3824 = vshrl.u32 %v3823, 7
  %v3825 = vsub.s32 0, %v3824
  %v3826 = vrot.slane %v3821, %v3825
  %3828 = vbcast.lane.b32.xlu0 %v3826, 256
  %v3829 = vpop.permute.xlu0 %3828
  %v3830 = vlaneseq
  %v3831 = vshrl.u32 %v3830, 7
  %v3832 = vsub.s32 1, %v3831
  %v3833 = vrot.slane %v3821, %v3832
  %3835 = vbcast.lane.b32.xlu0 %v3833, 256
  %v3836 = vpop.permute.xlu0 %3835
  %v3837 = vlaneseq
  %v3838 = vshrl.u32 %v3837, 7
  %v3839 = vsub.s32 2, %v3838
  %v3840 = vrot.slane %v3821, %v3839
  %3842 = vbcast.lane.b32.xlu0 %v3840, 256
  %v3843 = vpop.permute.xlu0 %3842
  %v3844 = vlaneseq
  %v3845 = vshrl.u32 %v3844, 7
  %v3846 = vsub.s32 3, %v3845
  %v3847 = vrot.slane %v3821, %v3846
  %3849 = vbcast.lane.b32.xlu0 %v3847, 256
  %v3850 = vpop.permute.xlu0 %3849
  %v3851 = vlaneseq
  %v3852 = vshrl.u32 %v3851, 7
  %v3853 = vsub.s32 4, %v3852
  %v3854 = vrot.slane %v3821, %v3853
  %3856 = vbcast.lane.b32.xlu0 %v3854, 256
  %v3857 = vpop.permute.xlu0 %3856
  %v3858 = vlaneseq
  %v3859 = vshrl.u32 %v3858, 7
  %v3860 = vsub.s32 5, %v3859
  %v3861 = vrot.slane %v3821, %v3860
  %3863 = vbcast.lane.b32.xlu0 %v3861, 256
  %v3864 = vpop.permute.xlu0 %3863
  %v3865 = vlaneseq
  %v3866 = vshrl.u32 %v3865, 7
  %v3867 = vsub.s32 6, %v3866
  %v3868 = vrot.slane %v3821, %v3867
  %3870 = vbcast.lane.b32.xlu0 %v3868, 256
  %v3871 = vpop.permute.xlu0 %3870
  %v3872 = vlaneseq
  %v3873 = vshrl.u32 %v3872, 7
  %v3874 = vsub.s32 7, %v3873
  %v3875 = vrot.slane %v3821, %v3874
  %3877 = vbcast.lane.b32.xlu0 %v3875, 256
  %v3878 = vpop.permute.xlu0 %3877
  %v3879 = vmul.f32 %v3829, %v52
  %v3880 = vmul.f32 %v3836, %v53
  %v3881 = vmul.f32 %v3843, %v54
  %v3882 = vmul.f32 %v3850, %v55
  %v3883 = vmul.f32 %v3857, %v56
  %v3884 = vmul.f32 %v3864, %v57
  %v3885 = vmul.f32 %v3871, %v58
  %v3886 = vmul.f32 %v3878, %v59
  %v3887 = vsel %vm61, %v3879, 0.0
  %v3888 = vrot.slane %v3887, 4
  %v3889 = vadd.f32 %v3887, %v3888
  %v3890 = vrot.slane %v3889, 2
  %v3891 = vadd.f32 %v3889, %v3890
  %v3892 = vrot.slane %v3891, 1
  %v3893 = vadd.f32 %v3891, %v3892
  %v3894 = vsel %vm61, %v3880, 0.0
  %v3895 = vrot.slane %v3894, 4
  %v3896 = vadd.f32 %v3894, %v3895
  %v3897 = vrot.slane %v3896, 2
  %v3898 = vadd.f32 %v3896, %v3897
  %v3899 = vrot.slane %v3898, 1
  %v3900 = vadd.f32 %v3898, %v3899
  %v3901 = vsel %vm61, %v3881, 0.0
  %v3902 = vrot.slane %v3901, 4
  %v3903 = vadd.f32 %v3901, %v3902
  %v3904 = vrot.slane %v3903, 2
  %v3905 = vadd.f32 %v3903, %v3904
  %v3906 = vrot.slane %v3905, 1
  %v3907 = vadd.f32 %v3905, %v3906
  %v3908 = vsel %vm61, %v3882, 0.0
  %v3909 = vrot.slane %v3908, 4
  %v3910 = vadd.f32 %v3908, %v3909
  %v3911 = vrot.slane %v3910, 2
  %v3912 = vadd.f32 %v3910, %v3911
  %v3913 = vrot.slane %v3912, 1
  %v3914 = vadd.f32 %v3912, %v3913
  %v3915 = vsel %vm61, %v3883, 0.0
  %v3916 = vrot.slane %v3915, 4
  %v3917 = vadd.f32 %v3915, %v3916
  %v3918 = vrot.slane %v3917, 2
  %v3919 = vadd.f32 %v3917, %v3918
  %v3920 = vrot.slane %v3919, 1
  %v3921 = vadd.f32 %v3919, %v3920
  %v3922 = vsel %vm61, %v3884, 0.0
  %v3923 = vrot.slane %v3922, 4
  %v3924 = vadd.f32 %v3922, %v3923
  %v3925 = vrot.slane %v3924, 2
  %v3926 = vadd.f32 %v3924, %v3925
  %v3927 = vrot.slane %v3926, 1
  %v3928 = vadd.f32 %v3926, %v3927
  %v3929 = vsel %vm61, %v3885, 0.0
  %v3930 = vrot.slane %v3929, 4
  %v3931 = vadd.f32 %v3929, %v3930
  %v3932 = vrot.slane %v3931, 2
  %v3933 = vadd.f32 %v3931, %v3932
  %v3934 = vrot.slane %v3933, 1
  %v3935 = vadd.f32 %v3933, %v3934
  %v3936 = vsel %vm61, %v3886, 0.0
  %v3937 = vrot.slane %v3936, 4
  %v3938 = vadd.f32 %v3936, %v3937
  %v3939 = vrot.slane %v3938, 2
  %v3940 = vadd.f32 %v3938, %v3939
  %v3941 = vrot.slane %v3940, 1
  %v3942 = vadd.f32 %v3940, %v3941
  %v3951 = vsel %vm638, %v3900, %v3893
  %v3952 = vsel %vm641, %v3907, %v3951
  %v3953 = vsel %vm644, %v3914, %v3952
  %v3954 = vsel %vm647, %v3921, %v3953
  %v3955 = vsel %vm650, %v3928, %v3954
  %v3956 = vsel %vm653, %v3935, %v3955
  %v3957 = vsel %vm656, %v3942, %v3956
  %v3958 = vsel %vm61, %v3957, 0
  %3960 = vmatprep.subr.mxu0 0.0
  %3961 = vmatpush1.msra.mxu0 0.0
  %3962 = vmatprep.subr.mxu0 0.0
  %3963 = vmatpush1.msra.mxu0 0.0
  %3964 = vmatprep.subr.mxu0 0.0
  %3965 = vmatpush1.msra.mxu0 0.0
  %3966 = vmatprep.subr.mxu0 0.0
  %3967 = vmatpush1.msra.mxu0 0.0
  %3968 = vmatprep.subr.mxu0 0.0
  %3969 = vmatpush1.msra.mxu0 0.0
  %3970 = vmatprep.subr.mxu0 0.0
  %3971 = vmatpush1.msra.mxu0 0.0
  %3972 = vmatprep.subr.mxu0 0.0
  %3973 = vmatpush1.msra.mxu0 0.0
  %3974 = vmatprep.subr.mxu0 0.0
  %3975 = vmatpush1.msra.mxu0 0.0
  %3976 = vmatprep.subr.mxu0 0.0
  %3977 = vmatpush1.msra.mxu0 0.0
  %3978 = vmatprep.subr.mxu0 0.0
  %3979 = vmatpush1.msra.mxu0 0.0
  %3980 = vmatprep.subr.mxu0 0.0
  %3981 = vmatpush1.msra.mxu0 0.0
  %3982 = vmatprep.subr.mxu0 0.0
  %3983 = vmatpush1.msra.mxu0 0.0
  %3984 = vmatprep.subr.mxu0 0.0
  %3985 = vmatpush1.msra.mxu0 0.0
  %3986 = vmatprep.subr.mxu0 0.0
  %3987 = vmatpush1.msra.mxu0 0.0
  %3988 = vmatprep.subr.mxu0 0.0
  %3989 = vmatpush1.msra.mxu0 0.0
  %3990 = vmatprep.subr.mxu0 0.0
  %3991 = vmatpush1.msra.mxu0 %v88
  %3992 = vmatprep.subr.mxu0 0.0
  %3993 = vmatpush2.msra.mxu0 0.0
  %3994 = vmatprep.subr.mxu0 0.0
  %3995 = vmatpush2.msra.mxu0 0.0
  %3996 = vmatprep.subr.mxu0 0.0
  %3997 = vmatpush2.msra.mxu0 0.0
  %3998 = vmatprep.subr.mxu0 0.0
  %3999 = vmatpush2.msra.mxu0 0.0
  %4000 = vmatprep.subr.mxu0 0.0
  %4001 = vmatpush2.msra.mxu0 0.0
  %4002 = vmatprep.subr.mxu0 0.0
  %4003 = vmatpush2.msra.mxu0 0.0
  %4004 = vmatprep.subr.mxu0 0.0
  %4005 = vmatpush2.msra.mxu0 0.0
  %4006 = vmatprep.subr.mxu0 0.0
  %4007 = vmatpush2.msra.mxu0 0.0
  %4008 = vmatprep.subr.mxu0 0.0
  %4009 = vmatpush2.msra.mxu0 0.0
  %4010 = vmatprep.subr.mxu0 0.0
  %4011 = vmatpush2.msra.mxu0 0.0
  %4012 = vmatprep.subr.mxu0 0.0
  %4013 = vmatpush2.msra.mxu0 0.0
  %4014 = vmatprep.subr.mxu0 0.0
  %4015 = vmatpush2.msra.mxu0 0.0
  %4016 = vmatprep.subr.mxu0 0.0
  %4017 = vmatpush2.msra.mxu0 0.0
  %4018 = vmatprep.subr.mxu0 0.0
  %4019 = vmatpush2.msra.mxu0 0.0
  %4020 = vmatprep.subr.mxu0 0.0
  %4021 = vmatpush2.msra.mxu0 0.0
  %4022 = vmatprep.subr.mxu0 0.0
  %4023 = vmatpush2.msra.mxu0 0.0
  %4024 = vmatprep.mubr.f32.mxu0 0.0
  %4025 = vmatmul.mubr.f32.gmra.mxu0 %v3958
  %v4026 = vpop.f32.mrf.mxu0
  %v4027 = vadd.f32 0.0, %v4026
  %v4028 = vpop.f32.mrf.mxu0
  %4029 = vdwg.mxu0
  %v4030 = vmul.f32 %v3774, %v3821
  %v4031 = vsel %vm3761, %v4030, 0.0
  %4032 = vadd.xlane.f32.xlu0 %v4031
  %v4033 = vpop.xlane.xlu0 %4032
  %4034 = vmatprep.subr.mxu0 0.0
  %4035 = vmatpush1.msra.mxu0 0.0
  %4036 = vmatprep.subr.mxu0 0.0
  %4037 = vmatpush1.msra.mxu0 0.0
  %4038 = vmatprep.subr.mxu0 0.0
  %4039 = vmatpush1.msra.mxu0 0.0
  %4040 = vmatprep.subr.mxu0 0.0
  %4041 = vmatpush1.msra.mxu0 0.0
  %4042 = vmatprep.subr.mxu0 0.0
  %4043 = vmatpush1.msra.mxu0 0.0
  %4044 = vmatprep.subr.mxu0 0.0
  %4045 = vmatpush1.msra.mxu0 0.0
  %4046 = vmatprep.subr.mxu0 0.0
  %4047 = vmatpush1.msra.mxu0 0.0
  %4048 = vmatprep.subr.mxu0 0.0
  %4049 = vmatpush1.msra.mxu0 0.0
  %4050 = vmatprep.subr.mxu0 0.0
  %4051 = vmatpush1.msra.mxu0 0.0
  %4052 = vmatprep.subr.mxu0 0.0
  %4053 = vmatpush1.msra.mxu0 0.0
  %4054 = vmatprep.subr.mxu0 0.0
  %4055 = vmatpush1.msra.mxu0 0.0
  %4056 = vmatprep.subr.mxu0 0.0
  %4057 = vmatpush1.msra.mxu0 0.0
  %4058 = vmatprep.subr.mxu0 0.0
  %4059 = vmatpush1.msra.mxu0 %v3218
  %4060 = vmatprep.subr.mxu0 0.0
  %4061 = vmatpush1.msra.mxu0 %v3217
  %4062 = vmatprep.subr.mxu0 0.0
  %4063 = vmatpush1.msra.mxu0 %v3216
  %4064 = vmatprep.subr.mxu0 0.0
  %4065 = vmatpush1.msra.mxu0 %v3215
  %4066 = vmatprep.subr.mxu0 0.0
  %4067 = vmatpush2.msra.mxu0 0.0
  %4068 = vmatprep.subr.mxu0 0.0
  %4069 = vmatpush2.msra.mxu0 0.0
  %4070 = vmatprep.subr.mxu0 0.0
  %4071 = vmatpush2.msra.mxu0 0.0
  %4072 = vmatprep.subr.mxu0 0.0
  %4073 = vmatpush2.msra.mxu0 0.0
  %4074 = vmatprep.subr.mxu0 0.0
  %4075 = vmatpush2.msra.mxu0 0.0
  %4076 = vmatprep.subr.mxu0 0.0
  %4077 = vmatpush2.msra.mxu0 0.0
  %4078 = vmatprep.subr.mxu0 0.0
  %4079 = vmatpush2.msra.mxu0 0.0
  %4080 = vmatprep.subr.mxu0 0.0
  %4081 = vmatpush2.msra.mxu0 0.0
  %4082 = vmatprep.subr.mxu0 0.0
  %4083 = vmatpush2.msra.mxu0 0.0
  %4084 = vmatprep.subr.mxu0 0.0
  %4085 = vmatpush2.msra.mxu0 0.0
  %4086 = vmatprep.subr.mxu0 0.0
  %4087 = vmatpush2.msra.mxu0 0.0
  %4088 = vmatprep.subr.mxu0 0.0
  %4089 = vmatpush2.msra.mxu0 0.0
  %4090 = vmatprep.subr.mxu0 0.0
  %4091 = vmatpush2.msra.mxu0 0.0
  %4092 = vmatprep.subr.mxu0 0.0
  %4093 = vmatpush2.msra.mxu0 0.0
  %4094 = vmatprep.subr.mxu0 0.0
  %4095 = vmatpush2.msra.mxu0 0.0
  %4096 = vmatprep.subr.mxu0 0.0
  %4097 = vmatpush2.msra.mxu0 0.0
  %4098 = vmatprep.mubr.f32.mxu0 0.0
  %4099 = vmatmul.mubr.f32.gmra.mxu0 %v3479
  %v4100 = vpop.f32.mrf.mxu0
  %v4101 = vadd.f32 0.0, %v4100
  %v4102 = vpop.f32.mrf.mxu0
  %4103 = vdwg.mxu0
  %v4105 = vsel %vm206, %v4027, 0
  %4107 = vmatprep.subr.mxu0 0.0
  %4108 = vmatpush1.msra.mxu0 0.0
  %4109 = vmatprep.subr.mxu0 0.0
  %4110 = vmatpush1.msra.mxu0 0.0
  %4111 = vmatprep.subr.mxu0 0.0
  %4112 = vmatpush1.msra.mxu0 0.0
  %4113 = vmatprep.subr.mxu0 0.0
  %4114 = vmatpush1.msra.mxu0 0.0
  %4115 = vmatprep.subr.mxu0 0.0
  %4116 = vmatpush1.msra.mxu0 0.0
  %4117 = vmatprep.subr.mxu0 0.0
  %4118 = vmatpush1.msra.mxu0 0.0
  %4119 = vmatprep.subr.mxu0 0.0
  %4120 = vmatpush1.msra.mxu0 0.0
  %4121 = vmatprep.subr.mxu0 0.0
  %4122 = vmatpush1.msra.mxu0 0.0
  %4123 = vmatprep.subr.mxu0 0.0
  %4124 = vmatpush1.msra.mxu0 0.0
  %4125 = vmatprep.subr.mxu0 0.0
  %4126 = vmatpush1.msra.mxu0 0.0
  %4127 = vmatprep.subr.mxu0 0.0
  %4128 = vmatpush1.msra.mxu0 0.0
  %4129 = vmatprep.subr.mxu0 0.0
  %4130 = vmatpush1.msra.mxu0 0.0
  %4131 = vmatprep.subr.mxu0 0.0
  %4132 = vmatpush1.msra.mxu0 %v3214
  %4133 = vmatprep.subr.mxu0 0.0
  %4134 = vmatpush1.msra.mxu0 %v3213
  %4135 = vmatprep.subr.mxu0 0.0
  %4136 = vmatpush1.msra.mxu0 %v3212
  %4137 = vmatprep.subr.mxu0 0.0
  %4138 = vmatpush1.msra.mxu0 %v3211
  %4139 = vmatprep.subr.mxu0 0.0
  %4140 = vmatpush2.msra.mxu0 0.0
  %4141 = vmatprep.subr.mxu0 0.0
  %4142 = vmatpush2.msra.mxu0 0.0
  %4143 = vmatprep.subr.mxu0 0.0
  %4144 = vmatpush2.msra.mxu0 0.0
  %4145 = vmatprep.subr.mxu0 0.0
  %4146 = vmatpush2.msra.mxu0 0.0
  %4147 = vmatprep.subr.mxu0 0.0
  %4148 = vmatpush2.msra.mxu0 0.0
  %4149 = vmatprep.subr.mxu0 0.0
  %4150 = vmatpush2.msra.mxu0 0.0
  %4151 = vmatprep.subr.mxu0 0.0
  %4152 = vmatpush2.msra.mxu0 0.0
  %4153 = vmatprep.subr.mxu0 0.0
  %4154 = vmatpush2.msra.mxu0 0.0
  %4155 = vmatprep.subr.mxu0 0.0
  %4156 = vmatpush2.msra.mxu0 0.0
  %4157 = vmatprep.subr.mxu0 0.0
  %4158 = vmatpush2.msra.mxu0 0.0
  %4159 = vmatprep.subr.mxu0 0.0
  %4160 = vmatpush2.msra.mxu0 0.0
  %4161 = vmatprep.subr.mxu0 0.0
  %4162 = vmatpush2.msra.mxu0 0.0
  %4163 = vmatprep.subr.mxu0 0.0
  %4164 = vmatpush2.msra.mxu0 0.0
  %4165 = vmatprep.subr.mxu0 0.0
  %4166 = vmatpush2.msra.mxu0 0.0
  %4167 = vmatprep.subr.mxu0 0.0
  %4168 = vmatpush2.msra.mxu0 0.0
  %4169 = vmatprep.subr.mxu0 0.0
  %4170 = vmatpush2.msra.mxu0 0.0
  %4171 = vmatprep.mubr.f32.mxu0 0.0
  %4172 = vmatmul.mubr.f32.gmra.mxu0 %v4105
  %v4173 = vpop.f32.mrf.mxu0
  %v4174 = vadd.f32 %v4101, %v4173
  %v4175 = vpop.f32.mrf.mxu0
  %4176 = vdwg.mxu0
  %v4177 = vadd.f32 %v4174, %v3420
  %v4178 = vxor.u32 %v4177, 2147483648
  %v4179 = vmul.f32 %v4178, 1.442695
  %v4180 = vpow.pop %v4179
  %v4181 = vadd.f32 %v4180, 1.0
  %v4182 = vrcp.pop %v4181
  %v4183 = vmul.f32 1.0, %v4182
  %v4184 = vtanh.pop %v4177
  %v4185 = vmul.f32 %v4183, %v3463
  %4187 = vrot.lane.b32.xlu0 %v4184, 64
  %v4188 = vpop.permute.xlu0 %4187
  %v4190 = vmul.f32 %v4183, %v4188
  %4192 = vrot.lane.b32.xlu0 %v4190, 32
  %v4193 = vpop.permute.xlu0 %4192
  %v4195 = vadd.f32 %v4185, %v4193
  %v4196 = vtanh.pop %v4195
  %4198 = vrot.lane.b32.xlu0 %v4196, 64
  %v4199 = vpop.permute.xlu0 %4198
  %v4201 = vmul.f32 %v4183, %v4199
  %4203 = vrot.lane.b32.xlu0 %v4201, 32
  %v4204 = vpop.permute.xlu0 %4203
  %v4205 = vsel %vm206, %v4204, 0
  %4207 = vmatprep.subr.mxu0 0.0
  %4208 = vmatpush1.msra.mxu0 0.0
  %4209 = vmatprep.subr.mxu0 0.0
  %4210 = vmatpush1.msra.mxu0 0.0
  %4211 = vmatprep.subr.mxu0 0.0
  %4212 = vmatpush1.msra.mxu0 0.0
  %4213 = vmatprep.subr.mxu0 0.0
  %4214 = vmatpush1.msra.mxu0 0.0
  %4215 = vmatprep.subr.mxu0 0.0
  %4216 = vmatpush1.msra.mxu0 0.0
  %4217 = vmatprep.subr.mxu0 0.0
  %4218 = vmatpush1.msra.mxu0 0.0
  %4219 = vmatprep.subr.mxu0 0.0
  %4220 = vmatpush1.msra.mxu0 0.0
  %4221 = vmatprep.subr.mxu0 0.0
  %4222 = vmatpush1.msra.mxu0 0.0
  %4223 = vmatprep.subr.mxu0 0.0
  %4224 = vmatpush1.msra.mxu0 0.0
  %4225 = vmatprep.subr.mxu0 0.0
  %4226 = vmatpush1.msra.mxu0 0.0
  %4227 = vmatprep.subr.mxu0 0.0
  %4228 = vmatpush1.msra.mxu0 0.0
  %4229 = vmatprep.subr.mxu0 0.0
  %4230 = vmatpush1.msra.mxu0 0.0
  %4231 = vmatprep.subr.mxu0 0.0
  %4232 = vmatpush1.msra.mxu0 %v3223
  %4233 = vmatprep.subr.mxu0 0.0
  %4234 = vmatpush1.msra.mxu0 %v3222
  %4235 = vmatprep.subr.mxu0 0.0
  %4236 = vmatpush1.msra.mxu0 %v3221
  %4237 = vmatprep.subr.mxu0 0.0
  %4238 = vmatpush1.msra.mxu0 %v3220
  %4239 = vmatprep.subr.mxu0 0.0
  %4240 = vmatpush2.msra.mxu0 0.0
  %4241 = vmatprep.subr.mxu0 0.0
  %4242 = vmatpush2.msra.mxu0 0.0
  %4243 = vmatprep.subr.mxu0 0.0
  %4244 = vmatpush2.msra.mxu0 0.0
  %4245 = vmatprep.subr.mxu0 0.0
  %4246 = vmatpush2.msra.mxu0 0.0
  %4247 = vmatprep.subr.mxu0 0.0
  %4248 = vmatpush2.msra.mxu0 0.0
  %4249 = vmatprep.subr.mxu0 0.0
  %4250 = vmatpush2.msra.mxu0 0.0
  %4251 = vmatprep.subr.mxu0 0.0
  %4252 = vmatpush2.msra.mxu0 0.0
  %4253 = vmatprep.subr.mxu0 0.0
  %4254 = vmatpush2.msra.mxu0 0.0
  %4255 = vmatprep.subr.mxu0 0.0
  %4256 = vmatpush2.msra.mxu0 0.0
  %4257 = vmatprep.subr.mxu0 0.0
  %4258 = vmatpush2.msra.mxu0 0.0
  %4259 = vmatprep.subr.mxu0 0.0
  %4260 = vmatpush2.msra.mxu0 0.0
  %4261 = vmatprep.subr.mxu0 0.0
  %4262 = vmatpush2.msra.mxu0 0.0
  %4263 = vmatprep.subr.mxu0 0.0
  %4264 = vmatpush2.msra.mxu0 0.0
  %4265 = vmatprep.subr.mxu0 0.0
  %4266 = vmatpush2.msra.mxu0 0.0
  %4267 = vmatprep.subr.mxu0 0.0
  %4268 = vmatpush2.msra.mxu0 0.0
  %4269 = vmatprep.subr.mxu0 0.0
  %4270 = vmatpush2.msra.mxu0 0.0
  %4271 = vmatprep.mubr.f32.mxu0 0.0
  %4272 = vmatmul.mubr.f32.gmra.mxu0 %v4205
  %v4273 = vpop.f32.mrf.mxu0
  %v4274 = vadd.f32 %v3474, %v4273
  %v4275 = vpop.f32.mrf.mxu0
  %4276 = vdwg.mxu0
  %v4278 = vcombine.high %v4274, %v4274
  %v4280 = vunpack.c.l.s4 1966171168
  %v4281 = vunpack.c.0.s8 %v4280
  %v4282 = vlaneseq
  %v4283 = vshrl.u32 %v4282, 7
  %v4284 = vsub.s32 %v4281, %v4283
  %v4285 = vrot.slane %v4274, %v4284
  %v4287 = vunpack.c.l.s4 1966171168
  %v4288 = vunpack.c.0.s8 %v4287
  %v4289 = vlaneseq
  %v4290 = vshrl.u32 %v4289, 7
  %v4291 = vsub.s32 %v4288, %v4290
  %v4292 = vrot.slane %v4278, %v4291
  %v4293 = vcombine.high %v4285, %v4285
  %v4294 = vcombine.high %v4292, %v4292
  %v4296 = vunpack.c.l.s4 1966171168
  %v4297 = vunpack.c.0.s8 %v4296
  %v4298 = vlaneseq
  %v4299 = vshrl.u32 %v4298, 7
  %v4300 = vsub.s32 %v4297, %v4299
  %v4301 = vrot.slane %v4285, %v4300
  %v4303 = vunpack.c.l.s4 1966171168
  %v4304 = vunpack.c.0.s8 %v4303
  %v4305 = vlaneseq
  %v4306 = vshrl.u32 %v4305, 7
  %v4307 = vsub.s32 %v4304, %v4306
  %v4308 = vrot.slane %v4292, %v4307
  %v4310 = vunpack.c.l.s4 1966171168
  %v4311 = vunpack.c.0.s8 %v4310
  %v4312 = vlaneseq
  %v4313 = vshrl.u32 %v4312, 7
  %v4314 = vsub.s32 %v4311, %v4313
  %v4315 = vrot.slane %v4293, %v4314
  %v4317 = vunpack.c.l.s4 1966171168
  %v4318 = vunpack.c.0.s8 %v4317
  %v4319 = vlaneseq
  %v4320 = vshrl.u32 %v4319, 7
  %v4321 = vsub.s32 %v4318, %v4320
  %v4322 = vrot.slane %v4294, %v4321
  %v4323 = vcombine.high %v4301, %v4301
  %v4324 = vcombine.high %v4308, %v4308
  %v4325 = vcombine.high %v4315, %v4315
  %v4326 = vcombine.high %v4322, %v4322
  %v4327 = vlaneseq
  %v4328 = vshrl.u32 %v4327, 7
  %v4329 = vsub.s32 0, %v4328
  %v4330 = vrot.slane %v4301, %v4329
  %v4331 = vlaneseq
  %v4332 = vshrl.u32 %v4331, 7
  %v4333 = vsub.s32 0, %v4332
  %v4334 = vrot.slane %v4315, %v4333
  %v4335 = vlaneseq
  %v4336 = vshrl.u32 %v4335, 7
  %v4337 = vsub.s32 0, %v4336
  %v4338 = vrot.slane %v4323, %v4337
  %v4339 = vlaneseq
  %v4340 = vshrl.u32 %v4339, 7
  %v4341 = vsub.s32 0, %v4340
  %v4342 = vrot.slane %v4325, %v4341
  %v4343 = vlaneseq
  %v4344 = vshrl.u32 %v4343, 7
  %v4345 = vsub.s32 0, %v4344
  %v4346 = vrot.slane %v4308, %v4345
  %v4347 = vlaneseq
  %v4348 = vshrl.u32 %v4347, 7
  %v4349 = vsub.s32 0, %v4348
  %v4350 = vrot.slane %v4322, %v4349
  %v4351 = vlaneseq
  %v4352 = vshrl.u32 %v4351, 7
  %v4353 = vsub.s32 0, %v4352
  %v4354 = vrot.slane %v4324, %v4353
  %v4355 = vlaneseq
  %v4356 = vshrl.u32 %v4355, 7
  %v4357 = vsub.s32 0, %v4356
  %v4358 = vrot.slane %v4326, %v4357
  %v4367 = vadd.f32 %v4330, %v3168
  %v4368 = vadd.f32 %v4334, %v3173
  %v4369 = vadd.f32 %v4338, %v3178
  %v4370 = vadd.f32 %v4342, %v3183
  %v4371 = vadd.f32 %v4346, %v3188
  %v4372 = vadd.f32 %v4350, %v3193
  %v4373 = vadd.f32 %v4354, %v3198
  %v4374 = vadd.f32 %v4358, %v3203
  %v4375 = vtanh.pop %v4367
  %v4376 = vtanh.pop %v4368
  %v4377 = vtanh.pop %v4369
  %v4378 = vtanh.pop %v4370
  %v4379 = vtanh.pop %v4371
  %v4380 = vtanh.pop %v4372
  %v4381 = vtanh.pop %v4373
  %v4382 = vtanh.pop %v4374
  %v4383 = vmul.f32 %v4375, %v3661
  %v4384 = vmul.f32 %v4376, %v3661
  %v4385 = vmul.f32 %v4377, %v3661
  %v4386 = vmul.f32 %v4378, %v3661
  %v4387 = vmul.f32 %v4379, %v3661
  %v4388 = vmul.f32 %v4380, %v3661
  %v4389 = vmul.f32 %v4381, %v3661
  %v4390 = vmul.f32 %v4382, %v3661
  %v4391 = vsel %vm206, %v4383, 0.0
  %4392 = vadd.xlane.f32.xlu0 %v4391
  %v4393 = vpop.xlane.xlu0 %4392
  %v4394 = vsel %vm206, %v4384, 0.0
  %4395 = vadd.xlane.f32.xlu0 %v4394
  %v4396 = vpop.xlane.xlu0 %4395
  %v4397 = vsel %vm206, %v4385, 0.0
  %4398 = vadd.xlane.f32.xlu0 %v4397
  %v4399 = vpop.xlane.xlu0 %4398
  %v4400 = vsel %vm206, %v4386, 0.0
  %4401 = vadd.xlane.f32.xlu0 %v4400
  %v4402 = vpop.xlane.xlu0 %4401
  %v4403 = vsel %vm206, %v4387, 0.0
  %4404 = vadd.xlane.f32.xlu0 %v4403
  %v4405 = vpop.xlane.xlu0 %4404
  %v4406 = vsel %vm206, %v4388, 0.0
  %4407 = vadd.xlane.f32.xlu0 %v4406
  %v4408 = vpop.xlane.xlu0 %4407
  %v4409 = vsel %vm206, %v4389, 0.0
  %4410 = vadd.xlane.f32.xlu0 %v4409
  %v4411 = vpop.xlane.xlu0 %4410
  %v4412 = vsel %vm206, %v4390, 0.0
  %4413 = vadd.xlane.f32.xlu0 %v4412
  %v4414 = vpop.xlane.xlu0 %4413
  %v4415 = vtanh.pop %v4393
  %v4416 = vtanh.pop %v4396
  %v4417 = vtanh.pop %v4399
  %v4418 = vtanh.pop %v4402
  %v4419 = vtanh.pop %v4405
  %v4420 = vtanh.pop %v4408
  %v4421 = vtanh.pop %v4411
  %v4422 = vtanh.pop %v4414
  %v4423 = vmul.f32 %v4415, 10.0
  %v4424 = vmul.f32 %v4416, 10.0
  %v4425 = vmul.f32 %v4417, 10.0
  %v4426 = vmul.f32 %v4418, 10.0
  %v4427 = vmul.f32 %v4419, 10.0
  %v4428 = vmul.f32 %v4420, 10.0
  %v4429 = vmul.f32 %v4421, 10.0
  %v4430 = vmul.f32 %v4422, 10.0
  %vm4431 = vcmp.gt.f32.partialorder %v3822, 0.5
  %v4440 = vlaneseq
  %v4441 = vshrl.u32 %v4440, 7
  %v4442 = vsub.s32 %v3207, %v4441
  %v4443 = vrot.slane %v4423, %v4442
  %v4444 = vlaneseq
  %v4445 = vshrl.u32 %v4444, 7
  %v4446 = vsub.s32 %v3207, %v4445
  %v4447 = vrot.slane %v4424, %v4446
  %v4448 = vlaneseq
  %v4449 = vshrl.u32 %v4448, 7
  %v4450 = vsub.s32 %v3207, %v4449
  %v4451 = vrot.slane %v4425, %v4450
  %v4452 = vlaneseq
  %v4453 = vshrl.u32 %v4452, 7
  %v4454 = vsub.s32 %v3207, %v4453
  %v4455 = vrot.slane %v4426, %v4454
  %v4456 = vlaneseq
  %v4457 = vshrl.u32 %v4456, 7
  %v4458 = vsub.s32 %v3207, %v4457
  %v4459 = vrot.slane %v4427, %v4458
  %v4460 = vlaneseq
  %v4461 = vshrl.u32 %v4460, 7
  %v4462 = vsub.s32 %v3207, %v4461
  %v4463 = vrot.slane %v4428, %v4462
  %v4464 = vlaneseq
  %v4465 = vshrl.u32 %v4464, 7
  %v4466 = vsub.s32 %v3207, %v4465
  %v4467 = vrot.slane %v4429, %v4466
  %v4468 = vlaneseq
  %v4469 = vshrl.u32 %v4468, 7
  %v4470 = vsub.s32 %v3207, %v4469
  %v4471 = vrot.slane %v4430, %v4470
  %v4472 = vsel %vm638, %v4447, %v4443
  %v4473 = vsel %vm641, %v4451, %v4472
  %v4474 = vsel %vm644, %v4455, %v4473
  %v4475 = vsel %vm647, %v4459, %v4474
  %v4476 = vsel %vm650, %v4463, %v4475
  %v4477 = vsel %vm653, %v4467, %v4476
  %v4478 = vsel %vm656, %v4471, %v4477
  %v4480 = vsel %vm4431, -100000.0, %v4478
  %v4481 = vsel %vm3761, %v4480, -inf
  %4482 = vmax.xlane.f32.xlu0 %v4481
  %v4483 = vpop.xlane.xlu0 %4482
  %v4484 = vsub.f32 %v4480, %v4483
  %v4485 = vmul.f32 %v4484, 1.442695
  %v4486 = vpow.pop %v4485
  %v4487 = vsel %vm3761, %v4486, 0.0
  %4488 = vadd.xlane.f32.xlu0 %v4487
  %v4489 = vpop.xlane.xlu0 %4488
  %v4490 = vlog2.pop %v4489
  %v4491 = vmul.f32 %v4490, 0.6931472
  %v4492 = vadd.f32 %v4483, %v4491
  %v4493 = vsub.f32 %v4480, %v4492
  %v4494 = vrot.slane %v3226, 1
  %v4495 = vsel %vm638, %v3227, %v4494
  %v4496 = vrot.slane %v3228, 7
  %v4497 = vsel %vm641, %v4496, %v4495
  %v4498 = vrot.slane %v3229, 6
  %v4499 = vsel %vm644, %v4498, %v4497
  %v4500 = vrot.slane %v3230, 5
  %v4501 = vsel %vm647, %v4500, %v4499
  %v4502 = vrot.slane %v3231, 4
  %v4503 = vsel %vm650, %v4502, %v4501
  %v4504 = vrot.slane %v3232, 3
  %v4505 = vsel %vm653, %v4504, %v4503
  %v4506 = vrot.slane %v3233, 2
  %v4507 = vsel %vm656, %v4506, %v4505
  %v4509 = vadd.f32 %v4480, %v4507
  %v4510 = vsel %vm3761, %v4509, -inf
  %4511 = vmax.xlane.f32.xlu0 %v4510
  %v4512 = vpop.xlane.xlu0 %4511
  %vm4513 = vcmp.ge.f32.partialorder %v4509, %v4512
  %v4514 = vsel %vm4513, %v3207, 8
  %v4515 = vsel %vm3761, %v4514, 2147483647
  %v4516 = vand.u32 %v4515, 65535
  %v4517 = vshra.s32 %v4515, 16
  %v4518 = vcvt.s32.f32 %v4516
  %v4519 = vcvt.s32.f32 %v4517
  %4520 = vmin.xlane.f32.xlu0 %v4519
  %v4521 = vpop.xlane.xlu0 %4520
  %vm4522 = vcmp.eq.f32.partialorder %v4519, %v4521
  %v4523 = vsel %vm4522, %v4518, inf
  %4524 = vmin.xlane.f32.xlu0 %v4523
  %v4525 = vpop.xlane.xlu0 %4524
  %v4526 = vcvt.f32.s32 %v4525
  %v4527 = vcvt.f32.s32 %v4521
  %v4528 = vshll.u32 %v4527, 16
  %v4529 = vadd.s32 %v4528, %v4526
  %vm4530 = vcmp.eq.s32.totalorder %v3207, %v4529
  %v4531 = vsel %vm4530, 1, 0
  %v4532 = vcvt.s32.f32 %v4531
  %v4533 = vmax.f32 %v3822, %v4532
  %v4534 = vlaneseq
  %v4535 = vshrl.u32 %v4534, 7
  %v4536 = vsub.s32 0, %v4535
  %v4537 = vrot.slane %v4532, %v4536
  %4539 = vbcast.lane.b32.xlu0 %v4537, 256
  %v4540 = vpop.permute.xlu0 %4539
  %v4541 = vlaneseq
  %v4542 = vshrl.u32 %v4541, 7
  %v4543 = vsub.s32 1, %v4542
  %v4544 = vrot.slane %v4532, %v4543
  %4546 = vbcast.lane.b32.xlu0 %v4544, 256
  %v4547 = vpop.permute.xlu0 %4546
  %v4548 = vlaneseq
  %v4549 = vshrl.u32 %v4548, 7
  %v4550 = vsub.s32 2, %v4549
  %v4551 = vrot.slane %v4532, %v4550
  %4553 = vbcast.lane.b32.xlu0 %v4551, 256
  %v4554 = vpop.permute.xlu0 %4553
  %v4555 = vlaneseq
  %v4556 = vshrl.u32 %v4555, 7
  %v4557 = vsub.s32 3, %v4556
  %v4558 = vrot.slane %v4532, %v4557
  %4560 = vbcast.lane.b32.xlu0 %v4558, 256
  %v4561 = vpop.permute.xlu0 %4560
  %v4562 = vlaneseq
  %v4563 = vshrl.u32 %v4562, 7
  %v4564 = vsub.s32 4, %v4563
  %v4565 = vrot.slane %v4532, %v4564
  %4567 = vbcast.lane.b32.xlu0 %v4565, 256
  %v4568 = vpop.permute.xlu0 %4567
  %v4569 = vlaneseq
  %v4570 = vshrl.u32 %v4569, 7
  %v4571 = vsub.s32 5, %v4570
  %v4572 = vrot.slane %v4532, %v4571
  %4574 = vbcast.lane.b32.xlu0 %v4572, 256
  %v4575 = vpop.permute.xlu0 %4574
  %v4576 = vlaneseq
  %v4577 = vshrl.u32 %v4576, 7
  %v4578 = vsub.s32 6, %v4577
  %v4579 = vrot.slane %v4532, %v4578
  %4581 = vbcast.lane.b32.xlu0 %v4579, 256
  %v4582 = vpop.permute.xlu0 %4581
  %v4583 = vlaneseq
  %v4584 = vshrl.u32 %v4583, 7
  %v4585 = vsub.s32 7, %v4584
  %v4586 = vrot.slane %v4532, %v4585
  %4588 = vbcast.lane.b32.xlu0 %v4586, 256
  %v4589 = vpop.permute.xlu0 %4588
  %v4590 = vmul.f32 %v4540, %v52
  %v4591 = vmul.f32 %v4547, %v53
  %v4592 = vmul.f32 %v4554, %v54
  %v4593 = vmul.f32 %v4561, %v55
  %v4594 = vmul.f32 %v4568, %v56
  %v4595 = vmul.f32 %v4575, %v57
  %v4596 = vmul.f32 %v4582, %v58
  %v4597 = vmul.f32 %v4589, %v59
  %v4598 = vsel %vm61, %v4590, 0.0
  %v4599 = vrot.slane %v4598, 4
  %v4600 = vadd.f32 %v4598, %v4599
  %v4601 = vrot.slane %v4600, 2
  %v4602 = vadd.f32 %v4600, %v4601
  %v4603 = vrot.slane %v4602, 1
  %v4604 = vadd.f32 %v4602, %v4603
  %v4605 = vsel %vm61, %v4591, 0.0
  %v4606 = vrot.slane %v4605, 4
  %v4607 = vadd.f32 %v4605, %v4606
  %v4608 = vrot.slane %v4607, 2
  %v4609 = vadd.f32 %v4607, %v4608
  %v4610 = vrot.slane %v4609, 1
  %v4611 = vadd.f32 %v4609, %v4610
  %v4612 = vsel %vm61, %v4592, 0.0
  %v4613 = vrot.slane %v4612, 4
  %v4614 = vadd.f32 %v4612, %v4613
  %v4615 = vrot.slane %v4614, 2
  %v4616 = vadd.f32 %v4614, %v4615
  %v4617 = vrot.slane %v4616, 1
  %v4618 = vadd.f32 %v4616, %v4617
  %v4619 = vsel %vm61, %v4593, 0.0
  %v4620 = vrot.slane %v4619, 4
  %v4621 = vadd.f32 %v4619, %v4620
  %v4622 = vrot.slane %v4621, 2
  %v4623 = vadd.f32 %v4621, %v4622
  %v4624 = vrot.slane %v4623, 1
  %v4625 = vadd.f32 %v4623, %v4624
  %v4626 = vsel %vm61, %v4594, 0.0
  %v4627 = vrot.slane %v4626, 4
  %v4628 = vadd.f32 %v4626, %v4627
  %v4629 = vrot.slane %v4628, 2
  %v4630 = vadd.f32 %v4628, %v4629
  %v4631 = vrot.slane %v4630, 1
  %v4632 = vadd.f32 %v4630, %v4631
  %v4633 = vsel %vm61, %v4595, 0.0
  %v4634 = vrot.slane %v4633, 4
  %v4635 = vadd.f32 %v4633, %v4634
  %v4636 = vrot.slane %v4635, 2
  %v4637 = vadd.f32 %v4635, %v4636
  %v4638 = vrot.slane %v4637, 1
  %v4639 = vadd.f32 %v4637, %v4638
  %v4640 = vsel %vm61, %v4596, 0.0
  %v4641 = vrot.slane %v4640, 4
  %v4642 = vadd.f32 %v4640, %v4641
  %v4643 = vrot.slane %v4642, 2
  %v4644 = vadd.f32 %v4642, %v4643
  %v4645 = vrot.slane %v4644, 1
  %v4646 = vadd.f32 %v4644, %v4645
  %v4647 = vsel %vm61, %v4597, 0.0
  %v4648 = vrot.slane %v4647, 4
  %v4649 = vadd.f32 %v4647, %v4648
  %v4650 = vrot.slane %v4649, 2
  %v4651 = vadd.f32 %v4649, %v4650
  %v4652 = vrot.slane %v4651, 1
  %v4653 = vadd.f32 %v4651, %v4652
  %v4662 = vsel %vm638, %v4611, %v4604
  %v4663 = vsel %vm641, %v4618, %v4662
  %v4664 = vsel %vm644, %v4625, %v4663
  %v4665 = vsel %vm647, %v4632, %v4664
  %v4666 = vsel %vm650, %v4639, %v4665
  %v4667 = vsel %vm653, %v4646, %v4666
  %v4668 = vsel %vm656, %v4653, %v4667
  %v4669 = vsel %vm61, %v4668, 0
  %4671 = vmatprep.subr.mxu0 0.0
  %4672 = vmatpush1.msra.mxu0 0.0
  %4673 = vmatprep.subr.mxu0 0.0
  %4674 = vmatpush1.msra.mxu0 0.0
  %4675 = vmatprep.subr.mxu0 0.0
  %4676 = vmatpush1.msra.mxu0 0.0
  %4677 = vmatprep.subr.mxu0 0.0
  %4678 = vmatpush1.msra.mxu0 0.0
  %4679 = vmatprep.subr.mxu0 0.0
  %4680 = vmatpush1.msra.mxu0 0.0
  %4681 = vmatprep.subr.mxu0 0.0
  %4682 = vmatpush1.msra.mxu0 0.0
  %4683 = vmatprep.subr.mxu0 0.0
  %4684 = vmatpush1.msra.mxu0 0.0
  %4685 = vmatprep.subr.mxu0 0.0
  %4686 = vmatpush1.msra.mxu0 0.0
  %4687 = vmatprep.subr.mxu0 0.0
  %4688 = vmatpush1.msra.mxu0 0.0
  %4689 = vmatprep.subr.mxu0 0.0
  %4690 = vmatpush1.msra.mxu0 0.0
  %4691 = vmatprep.subr.mxu0 0.0
  %4692 = vmatpush1.msra.mxu0 0.0
  %4693 = vmatprep.subr.mxu0 0.0
  %4694 = vmatpush1.msra.mxu0 0.0
  %4695 = vmatprep.subr.mxu0 0.0
  %4696 = vmatpush1.msra.mxu0 0.0
  %4697 = vmatprep.subr.mxu0 0.0
  %4698 = vmatpush1.msra.mxu0 0.0
  %4699 = vmatprep.subr.mxu0 0.0
  %4700 = vmatpush1.msra.mxu0 0.0
  %4701 = vmatprep.subr.mxu0 0.0
  %4702 = vmatpush1.msra.mxu0 %v88
  %4703 = vmatprep.subr.mxu0 0.0
  %4704 = vmatpush2.msra.mxu0 0.0
  %4705 = vmatprep.subr.mxu0 0.0
  %4706 = vmatpush2.msra.mxu0 0.0
  %4707 = vmatprep.subr.mxu0 0.0
  %4708 = vmatpush2.msra.mxu0 0.0
  %4709 = vmatprep.subr.mxu0 0.0
  %4710 = vmatpush2.msra.mxu0 0.0
  %4711 = vmatprep.subr.mxu0 0.0
  %4712 = vmatpush2.msra.mxu0 0.0
  %4713 = vmatprep.subr.mxu0 0.0
  %4714 = vmatpush2.msra.mxu0 0.0
  %4715 = vmatprep.subr.mxu0 0.0
  %4716 = vmatpush2.msra.mxu0 0.0
  %4717 = vmatprep.subr.mxu0 0.0
  %4718 = vmatpush2.msra.mxu0 0.0
  %4719 = vmatprep.subr.mxu0 0.0
  %4720 = vmatpush2.msra.mxu0 0.0
  %4721 = vmatprep.subr.mxu0 0.0
  %4722 = vmatpush2.msra.mxu0 0.0
  %4723 = vmatprep.subr.mxu0 0.0
  %4724 = vmatpush2.msra.mxu0 0.0
  %4725 = vmatprep.subr.mxu0 0.0
  %4726 = vmatpush2.msra.mxu0 0.0
  %4727 = vmatprep.subr.mxu0 0.0
  %4728 = vmatpush2.msra.mxu0 0.0
  %4729 = vmatprep.subr.mxu0 0.0
  %4730 = vmatpush2.msra.mxu0 0.0
  %4731 = vmatprep.subr.mxu0 0.0
  %4732 = vmatpush2.msra.mxu0 0.0
  %4733 = vmatprep.subr.mxu0 0.0
  %4734 = vmatpush2.msra.mxu0 0.0
  %4735 = vmatprep.mubr.f32.mxu0 0.0
  %4736 = vmatmul.mubr.f32.gmra.mxu0 %v4669
  %v4737 = vpop.f32.mrf.mxu0
  %v4738 = vadd.f32 0.0, %v4737
  %v4739 = vpop.f32.mrf.mxu0
  %4740 = vdwg.mxu0
  %v4741 = vmul.f32 %v4493, %v4532
  %v4742 = vsel %vm3761, %v4741, 0.0
  %4743 = vadd.xlane.f32.xlu0 %v4742
  %v4744 = vpop.xlane.xlu0 %4743
  %4745 = vmatprep.subr.mxu0 0.0
  %4746 = vmatpush1.msra.mxu0 0.0
  %4747 = vmatprep.subr.mxu0 0.0
  %4748 = vmatpush1.msra.mxu0 0.0
  %4749 = vmatprep.subr.mxu0 0.0
  %4750 = vmatpush1.msra.mxu0 0.0
  %4751 = vmatprep.subr.mxu0 0.0
  %4752 = vmatpush1.msra.mxu0 0.0
  %4753 = vmatprep.subr.mxu0 0.0
  %4754 = vmatpush1.msra.mxu0 0.0
  %4755 = vmatprep.subr.mxu0 0.0
  %4756 = vmatpush1.msra.mxu0 0.0
  %4757 = vmatprep.subr.mxu0 0.0
  %4758 = vmatpush1.msra.mxu0 0.0
  %4759 = vmatprep.subr.mxu0 0.0
  %4760 = vmatpush1.msra.mxu0 0.0
  %4761 = vmatprep.subr.mxu0 0.0
  %4762 = vmatpush1.msra.mxu0 0.0
  %4763 = vmatprep.subr.mxu0 0.0
  %4764 = vmatpush1.msra.mxu0 0.0
  %4765 = vmatprep.subr.mxu0 0.0
  %4766 = vmatpush1.msra.mxu0 0.0
  %4767 = vmatprep.subr.mxu0 0.0
  %4768 = vmatpush1.msra.mxu0 0.0
  %4769 = vmatprep.subr.mxu0 0.0
  %4770 = vmatpush1.msra.mxu0 %v3218
  %4771 = vmatprep.subr.mxu0 0.0
  %4772 = vmatpush1.msra.mxu0 %v3217
  %4773 = vmatprep.subr.mxu0 0.0
  %4774 = vmatpush1.msra.mxu0 %v3216
  %4775 = vmatprep.subr.mxu0 0.0
  %4776 = vmatpush1.msra.mxu0 %v3215
  %4777 = vmatprep.subr.mxu0 0.0
  %4778 = vmatpush2.msra.mxu0 0.0
  %4779 = vmatprep.subr.mxu0 0.0
  %4780 = vmatpush2.msra.mxu0 0.0
  %4781 = vmatprep.subr.mxu0 0.0
  %4782 = vmatpush2.msra.mxu0 0.0
  %4783 = vmatprep.subr.mxu0 0.0
  %4784 = vmatpush2.msra.mxu0 0.0
  %4785 = vmatprep.subr.mxu0 0.0
  %4786 = vmatpush2.msra.mxu0 0.0
  %4787 = vmatprep.subr.mxu0 0.0
  %4788 = vmatpush2.msra.mxu0 0.0
  %4789 = vmatprep.subr.mxu0 0.0
  %4790 = vmatpush2.msra.mxu0 0.0
  %4791 = vmatprep.subr.mxu0 0.0
  %4792 = vmatpush2.msra.mxu0 0.0
  %4793 = vmatprep.subr.mxu0 0.0
  %4794 = vmatpush2.msra.mxu0 0.0
  %4795 = vmatprep.subr.mxu0 0.0
  %4796 = vmatpush2.msra.mxu0 0.0
  %4797 = vmatprep.subr.mxu0 0.0
  %4798 = vmatpush2.msra.mxu0 0.0
  %4799 = vmatprep.subr.mxu0 0.0
  %4800 = vmatpush2.msra.mxu0 0.0
  %4801 = vmatprep.subr.mxu0 0.0
  %4802 = vmatpush2.msra.mxu0 0.0
  %4803 = vmatprep.subr.mxu0 0.0
  %4804 = vmatpush2.msra.mxu0 0.0
  %4805 = vmatprep.subr.mxu0 0.0
  %4806 = vmatpush2.msra.mxu0 0.0
  %4807 = vmatprep.subr.mxu0 0.0
  %4808 = vmatpush2.msra.mxu0 0.0
  %4809 = vmatprep.mubr.f32.mxu0 0.0
  %4810 = vmatmul.mubr.f32.gmra.mxu0 %v4205
  %v4811 = vpop.f32.mrf.mxu0
  %v4812 = vadd.f32 0.0, %v4811
  %v4813 = vpop.f32.mrf.mxu0
  %4814 = vdwg.mxu0
  %v4816 = vsel %vm206, %v4738, 0
  %4818 = vmatprep.subr.mxu0 0.0
  %4819 = vmatpush1.msra.mxu0 0.0
  %4820 = vmatprep.subr.mxu0 0.0
  %4821 = vmatpush1.msra.mxu0 0.0
  %4822 = vmatprep.subr.mxu0 0.0
  %4823 = vmatpush1.msra.mxu0 0.0
  %4824 = vmatprep.subr.mxu0 0.0
  %4825 = vmatpush1.msra.mxu0 0.0
  %4826 = vmatprep.subr.mxu0 0.0
  %4827 = vmatpush1.msra.mxu0 0.0
  %4828 = vmatprep.subr.mxu0 0.0
  %4829 = vmatpush1.msra.mxu0 0.0
  %4830 = vmatprep.subr.mxu0 0.0
  %4831 = vmatpush1.msra.mxu0 0.0
  %4832 = vmatprep.subr.mxu0 0.0
  %4833 = vmatpush1.msra.mxu0 0.0
  %4834 = vmatprep.subr.mxu0 0.0
  %4835 = vmatpush1.msra.mxu0 0.0
  %4836 = vmatprep.subr.mxu0 0.0
  %4837 = vmatpush1.msra.mxu0 0.0
  %4838 = vmatprep.subr.mxu0 0.0
  %4839 = vmatpush1.msra.mxu0 0.0
  %4840 = vmatprep.subr.mxu0 0.0
  %4841 = vmatpush1.msra.mxu0 0.0
  %4842 = vmatprep.subr.mxu0 0.0
  %4843 = vmatpush1.msra.mxu0 %v3214
  %4844 = vmatprep.subr.mxu0 0.0
  %4845 = vmatpush1.msra.mxu0 %v3213
  %4846 = vmatprep.subr.mxu0 0.0
  %4847 = vmatpush1.msra.mxu0 %v3212
  %4848 = vmatprep.subr.mxu0 0.0
  %4849 = vmatpush1.msra.mxu0 %v3211
  %4850 = vmatprep.subr.mxu0 0.0
  %4851 = vmatpush2.msra.mxu0 0.0
  %4852 = vmatprep.subr.mxu0 0.0
  %4853 = vmatpush2.msra.mxu0 0.0
  %4854 = vmatprep.subr.mxu0 0.0
  %4855 = vmatpush2.msra.mxu0 0.0
  %4856 = vmatprep.subr.mxu0 0.0
  %4857 = vmatpush2.msra.mxu0 0.0
  %4858 = vmatprep.subr.mxu0 0.0
  %4859 = vmatpush2.msra.mxu0 0.0
  %4860 = vmatprep.subr.mxu0 0.0
  %4861 = vmatpush2.msra.mxu0 0.0
  %4862 = vmatprep.subr.mxu0 0.0
  %4863 = vmatpush2.msra.mxu0 0.0
  %4864 = vmatprep.subr.mxu0 0.0
  %4865 = vmatpush2.msra.mxu0 0.0
  %4866 = vmatprep.subr.mxu0 0.0
  %4867 = vmatpush2.msra.mxu0 0.0
  %4868 = vmatprep.subr.mxu0 0.0
  %4869 = vmatpush2.msra.mxu0 0.0
  %4870 = vmatprep.subr.mxu0 0.0
  %4871 = vmatpush2.msra.mxu0 0.0
  %4872 = vmatprep.subr.mxu0 0.0
  %4873 = vmatpush2.msra.mxu0 0.0
  %4874 = vmatprep.subr.mxu0 0.0
  %4875 = vmatpush2.msra.mxu0 0.0
  %4876 = vmatprep.subr.mxu0 0.0
  %4877 = vmatpush2.msra.mxu0 0.0
  %4878 = vmatprep.subr.mxu0 0.0
  %4879 = vmatpush2.msra.mxu0 0.0
  %4880 = vmatprep.subr.mxu0 0.0
  %4881 = vmatpush2.msra.mxu0 0.0
  %4882 = vmatprep.mubr.f32.mxu0 0.0
  %4883 = vmatmul.mubr.f32.gmra.mxu0 %v4816
  %v4884 = vpop.f32.mrf.mxu0
  %v4885 = vadd.f32 %v4812, %v4884
  %v4886 = vpop.f32.mrf.mxu0
  %4887 = vdwg.mxu0
  %v4888 = vadd.f32 %v4885, %v3420
  %v4889 = vxor.u32 %v4888, 2147483648
  %v4890 = vmul.f32 %v4889, 1.442695
  %v4891 = vpow.pop %v4890
  %v4892 = vadd.f32 %v4891, 1.0
  %v4893 = vrcp.pop %v4892
  %v4894 = vmul.f32 1.0, %v4893
  %v4895 = vtanh.pop %v4888
  %v4896 = vmul.f32 %v4894, %v4195
  %4898 = vrot.lane.b32.xlu0 %v4895, 64
  %v4899 = vpop.permute.xlu0 %4898
  %v4901 = vmul.f32 %v4894, %v4899
  %4903 = vrot.lane.b32.xlu0 %v4901, 32
  %v4904 = vpop.permute.xlu0 %4903
  %v4906 = vadd.f32 %v4896, %v4904
  %v4907 = vtanh.pop %v4906
  %4909 = vrot.lane.b32.xlu0 %v4907, 64
  %v4910 = vpop.permute.xlu0 %4909
  %v4912 = vmul.f32 %v4894, %v4910
  %4914 = vrot.lane.b32.xlu0 %v4912, 32
  %v4915 = vpop.permute.xlu0 %4914
  %v4916 = vsel %vm206, %v4915, 0
  %4918 = vmatprep.subr.mxu0 0.0
  %4919 = vmatpush1.msra.mxu0 0.0
  %4920 = vmatprep.subr.mxu0 0.0
  %4921 = vmatpush1.msra.mxu0 0.0
  %4922 = vmatprep.subr.mxu0 0.0
  %4923 = vmatpush1.msra.mxu0 0.0
  %4924 = vmatprep.subr.mxu0 0.0
  %4925 = vmatpush1.msra.mxu0 0.0
  %4926 = vmatprep.subr.mxu0 0.0
  %4927 = vmatpush1.msra.mxu0 0.0
  %4928 = vmatprep.subr.mxu0 0.0
  %4929 = vmatpush1.msra.mxu0 0.0
  %4930 = vmatprep.subr.mxu0 0.0
  %4931 = vmatpush1.msra.mxu0 0.0
  %4932 = vmatprep.subr.mxu0 0.0
  %4933 = vmatpush1.msra.mxu0 0.0
  %4934 = vmatprep.subr.mxu0 0.0
  %4935 = vmatpush1.msra.mxu0 0.0
  %4936 = vmatprep.subr.mxu0 0.0
  %4937 = vmatpush1.msra.mxu0 0.0
  %4938 = vmatprep.subr.mxu0 0.0
  %4939 = vmatpush1.msra.mxu0 0.0
  %4940 = vmatprep.subr.mxu0 0.0
  %4941 = vmatpush1.msra.mxu0 0.0
  %4942 = vmatprep.subr.mxu0 0.0
  %4943 = vmatpush1.msra.mxu0 %v3223
  %4944 = vmatprep.subr.mxu0 0.0
  %4945 = vmatpush1.msra.mxu0 %v3222
  %4946 = vmatprep.subr.mxu0 0.0
  %4947 = vmatpush1.msra.mxu0 %v3221
  %4948 = vmatprep.subr.mxu0 0.0
  %4949 = vmatpush1.msra.mxu0 %v3220
  %4950 = vmatprep.subr.mxu0 0.0
  %4951 = vmatpush2.msra.mxu0 0.0
  %4952 = vmatprep.subr.mxu0 0.0
  %4953 = vmatpush2.msra.mxu0 0.0
  %4954 = vmatprep.subr.mxu0 0.0
  %4955 = vmatpush2.msra.mxu0 0.0
  %4956 = vmatprep.subr.mxu0 0.0
  %4957 = vmatpush2.msra.mxu0 0.0
  %4958 = vmatprep.subr.mxu0 0.0
  %4959 = vmatpush2.msra.mxu0 0.0
  %4960 = vmatprep.subr.mxu0 0.0
  %4961 = vmatpush2.msra.mxu0 0.0
  %4962 = vmatprep.subr.mxu0 0.0
  %4963 = vmatpush2.msra.mxu0 0.0
  %4964 = vmatprep.subr.mxu0 0.0
  %4965 = vmatpush2.msra.mxu0 0.0
  %4966 = vmatprep.subr.mxu0 0.0
  %4967 = vmatpush2.msra.mxu0 0.0
  %4968 = vmatprep.subr.mxu0 0.0
  %4969 = vmatpush2.msra.mxu0 0.0
  %4970 = vmatprep.subr.mxu0 0.0
  %4971 = vmatpush2.msra.mxu0 0.0
  %4972 = vmatprep.subr.mxu0 0.0
  %4973 = vmatpush2.msra.mxu0 0.0
  %4974 = vmatprep.subr.mxu0 0.0
  %4975 = vmatpush2.msra.mxu0 0.0
  %4976 = vmatprep.subr.mxu0 0.0
  %4977 = vmatpush2.msra.mxu0 0.0
  %4978 = vmatprep.subr.mxu0 0.0
  %4979 = vmatpush2.msra.mxu0 0.0
  %4980 = vmatprep.subr.mxu0 0.0
  %4981 = vmatpush2.msra.mxu0 0.0
  %4982 = vmatprep.mubr.f32.mxu0 0.0
  %4983 = vmatmul.mubr.f32.gmra.mxu0 %v4916
  %v4984 = vpop.f32.mrf.mxu0
  %v4985 = vadd.f32 %v3474, %v4984
  %v4986 = vpop.f32.mrf.mxu0
  %4987 = vdwg.mxu0
  %v4989 = vcombine.high %v4985, %v4985
  %v4991 = vunpack.c.l.s4 1966171168
  %v4992 = vunpack.c.0.s8 %v4991
  %v4993 = vlaneseq
  %v4994 = vshrl.u32 %v4993, 7
  %v4995 = vsub.s32 %v4992, %v4994
  %v4996 = vrot.slane %v4985, %v4995
  %v4998 = vunpack.c.l.s4 1966171168
  %v4999 = vunpack.c.0.s8 %v4998
  %v5000 = vlaneseq
  %v5001 = vshrl.u32 %v5000, 7
  %v5002 = vsub.s32 %v4999, %v5001
  %v5003 = vrot.slane %v4989, %v5002
  %v5004 = vcombine.high %v4996, %v4996
  %v5005 = vcombine.high %v5003, %v5003
  %v5007 = vunpack.c.l.s4 1966171168
  %v5008 = vunpack.c.0.s8 %v5007
  %v5009 = vlaneseq
  %v5010 = vshrl.u32 %v5009, 7
  %v5011 = vsub.s32 %v5008, %v5010
  %v5012 = vrot.slane %v4996, %v5011
  %v5014 = vunpack.c.l.s4 1966171168
  %v5015 = vunpack.c.0.s8 %v5014
  %v5016 = vlaneseq
  %v5017 = vshrl.u32 %v5016, 7
  %v5018 = vsub.s32 %v5015, %v5017
  %v5019 = vrot.slane %v5003, %v5018
  %v5021 = vunpack.c.l.s4 1966171168
  %v5022 = vunpack.c.0.s8 %v5021
  %v5023 = vlaneseq
  %v5024 = vshrl.u32 %v5023, 7
  %v5025 = vsub.s32 %v5022, %v5024
  %v5026 = vrot.slane %v5004, %v5025
  %v5028 = vunpack.c.l.s4 1966171168
  %v5029 = vunpack.c.0.s8 %v5028
  %v5030 = vlaneseq
  %v5031 = vshrl.u32 %v5030, 7
  %v5032 = vsub.s32 %v5029, %v5031
  %v5033 = vrot.slane %v5005, %v5032
  %v5034 = vcombine.high %v5012, %v5012
  %v5035 = vcombine.high %v5019, %v5019
  %v5036 = vcombine.high %v5026, %v5026
  %v5037 = vcombine.high %v5033, %v5033
  %v5038 = vlaneseq
  %v5039 = vshrl.u32 %v5038, 7
  %v5040 = vsub.s32 0, %v5039
  %v5041 = vrot.slane %v5012, %v5040
  %v5042 = vlaneseq
  %v5043 = vshrl.u32 %v5042, 7
  %v5044 = vsub.s32 0, %v5043
  %v5045 = vrot.slane %v5026, %v5044
  %v5046 = vlaneseq
  %v5047 = vshrl.u32 %v5046, 7
  %v5048 = vsub.s32 0, %v5047
  %v5049 = vrot.slane %v5034, %v5048
  %v5050 = vlaneseq
  %v5051 = vshrl.u32 %v5050, 7
  %v5052 = vsub.s32 0, %v5051
  %v5053 = vrot.slane %v5036, %v5052
  %v5054 = vlaneseq
  %v5055 = vshrl.u32 %v5054, 7
  %v5056 = vsub.s32 0, %v5055
  %v5057 = vrot.slane %v5019, %v5056
  %v5058 = vlaneseq
  %v5059 = vshrl.u32 %v5058, 7
  %v5060 = vsub.s32 0, %v5059
  %v5061 = vrot.slane %v5033, %v5060
  %v5062 = vlaneseq
  %v5063 = vshrl.u32 %v5062, 7
  %v5064 = vsub.s32 0, %v5063
  %v5065 = vrot.slane %v5035, %v5064
  %v5066 = vlaneseq
  %v5067 = vshrl.u32 %v5066, 7
  %v5068 = vsub.s32 0, %v5067
  %v5069 = vrot.slane %v5037, %v5068
  %v5078 = vadd.f32 %v5041, %v3168
  %v5079 = vadd.f32 %v5045, %v3173
  %v5080 = vadd.f32 %v5049, %v3178
  %v5081 = vadd.f32 %v5053, %v3183
  %v5082 = vadd.f32 %v5057, %v3188
  %v5083 = vadd.f32 %v5061, %v3193
  %v5084 = vadd.f32 %v5065, %v3198
  %v5085 = vadd.f32 %v5069, %v3203
  %v5086 = vtanh.pop %v5078
  %v5087 = vtanh.pop %v5079
  %v5088 = vtanh.pop %v5080
  %v5089 = vtanh.pop %v5081
  %v5090 = vtanh.pop %v5082
  %v5091 = vtanh.pop %v5083
  %v5092 = vtanh.pop %v5084
  %v5093 = vtanh.pop %v5085
  %v5094 = vmul.f32 %v5086, %v3661
  %v5095 = vmul.f32 %v5087, %v3661
  %v5096 = vmul.f32 %v5088, %v3661
  %v5097 = vmul.f32 %v5089, %v3661
  %v5098 = vmul.f32 %v5090, %v3661
  %v5099 = vmul.f32 %v5091, %v3661
  %v5100 = vmul.f32 %v5092, %v3661
  %v5101 = vmul.f32 %v5093, %v3661
  %v5102 = vsel %vm206, %v5094, 0.0
  %5103 = vadd.xlane.f32.xlu0 %v5102
  %v5104 = vpop.xlane.xlu0 %5103
  %v5105 = vsel %vm206, %v5095, 0.0
  %5106 = vadd.xlane.f32.xlu0 %v5105
  %v5107 = vpop.xlane.xlu0 %5106
  %v5108 = vsel %vm206, %v5096, 0.0
  %5109 = vadd.xlane.f32.xlu0 %v5108
  %v5110 = vpop.xlane.xlu0 %5109
  %v5111 = vsel %vm206, %v5097, 0.0
  %5112 = vadd.xlane.f32.xlu0 %v5111
  %v5113 = vpop.xlane.xlu0 %5112
  %v5114 = vsel %vm206, %v5098, 0.0
  %5115 = vadd.xlane.f32.xlu0 %v5114
  %v5116 = vpop.xlane.xlu0 %5115
  %v5117 = vsel %vm206, %v5099, 0.0
  %5118 = vadd.xlane.f32.xlu0 %v5117
  %v5119 = vpop.xlane.xlu0 %5118
  %v5120 = vsel %vm206, %v5100, 0.0
  %5121 = vadd.xlane.f32.xlu0 %v5120
  %v5122 = vpop.xlane.xlu0 %5121
  %v5123 = vsel %vm206, %v5101, 0.0
  %5124 = vadd.xlane.f32.xlu0 %v5123
  %v5125 = vpop.xlane.xlu0 %5124
  %v5126 = vtanh.pop %v5104
  %v5127 = vtanh.pop %v5107
  %v5128 = vtanh.pop %v5110
  %v5129 = vtanh.pop %v5113
  %v5130 = vtanh.pop %v5116
  %v5131 = vtanh.pop %v5119
  %v5132 = vtanh.pop %v5122
  %v5133 = vtanh.pop %v5125
  %v5134 = vmul.f32 %v5126, 10.0
  %v5135 = vmul.f32 %v5127, 10.0
  %v5136 = vmul.f32 %v5128, 10.0
  %v5137 = vmul.f32 %v5129, 10.0
  %v5138 = vmul.f32 %v5130, 10.0
  %v5139 = vmul.f32 %v5131, 10.0
  %v5140 = vmul.f32 %v5132, 10.0
  %v5141 = vmul.f32 %v5133, 10.0
  %vm5142 = vcmp.gt.f32.partialorder %v4533, 0.5
  %v5151 = vlaneseq
  %v5152 = vshrl.u32 %v5151, 7
  %v5153 = vsub.s32 %v3207, %v5152
  %v5154 = vrot.slane %v5134, %v5153
  %v5155 = vlaneseq
  %v5156 = vshrl.u32 %v5155, 7
  %v5157 = vsub.s32 %v3207, %v5156
  %v5158 = vrot.slane %v5135, %v5157
  %v5159 = vlaneseq
  %v5160 = vshrl.u32 %v5159, 7
  %v5161 = vsub.s32 %v3207, %v5160
  %v5162 = vrot.slane %v5136, %v5161
  %v5163 = vlaneseq
  %v5164 = vshrl.u32 %v5163, 7
  %v5165 = vsub.s32 %v3207, %v5164
  %v5166 = vrot.slane %v5137, %v5165
  %v5167 = vlaneseq
  %v5168 = vshrl.u32 %v5167, 7
  %v5169 = vsub.s32 %v3207, %v5168
  %v5170 = vrot.slane %v5138, %v5169
  %v5171 = vlaneseq
  %v5172 = vshrl.u32 %v5171, 7
  %v5173 = vsub.s32 %v3207, %v5172
  %v5174 = vrot.slane %v5139, %v5173
  %v5175 = vlaneseq
  %v5176 = vshrl.u32 %v5175, 7
  %v5177 = vsub.s32 %v3207, %v5176
  %v5178 = vrot.slane %v5140, %v5177
  %v5179 = vlaneseq
  %v5180 = vshrl.u32 %v5179, 7
  %v5181 = vsub.s32 %v3207, %v5180
  %v5182 = vrot.slane %v5141, %v5181
  %v5183 = vsel %vm638, %v5158, %v5154
  %v5184 = vsel %vm641, %v5162, %v5183
  %v5185 = vsel %vm644, %v5166, %v5184
  %v5186 = vsel %vm647, %v5170, %v5185
  %v5187 = vsel %vm650, %v5174, %v5186
  %v5188 = vsel %vm653, %v5178, %v5187
  %v5189 = vsel %vm656, %v5182, %v5188
  %v5191 = vsel %vm5142, -100000.0, %v5189
  %v5192 = vsel %vm3761, %v5191, -inf
  %5193 = vmax.xlane.f32.xlu0 %v5192
  %v5194 = vpop.xlane.xlu0 %5193
  %v5195 = vsub.f32 %v5191, %v5194
  %v5196 = vmul.f32 %v5195, 1.442695
  %v5197 = vpow.pop %v5196
  %v5198 = vsel %vm3761, %v5197, 0.0
  %5199 = vadd.xlane.f32.xlu0 %v5198
  %v5200 = vpop.xlane.xlu0 %5199
  %v5201 = vlog2.pop %v5200
  %v5202 = vmul.f32 %v5201, 0.6931472
  %v5203 = vadd.f32 %v5194, %v5202
  %v5204 = vsub.f32 %v5191, %v5203
  %v5205 = vrot.slane %v3226, 2
  %v5206 = vrot.slane %v3227, 1
  %v5207 = vsel %vm638, %v5206, %v5205
  %v5208 = vsel %vm641, %v3228, %v5207
  %v5209 = vrot.slane %v3229, 7
  %v5210 = vsel %vm644, %v5209, %v5208
  %v5211 = vrot.slane %v3230, 6
  %v5212 = vsel %vm647, %v5211, %v5210
  %v5213 = vrot.slane %v3231, 5
  %v5214 = vsel %vm650, %v5213, %v5212
  %v5215 = vrot.slane %v3232, 4
  %v5216 = vsel %vm653, %v5215, %v5214
  %v5217 = vrot.slane %v3233, 3
  %v5218 = vsel %vm656, %v5217, %v5216
  %v5220 = vadd.f32 %v5191, %v5218
  %v5221 = vsel %vm3761, %v5220, -inf
  %5222 = vmax.xlane.f32.xlu0 %v5221
  %v5223 = vpop.xlane.xlu0 %5222
  %vm5224 = vcmp.ge.f32.partialorder %v5220, %v5223
  %v5225 = vsel %vm5224, %v3207, 8
  %v5226 = vsel %vm3761, %v5225, 2147483647
  %v5227 = vand.u32 %v5226, 65535
  %v5228 = vshra.s32 %v5226, 16
  %v5229 = vcvt.s32.f32 %v5227
  %v5230 = vcvt.s32.f32 %v5228
  %5231 = vmin.xlane.f32.xlu0 %v5230
  %v5232 = vpop.xlane.xlu0 %5231
  %vm5233 = vcmp.eq.f32.partialorder %v5230, %v5232
  %v5234 = vsel %vm5233, %v5229, inf
  %5235 = vmin.xlane.f32.xlu0 %v5234
  %v5236 = vpop.xlane.xlu0 %5235
  %v5237 = vcvt.f32.s32 %v5236
  %v5238 = vcvt.f32.s32 %v5232
  %v5239 = vshll.u32 %v5238, 16
  %v5240 = vadd.s32 %v5239, %v5237
  %vm5241 = vcmp.eq.s32.totalorder %v3207, %v5240
  %v5242 = vsel %vm5241, 1, 0
  %v5243 = vcvt.s32.f32 %v5242
  %v5244 = vmax.f32 %v4533, %v5243
  %v5245 = vlaneseq
  %v5246 = vshrl.u32 %v5245, 7
  %v5247 = vsub.s32 0, %v5246
  %v5248 = vrot.slane %v5243, %v5247
  %5250 = vbcast.lane.b32.xlu0 %v5248, 256
  %v5251 = vpop.permute.xlu0 %5250
  %v5252 = vlaneseq
  %v5253 = vshrl.u32 %v5252, 7
  %v5254 = vsub.s32 1, %v5253
  %v5255 = vrot.slane %v5243, %v5254
  %5257 = vbcast.lane.b32.xlu0 %v5255, 256
  %v5258 = vpop.permute.xlu0 %5257
  %v5259 = vlaneseq
  %v5260 = vshrl.u32 %v5259, 7
  %v5261 = vsub.s32 2, %v5260
  %v5262 = vrot.slane %v5243, %v5261
  %5264 = vbcast.lane.b32.xlu0 %v5262, 256
  %v5265 = vpop.permute.xlu0 %5264
  %v5266 = vlaneseq
  %v5267 = vshrl.u32 %v5266, 7
  %v5268 = vsub.s32 3, %v5267
  %v5269 = vrot.slane %v5243, %v5268
  %5271 = vbcast.lane.b32.xlu0 %v5269, 256
  %v5272 = vpop.permute.xlu0 %5271
  %v5273 = vlaneseq
  %v5274 = vshrl.u32 %v5273, 7
  %v5275 = vsub.s32 4, %v5274
  %v5276 = vrot.slane %v5243, %v5275
  %5278 = vbcast.lane.b32.xlu0 %v5276, 256
  %v5279 = vpop.permute.xlu0 %5278
  %v5280 = vlaneseq
  %v5281 = vshrl.u32 %v5280, 7
  %v5282 = vsub.s32 5, %v5281
  %v5283 = vrot.slane %v5243, %v5282
  %5285 = vbcast.lane.b32.xlu0 %v5283, 256
  %v5286 = vpop.permute.xlu0 %5285
  %v5287 = vlaneseq
  %v5288 = vshrl.u32 %v5287, 7
  %v5289 = vsub.s32 6, %v5288
  %v5290 = vrot.slane %v5243, %v5289
  %5292 = vbcast.lane.b32.xlu0 %v5290, 256
  %v5293 = vpop.permute.xlu0 %5292
  %v5294 = vlaneseq
  %v5295 = vshrl.u32 %v5294, 7
  %v5296 = vsub.s32 7, %v5295
  %v5297 = vrot.slane %v5243, %v5296
  %5299 = vbcast.lane.b32.xlu0 %v5297, 256
  %v5300 = vpop.permute.xlu0 %5299
  %v5301 = vmul.f32 %v5251, %v52
  %v5302 = vmul.f32 %v5258, %v53
  %v5303 = vmul.f32 %v5265, %v54
  %v5304 = vmul.f32 %v5272, %v55
  %v5305 = vmul.f32 %v5279, %v56
  %v5306 = vmul.f32 %v5286, %v57
  %v5307 = vmul.f32 %v5293, %v58
  %v5308 = vmul.f32 %v5300, %v59
  %v5309 = vsel %vm61, %v5301, 0.0
  %v5310 = vrot.slane %v5309, 4
  %v5311 = vadd.f32 %v5309, %v5310
  %v5312 = vrot.slane %v5311, 2
  %v5313 = vadd.f32 %v5311, %v5312
  %v5314 = vrot.slane %v5313, 1
  %v5315 = vadd.f32 %v5313, %v5314
  %v5316 = vsel %vm61, %v5302, 0.0
  %v5317 = vrot.slane %v5316, 4
  %v5318 = vadd.f32 %v5316, %v5317
  %v5319 = vrot.slane %v5318, 2
  %v5320 = vadd.f32 %v5318, %v5319
  %v5321 = vrot.slane %v5320, 1
  %v5322 = vadd.f32 %v5320, %v5321
  %v5323 = vsel %vm61, %v5303, 0.0
  %v5324 = vrot.slane %v5323, 4
  %v5325 = vadd.f32 %v5323, %v5324
  %v5326 = vrot.slane %v5325, 2
  %v5327 = vadd.f32 %v5325, %v5326
  %v5328 = vrot.slane %v5327, 1
  %v5329 = vadd.f32 %v5327, %v5328
  %v5330 = vsel %vm61, %v5304, 0.0
  %v5331 = vrot.slane %v5330, 4
  %v5332 = vadd.f32 %v5330, %v5331
  %v5333 = vrot.slane %v5332, 2
  %v5334 = vadd.f32 %v5332, %v5333
  %v5335 = vrot.slane %v5334, 1
  %v5336 = vadd.f32 %v5334, %v5335
  %v5337 = vsel %vm61, %v5305, 0.0
  %v5338 = vrot.slane %v5337, 4
  %v5339 = vadd.f32 %v5337, %v5338
  %v5340 = vrot.slane %v5339, 2
  %v5341 = vadd.f32 %v5339, %v5340
  %v5342 = vrot.slane %v5341, 1
  %v5343 = vadd.f32 %v5341, %v5342
  %v5344 = vsel %vm61, %v5306, 0.0
  %v5345 = vrot.slane %v5344, 4
  %v5346 = vadd.f32 %v5344, %v5345
  %v5347 = vrot.slane %v5346, 2
  %v5348 = vadd.f32 %v5346, %v5347
  %v5349 = vrot.slane %v5348, 1
  %v5350 = vadd.f32 %v5348, %v5349
  %v5351 = vsel %vm61, %v5307, 0.0
  %v5352 = vrot.slane %v5351, 4
  %v5353 = vadd.f32 %v5351, %v5352
  %v5354 = vrot.slane %v5353, 2
  %v5355 = vadd.f32 %v5353, %v5354
  %v5356 = vrot.slane %v5355, 1
  %v5357 = vadd.f32 %v5355, %v5356
  %v5358 = vsel %vm61, %v5308, 0.0
  %v5359 = vrot.slane %v5358, 4
  %v5360 = vadd.f32 %v5358, %v5359
  %v5361 = vrot.slane %v5360, 2
  %v5362 = vadd.f32 %v5360, %v5361
  %v5363 = vrot.slane %v5362, 1
  %v5364 = vadd.f32 %v5362, %v5363
  %v5373 = vsel %vm638, %v5322, %v5315
  %v5374 = vsel %vm641, %v5329, %v5373
  %v5375 = vsel %vm644, %v5336, %v5374
  %v5376 = vsel %vm647, %v5343, %v5375
  %v5377 = vsel %vm650, %v5350, %v5376
  %v5378 = vsel %vm653, %v5357, %v5377
  %v5379 = vsel %vm656, %v5364, %v5378
  %v5380 = vsel %vm61, %v5379, 0
  %5382 = vmatprep.subr.mxu0 0.0
  %5383 = vmatpush1.msra.mxu0 0.0
  %5384 = vmatprep.subr.mxu0 0.0
  %5385 = vmatpush1.msra.mxu0 0.0
  %5386 = vmatprep.subr.mxu0 0.0
  %5387 = vmatpush1.msra.mxu0 0.0
  %5388 = vmatprep.subr.mxu0 0.0
  %5389 = vmatpush1.msra.mxu0 0.0
  %5390 = vmatprep.subr.mxu0 0.0
  %5391 = vmatpush1.msra.mxu0 0.0
  %5392 = vmatprep.subr.mxu0 0.0
  %5393 = vmatpush1.msra.mxu0 0.0
  %5394 = vmatprep.subr.mxu0 0.0
  %5395 = vmatpush1.msra.mxu0 0.0
  %5396 = vmatprep.subr.mxu0 0.0
  %5397 = vmatpush1.msra.mxu0 0.0
  %5398 = vmatprep.subr.mxu0 0.0
  %5399 = vmatpush1.msra.mxu0 0.0
  %5400 = vmatprep.subr.mxu0 0.0
  %5401 = vmatpush1.msra.mxu0 0.0
  %5402 = vmatprep.subr.mxu0 0.0
  %5403 = vmatpush1.msra.mxu0 0.0
  %5404 = vmatprep.subr.mxu0 0.0
  %5405 = vmatpush1.msra.mxu0 0.0
  %5406 = vmatprep.subr.mxu0 0.0
  %5407 = vmatpush1.msra.mxu0 0.0
  %5408 = vmatprep.subr.mxu0 0.0
  %5409 = vmatpush1.msra.mxu0 0.0
  %5410 = vmatprep.subr.mxu0 0.0
  %5411 = vmatpush1.msra.mxu0 0.0
  %5412 = vmatprep.subr.mxu0 0.0
  %5413 = vmatpush1.msra.mxu0 %v88
  %5414 = vmatprep.subr.mxu0 0.0
  %5415 = vmatpush2.msra.mxu0 0.0
  %5416 = vmatprep.subr.mxu0 0.0
  %5417 = vmatpush2.msra.mxu0 0.0
  %5418 = vmatprep.subr.mxu0 0.0
  %5419 = vmatpush2.msra.mxu0 0.0
  %5420 = vmatprep.subr.mxu0 0.0
  %5421 = vmatpush2.msra.mxu0 0.0
  %5422 = vmatprep.subr.mxu0 0.0
  %5423 = vmatpush2.msra.mxu0 0.0
  %5424 = vmatprep.subr.mxu0 0.0
  %5425 = vmatpush2.msra.mxu0 0.0
  %5426 = vmatprep.subr.mxu0 0.0
  %5427 = vmatpush2.msra.mxu0 0.0
  %5428 = vmatprep.subr.mxu0 0.0
  %5429 = vmatpush2.msra.mxu0 0.0
  %5430 = vmatprep.subr.mxu0 0.0
  %5431 = vmatpush2.msra.mxu0 0.0
  %5432 = vmatprep.subr.mxu0 0.0
  %5433 = vmatpush2.msra.mxu0 0.0
  %5434 = vmatprep.subr.mxu0 0.0
  %5435 = vmatpush2.msra.mxu0 0.0
  %5436 = vmatprep.subr.mxu0 0.0
  %5437 = vmatpush2.msra.mxu0 0.0
  %5438 = vmatprep.subr.mxu0 0.0
  %5439 = vmatpush2.msra.mxu0 0.0
  %5440 = vmatprep.subr.mxu0 0.0
  %5441 = vmatpush2.msra.mxu0 0.0
  %5442 = vmatprep.subr.mxu0 0.0
  %5443 = vmatpush2.msra.mxu0 0.0
  %5444 = vmatprep.subr.mxu0 0.0
  %5445 = vmatpush2.msra.mxu0 0.0
  %5446 = vmatprep.mubr.f32.mxu0 0.0
  %5447 = vmatmul.mubr.f32.gmra.mxu0 %v5380
  %v5448 = vpop.f32.mrf.mxu0
  %v5449 = vadd.f32 0.0, %v5448
  %v5450 = vpop.f32.mrf.mxu0
  %5451 = vdwg.mxu0
  %v5452 = vmul.f32 %v5204, %v5243
  %v5453 = vsel %vm3761, %v5452, 0.0
  %5454 = vadd.xlane.f32.xlu0 %v5453
  %v5455 = vpop.xlane.xlu0 %5454
  %5456 = vmatprep.subr.mxu0 0.0
  %5457 = vmatpush1.msra.mxu0 0.0
  %5458 = vmatprep.subr.mxu0 0.0
  %5459 = vmatpush1.msra.mxu0 0.0
  %5460 = vmatprep.subr.mxu0 0.0
  %5461 = vmatpush1.msra.mxu0 0.0
  %5462 = vmatprep.subr.mxu0 0.0
  %5463 = vmatpush1.msra.mxu0 0.0
  %5464 = vmatprep.subr.mxu0 0.0
  %5465 = vmatpush1.msra.mxu0 0.0
  %5466 = vmatprep.subr.mxu0 0.0
  %5467 = vmatpush1.msra.mxu0 0.0
  %5468 = vmatprep.subr.mxu0 0.0
  %5469 = vmatpush1.msra.mxu0 0.0
  %5470 = vmatprep.subr.mxu0 0.0
  %5471 = vmatpush1.msra.mxu0 0.0
  %5472 = vmatprep.subr.mxu0 0.0
  %5473 = vmatpush1.msra.mxu0 0.0
  %5474 = vmatprep.subr.mxu0 0.0
  %5475 = vmatpush1.msra.mxu0 0.0
  %5476 = vmatprep.subr.mxu0 0.0
  %5477 = vmatpush1.msra.mxu0 0.0
  %5478 = vmatprep.subr.mxu0 0.0
  %5479 = vmatpush1.msra.mxu0 0.0
  %5480 = vmatprep.subr.mxu0 0.0
  %5481 = vmatpush1.msra.mxu0 %v3218
  %5482 = vmatprep.subr.mxu0 0.0
  %5483 = vmatpush1.msra.mxu0 %v3217
  %5484 = vmatprep.subr.mxu0 0.0
  %5485 = vmatpush1.msra.mxu0 %v3216
  %5486 = vmatprep.subr.mxu0 0.0
  %5487 = vmatpush1.msra.mxu0 %v3215
  %5488 = vmatprep.subr.mxu0 0.0
  %5489 = vmatpush2.msra.mxu0 0.0
  %5490 = vmatprep.subr.mxu0 0.0
  %5491 = vmatpush2.msra.mxu0 0.0
  %5492 = vmatprep.subr.mxu0 0.0
  %5493 = vmatpush2.msra.mxu0 0.0
  %5494 = vmatprep.subr.mxu0 0.0
  %5495 = vmatpush2.msra.mxu0 0.0
  %5496 = vmatprep.subr.mxu0 0.0
  %5497 = vmatpush2.msra.mxu0 0.0
  %5498 = vmatprep.subr.mxu0 0.0
  %5499 = vmatpush2.msra.mxu0 0.0
  %5500 = vmatprep.subr.mxu0 0.0
  %5501 = vmatpush2.msra.mxu0 0.0
  %5502 = vmatprep.subr.mxu0 0.0
  %5503 = vmatpush2.msra.mxu0 0.0
  %5504 = vmatprep.subr.mxu0 0.0
  %5505 = vmatpush2.msra.mxu0 0.0
  %5506 = vmatprep.subr.mxu0 0.0
  %5507 = vmatpush2.msra.mxu0 0.0
  %5508 = vmatprep.subr.mxu0 0.0
  %5509 = vmatpush2.msra.mxu0 0.0
  %5510 = vmatprep.subr.mxu0 0.0
  %5511 = vmatpush2.msra.mxu0 0.0
  %5512 = vmatprep.subr.mxu0 0.0
  %5513 = vmatpush2.msra.mxu0 0.0
  %5514 = vmatprep.subr.mxu0 0.0
  %5515 = vmatpush2.msra.mxu0 0.0
  %5516 = vmatprep.subr.mxu0 0.0
  %5517 = vmatpush2.msra.mxu0 0.0
  %5518 = vmatprep.subr.mxu0 0.0
  %5519 = vmatpush2.msra.mxu0 0.0
  %5520 = vmatprep.mubr.f32.mxu0 0.0
  %5521 = vmatmul.mubr.f32.gmra.mxu0 %v4916
  %v5522 = vpop.f32.mrf.mxu0
  %v5523 = vadd.f32 0.0, %v5522
  %v5524 = vpop.f32.mrf.mxu0
  %5525 = vdwg.mxu0
  %v5527 = vsel %vm206, %v5449, 0
  %5529 = vmatprep.subr.mxu0 0.0
  %5530 = vmatpush1.msra.mxu0 0.0
  %5531 = vmatprep.subr.mxu0 0.0
  %5532 = vmatpush1.msra.mxu0 0.0
  %5533 = vmatprep.subr.mxu0 0.0
  %5534 = vmatpush1.msra.mxu0 0.0
  %5535 = vmatprep.subr.mxu0 0.0
  %5536 = vmatpush1.msra.mxu0 0.0
  %5537 = vmatprep.subr.mxu0 0.0
  %5538 = vmatpush1.msra.mxu0 0.0
  %5539 = vmatprep.subr.mxu0 0.0
  %5540 = vmatpush1.msra.mxu0 0.0
  %5541 = vmatprep.subr.mxu0 0.0
  %5542 = vmatpush1.msra.mxu0 0.0
  %5543 = vmatprep.subr.mxu0 0.0
  %5544 = vmatpush1.msra.mxu0 0.0
  %5545 = vmatprep.subr.mxu0 0.0
  %5546 = vmatpush1.msra.mxu0 0.0
  %5547 = vmatprep.subr.mxu0 0.0
  %5548 = vmatpush1.msra.mxu0 0.0
  %5549 = vmatprep.subr.mxu0 0.0
  %5550 = vmatpush1.msra.mxu0 0.0
  %5551 = vmatprep.subr.mxu0 0.0
  %5552 = vmatpush1.msra.mxu0 0.0
  %5553 = vmatprep.subr.mxu0 0.0
  %5554 = vmatpush1.msra.mxu0 %v3214
  %5555 = vmatprep.subr.mxu0 0.0
  %5556 = vmatpush1.msra.mxu0 %v3213
  %5557 = vmatprep.subr.mxu0 0.0
  %5558 = vmatpush1.msra.mxu0 %v3212
  %5559 = vmatprep.subr.mxu0 0.0
  %5560 = vmatpush1.msra.mxu0 %v3211
  %5561 = vmatprep.subr.mxu0 0.0
  %5562 = vmatpush2.msra.mxu0 0.0
  %5563 = vmatprep.subr.mxu0 0.0
  %5564 = vmatpush2.msra.mxu0 0.0
  %5565 = vmatprep.subr.mxu0 0.0
  %5566 = vmatpush2.msra.mxu0 0.0
  %5567 = vmatprep.subr.mxu0 0.0
  %5568 = vmatpush2.msra.mxu0 0.0
  %5569 = vmatprep.subr.mxu0 0.0
  %5570 = vmatpush2.msra.mxu0 0.0
  %5571 = vmatprep.subr.mxu0 0.0
  %5572 = vmatpush2.msra.mxu0 0.0
  %5573 = vmatprep.subr.mxu0 0.0
  %5574 = vmatpush2.msra.mxu0 0.0
  %5575 = vmatprep.subr.mxu0 0.0
  %5576 = vmatpush2.msra.mxu0 0.0
  %5577 = vmatprep.subr.mxu0 0.0
  %5578 = vmatpush2.msra.mxu0 0.0
  %5579 = vmatprep.subr.mxu0 0.0
  %5580 = vmatpush2.msra.mxu0 0.0
  %5581 = vmatprep.subr.mxu0 0.0
  %5582 = vmatpush2.msra.mxu0 0.0
  %5583 = vmatprep.subr.mxu0 0.0
  %5584 = vmatpush2.msra.mxu0 0.0
  %5585 = vmatprep.subr.mxu0 0.0
  %5586 = vmatpush2.msra.mxu0 0.0
  %5587 = vmatprep.subr.mxu0 0.0
  %5588 = vmatpush2.msra.mxu0 0.0
  %5589 = vmatprep.subr.mxu0 0.0
  %5590 = vmatpush2.msra.mxu0 0.0
  %5591 = vmatprep.subr.mxu0 0.0
  %5592 = vmatpush2.msra.mxu0 0.0
  %5593 = vmatprep.mubr.f32.mxu0 0.0
  %5594 = vmatmul.mubr.f32.gmra.mxu0 %v5527
  %v5595 = vpop.f32.mrf.mxu0
  %v5596 = vadd.f32 %v5523, %v5595
  %v5597 = vpop.f32.mrf.mxu0
  %5598 = vdwg.mxu0
  %v5599 = vadd.f32 %v5596, %v3420
  %v5600 = vxor.u32 %v5599, 2147483648
  %v5601 = vmul.f32 %v5600, 1.442695
  %v5602 = vpow.pop %v5601
  %v5603 = vadd.f32 %v5602, 1.0
  %v5604 = vrcp.pop %v5603
  %v5605 = vmul.f32 1.0, %v5604
  %v5606 = vtanh.pop %v5599
  %v5607 = vmul.f32 %v5605, %v4906
  %5609 = vrot.lane.b32.xlu0 %v5606, 64
  %v5610 = vpop.permute.xlu0 %5609
  %v5612 = vmul.f32 %v5605, %v5610
  %5614 = vrot.lane.b32.xlu0 %v5612, 32
  %v5615 = vpop.permute.xlu0 %5614
  %v5617 = vadd.f32 %v5607, %v5615
  %v5618 = vtanh.pop %v5617
  %5620 = vrot.lane.b32.xlu0 %v5618, 64
  %v5621 = vpop.permute.xlu0 %5620
  %v5623 = vmul.f32 %v5605, %v5621
  %5625 = vrot.lane.b32.xlu0 %v5623, 32
  %v5626 = vpop.permute.xlu0 %5625
  %v5627 = vsel %vm206, %v5626, 0
  %5629 = vmatprep.subr.mxu0 0.0
  %5630 = vmatpush1.msra.mxu0 0.0
  %5631 = vmatprep.subr.mxu0 0.0
  %5632 = vmatpush1.msra.mxu0 0.0
  %5633 = vmatprep.subr.mxu0 0.0
  %5634 = vmatpush1.msra.mxu0 0.0
  %5635 = vmatprep.subr.mxu0 0.0
  %5636 = vmatpush1.msra.mxu0 0.0
  %5637 = vmatprep.subr.mxu0 0.0
  %5638 = vmatpush1.msra.mxu0 0.0
  %5639 = vmatprep.subr.mxu0 0.0
  %5640 = vmatpush1.msra.mxu0 0.0
  %5641 = vmatprep.subr.mxu0 0.0
  %5642 = vmatpush1.msra.mxu0 0.0
  %5643 = vmatprep.subr.mxu0 0.0
  %5644 = vmatpush1.msra.mxu0 0.0
  %5645 = vmatprep.subr.mxu0 0.0
  %5646 = vmatpush1.msra.mxu0 0.0
  %5647 = vmatprep.subr.mxu0 0.0
  %5648 = vmatpush1.msra.mxu0 0.0
  %5649 = vmatprep.subr.mxu0 0.0
  %5650 = vmatpush1.msra.mxu0 0.0
  %5651 = vmatprep.subr.mxu0 0.0
  %5652 = vmatpush1.msra.mxu0 0.0
  %5653 = vmatprep.subr.mxu0 0.0
  %5654 = vmatpush1.msra.mxu0 %v3223
  %5655 = vmatprep.subr.mxu0 0.0
  %5656 = vmatpush1.msra.mxu0 %v3222
  %5657 = vmatprep.subr.mxu0 0.0
  %5658 = vmatpush1.msra.mxu0 %v3221
  %5659 = vmatprep.subr.mxu0 0.0
  %5660 = vmatpush1.msra.mxu0 %v3220
  %5661 = vmatprep.subr.mxu0 0.0
  %5662 = vmatpush2.msra.mxu0 0.0
  %5663 = vmatprep.subr.mxu0 0.0
  %5664 = vmatpush2.msra.mxu0 0.0
  %5665 = vmatprep.subr.mxu0 0.0
  %5666 = vmatpush2.msra.mxu0 0.0
  %5667 = vmatprep.subr.mxu0 0.0
  %5668 = vmatpush2.msra.mxu0 0.0
  %5669 = vmatprep.subr.mxu0 0.0
  %5670 = vmatpush2.msra.mxu0 0.0
  %5671 = vmatprep.subr.mxu0 0.0
  %5672 = vmatpush2.msra.mxu0 0.0
  %5673 = vmatprep.subr.mxu0 0.0
  %5674 = vmatpush2.msra.mxu0 0.0
  %5675 = vmatprep.subr.mxu0 0.0
  %5676 = vmatpush2.msra.mxu0 0.0
  %5677 = vmatprep.subr.mxu0 0.0
  %5678 = vmatpush2.msra.mxu0 0.0
  %5679 = vmatprep.subr.mxu0 0.0
  %5680 = vmatpush2.msra.mxu0 0.0
  %5681 = vmatprep.subr.mxu0 0.0
  %5682 = vmatpush2.msra.mxu0 0.0
  %5683 = vmatprep.subr.mxu0 0.0
  %5684 = vmatpush2.msra.mxu0 0.0
  %5685 = vmatprep.subr.mxu0 0.0
  %5686 = vmatpush2.msra.mxu0 0.0
  %5687 = vmatprep.subr.mxu0 0.0
  %5688 = vmatpush2.msra.mxu0 0.0
  %5689 = vmatprep.subr.mxu0 0.0
  %5690 = vmatpush2.msra.mxu0 0.0
  %5691 = vmatprep.subr.mxu0 0.0
  %5692 = vmatpush2.msra.mxu0 0.0
  %5693 = vmatprep.mubr.f32.mxu0 0.0
  %5694 = vmatmul.mubr.f32.gmra.mxu0 %v5627
  %v5695 = vpop.f32.mrf.mxu0
  %v5696 = vadd.f32 %v3474, %v5695
  %v5697 = vpop.f32.mrf.mxu0
  %5698 = vdwg.mxu0
  %v5700 = vcombine.high %v5696, %v5696
  %v5702 = vunpack.c.l.s4 1966171168
  %v5703 = vunpack.c.0.s8 %v5702
  %v5704 = vlaneseq
  %v5705 = vshrl.u32 %v5704, 7
  %v5706 = vsub.s32 %v5703, %v5705
  %v5707 = vrot.slane %v5696, %v5706
  %v5709 = vunpack.c.l.s4 1966171168
  %v5710 = vunpack.c.0.s8 %v5709
  %v5711 = vlaneseq
  %v5712 = vshrl.u32 %v5711, 7
  %v5713 = vsub.s32 %v5710, %v5712
  %v5714 = vrot.slane %v5700, %v5713
  %v5715 = vcombine.high %v5707, %v5707
  %v5716 = vcombine.high %v5714, %v5714
  %v5718 = vunpack.c.l.s4 1966171168
  %v5719 = vunpack.c.0.s8 %v5718
  %v5720 = vlaneseq
  %v5721 = vshrl.u32 %v5720, 7
  %v5722 = vsub.s32 %v5719, %v5721
  %v5723 = vrot.slane %v5707, %v5722
  %v5725 = vunpack.c.l.s4 1966171168
  %v5726 = vunpack.c.0.s8 %v5725
  %v5727 = vlaneseq
  %v5728 = vshrl.u32 %v5727, 7
  %v5729 = vsub.s32 %v5726, %v5728
  %v5730 = vrot.slane %v5714, %v5729
  %v5732 = vunpack.c.l.s4 1966171168
  %v5733 = vunpack.c.0.s8 %v5732
  %v5734 = vlaneseq
  %v5735 = vshrl.u32 %v5734, 7
  %v5736 = vsub.s32 %v5733, %v5735
  %v5737 = vrot.slane %v5715, %v5736
  %v5739 = vunpack.c.l.s4 1966171168
  %v5740 = vunpack.c.0.s8 %v5739
  %v5741 = vlaneseq
  %v5742 = vshrl.u32 %v5741, 7
  %v5743 = vsub.s32 %v5740, %v5742
  %v5744 = vrot.slane %v5716, %v5743
  %v5745 = vcombine.high %v5723, %v5723
  %v5746 = vcombine.high %v5730, %v5730
  %v5747 = vcombine.high %v5737, %v5737
  %v5748 = vcombine.high %v5744, %v5744
  %v5749 = vlaneseq
  %v5750 = vshrl.u32 %v5749, 7
  %v5751 = vsub.s32 0, %v5750
  %v5752 = vrot.slane %v5723, %v5751
  %v5753 = vlaneseq
  %v5754 = vshrl.u32 %v5753, 7
  %v5755 = vsub.s32 0, %v5754
  %v5756 = vrot.slane %v5737, %v5755
  %v5757 = vlaneseq
  %v5758 = vshrl.u32 %v5757, 7
  %v5759 = vsub.s32 0, %v5758
  %v5760 = vrot.slane %v5745, %v5759
  %v5761 = vlaneseq
  %v5762 = vshrl.u32 %v5761, 7
  %v5763 = vsub.s32 0, %v5762
  %v5764 = vrot.slane %v5747, %v5763
  %v5765 = vlaneseq
  %v5766 = vshrl.u32 %v5765, 7
  %v5767 = vsub.s32 0, %v5766
  %v5768 = vrot.slane %v5730, %v5767
  %v5769 = vlaneseq
  %v5770 = vshrl.u32 %v5769, 7
  %v5771 = vsub.s32 0, %v5770
  %v5772 = vrot.slane %v5744, %v5771
  %v5773 = vlaneseq
  %v5774 = vshrl.u32 %v5773, 7
  %v5775 = vsub.s32 0, %v5774
  %v5776 = vrot.slane %v5746, %v5775
  %v5777 = vlaneseq
  %v5778 = vshrl.u32 %v5777, 7
  %v5779 = vsub.s32 0, %v5778
  %v5780 = vrot.slane %v5748, %v5779
  %v5789 = vadd.f32 %v5752, %v3168
  %v5790 = vadd.f32 %v5756, %v3173
  %v5791 = vadd.f32 %v5760, %v3178
  %v5792 = vadd.f32 %v5764, %v3183
  %v5793 = vadd.f32 %v5768, %v3188
  %v5794 = vadd.f32 %v5772, %v3193
  %v5795 = vadd.f32 %v5776, %v3198
  %v5796 = vadd.f32 %v5780, %v3203
  %v5797 = vtanh.pop %v5789
  %v5798 = vtanh.pop %v5790
  %v5799 = vtanh.pop %v5791
  %v5800 = vtanh.pop %v5792
  %v5801 = vtanh.pop %v5793
  %v5802 = vtanh.pop %v5794
  %v5803 = vtanh.pop %v5795
  %v5804 = vtanh.pop %v5796
  %v5805 = vmul.f32 %v5797, %v3661
  %v5806 = vmul.f32 %v5798, %v3661
  %v5807 = vmul.f32 %v5799, %v3661
  %v5808 = vmul.f32 %v5800, %v3661
  %v5809 = vmul.f32 %v5801, %v3661
  %v5810 = vmul.f32 %v5802, %v3661
  %v5811 = vmul.f32 %v5803, %v3661
  %v5812 = vmul.f32 %v5804, %v3661
  %v5813 = vsel %vm206, %v5805, 0.0
  %5814 = vadd.xlane.f32.xlu0 %v5813
  %v5815 = vpop.xlane.xlu0 %5814
  %v5816 = vsel %vm206, %v5806, 0.0
  %5817 = vadd.xlane.f32.xlu0 %v5816
  %v5818 = vpop.xlane.xlu0 %5817
  %v5819 = vsel %vm206, %v5807, 0.0
  %5820 = vadd.xlane.f32.xlu0 %v5819
  %v5821 = vpop.xlane.xlu0 %5820
  %v5822 = vsel %vm206, %v5808, 0.0
  %5823 = vadd.xlane.f32.xlu0 %v5822
  %v5824 = vpop.xlane.xlu0 %5823
  %v5825 = vsel %vm206, %v5809, 0.0
  %5826 = vadd.xlane.f32.xlu0 %v5825
  %v5827 = vpop.xlane.xlu0 %5826
  %v5828 = vsel %vm206, %v5810, 0.0
  %5829 = vadd.xlane.f32.xlu0 %v5828
  %v5830 = vpop.xlane.xlu0 %5829
  %v5831 = vsel %vm206, %v5811, 0.0
  %5832 = vadd.xlane.f32.xlu0 %v5831
  %v5833 = vpop.xlane.xlu0 %5832
  %v5834 = vsel %vm206, %v5812, 0.0
  %5835 = vadd.xlane.f32.xlu0 %v5834
  %v5836 = vpop.xlane.xlu0 %5835
  %v5837 = vtanh.pop %v5815
  %v5838 = vtanh.pop %v5818
  %v5839 = vtanh.pop %v5821
  %v5840 = vtanh.pop %v5824
  %v5841 = vtanh.pop %v5827
  %v5842 = vtanh.pop %v5830
  %v5843 = vtanh.pop %v5833
  %v5844 = vtanh.pop %v5836
  %v5845 = vmul.f32 %v5837, 10.0
  %v5846 = vmul.f32 %v5838, 10.0
  %v5847 = vmul.f32 %v5839, 10.0
  %v5848 = vmul.f32 %v5840, 10.0
  %v5849 = vmul.f32 %v5841, 10.0
  %v5850 = vmul.f32 %v5842, 10.0
  %v5851 = vmul.f32 %v5843, 10.0
  %v5852 = vmul.f32 %v5844, 10.0
  %vm5853 = vcmp.gt.f32.partialorder %v5244, 0.5
  %v5862 = vlaneseq
  %v5863 = vshrl.u32 %v5862, 7
  %v5864 = vsub.s32 %v3207, %v5863
  %v5865 = vrot.slane %v5845, %v5864
  %v5866 = vlaneseq
  %v5867 = vshrl.u32 %v5866, 7
  %v5868 = vsub.s32 %v3207, %v5867
  %v5869 = vrot.slane %v5846, %v5868
  %v5870 = vlaneseq
  %v5871 = vshrl.u32 %v5870, 7
  %v5872 = vsub.s32 %v3207, %v5871
  %v5873 = vrot.slane %v5847, %v5872
  %v5874 = vlaneseq
  %v5875 = vshrl.u32 %v5874, 7
  %v5876 = vsub.s32 %v3207, %v5875
  %v5877 = vrot.slane %v5848, %v5876
  %v5878 = vlaneseq
  %v5879 = vshrl.u32 %v5878, 7
  %v5880 = vsub.s32 %v3207, %v5879
  %v5881 = vrot.slane %v5849, %v5880
  %v5882 = vlaneseq
  %v5883 = vshrl.u32 %v5882, 7
  %v5884 = vsub.s32 %v3207, %v5883
  %v5885 = vrot.slane %v5850, %v5884
  %v5886 = vlaneseq
  %v5887 = vshrl.u32 %v5886, 7
  %v5888 = vsub.s32 %v3207, %v5887
  %v5889 = vrot.slane %v5851, %v5888
  %v5890 = vlaneseq
  %v5891 = vshrl.u32 %v5890, 7
  %v5892 = vsub.s32 %v3207, %v5891
  %v5893 = vrot.slane %v5852, %v5892
  %v5894 = vsel %vm638, %v5869, %v5865
  %v5895 = vsel %vm641, %v5873, %v5894
  %v5896 = vsel %vm644, %v5877, %v5895
  %v5897 = vsel %vm647, %v5881, %v5896
  %v5898 = vsel %vm650, %v5885, %v5897
  %v5899 = vsel %vm653, %v5889, %v5898
  %v5900 = vsel %vm656, %v5893, %v5899
  %v5902 = vsel %vm5853, -100000.0, %v5900
  %v5903 = vsel %vm3761, %v5902, -inf
  %5904 = vmax.xlane.f32.xlu0 %v5903
  %v5905 = vpop.xlane.xlu0 %5904
  %v5906 = vsub.f32 %v5902, %v5905
  %v5907 = vmul.f32 %v5906, 1.442695
  %v5908 = vpow.pop %v5907
  %v5909 = vsel %vm3761, %v5908, 0.0
  %5910 = vadd.xlane.f32.xlu0 %v5909
  %v5911 = vpop.xlane.xlu0 %5910
  %v5912 = vlog2.pop %v5911
  %v5913 = vmul.f32 %v5912, 0.6931472
  %v5914 = vadd.f32 %v5905, %v5913
  %v5915 = vsub.f32 %v5902, %v5914
  %v5916 = vrot.slane %v3226, 3
  %v5917 = vrot.slane %v3227, 2
  %v5918 = vsel %vm638, %v5917, %v5916
  %v5919 = vrot.slane %v3228, 1
  %v5920 = vsel %vm641, %v5919, %v5918
  %v5921 = vsel %vm644, %v3229, %v5920
  %v5922 = vrot.slane %v3230, 7
  %v5923 = vsel %vm647, %v5922, %v5921
  %v5924 = vrot.slane %v3231, 6
  %v5925 = vsel %vm650, %v5924, %v5923
  %v5926 = vrot.slane %v3232, 5
  %v5927 = vsel %vm653, %v5926, %v5925
  %v5928 = vrot.slane %v3233, 4
  %v5929 = vsel %vm656, %v5928, %v5927
  %v5931 = vadd.f32 %v5902, %v5929
  %v5932 = vsel %vm3761, %v5931, -inf
  %5933 = vmax.xlane.f32.xlu0 %v5932
  %v5934 = vpop.xlane.xlu0 %5933
  %vm5935 = vcmp.ge.f32.partialorder %v5931, %v5934
  %v5936 = vsel %vm5935, %v3207, 8
  %v5937 = vsel %vm3761, %v5936, 2147483647
  %v5938 = vand.u32 %v5937, 65535
  %v5939 = vshra.s32 %v5937, 16
  %v5940 = vcvt.s32.f32 %v5938
  %v5941 = vcvt.s32.f32 %v5939
  %5942 = vmin.xlane.f32.xlu0 %v5941
  %v5943 = vpop.xlane.xlu0 %5942
  %vm5944 = vcmp.eq.f32.partialorder %v5941, %v5943
  %v5945 = vsel %vm5944, %v5940, inf
  %5946 = vmin.xlane.f32.xlu0 %v5945
  %v5947 = vpop.xlane.xlu0 %5946
  %v5948 = vcvt.f32.s32 %v5947
  %v5949 = vcvt.f32.s32 %v5943
  %v5950 = vshll.u32 %v5949, 16
  %v5951 = vadd.s32 %v5950, %v5948
  %vm5952 = vcmp.eq.s32.totalorder %v3207, %v5951
  %v5953 = vsel %vm5952, 1, 0
  %v5954 = vcvt.s32.f32 %v5953
  %v5955 = vmax.f32 %v5244, %v5954
  %v5956 = vlaneseq
  %v5957 = vshrl.u32 %v5956, 7
  %v5958 = vsub.s32 0, %v5957
  %v5959 = vrot.slane %v5954, %v5958
  %5961 = vbcast.lane.b32.xlu0 %v5959, 256
  %v5962 = vpop.permute.xlu0 %5961
  %v5963 = vlaneseq
  %v5964 = vshrl.u32 %v5963, 7
  %v5965 = vsub.s32 1, %v5964
  %v5966 = vrot.slane %v5954, %v5965
  %5968 = vbcast.lane.b32.xlu0 %v5966, 256
  %v5969 = vpop.permute.xlu0 %5968
  %v5970 = vlaneseq
  %v5971 = vshrl.u32 %v5970, 7
  %v5972 = vsub.s32 2, %v5971
  %v5973 = vrot.slane %v5954, %v5972
  %5975 = vbcast.lane.b32.xlu0 %v5973, 256
  %v5976 = vpop.permute.xlu0 %5975
  %v5977 = vlaneseq
  %v5978 = vshrl.u32 %v5977, 7
  %v5979 = vsub.s32 3, %v5978
  %v5980 = vrot.slane %v5954, %v5979
  %5982 = vbcast.lane.b32.xlu0 %v5980, 256
  %v5983 = vpop.permute.xlu0 %5982
  %v5984 = vlaneseq
  %v5985 = vshrl.u32 %v5984, 7
  %v5986 = vsub.s32 4, %v5985
  %v5987 = vrot.slane %v5954, %v5986
  %5989 = vbcast.lane.b32.xlu0 %v5987, 256
  %v5990 = vpop.permute.xlu0 %5989
  %v5991 = vlaneseq
  %v5992 = vshrl.u32 %v5991, 7
  %v5993 = vsub.s32 5, %v5992
  %v5994 = vrot.slane %v5954, %v5993
  %5996 = vbcast.lane.b32.xlu0 %v5994, 256
  %v5997 = vpop.permute.xlu0 %5996
  %v5998 = vlaneseq
  %v5999 = vshrl.u32 %v5998, 7
  %v6000 = vsub.s32 6, %v5999
  %v6001 = vrot.slane %v5954, %v6000
  %6003 = vbcast.lane.b32.xlu0 %v6001, 256
  %v6004 = vpop.permute.xlu0 %6003
  %v6005 = vlaneseq
  %v6006 = vshrl.u32 %v6005, 7
  %v6007 = vsub.s32 7, %v6006
  %v6008 = vrot.slane %v5954, %v6007
  %6010 = vbcast.lane.b32.xlu0 %v6008, 256
  %v6011 = vpop.permute.xlu0 %6010
  %v6012 = vmul.f32 %v5962, %v52
  %v6013 = vmul.f32 %v5969, %v53
  %v6014 = vmul.f32 %v5976, %v54
  %v6015 = vmul.f32 %v5983, %v55
  %v6016 = vmul.f32 %v5990, %v56
  %v6017 = vmul.f32 %v5997, %v57
  %v6018 = vmul.f32 %v6004, %v58
  %v6019 = vmul.f32 %v6011, %v59
  %v6020 = vsel %vm61, %v6012, 0.0
  %v6021 = vrot.slane %v6020, 4
  %v6022 = vadd.f32 %v6020, %v6021
  %v6023 = vrot.slane %v6022, 2
  %v6024 = vadd.f32 %v6022, %v6023
  %v6025 = vrot.slane %v6024, 1
  %v6026 = vadd.f32 %v6024, %v6025
  %v6027 = vsel %vm61, %v6013, 0.0
  %v6028 = vrot.slane %v6027, 4
  %v6029 = vadd.f32 %v6027, %v6028
  %v6030 = vrot.slane %v6029, 2
  %v6031 = vadd.f32 %v6029, %v6030
  %v6032 = vrot.slane %v6031, 1
  %v6033 = vadd.f32 %v6031, %v6032
  %v6034 = vsel %vm61, %v6014, 0.0
  %v6035 = vrot.slane %v6034, 4
  %v6036 = vadd.f32 %v6034, %v6035
  %v6037 = vrot.slane %v6036, 2
  %v6038 = vadd.f32 %v6036, %v6037
  %v6039 = vrot.slane %v6038, 1
  %v6040 = vadd.f32 %v6038, %v6039
  %v6041 = vsel %vm61, %v6015, 0.0
  %v6042 = vrot.slane %v6041, 4
  %v6043 = vadd.f32 %v6041, %v6042
  %v6044 = vrot.slane %v6043, 2
  %v6045 = vadd.f32 %v6043, %v6044
  %v6046 = vrot.slane %v6045, 1
  %v6047 = vadd.f32 %v6045, %v6046
  %v6048 = vsel %vm61, %v6016, 0.0
  %v6049 = vrot.slane %v6048, 4
  %v6050 = vadd.f32 %v6048, %v6049
  %v6051 = vrot.slane %v6050, 2
  %v6052 = vadd.f32 %v6050, %v6051
  %v6053 = vrot.slane %v6052, 1
  %v6054 = vadd.f32 %v6052, %v6053
  %v6055 = vsel %vm61, %v6017, 0.0
  %v6056 = vrot.slane %v6055, 4
  %v6057 = vadd.f32 %v6055, %v6056
  %v6058 = vrot.slane %v6057, 2
  %v6059 = vadd.f32 %v6057, %v6058
  %v6060 = vrot.slane %v6059, 1
  %v6061 = vadd.f32 %v6059, %v6060
  %v6062 = vsel %vm61, %v6018, 0.0
  %v6063 = vrot.slane %v6062, 4
  %v6064 = vadd.f32 %v6062, %v6063
  %v6065 = vrot.slane %v6064, 2
  %v6066 = vadd.f32 %v6064, %v6065
  %v6067 = vrot.slane %v6066, 1
  %v6068 = vadd.f32 %v6066, %v6067
  %v6069 = vsel %vm61, %v6019, 0.0
  %v6070 = vrot.slane %v6069, 4
  %v6071 = vadd.f32 %v6069, %v6070
  %v6072 = vrot.slane %v6071, 2
  %v6073 = vadd.f32 %v6071, %v6072
  %v6074 = vrot.slane %v6073, 1
  %v6075 = vadd.f32 %v6073, %v6074
  %v6084 = vsel %vm638, %v6033, %v6026
  %v6085 = vsel %vm641, %v6040, %v6084
  %v6086 = vsel %vm644, %v6047, %v6085
  %v6087 = vsel %vm647, %v6054, %v6086
  %v6088 = vsel %vm650, %v6061, %v6087
  %v6089 = vsel %vm653, %v6068, %v6088
  %v6090 = vsel %vm656, %v6075, %v6089
  %v6091 = vsel %vm61, %v6090, 0
  %6093 = vmatprep.subr.mxu0 0.0
  %6094 = vmatpush1.msra.mxu0 0.0
  %6095 = vmatprep.subr.mxu0 0.0
  %6096 = vmatpush1.msra.mxu0 0.0
  %6097 = vmatprep.subr.mxu0 0.0
  %6098 = vmatpush1.msra.mxu0 0.0
  %6099 = vmatprep.subr.mxu0 0.0
  %6100 = vmatpush1.msra.mxu0 0.0
  %6101 = vmatprep.subr.mxu0 0.0
  %6102 = vmatpush1.msra.mxu0 0.0
  %6103 = vmatprep.subr.mxu0 0.0
  %6104 = vmatpush1.msra.mxu0 0.0
  %6105 = vmatprep.subr.mxu0 0.0
  %6106 = vmatpush1.msra.mxu0 0.0
  %6107 = vmatprep.subr.mxu0 0.0
  %6108 = vmatpush1.msra.mxu0 0.0
  %6109 = vmatprep.subr.mxu0 0.0
  %6110 = vmatpush1.msra.mxu0 0.0
  %6111 = vmatprep.subr.mxu0 0.0
  %6112 = vmatpush1.msra.mxu0 0.0
  %6113 = vmatprep.subr.mxu0 0.0
  %6114 = vmatpush1.msra.mxu0 0.0
  %6115 = vmatprep.subr.mxu0 0.0
  %6116 = vmatpush1.msra.mxu0 0.0
  %6117 = vmatprep.subr.mxu0 0.0
  %6118 = vmatpush1.msra.mxu0 0.0
  %6119 = vmatprep.subr.mxu0 0.0
  %6120 = vmatpush1.msra.mxu0 0.0
  %6121 = vmatprep.subr.mxu0 0.0
  %6122 = vmatpush1.msra.mxu0 0.0
  %6123 = vmatprep.subr.mxu0 0.0
  %6124 = vmatpush1.msra.mxu0 %v88
  %6125 = vmatprep.subr.mxu0 0.0
  %6126 = vmatpush2.msra.mxu0 0.0
  %6127 = vmatprep.subr.mxu0 0.0
  %6128 = vmatpush2.msra.mxu0 0.0
  %6129 = vmatprep.subr.mxu0 0.0
  %6130 = vmatpush2.msra.mxu0 0.0
  %6131 = vmatprep.subr.mxu0 0.0
  %6132 = vmatpush2.msra.mxu0 0.0
  %6133 = vmatprep.subr.mxu0 0.0
  %6134 = vmatpush2.msra.mxu0 0.0
  %6135 = vmatprep.subr.mxu0 0.0
  %6136 = vmatpush2.msra.mxu0 0.0
  %6137 = vmatprep.subr.mxu0 0.0
  %6138 = vmatpush2.msra.mxu0 0.0
  %6139 = vmatprep.subr.mxu0 0.0
  %6140 = vmatpush2.msra.mxu0 0.0
  %6141 = vmatprep.subr.mxu0 0.0
  %6142 = vmatpush2.msra.mxu0 0.0
  %6143 = vmatprep.subr.mxu0 0.0
  %6144 = vmatpush2.msra.mxu0 0.0
  %6145 = vmatprep.subr.mxu0 0.0
  %6146 = vmatpush2.msra.mxu0 0.0
  %6147 = vmatprep.subr.mxu0 0.0
  %6148 = vmatpush2.msra.mxu0 0.0
  %6149 = vmatprep.subr.mxu0 0.0
  %6150 = vmatpush2.msra.mxu0 0.0
  %6151 = vmatprep.subr.mxu0 0.0
  %6152 = vmatpush2.msra.mxu0 0.0
  %6153 = vmatprep.subr.mxu0 0.0
  %6154 = vmatpush2.msra.mxu0 0.0
  %6155 = vmatprep.subr.mxu0 0.0
  %6156 = vmatpush2.msra.mxu0 0.0
  %6157 = vmatprep.mubr.f32.mxu0 0.0
  %6158 = vmatmul.mubr.f32.gmra.mxu0 %v6091
  %v6159 = vpop.f32.mrf.mxu0
  %v6160 = vadd.f32 0.0, %v6159
  %v6161 = vpop.f32.mrf.mxu0
  %6162 = vdwg.mxu0
  %v6163 = vmul.f32 %v5915, %v5954
  %v6164 = vsel %vm3761, %v6163, 0.0
  %6165 = vadd.xlane.f32.xlu0 %v6164
  %v6166 = vpop.xlane.xlu0 %6165
  %6167 = vmatprep.subr.mxu0 0.0
  %6168 = vmatpush1.msra.mxu0 0.0
  %6169 = vmatprep.subr.mxu0 0.0
  %6170 = vmatpush1.msra.mxu0 0.0
  %6171 = vmatprep.subr.mxu0 0.0
  %6172 = vmatpush1.msra.mxu0 0.0
  %6173 = vmatprep.subr.mxu0 0.0
  %6174 = vmatpush1.msra.mxu0 0.0
  %6175 = vmatprep.subr.mxu0 0.0
  %6176 = vmatpush1.msra.mxu0 0.0
  %6177 = vmatprep.subr.mxu0 0.0
  %6178 = vmatpush1.msra.mxu0 0.0
  %6179 = vmatprep.subr.mxu0 0.0
  %6180 = vmatpush1.msra.mxu0 0.0
  %6181 = vmatprep.subr.mxu0 0.0
  %6182 = vmatpush1.msra.mxu0 0.0
  %6183 = vmatprep.subr.mxu0 0.0
  %6184 = vmatpush1.msra.mxu0 0.0
  %6185 = vmatprep.subr.mxu0 0.0
  %6186 = vmatpush1.msra.mxu0 0.0
  %6187 = vmatprep.subr.mxu0 0.0
  %6188 = vmatpush1.msra.mxu0 0.0
  %6189 = vmatprep.subr.mxu0 0.0
  %6190 = vmatpush1.msra.mxu0 0.0
  %6191 = vmatprep.subr.mxu0 0.0
  %6192 = vmatpush1.msra.mxu0 %v3218
  %6193 = vmatprep.subr.mxu0 0.0
  %6194 = vmatpush1.msra.mxu0 %v3217
  %6195 = vmatprep.subr.mxu0 0.0
  %6196 = vmatpush1.msra.mxu0 %v3216
  %6197 = vmatprep.subr.mxu0 0.0
  %6198 = vmatpush1.msra.mxu0 %v3215
  %6199 = vmatprep.subr.mxu0 0.0
  %6200 = vmatpush2.msra.mxu0 0.0
  %6201 = vmatprep.subr.mxu0 0.0
  %6202 = vmatpush2.msra.mxu0 0.0
  %6203 = vmatprep.subr.mxu0 0.0
  %6204 = vmatpush2.msra.mxu0 0.0
  %6205 = vmatprep.subr.mxu0 0.0
  %6206 = vmatpush2.msra.mxu0 0.0
  %6207 = vmatprep.subr.mxu0 0.0
  %6208 = vmatpush2.msra.mxu0 0.0
  %6209 = vmatprep.subr.mxu0 0.0
  %6210 = vmatpush2.msra.mxu0 0.0
  %6211 = vmatprep.subr.mxu0 0.0
  %6212 = vmatpush2.msra.mxu0 0.0
  %6213 = vmatprep.subr.mxu0 0.0
  %6214 = vmatpush2.msra.mxu0 0.0
  %6215 = vmatprep.subr.mxu0 0.0
  %6216 = vmatpush2.msra.mxu0 0.0
  %6217 = vmatprep.subr.mxu0 0.0
  %6218 = vmatpush2.msra.mxu0 0.0
  %6219 = vmatprep.subr.mxu0 0.0
  %6220 = vmatpush2.msra.mxu0 0.0
  %6221 = vmatprep.subr.mxu0 0.0
  %6222 = vmatpush2.msra.mxu0 0.0
  %6223 = vmatprep.subr.mxu0 0.0
  %6224 = vmatpush2.msra.mxu0 0.0
  %6225 = vmatprep.subr.mxu0 0.0
  %6226 = vmatpush2.msra.mxu0 0.0
  %6227 = vmatprep.subr.mxu0 0.0
  %6228 = vmatpush2.msra.mxu0 0.0
  %6229 = vmatprep.subr.mxu0 0.0
  %6230 = vmatpush2.msra.mxu0 0.0
  %6231 = vmatprep.mubr.f32.mxu0 0.0
  %6232 = vmatmul.mubr.f32.gmra.mxu0 %v5627
  %v6233 = vpop.f32.mrf.mxu0
  %v6234 = vadd.f32 0.0, %v6233
  %v6235 = vpop.f32.mrf.mxu0
  %6236 = vdwg.mxu0
  %v6238 = vsel %vm206, %v6160, 0
  %6240 = vmatprep.subr.mxu0 0.0
  %6241 = vmatpush1.msra.mxu0 0.0
  %6242 = vmatprep.subr.mxu0 0.0
  %6243 = vmatpush1.msra.mxu0 0.0
  %6244 = vmatprep.subr.mxu0 0.0
  %6245 = vmatpush1.msra.mxu0 0.0
  %6246 = vmatprep.subr.mxu0 0.0
  %6247 = vmatpush1.msra.mxu0 0.0
  %6248 = vmatprep.subr.mxu0 0.0
  %6249 = vmatpush1.msra.mxu0 0.0
  %6250 = vmatprep.subr.mxu0 0.0
  %6251 = vmatpush1.msra.mxu0 0.0
  %6252 = vmatprep.subr.mxu0 0.0
  %6253 = vmatpush1.msra.mxu0 0.0
  %6254 = vmatprep.subr.mxu0 0.0
  %6255 = vmatpush1.msra.mxu0 0.0
  %6256 = vmatprep.subr.mxu0 0.0
  %6257 = vmatpush1.msra.mxu0 0.0
  %6258 = vmatprep.subr.mxu0 0.0
  %6259 = vmatpush1.msra.mxu0 0.0
  %6260 = vmatprep.subr.mxu0 0.0
  %6261 = vmatpush1.msra.mxu0 0.0
  %6262 = vmatprep.subr.mxu0 0.0
  %6263 = vmatpush1.msra.mxu0 0.0
  %6264 = vmatprep.subr.mxu0 0.0
  %6265 = vmatpush1.msra.mxu0 %v3214
  %6266 = vmatprep.subr.mxu0 0.0
  %6267 = vmatpush1.msra.mxu0 %v3213
  %6268 = vmatprep.subr.mxu0 0.0
  %6269 = vmatpush1.msra.mxu0 %v3212
  %6270 = vmatprep.subr.mxu0 0.0
  %6271 = vmatpush1.msra.mxu0 %v3211
  %6272 = vmatprep.subr.mxu0 0.0
  %6273 = vmatpush2.msra.mxu0 0.0
  %6274 = vmatprep.subr.mxu0 0.0
  %6275 = vmatpush2.msra.mxu0 0.0
  %6276 = vmatprep.subr.mxu0 0.0
  %6277 = vmatpush2.msra.mxu0 0.0
  %6278 = vmatprep.subr.mxu0 0.0
  %6279 = vmatpush2.msra.mxu0 0.0
  %6280 = vmatprep.subr.mxu0 0.0
  %6281 = vmatpush2.msra.mxu0 0.0
  %6282 = vmatprep.subr.mxu0 0.0
  %6283 = vmatpush2.msra.mxu0 0.0
  %6284 = vmatprep.subr.mxu0 0.0
  %6285 = vmatpush2.msra.mxu0 0.0
  %6286 = vmatprep.subr.mxu0 0.0
  %6287 = vmatpush2.msra.mxu0 0.0
  %6288 = vmatprep.subr.mxu0 0.0
  %6289 = vmatpush2.msra.mxu0 0.0
  %6290 = vmatprep.subr.mxu0 0.0
  %6291 = vmatpush2.msra.mxu0 0.0
  %6292 = vmatprep.subr.mxu0 0.0
  %6293 = vmatpush2.msra.mxu0 0.0
  %6294 = vmatprep.subr.mxu0 0.0
  %6295 = vmatpush2.msra.mxu0 0.0
  %6296 = vmatprep.subr.mxu0 0.0
  %6297 = vmatpush2.msra.mxu0 0.0
  %6298 = vmatprep.subr.mxu0 0.0
  %6299 = vmatpush2.msra.mxu0 0.0
  %6300 = vmatprep.subr.mxu0 0.0
  %6301 = vmatpush2.msra.mxu0 0.0
  %6302 = vmatprep.subr.mxu0 0.0
  %6303 = vmatpush2.msra.mxu0 0.0
  %6304 = vmatprep.mubr.f32.mxu0 0.0
  %6305 = vmatmul.mubr.f32.gmra.mxu0 %v6238
  %v6306 = vpop.f32.mrf.mxu0
  %v6307 = vadd.f32 %v6234, %v6306
  %v6308 = vpop.f32.mrf.mxu0
  %6309 = vdwg.mxu0
  %v6310 = vadd.f32 %v6307, %v3420
  %v6311 = vxor.u32 %v6310, 2147483648
  %v6312 = vmul.f32 %v6311, 1.442695
  %v6313 = vpow.pop %v6312
  %v6314 = vadd.f32 %v6313, 1.0
  %v6315 = vrcp.pop %v6314
  %v6316 = vmul.f32 1.0, %v6315
  %v6317 = vtanh.pop %v6310
  %v6318 = vmul.f32 %v6316, %v5617
  %6320 = vrot.lane.b32.xlu0 %v6317, 64
  %v6321 = vpop.permute.xlu0 %6320
  %v6323 = vmul.f32 %v6316, %v6321
  %6325 = vrot.lane.b32.xlu0 %v6323, 32
  %v6326 = vpop.permute.xlu0 %6325
  %v6328 = vadd.f32 %v6318, %v6326
  %v6329 = vtanh.pop %v6328
  %6331 = vrot.lane.b32.xlu0 %v6329, 64
  %v6332 = vpop.permute.xlu0 %6331
  %v6334 = vmul.f32 %v6316, %v6332
  %6336 = vrot.lane.b32.xlu0 %v6334, 32
  %v6337 = vpop.permute.xlu0 %6336
  %v6338 = vsel %vm206, %v6337, 0
  %6340 = vmatprep.subr.mxu0 0.0
  %6341 = vmatpush1.msra.mxu0 0.0
  %6342 = vmatprep.subr.mxu0 0.0
  %6343 = vmatpush1.msra.mxu0 0.0
  %6344 = vmatprep.subr.mxu0 0.0
  %6345 = vmatpush1.msra.mxu0 0.0
  %6346 = vmatprep.subr.mxu0 0.0
  %6347 = vmatpush1.msra.mxu0 0.0
  %6348 = vmatprep.subr.mxu0 0.0
  %6349 = vmatpush1.msra.mxu0 0.0
  %6350 = vmatprep.subr.mxu0 0.0
  %6351 = vmatpush1.msra.mxu0 0.0
  %6352 = vmatprep.subr.mxu0 0.0
  %6353 = vmatpush1.msra.mxu0 0.0
  %6354 = vmatprep.subr.mxu0 0.0
  %6355 = vmatpush1.msra.mxu0 0.0
  %6356 = vmatprep.subr.mxu0 0.0
  %6357 = vmatpush1.msra.mxu0 0.0
  %6358 = vmatprep.subr.mxu0 0.0
  %6359 = vmatpush1.msra.mxu0 0.0
  %6360 = vmatprep.subr.mxu0 0.0
  %6361 = vmatpush1.msra.mxu0 0.0
  %6362 = vmatprep.subr.mxu0 0.0
  %6363 = vmatpush1.msra.mxu0 0.0
  %6364 = vmatprep.subr.mxu0 0.0
  %6365 = vmatpush1.msra.mxu0 %v3223
  %6366 = vmatprep.subr.mxu0 0.0
  %6367 = vmatpush1.msra.mxu0 %v3222
  %6368 = vmatprep.subr.mxu0 0.0
  %6369 = vmatpush1.msra.mxu0 %v3221
  %6370 = vmatprep.subr.mxu0 0.0
  %6371 = vmatpush1.msra.mxu0 %v3220
  %6372 = vmatprep.subr.mxu0 0.0
  %6373 = vmatpush2.msra.mxu0 0.0
  %6374 = vmatprep.subr.mxu0 0.0
  %6375 = vmatpush2.msra.mxu0 0.0
  %6376 = vmatprep.subr.mxu0 0.0
  %6377 = vmatpush2.msra.mxu0 0.0
  %6378 = vmatprep.subr.mxu0 0.0
  %6379 = vmatpush2.msra.mxu0 0.0
  %6380 = vmatprep.subr.mxu0 0.0
  %6381 = vmatpush2.msra.mxu0 0.0
  %6382 = vmatprep.subr.mxu0 0.0
  %6383 = vmatpush2.msra.mxu0 0.0
  %6384 = vmatprep.subr.mxu0 0.0
  %6385 = vmatpush2.msra.mxu0 0.0
  %6386 = vmatprep.subr.mxu0 0.0
  %6387 = vmatpush2.msra.mxu0 0.0
  %6388 = vmatprep.subr.mxu0 0.0
  %6389 = vmatpush2.msra.mxu0 0.0
  %6390 = vmatprep.subr.mxu0 0.0
  %6391 = vmatpush2.msra.mxu0 0.0
  %6392 = vmatprep.subr.mxu0 0.0
  %6393 = vmatpush2.msra.mxu0 0.0
  %6394 = vmatprep.subr.mxu0 0.0
  %6395 = vmatpush2.msra.mxu0 0.0
  %6396 = vmatprep.subr.mxu0 0.0
  %6397 = vmatpush2.msra.mxu0 0.0
  %6398 = vmatprep.subr.mxu0 0.0
  %6399 = vmatpush2.msra.mxu0 0.0
  %6400 = vmatprep.subr.mxu0 0.0
  %6401 = vmatpush2.msra.mxu0 0.0
  %6402 = vmatprep.subr.mxu0 0.0
  %6403 = vmatpush2.msra.mxu0 0.0
  %6404 = vmatprep.mubr.f32.mxu0 0.0
  %6405 = vmatmul.mubr.f32.gmra.mxu0 %v6338
  %v6406 = vpop.f32.mrf.mxu0
  %v6407 = vadd.f32 %v3474, %v6406
  %v6408 = vpop.f32.mrf.mxu0
  %6409 = vdwg.mxu0
  %v6411 = vcombine.high %v6407, %v6407
  %v6413 = vunpack.c.l.s4 1966171168
  %v6414 = vunpack.c.0.s8 %v6413
  %v6415 = vlaneseq
  %v6416 = vshrl.u32 %v6415, 7
  %v6417 = vsub.s32 %v6414, %v6416
  %v6418 = vrot.slane %v6407, %v6417
  %v6420 = vunpack.c.l.s4 1966171168
  %v6421 = vunpack.c.0.s8 %v6420
  %v6422 = vlaneseq
  %v6423 = vshrl.u32 %v6422, 7
  %v6424 = vsub.s32 %v6421, %v6423
  %v6425 = vrot.slane %v6411, %v6424
  %v6426 = vcombine.high %v6418, %v6418
  %v6427 = vcombine.high %v6425, %v6425
  %v6429 = vunpack.c.l.s4 1966171168
  %v6430 = vunpack.c.0.s8 %v6429
  %v6431 = vlaneseq
  %v6432 = vshrl.u32 %v6431, 7
  %v6433 = vsub.s32 %v6430, %v6432
  %v6434 = vrot.slane %v6418, %v6433
  %v6436 = vunpack.c.l.s4 1966171168
  %v6437 = vunpack.c.0.s8 %v6436
  %v6438 = vlaneseq
  %v6439 = vshrl.u32 %v6438, 7
  %v6440 = vsub.s32 %v6437, %v6439
  %v6441 = vrot.slane %v6425, %v6440
  %v6443 = vunpack.c.l.s4 1966171168
  %v6444 = vunpack.c.0.s8 %v6443
  %v6445 = vlaneseq
  %v6446 = vshrl.u32 %v6445, 7
  %v6447 = vsub.s32 %v6444, %v6446
  %v6448 = vrot.slane %v6426, %v6447
  %v6450 = vunpack.c.l.s4 1966171168
  %v6451 = vunpack.c.0.s8 %v6450
  %v6452 = vlaneseq
  %v6453 = vshrl.u32 %v6452, 7
  %v6454 = vsub.s32 %v6451, %v6453
  %v6455 = vrot.slane %v6427, %v6454
  %v6456 = vcombine.high %v6434, %v6434
  %v6457 = vcombine.high %v6441, %v6441
  %v6458 = vcombine.high %v6448, %v6448
  %v6459 = vcombine.high %v6455, %v6455
  %v6460 = vlaneseq
  %v6461 = vshrl.u32 %v6460, 7
  %v6462 = vsub.s32 0, %v6461
  %v6463 = vrot.slane %v6434, %v6462
  %v6464 = vlaneseq
  %v6465 = vshrl.u32 %v6464, 7
  %v6466 = vsub.s32 0, %v6465
  %v6467 = vrot.slane %v6448, %v6466
  %v6468 = vlaneseq
  %v6469 = vshrl.u32 %v6468, 7
  %v6470 = vsub.s32 0, %v6469
  %v6471 = vrot.slane %v6456, %v6470
  %v6472 = vlaneseq
  %v6473 = vshrl.u32 %v6472, 7
  %v6474 = vsub.s32 0, %v6473
  %v6475 = vrot.slane %v6458, %v6474
  %v6476 = vlaneseq
  %v6477 = vshrl.u32 %v6476, 7
  %v6478 = vsub.s32 0, %v6477
  %v6479 = vrot.slane %v6441, %v6478
  %v6480 = vlaneseq
  %v6481 = vshrl.u32 %v6480, 7
  %v6482 = vsub.s32 0, %v6481
  %v6483 = vrot.slane %v6455, %v6482
  %v6484 = vlaneseq
  %v6485 = vshrl.u32 %v6484, 7
  %v6486 = vsub.s32 0, %v6485
  %v6487 = vrot.slane %v6457, %v6486
  %v6488 = vlaneseq
  %v6489 = vshrl.u32 %v6488, 7
  %v6490 = vsub.s32 0, %v6489
  %v6491 = vrot.slane %v6459, %v6490
  %v6500 = vadd.f32 %v6463, %v3168
  %v6501 = vadd.f32 %v6467, %v3173
  %v6502 = vadd.f32 %v6471, %v3178
  %v6503 = vadd.f32 %v6475, %v3183
  %v6504 = vadd.f32 %v6479, %v3188
  %v6505 = vadd.f32 %v6483, %v3193
  %v6506 = vadd.f32 %v6487, %v3198
  %v6507 = vadd.f32 %v6491, %v3203
  %v6508 = vtanh.pop %v6500
  %v6509 = vtanh.pop %v6501
  %v6510 = vtanh.pop %v6502
  %v6511 = vtanh.pop %v6503
  %v6512 = vtanh.pop %v6504
  %v6513 = vtanh.pop %v6505
  %v6514 = vtanh.pop %v6506
  %v6515 = vtanh.pop %v6507
  %v6516 = vmul.f32 %v6508, %v3661
  %v6517 = vmul.f32 %v6509, %v3661
  %v6518 = vmul.f32 %v6510, %v3661
  %v6519 = vmul.f32 %v6511, %v3661
  %v6520 = vmul.f32 %v6512, %v3661
  %v6521 = vmul.f32 %v6513, %v3661
  %v6522 = vmul.f32 %v6514, %v3661
  %v6523 = vmul.f32 %v6515, %v3661
  %v6524 = vsel %vm206, %v6516, 0.0
  %6525 = vadd.xlane.f32.xlu0 %v6524
  %v6526 = vpop.xlane.xlu0 %6525
  %v6527 = vsel %vm206, %v6517, 0.0
  %6528 = vadd.xlane.f32.xlu0 %v6527
  %v6529 = vpop.xlane.xlu0 %6528
  %v6530 = vsel %vm206, %v6518, 0.0
  %6531 = vadd.xlane.f32.xlu0 %v6530
  %v6532 = vpop.xlane.xlu0 %6531
  %v6533 = vsel %vm206, %v6519, 0.0
  %6534 = vadd.xlane.f32.xlu0 %v6533
  %v6535 = vpop.xlane.xlu0 %6534
  %v6536 = vsel %vm206, %v6520, 0.0
  %6537 = vadd.xlane.f32.xlu0 %v6536
  %v6538 = vpop.xlane.xlu0 %6537
  %v6539 = vsel %vm206, %v6521, 0.0
  %6540 = vadd.xlane.f32.xlu0 %v6539
  %v6541 = vpop.xlane.xlu0 %6540
  %v6542 = vsel %vm206, %v6522, 0.0
  %6543 = vadd.xlane.f32.xlu0 %v6542
  %v6544 = vpop.xlane.xlu0 %6543
  %v6545 = vsel %vm206, %v6523, 0.0
  %6546 = vadd.xlane.f32.xlu0 %v6545
  %v6547 = vpop.xlane.xlu0 %6546
  %v6548 = vtanh.pop %v6526
  %v6549 = vtanh.pop %v6529
  %v6550 = vtanh.pop %v6532
  %v6551 = vtanh.pop %v6535
  %v6552 = vtanh.pop %v6538
  %v6553 = vtanh.pop %v6541
  %v6554 = vtanh.pop %v6544
  %v6555 = vtanh.pop %v6547
  %v6556 = vmul.f32 %v6548, 10.0
  %v6557 = vmul.f32 %v6549, 10.0
  %v6558 = vmul.f32 %v6550, 10.0
  %v6559 = vmul.f32 %v6551, 10.0
  %v6560 = vmul.f32 %v6552, 10.0
  %v6561 = vmul.f32 %v6553, 10.0
  %v6562 = vmul.f32 %v6554, 10.0
  %v6563 = vmul.f32 %v6555, 10.0
  %vm6564 = vcmp.gt.f32.partialorder %v5955, 0.5
  %v6573 = vlaneseq
  %v6574 = vshrl.u32 %v6573, 7
  %v6575 = vsub.s32 %v3207, %v6574
  %v6576 = vrot.slane %v6556, %v6575
  %v6577 = vlaneseq
  %v6578 = vshrl.u32 %v6577, 7
  %v6579 = vsub.s32 %v3207, %v6578
  %v6580 = vrot.slane %v6557, %v6579
  %v6581 = vlaneseq
  %v6582 = vshrl.u32 %v6581, 7
  %v6583 = vsub.s32 %v3207, %v6582
  %v6584 = vrot.slane %v6558, %v6583
  %v6585 = vlaneseq
  %v6586 = vshrl.u32 %v6585, 7
  %v6587 = vsub.s32 %v3207, %v6586
  %v6588 = vrot.slane %v6559, %v6587
  %v6589 = vlaneseq
  %v6590 = vshrl.u32 %v6589, 7
  %v6591 = vsub.s32 %v3207, %v6590
  %v6592 = vrot.slane %v6560, %v6591
  %v6593 = vlaneseq
  %v6594 = vshrl.u32 %v6593, 7
  %v6595 = vsub.s32 %v3207, %v6594
  %v6596 = vrot.slane %v6561, %v6595
  %v6597 = vlaneseq
  %v6598 = vshrl.u32 %v6597, 7
  %v6599 = vsub.s32 %v3207, %v6598
  %v6600 = vrot.slane %v6562, %v6599
  %v6601 = vlaneseq
  %v6602 = vshrl.u32 %v6601, 7
  %v6603 = vsub.s32 %v3207, %v6602
  %v6604 = vrot.slane %v6563, %v6603
  %v6605 = vsel %vm638, %v6580, %v6576
  %v6606 = vsel %vm641, %v6584, %v6605
  %v6607 = vsel %vm644, %v6588, %v6606
  %v6608 = vsel %vm647, %v6592, %v6607
  %v6609 = vsel %vm650, %v6596, %v6608
  %v6610 = vsel %vm653, %v6600, %v6609
  %v6611 = vsel %vm656, %v6604, %v6610
  %v6613 = vsel %vm6564, -100000.0, %v6611
  %v6614 = vsel %vm3761, %v6613, -inf
  %6615 = vmax.xlane.f32.xlu0 %v6614
  %v6616 = vpop.xlane.xlu0 %6615
  %v6617 = vsub.f32 %v6613, %v6616
  %v6618 = vmul.f32 %v6617, 1.442695
  %v6619 = vpow.pop %v6618
  %v6620 = vsel %vm3761, %v6619, 0.0
  %6621 = vadd.xlane.f32.xlu0 %v6620
  %v6622 = vpop.xlane.xlu0 %6621
  %v6623 = vlog2.pop %v6622
  %v6624 = vmul.f32 %v6623, 0.6931472
  %v6625 = vadd.f32 %v6616, %v6624
  %v6626 = vsub.f32 %v6613, %v6625
  %v6627 = vrot.slane %v3226, 4
  %v6628 = vrot.slane %v3227, 3
  %v6629 = vsel %vm638, %v6628, %v6627
  %v6630 = vrot.slane %v3228, 2
  %v6631 = vsel %vm641, %v6630, %v6629
  %v6632 = vrot.slane %v3229, 1
  %v6633 = vsel %vm644, %v6632, %v6631
  %v6634 = vsel %vm647, %v3230, %v6633
  %v6635 = vrot.slane %v3231, 7
  %v6636 = vsel %vm650, %v6635, %v6634
  %v6637 = vrot.slane %v3232, 6
  %v6638 = vsel %vm653, %v6637, %v6636
  %v6639 = vrot.slane %v3233, 5
  %v6640 = vsel %vm656, %v6639, %v6638
  %v6642 = vadd.f32 %v6613, %v6640
  %v6643 = vsel %vm3761, %v6642, -inf
  %6644 = vmax.xlane.f32.xlu0 %v6643
  %v6645 = vpop.xlane.xlu0 %6644
  %vm6646 = vcmp.ge.f32.partialorder %v6642, %v6645
  %v6647 = vsel %vm6646, %v3207, 8
  %v6648 = vsel %vm3761, %v6647, 2147483647
  %v6649 = vand.u32 %v6648, 65535
  %v6650 = vshra.s32 %v6648, 16
  %v6651 = vcvt.s32.f32 %v6649
  %v6652 = vcvt.s32.f32 %v6650
  %6653 = vmin.xlane.f32.xlu0 %v6652
  %v6654 = vpop.xlane.xlu0 %6653
  %vm6655 = vcmp.eq.f32.partialorder %v6652, %v6654
  %v6656 = vsel %vm6655, %v6651, inf
  %6657 = vmin.xlane.f32.xlu0 %v6656
  %v6658 = vpop.xlane.xlu0 %6657
  %v6659 = vcvt.f32.s32 %v6658
  %v6660 = vcvt.f32.s32 %v6654
  %v6661 = vshll.u32 %v6660, 16
  %v6662 = vadd.s32 %v6661, %v6659
  %vm6663 = vcmp.eq.s32.totalorder %v3207, %v6662
  %v6664 = vsel %vm6663, 1, 0
  %v6665 = vcvt.s32.f32 %v6664
  %v6666 = vmax.f32 %v5955, %v6665
  %v6667 = vlaneseq
  %v6668 = vshrl.u32 %v6667, 7
  %v6669 = vsub.s32 0, %v6668
  %v6670 = vrot.slane %v6665, %v6669
  %6672 = vbcast.lane.b32.xlu0 %v6670, 256
  %v6673 = vpop.permute.xlu0 %6672
  %v6674 = vlaneseq
  %v6675 = vshrl.u32 %v6674, 7
  %v6676 = vsub.s32 1, %v6675
  %v6677 = vrot.slane %v6665, %v6676
  %6679 = vbcast.lane.b32.xlu0 %v6677, 256
  %v6680 = vpop.permute.xlu0 %6679
  %v6681 = vlaneseq
  %v6682 = vshrl.u32 %v6681, 7
  %v6683 = vsub.s32 2, %v6682
  %v6684 = vrot.slane %v6665, %v6683
  %6686 = vbcast.lane.b32.xlu0 %v6684, 256
  %v6687 = vpop.permute.xlu0 %6686
  %v6688 = vlaneseq
  %v6689 = vshrl.u32 %v6688, 7
  %v6690 = vsub.s32 3, %v6689
  %v6691 = vrot.slane %v6665, %v6690
  %6693 = vbcast.lane.b32.xlu0 %v6691, 256
  %v6694 = vpop.permute.xlu0 %6693
  %v6695 = vlaneseq
  %v6696 = vshrl.u32 %v6695, 7
  %v6697 = vsub.s32 4, %v6696
  %v6698 = vrot.slane %v6665, %v6697
  %6700 = vbcast.lane.b32.xlu0 %v6698, 256
  %v6701 = vpop.permute.xlu0 %6700
  %v6702 = vlaneseq
  %v6703 = vshrl.u32 %v6702, 7
  %v6704 = vsub.s32 5, %v6703
  %v6705 = vrot.slane %v6665, %v6704
  %6707 = vbcast.lane.b32.xlu0 %v6705, 256
  %v6708 = vpop.permute.xlu0 %6707
  %v6709 = vlaneseq
  %v6710 = vshrl.u32 %v6709, 7
  %v6711 = vsub.s32 6, %v6710
  %v6712 = vrot.slane %v6665, %v6711
  %6714 = vbcast.lane.b32.xlu0 %v6712, 256
  %v6715 = vpop.permute.xlu0 %6714
  %v6716 = vlaneseq
  %v6717 = vshrl.u32 %v6716, 7
  %v6718 = vsub.s32 7, %v6717
  %v6719 = vrot.slane %v6665, %v6718
  %6721 = vbcast.lane.b32.xlu0 %v6719, 256
  %v6722 = vpop.permute.xlu0 %6721
  %v6723 = vmul.f32 %v6673, %v52
  %v6724 = vmul.f32 %v6680, %v53
  %v6725 = vmul.f32 %v6687, %v54
  %v6726 = vmul.f32 %v6694, %v55
  %v6727 = vmul.f32 %v6701, %v56
  %v6728 = vmul.f32 %v6708, %v57
  %v6729 = vmul.f32 %v6715, %v58
  %v6730 = vmul.f32 %v6722, %v59
  %v6731 = vsel %vm61, %v6723, 0.0
  %v6732 = vrot.slane %v6731, 4
  %v6733 = vadd.f32 %v6731, %v6732
  %v6734 = vrot.slane %v6733, 2
  %v6735 = vadd.f32 %v6733, %v6734
  %v6736 = vrot.slane %v6735, 1
  %v6737 = vadd.f32 %v6735, %v6736
  %v6738 = vsel %vm61, %v6724, 0.0
  %v6739 = vrot.slane %v6738, 4
  %v6740 = vadd.f32 %v6738, %v6739
  %v6741 = vrot.slane %v6740, 2
  %v6742 = vadd.f32 %v6740, %v6741
  %v6743 = vrot.slane %v6742, 1
  %v6744 = vadd.f32 %v6742, %v6743
  %v6745 = vsel %vm61, %v6725, 0.0
  %v6746 = vrot.slane %v6745, 4
  %v6747 = vadd.f32 %v6745, %v6746
  %v6748 = vrot.slane %v6747, 2
  %v6749 = vadd.f32 %v6747, %v6748
  %v6750 = vrot.slane %v6749, 1
  %v6751 = vadd.f32 %v6749, %v6750
  %v6752 = vsel %vm61, %v6726, 0.0
  %v6753 = vrot.slane %v6752, 4
  %v6754 = vadd.f32 %v6752, %v6753
  %v6755 = vrot.slane %v6754, 2
  %v6756 = vadd.f32 %v6754, %v6755
  %v6757 = vrot.slane %v6756, 1
  %v6758 = vadd.f32 %v6756, %v6757
  %v6759 = vsel %vm61, %v6727, 0.0
  %v6760 = vrot.slane %v6759, 4
  %v6761 = vadd.f32 %v6759, %v6760
  %v6762 = vrot.slane %v6761, 2
  %v6763 = vadd.f32 %v6761, %v6762
  %v6764 = vrot.slane %v6763, 1
  %v6765 = vadd.f32 %v6763, %v6764
  %v6766 = vsel %vm61, %v6728, 0.0
  %v6767 = vrot.slane %v6766, 4
  %v6768 = vadd.f32 %v6766, %v6767
  %v6769 = vrot.slane %v6768, 2
  %v6770 = vadd.f32 %v6768, %v6769
  %v6771 = vrot.slane %v6770, 1
  %v6772 = vadd.f32 %v6770, %v6771
  %v6773 = vsel %vm61, %v6729, 0.0
  %v6774 = vrot.slane %v6773, 4
  %v6775 = vadd.f32 %v6773, %v6774
  %v6776 = vrot.slane %v6775, 2
  %v6777 = vadd.f32 %v6775, %v6776
  %v6778 = vrot.slane %v6777, 1
  %v6779 = vadd.f32 %v6777, %v6778
  %v6780 = vsel %vm61, %v6730, 0.0
  %v6781 = vrot.slane %v6780, 4
  %v6782 = vadd.f32 %v6780, %v6781
  %v6783 = vrot.slane %v6782, 2
  %v6784 = vadd.f32 %v6782, %v6783
  %v6785 = vrot.slane %v6784, 1
  %v6786 = vadd.f32 %v6784, %v6785
  %v6795 = vsel %vm638, %v6744, %v6737
  %v6796 = vsel %vm641, %v6751, %v6795
  %v6797 = vsel %vm644, %v6758, %v6796
  %v6798 = vsel %vm647, %v6765, %v6797
  %v6799 = vsel %vm650, %v6772, %v6798
  %v6800 = vsel %vm653, %v6779, %v6799
  %v6801 = vsel %vm656, %v6786, %v6800
  %v6802 = vsel %vm61, %v6801, 0
  %6804 = vmatprep.subr.mxu0 0.0
  %6805 = vmatpush1.msra.mxu0 0.0
  %6806 = vmatprep.subr.mxu0 0.0
  %6807 = vmatpush1.msra.mxu0 0.0
  %6808 = vmatprep.subr.mxu0 0.0
  %6809 = vmatpush1.msra.mxu0 0.0
  %6810 = vmatprep.subr.mxu0 0.0
  %6811 = vmatpush1.msra.mxu0 0.0
  %6812 = vmatprep.subr.mxu0 0.0
  %6813 = vmatpush1.msra.mxu0 0.0
  %6814 = vmatprep.subr.mxu0 0.0
  %6815 = vmatpush1.msra.mxu0 0.0
  %6816 = vmatprep.subr.mxu0 0.0
  %6817 = vmatpush1.msra.mxu0 0.0
  %6818 = vmatprep.subr.mxu0 0.0
  %6819 = vmatpush1.msra.mxu0 0.0
  %6820 = vmatprep.subr.mxu0 0.0
  %6821 = vmatpush1.msra.mxu0 0.0
  %6822 = vmatprep.subr.mxu0 0.0
  %6823 = vmatpush1.msra.mxu0 0.0
  %6824 = vmatprep.subr.mxu0 0.0
  %6825 = vmatpush1.msra.mxu0 0.0
  %6826 = vmatprep.subr.mxu0 0.0
  %6827 = vmatpush1.msra.mxu0 0.0
  %6828 = vmatprep.subr.mxu0 0.0
  %6829 = vmatpush1.msra.mxu0 0.0
  %6830 = vmatprep.subr.mxu0 0.0
  %6831 = vmatpush1.msra.mxu0 0.0
  %6832 = vmatprep.subr.mxu0 0.0
  %6833 = vmatpush1.msra.mxu0 0.0
  %6834 = vmatprep.subr.mxu0 0.0
  %6835 = vmatpush1.msra.mxu0 %v88
  %6836 = vmatprep.subr.mxu0 0.0
  %6837 = vmatpush2.msra.mxu0 0.0
  %6838 = vmatprep.subr.mxu0 0.0
  %6839 = vmatpush2.msra.mxu0 0.0
  %6840 = vmatprep.subr.mxu0 0.0
  %6841 = vmatpush2.msra.mxu0 0.0
  %6842 = vmatprep.subr.mxu0 0.0
  %6843 = vmatpush2.msra.mxu0 0.0
  %6844 = vmatprep.subr.mxu0 0.0
  %6845 = vmatpush2.msra.mxu0 0.0
  %6846 = vmatprep.subr.mxu0 0.0
  %6847 = vmatpush2.msra.mxu0 0.0
  %6848 = vmatprep.subr.mxu0 0.0
  %6849 = vmatpush2.msra.mxu0 0.0
  %6850 = vmatprep.subr.mxu0 0.0
  %6851 = vmatpush2.msra.mxu0 0.0
  %6852 = vmatprep.subr.mxu0 0.0
  %6853 = vmatpush2.msra.mxu0 0.0
  %6854 = vmatprep.subr.mxu0 0.0
  %6855 = vmatpush2.msra.mxu0 0.0
  %6856 = vmatprep.subr.mxu0 0.0
  %6857 = vmatpush2.msra.mxu0 0.0
  %6858 = vmatprep.subr.mxu0 0.0
  %6859 = vmatpush2.msra.mxu0 0.0
  %6860 = vmatprep.subr.mxu0 0.0
  %6861 = vmatpush2.msra.mxu0 0.0
  %6862 = vmatprep.subr.mxu0 0.0
  %6863 = vmatpush2.msra.mxu0 0.0
  %6864 = vmatprep.subr.mxu0 0.0
  %6865 = vmatpush2.msra.mxu0 0.0
  %6866 = vmatprep.subr.mxu0 0.0
  %6867 = vmatpush2.msra.mxu0 0.0
  %6868 = vmatprep.mubr.f32.mxu0 0.0
  %6869 = vmatmul.mubr.f32.gmra.mxu0 %v6802
  %v6870 = vpop.f32.mrf.mxu0
  %v6871 = vadd.f32 0.0, %v6870
  %v6872 = vpop.f32.mrf.mxu0
  %6873 = vdwg.mxu0
  %v6874 = vmul.f32 %v6626, %v6665
  %v6875 = vsel %vm3761, %v6874, 0.0
  %6876 = vadd.xlane.f32.xlu0 %v6875
  %v6877 = vpop.xlane.xlu0 %6876
  %6878 = vmatprep.subr.mxu0 0.0
  %6879 = vmatpush1.msra.mxu0 0.0
  %6880 = vmatprep.subr.mxu0 0.0
  %6881 = vmatpush1.msra.mxu0 0.0
  %6882 = vmatprep.subr.mxu0 0.0
  %6883 = vmatpush1.msra.mxu0 0.0
  %6884 = vmatprep.subr.mxu0 0.0
  %6885 = vmatpush1.msra.mxu0 0.0
  %6886 = vmatprep.subr.mxu0 0.0
  %6887 = vmatpush1.msra.mxu0 0.0
  %6888 = vmatprep.subr.mxu0 0.0
  %6889 = vmatpush1.msra.mxu0 0.0
  %6890 = vmatprep.subr.mxu0 0.0
  %6891 = vmatpush1.msra.mxu0 0.0
  %6892 = vmatprep.subr.mxu0 0.0
  %6893 = vmatpush1.msra.mxu0 0.0
  %6894 = vmatprep.subr.mxu0 0.0
  %6895 = vmatpush1.msra.mxu0 0.0
  %6896 = vmatprep.subr.mxu0 0.0
  %6897 = vmatpush1.msra.mxu0 0.0
  %6898 = vmatprep.subr.mxu0 0.0
  %6899 = vmatpush1.msra.mxu0 0.0
  %6900 = vmatprep.subr.mxu0 0.0
  %6901 = vmatpush1.msra.mxu0 0.0
  %6902 = vmatprep.subr.mxu0 0.0
  %6903 = vmatpush1.msra.mxu0 %v3218
  %6904 = vmatprep.subr.mxu0 0.0
  %6905 = vmatpush1.msra.mxu0 %v3217
  %6906 = vmatprep.subr.mxu0 0.0
  %6907 = vmatpush1.msra.mxu0 %v3216
  %6908 = vmatprep.subr.mxu0 0.0
  %6909 = vmatpush1.msra.mxu0 %v3215
  %6910 = vmatprep.subr.mxu0 0.0
  %6911 = vmatpush2.msra.mxu0 0.0
  %6912 = vmatprep.subr.mxu0 0.0
  %6913 = vmatpush2.msra.mxu0 0.0
  %6914 = vmatprep.subr.mxu0 0.0
  %6915 = vmatpush2.msra.mxu0 0.0
  %6916 = vmatprep.subr.mxu0 0.0
  %6917 = vmatpush2.msra.mxu0 0.0
  %6918 = vmatprep.subr.mxu0 0.0
  %6919 = vmatpush2.msra.mxu0 0.0
  %6920 = vmatprep.subr.mxu0 0.0
  %6921 = vmatpush2.msra.mxu0 0.0
  %6922 = vmatprep.subr.mxu0 0.0
  %6923 = vmatpush2.msra.mxu0 0.0
  %6924 = vmatprep.subr.mxu0 0.0
  %6925 = vmatpush2.msra.mxu0 0.0
  %6926 = vmatprep.subr.mxu0 0.0
  %6927 = vmatpush2.msra.mxu0 0.0
  %6928 = vmatprep.subr.mxu0 0.0
  %6929 = vmatpush2.msra.mxu0 0.0
  %6930 = vmatprep.subr.mxu0 0.0
  %6931 = vmatpush2.msra.mxu0 0.0
  %6932 = vmatprep.subr.mxu0 0.0
  %6933 = vmatpush2.msra.mxu0 0.0
  %6934 = vmatprep.subr.mxu0 0.0
  %6935 = vmatpush2.msra.mxu0 0.0
  %6936 = vmatprep.subr.mxu0 0.0
  %6937 = vmatpush2.msra.mxu0 0.0
  %6938 = vmatprep.subr.mxu0 0.0
  %6939 = vmatpush2.msra.mxu0 0.0
  %6940 = vmatprep.subr.mxu0 0.0
  %6941 = vmatpush2.msra.mxu0 0.0
  %6942 = vmatprep.mubr.f32.mxu0 0.0
  %6943 = vmatmul.mubr.f32.gmra.mxu0 %v6338
  %v6944 = vpop.f32.mrf.mxu0
  %v6945 = vadd.f32 0.0, %v6944
  %v6946 = vpop.f32.mrf.mxu0
  %6947 = vdwg.mxu0
  %v6949 = vsel %vm206, %v6871, 0
  %6951 = vmatprep.subr.mxu0 0.0
  %6952 = vmatpush1.msra.mxu0 0.0
  %6953 = vmatprep.subr.mxu0 0.0
  %6954 = vmatpush1.msra.mxu0 0.0
  %6955 = vmatprep.subr.mxu0 0.0
  %6956 = vmatpush1.msra.mxu0 0.0
  %6957 = vmatprep.subr.mxu0 0.0
  %6958 = vmatpush1.msra.mxu0 0.0
  %6959 = vmatprep.subr.mxu0 0.0
  %6960 = vmatpush1.msra.mxu0 0.0
  %6961 = vmatprep.subr.mxu0 0.0
  %6962 = vmatpush1.msra.mxu0 0.0
  %6963 = vmatprep.subr.mxu0 0.0
  %6964 = vmatpush1.msra.mxu0 0.0
  %6965 = vmatprep.subr.mxu0 0.0
  %6966 = vmatpush1.msra.mxu0 0.0
  %6967 = vmatprep.subr.mxu0 0.0
  %6968 = vmatpush1.msra.mxu0 0.0
  %6969 = vmatprep.subr.mxu0 0.0
  %6970 = vmatpush1.msra.mxu0 0.0
  %6971 = vmatprep.subr.mxu0 0.0
  %6972 = vmatpush1.msra.mxu0 0.0
  %6973 = vmatprep.subr.mxu0 0.0
  %6974 = vmatpush1.msra.mxu0 0.0
  %6975 = vmatprep.subr.mxu0 0.0
  %6976 = vmatpush1.msra.mxu0 %v3214
  %6977 = vmatprep.subr.mxu0 0.0
  %6978 = vmatpush1.msra.mxu0 %v3213
  %6979 = vmatprep.subr.mxu0 0.0
  %6980 = vmatpush1.msra.mxu0 %v3212
  %6981 = vmatprep.subr.mxu0 0.0
  %6982 = vmatpush1.msra.mxu0 %v3211
  %6983 = vmatprep.subr.mxu0 0.0
  %6984 = vmatpush2.msra.mxu0 0.0
  %6985 = vmatprep.subr.mxu0 0.0
  %6986 = vmatpush2.msra.mxu0 0.0
  %6987 = vmatprep.subr.mxu0 0.0
  %6988 = vmatpush2.msra.mxu0 0.0
  %6989 = vmatprep.subr.mxu0 0.0
  %6990 = vmatpush2.msra.mxu0 0.0
  %6991 = vmatprep.subr.mxu0 0.0
  %6992 = vmatpush2.msra.mxu0 0.0
  %6993 = vmatprep.subr.mxu0 0.0
  %6994 = vmatpush2.msra.mxu0 0.0
  %6995 = vmatprep.subr.mxu0 0.0
  %6996 = vmatpush2.msra.mxu0 0.0
  %6997 = vmatprep.subr.mxu0 0.0
  %6998 = vmatpush2.msra.mxu0 0.0
  %6999 = vmatprep.subr.mxu0 0.0
  %7000 = vmatpush2.msra.mxu0 0.0
  %7001 = vmatprep.subr.mxu0 0.0
  %7002 = vmatpush2.msra.mxu0 0.0
  %7003 = vmatprep.subr.mxu0 0.0
  %7004 = vmatpush2.msra.mxu0 0.0
  %7005 = vmatprep.subr.mxu0 0.0
  %7006 = vmatpush2.msra.mxu0 0.0
  %7007 = vmatprep.subr.mxu0 0.0
  %7008 = vmatpush2.msra.mxu0 0.0
  %7009 = vmatprep.subr.mxu0 0.0
  %7010 = vmatpush2.msra.mxu0 0.0
  %7011 = vmatprep.subr.mxu0 0.0
  %7012 = vmatpush2.msra.mxu0 0.0
  %7013 = vmatprep.subr.mxu0 0.0
  %7014 = vmatpush2.msra.mxu0 0.0
  %7015 = vmatprep.mubr.f32.mxu0 0.0
  %7016 = vmatmul.mubr.f32.gmra.mxu0 %v6949
  %v7017 = vpop.f32.mrf.mxu0
  %v7018 = vadd.f32 %v6945, %v7017
  %v7019 = vpop.f32.mrf.mxu0
  %7020 = vdwg.mxu0
  %v7021 = vadd.f32 %v7018, %v3420
  %v7022 = vxor.u32 %v7021, 2147483648
  %v7023 = vmul.f32 %v7022, 1.442695
  %v7024 = vpow.pop %v7023
  %v7025 = vadd.f32 %v7024, 1.0
  %v7026 = vrcp.pop %v7025
  %v7027 = vmul.f32 1.0, %v7026
  %v7028 = vtanh.pop %v7021
  %v7029 = vmul.f32 %v7027, %v6328
  %7031 = vrot.lane.b32.xlu0 %v7028, 64
  %v7032 = vpop.permute.xlu0 %7031
  %v7034 = vmul.f32 %v7027, %v7032
  %7036 = vrot.lane.b32.xlu0 %v7034, 32
  %v7037 = vpop.permute.xlu0 %7036
  %v7039 = vadd.f32 %v7029, %v7037
  %v7040 = vtanh.pop %v7039
  %7042 = vrot.lane.b32.xlu0 %v7040, 64
  %v7043 = vpop.permute.xlu0 %7042
  %v7045 = vmul.f32 %v7027, %v7043
  %7047 = vrot.lane.b32.xlu0 %v7045, 32
  %v7048 = vpop.permute.xlu0 %7047
  %v7049 = vsel %vm206, %v7048, 0
  %7051 = vmatprep.subr.mxu0 0.0
  %7052 = vmatpush1.msra.mxu0 0.0
  %7053 = vmatprep.subr.mxu0 0.0
  %7054 = vmatpush1.msra.mxu0 0.0
  %7055 = vmatprep.subr.mxu0 0.0
  %7056 = vmatpush1.msra.mxu0 0.0
  %7057 = vmatprep.subr.mxu0 0.0
  %7058 = vmatpush1.msra.mxu0 0.0
  %7059 = vmatprep.subr.mxu0 0.0
  %7060 = vmatpush1.msra.mxu0 0.0
  %7061 = vmatprep.subr.mxu0 0.0
  %7062 = vmatpush1.msra.mxu0 0.0
  %7063 = vmatprep.subr.mxu0 0.0
  %7064 = vmatpush1.msra.mxu0 0.0
  %7065 = vmatprep.subr.mxu0 0.0
  %7066 = vmatpush1.msra.mxu0 0.0
  %7067 = vmatprep.subr.mxu0 0.0
  %7068 = vmatpush1.msra.mxu0 0.0
  %7069 = vmatprep.subr.mxu0 0.0
  %7070 = vmatpush1.msra.mxu0 0.0
  %7071 = vmatprep.subr.mxu0 0.0
  %7072 = vmatpush1.msra.mxu0 0.0
  %7073 = vmatprep.subr.mxu0 0.0
  %7074 = vmatpush1.msra.mxu0 0.0
  %7075 = vmatprep.subr.mxu0 0.0
  %7076 = vmatpush1.msra.mxu0 %v3223
  %7077 = vmatprep.subr.mxu0 0.0
  %7078 = vmatpush1.msra.mxu0 %v3222
  %7079 = vmatprep.subr.mxu0 0.0
  %7080 = vmatpush1.msra.mxu0 %v3221
  %7081 = vmatprep.subr.mxu0 0.0
  %7082 = vmatpush1.msra.mxu0 %v3220
  %7083 = vmatprep.subr.mxu0 0.0
  %7084 = vmatpush2.msra.mxu0 0.0
  %7085 = vmatprep.subr.mxu0 0.0
  %7086 = vmatpush2.msra.mxu0 0.0
  %7087 = vmatprep.subr.mxu0 0.0
  %7088 = vmatpush2.msra.mxu0 0.0
  %7089 = vmatprep.subr.mxu0 0.0
  %7090 = vmatpush2.msra.mxu0 0.0
  %7091 = vmatprep.subr.mxu0 0.0
  %7092 = vmatpush2.msra.mxu0 0.0
  %7093 = vmatprep.subr.mxu0 0.0
  %7094 = vmatpush2.msra.mxu0 0.0
  %7095 = vmatprep.subr.mxu0 0.0
  %7096 = vmatpush2.msra.mxu0 0.0
  %7097 = vmatprep.subr.mxu0 0.0
  %7098 = vmatpush2.msra.mxu0 0.0
  %7099 = vmatprep.subr.mxu0 0.0
  %7100 = vmatpush2.msra.mxu0 0.0
  %7101 = vmatprep.subr.mxu0 0.0
  %7102 = vmatpush2.msra.mxu0 0.0
  %7103 = vmatprep.subr.mxu0 0.0
  %7104 = vmatpush2.msra.mxu0 0.0
  %7105 = vmatprep.subr.mxu0 0.0
  %7106 = vmatpush2.msra.mxu0 0.0
  %7107 = vmatprep.subr.mxu0 0.0
  %7108 = vmatpush2.msra.mxu0 0.0
  %7109 = vmatprep.subr.mxu0 0.0
  %7110 = vmatpush2.msra.mxu0 0.0
  %7111 = vmatprep.subr.mxu0 0.0
  %7112 = vmatpush2.msra.mxu0 0.0
  %7113 = vmatprep.subr.mxu0 0.0
  %7114 = vmatpush2.msra.mxu0 0.0
  %7115 = vmatprep.mubr.f32.mxu0 0.0
  %7116 = vmatmul.mubr.f32.gmra.mxu0 %v7049
  %v7117 = vpop.f32.mrf.mxu0
  %v7118 = vadd.f32 %v3474, %v7117
  %v7119 = vpop.f32.mrf.mxu0
  %7120 = vdwg.mxu0
  %v7122 = vcombine.high %v7118, %v7118
  %v7124 = vunpack.c.l.s4 1966171168
  %v7125 = vunpack.c.0.s8 %v7124
  %v7126 = vlaneseq
  %v7127 = vshrl.u32 %v7126, 7
  %v7128 = vsub.s32 %v7125, %v7127
  %v7129 = vrot.slane %v7118, %v7128
  %v7131 = vunpack.c.l.s4 1966171168
  %v7132 = vunpack.c.0.s8 %v7131
  %v7133 = vlaneseq
  %v7134 = vshrl.u32 %v7133, 7
  %v7135 = vsub.s32 %v7132, %v7134
  %v7136 = vrot.slane %v7122, %v7135
  %v7137 = vcombine.high %v7129, %v7129
  %v7138 = vcombine.high %v7136, %v7136
  %v7140 = vunpack.c.l.s4 1966171168
  %v7141 = vunpack.c.0.s8 %v7140
  %v7142 = vlaneseq
  %v7143 = vshrl.u32 %v7142, 7
  %v7144 = vsub.s32 %v7141, %v7143
  %v7145 = vrot.slane %v7129, %v7144
  %v7147 = vunpack.c.l.s4 1966171168
  %v7148 = vunpack.c.0.s8 %v7147
  %v7149 = vlaneseq
  %v7150 = vshrl.u32 %v7149, 7
  %v7151 = vsub.s32 %v7148, %v7150
  %v7152 = vrot.slane %v7136, %v7151
  %v7154 = vunpack.c.l.s4 1966171168
  %v7155 = vunpack.c.0.s8 %v7154
  %v7156 = vlaneseq
  %v7157 = vshrl.u32 %v7156, 7
  %v7158 = vsub.s32 %v7155, %v7157
  %v7159 = vrot.slane %v7137, %v7158
  %v7161 = vunpack.c.l.s4 1966171168
  %v7162 = vunpack.c.0.s8 %v7161
  %v7163 = vlaneseq
  %v7164 = vshrl.u32 %v7163, 7
  %v7165 = vsub.s32 %v7162, %v7164
  %v7166 = vrot.slane %v7138, %v7165
  %v7167 = vcombine.high %v7145, %v7145
  %v7168 = vcombine.high %v7152, %v7152
  %v7169 = vcombine.high %v7159, %v7159
  %v7170 = vcombine.high %v7166, %v7166
  %v7171 = vlaneseq
  %v7172 = vshrl.u32 %v7171, 7
  %v7173 = vsub.s32 0, %v7172
  %v7174 = vrot.slane %v7145, %v7173
  %v7175 = vlaneseq
  %v7176 = vshrl.u32 %v7175, 7
  %v7177 = vsub.s32 0, %v7176
  %v7178 = vrot.slane %v7159, %v7177
  %v7179 = vlaneseq
  %v7180 = vshrl.u32 %v7179, 7
  %v7181 = vsub.s32 0, %v7180
  %v7182 = vrot.slane %v7167, %v7181
  %v7183 = vlaneseq
  %v7184 = vshrl.u32 %v7183, 7
  %v7185 = vsub.s32 0, %v7184
  %v7186 = vrot.slane %v7169, %v7185
  %v7187 = vlaneseq
  %v7188 = vshrl.u32 %v7187, 7
  %v7189 = vsub.s32 0, %v7188
  %v7190 = vrot.slane %v7152, %v7189
  %v7191 = vlaneseq
  %v7192 = vshrl.u32 %v7191, 7
  %v7193 = vsub.s32 0, %v7192
  %v7194 = vrot.slane %v7166, %v7193
  %v7195 = vlaneseq
  %v7196 = vshrl.u32 %v7195, 7
  %v7197 = vsub.s32 0, %v7196
  %v7198 = vrot.slane %v7168, %v7197
  %v7199 = vlaneseq
  %v7200 = vshrl.u32 %v7199, 7
  %v7201 = vsub.s32 0, %v7200
  %v7202 = vrot.slane %v7170, %v7201
  %v7211 = vadd.f32 %v7174, %v3168
  %v7212 = vadd.f32 %v7178, %v3173
  %v7213 = vadd.f32 %v7182, %v3178
  %v7214 = vadd.f32 %v7186, %v3183
  %v7215 = vadd.f32 %v7190, %v3188
  %v7216 = vadd.f32 %v7194, %v3193
  %v7217 = vadd.f32 %v7198, %v3198
  %v7218 = vadd.f32 %v7202, %v3203
  %v7219 = vtanh.pop %v7211
  %v7220 = vtanh.pop %v7212
  %v7221 = vtanh.pop %v7213
  %v7222 = vtanh.pop %v7214
  %v7223 = vtanh.pop %v7215
  %v7224 = vtanh.pop %v7216
  %v7225 = vtanh.pop %v7217
  %v7226 = vtanh.pop %v7218
  %v7227 = vmul.f32 %v7219, %v3661
  %v7228 = vmul.f32 %v7220, %v3661
  %v7229 = vmul.f32 %v7221, %v3661
  %v7230 = vmul.f32 %v7222, %v3661
  %v7231 = vmul.f32 %v7223, %v3661
  %v7232 = vmul.f32 %v7224, %v3661
  %v7233 = vmul.f32 %v7225, %v3661
  %v7234 = vmul.f32 %v7226, %v3661
  %v7235 = vsel %vm206, %v7227, 0.0
  %7236 = vadd.xlane.f32.xlu0 %v7235
  %v7237 = vpop.xlane.xlu0 %7236
  %v7238 = vsel %vm206, %v7228, 0.0
  %7239 = vadd.xlane.f32.xlu0 %v7238
  %v7240 = vpop.xlane.xlu0 %7239
  %v7241 = vsel %vm206, %v7229, 0.0
  %7242 = vadd.xlane.f32.xlu0 %v7241
  %v7243 = vpop.xlane.xlu0 %7242
  %v7244 = vsel %vm206, %v7230, 0.0
  %7245 = vadd.xlane.f32.xlu0 %v7244
  %v7246 = vpop.xlane.xlu0 %7245
  %v7247 = vsel %vm206, %v7231, 0.0
  %7248 = vadd.xlane.f32.xlu0 %v7247
  %v7249 = vpop.xlane.xlu0 %7248
  %v7250 = vsel %vm206, %v7232, 0.0
  %7251 = vadd.xlane.f32.xlu0 %v7250
  %v7252 = vpop.xlane.xlu0 %7251
  %v7253 = vsel %vm206, %v7233, 0.0
  %7254 = vadd.xlane.f32.xlu0 %v7253
  %v7255 = vpop.xlane.xlu0 %7254
  %v7256 = vsel %vm206, %v7234, 0.0
  %7257 = vadd.xlane.f32.xlu0 %v7256
  %v7258 = vpop.xlane.xlu0 %7257
  %v7259 = vtanh.pop %v7237
  %v7260 = vtanh.pop %v7240
  %v7261 = vtanh.pop %v7243
  %v7262 = vtanh.pop %v7246
  %v7263 = vtanh.pop %v7249
  %v7264 = vtanh.pop %v7252
  %v7265 = vtanh.pop %v7255
  %v7266 = vtanh.pop %v7258
  %v7267 = vmul.f32 %v7259, 10.0
  %v7268 = vmul.f32 %v7260, 10.0
  %v7269 = vmul.f32 %v7261, 10.0
  %v7270 = vmul.f32 %v7262, 10.0
  %v7271 = vmul.f32 %v7263, 10.0
  %v7272 = vmul.f32 %v7264, 10.0
  %v7273 = vmul.f32 %v7265, 10.0
  %v7274 = vmul.f32 %v7266, 10.0
  %vm7275 = vcmp.gt.f32.partialorder %v6666, 0.5
  %v7284 = vlaneseq
  %v7285 = vshrl.u32 %v7284, 7
  %v7286 = vsub.s32 %v3207, %v7285
  %v7287 = vrot.slane %v7267, %v7286
  %v7288 = vlaneseq
  %v7289 = vshrl.u32 %v7288, 7
  %v7290 = vsub.s32 %v3207, %v7289
  %v7291 = vrot.slane %v7268, %v7290
  %v7292 = vlaneseq
  %v7293 = vshrl.u32 %v7292, 7
  %v7294 = vsub.s32 %v3207, %v7293
  %v7295 = vrot.slane %v7269, %v7294
  %v7296 = vlaneseq
  %v7297 = vshrl.u32 %v7296, 7
  %v7298 = vsub.s32 %v3207, %v7297
  %v7299 = vrot.slane %v7270, %v7298
  %v7300 = vlaneseq
  %v7301 = vshrl.u32 %v7300, 7
  %v7302 = vsub.s32 %v3207, %v7301
  %v7303 = vrot.slane %v7271, %v7302
  %v7304 = vlaneseq
  %v7305 = vshrl.u32 %v7304, 7
  %v7306 = vsub.s32 %v3207, %v7305
  %v7307 = vrot.slane %v7272, %v7306
  %v7308 = vlaneseq
  %v7309 = vshrl.u32 %v7308, 7
  %v7310 = vsub.s32 %v3207, %v7309
  %v7311 = vrot.slane %v7273, %v7310
  %v7312 = vlaneseq
  %v7313 = vshrl.u32 %v7312, 7
  %v7314 = vsub.s32 %v3207, %v7313
  %v7315 = vrot.slane %v7274, %v7314
  %v7316 = vsel %vm638, %v7291, %v7287
  %v7317 = vsel %vm641, %v7295, %v7316
  %v7318 = vsel %vm644, %v7299, %v7317
  %v7319 = vsel %vm647, %v7303, %v7318
  %v7320 = vsel %vm650, %v7307, %v7319
  %v7321 = vsel %vm653, %v7311, %v7320
  %v7322 = vsel %vm656, %v7315, %v7321
  %v7324 = vsel %vm7275, -100000.0, %v7322
  %v7325 = vsel %vm3761, %v7324, -inf
  %7326 = vmax.xlane.f32.xlu0 %v7325
  %v7327 = vpop.xlane.xlu0 %7326
  %v7328 = vsub.f32 %v7324, %v7327
  %v7329 = vmul.f32 %v7328, 1.442695
  %v7330 = vpow.pop %v7329
  %v7331 = vsel %vm3761, %v7330, 0.0
  %7332 = vadd.xlane.f32.xlu0 %v7331
  %v7333 = vpop.xlane.xlu0 %7332
  %v7334 = vlog2.pop %v7333
  %v7335 = vmul.f32 %v7334, 0.6931472
  %v7336 = vadd.f32 %v7327, %v7335
  %v7337 = vsub.f32 %v7324, %v7336
  %v7338 = vrot.slane %v3226, 5
  %v7339 = vrot.slane %v3227, 4
  %v7340 = vsel %vm638, %v7339, %v7338
  %v7341 = vrot.slane %v3228, 3
  %v7342 = vsel %vm641, %v7341, %v7340
  %v7343 = vrot.slane %v3229, 2
  %v7344 = vsel %vm644, %v7343, %v7342
  %v7345 = vrot.slane %v3230, 1
  %v7346 = vsel %vm647, %v7345, %v7344
  %v7347 = vsel %vm650, %v3231, %v7346
  %v7348 = vrot.slane %v3232, 7
  %v7349 = vsel %vm653, %v7348, %v7347
  %v7350 = vrot.slane %v3233, 6
  %v7351 = vsel %vm656, %v7350, %v7349
  %v7353 = vadd.f32 %v7324, %v7351
  %v7354 = vsel %vm3761, %v7353, -inf
  %7355 = vmax.xlane.f32.xlu0 %v7354
  %v7356 = vpop.xlane.xlu0 %7355
  %vm7357 = vcmp.ge.f32.partialorder %v7353, %v7356
  %v7358 = vsel %vm7357, %v3207, 8
  %v7359 = vsel %vm3761, %v7358, 2147483647
  %v7360 = vand.u32 %v7359, 65535
  %v7361 = vshra.s32 %v7359, 16
  %v7362 = vcvt.s32.f32 %v7360
  %v7363 = vcvt.s32.f32 %v7361
  %7364 = vmin.xlane.f32.xlu0 %v7363
  %v7365 = vpop.xlane.xlu0 %7364
  %vm7366 = vcmp.eq.f32.partialorder %v7363, %v7365
  %v7367 = vsel %vm7366, %v7362, inf
  %7368 = vmin.xlane.f32.xlu0 %v7367
  %v7369 = vpop.xlane.xlu0 %7368
  %v7370 = vcvt.f32.s32 %v7369
  %v7371 = vcvt.f32.s32 %v7365
  %v7372 = vshll.u32 %v7371, 16
  %v7373 = vadd.s32 %v7372, %v7370
  %vm7374 = vcmp.eq.s32.totalorder %v3207, %v7373
  %v7375 = vsel %vm7374, 1, 0
  %v7376 = vcvt.s32.f32 %v7375
  %v7377 = vmax.f32 %v6666, %v7376
  %v7378 = vlaneseq
  %v7379 = vshrl.u32 %v7378, 7
  %v7380 = vsub.s32 0, %v7379
  %v7381 = vrot.slane %v7376, %v7380
  %7383 = vbcast.lane.b32.xlu0 %v7381, 256
  %v7384 = vpop.permute.xlu0 %7383
  %v7385 = vlaneseq
  %v7386 = vshrl.u32 %v7385, 7
  %v7387 = vsub.s32 1, %v7386
  %v7388 = vrot.slane %v7376, %v7387
  %7390 = vbcast.lane.b32.xlu0 %v7388, 256
  %v7391 = vpop.permute.xlu0 %7390
  %v7392 = vlaneseq
  %v7393 = vshrl.u32 %v7392, 7
  %v7394 = vsub.s32 2, %v7393
  %v7395 = vrot.slane %v7376, %v7394
  %7397 = vbcast.lane.b32.xlu0 %v7395, 256
  %v7398 = vpop.permute.xlu0 %7397
  %v7399 = vlaneseq
  %v7400 = vshrl.u32 %v7399, 7
  %v7401 = vsub.s32 3, %v7400
  %v7402 = vrot.slane %v7376, %v7401
  %7404 = vbcast.lane.b32.xlu0 %v7402, 256
  %v7405 = vpop.permute.xlu0 %7404
  %v7406 = vlaneseq
  %v7407 = vshrl.u32 %v7406, 7
  %v7408 = vsub.s32 4, %v7407
  %v7409 = vrot.slane %v7376, %v7408
  %7411 = vbcast.lane.b32.xlu0 %v7409, 256
  %v7412 = vpop.permute.xlu0 %7411
  %v7413 = vlaneseq
  %v7414 = vshrl.u32 %v7413, 7
  %v7415 = vsub.s32 5, %v7414
  %v7416 = vrot.slane %v7376, %v7415
  %7418 = vbcast.lane.b32.xlu0 %v7416, 256
  %v7419 = vpop.permute.xlu0 %7418
  %v7420 = vlaneseq
  %v7421 = vshrl.u32 %v7420, 7
  %v7422 = vsub.s32 6, %v7421
  %v7423 = vrot.slane %v7376, %v7422
  %7425 = vbcast.lane.b32.xlu0 %v7423, 256
  %v7426 = vpop.permute.xlu0 %7425
  %v7427 = vlaneseq
  %v7428 = vshrl.u32 %v7427, 7
  %v7429 = vsub.s32 7, %v7428
  %v7430 = vrot.slane %v7376, %v7429
  %7432 = vbcast.lane.b32.xlu0 %v7430, 256
  %v7433 = vpop.permute.xlu0 %7432
  %v7434 = vmul.f32 %v7384, %v52
  %v7435 = vmul.f32 %v7391, %v53
  %v7436 = vmul.f32 %v7398, %v54
  %v7437 = vmul.f32 %v7405, %v55
  %v7438 = vmul.f32 %v7412, %v56
  %v7439 = vmul.f32 %v7419, %v57
  %v7440 = vmul.f32 %v7426, %v58
  %v7441 = vmul.f32 %v7433, %v59
  %v7442 = vsel %vm61, %v7434, 0.0
  %v7443 = vrot.slane %v7442, 4
  %v7444 = vadd.f32 %v7442, %v7443
  %v7445 = vrot.slane %v7444, 2
  %v7446 = vadd.f32 %v7444, %v7445
  %v7447 = vrot.slane %v7446, 1
  %v7448 = vadd.f32 %v7446, %v7447
  %v7449 = vsel %vm61, %v7435, 0.0
  %v7450 = vrot.slane %v7449, 4
  %v7451 = vadd.f32 %v7449, %v7450
  %v7452 = vrot.slane %v7451, 2
  %v7453 = vadd.f32 %v7451, %v7452
  %v7454 = vrot.slane %v7453, 1
  %v7455 = vadd.f32 %v7453, %v7454
  %v7456 = vsel %vm61, %v7436, 0.0
  %v7457 = vrot.slane %v7456, 4
  %v7458 = vadd.f32 %v7456, %v7457
  %v7459 = vrot.slane %v7458, 2
  %v7460 = vadd.f32 %v7458, %v7459
  %v7461 = vrot.slane %v7460, 1
  %v7462 = vadd.f32 %v7460, %v7461
  %v7463 = vsel %vm61, %v7437, 0.0
  %v7464 = vrot.slane %v7463, 4
  %v7465 = vadd.f32 %v7463, %v7464
  %v7466 = vrot.slane %v7465, 2
  %v7467 = vadd.f32 %v7465, %v7466
  %v7468 = vrot.slane %v7467, 1
  %v7469 = vadd.f32 %v7467, %v7468
  %v7470 = vsel %vm61, %v7438, 0.0
  %v7471 = vrot.slane %v7470, 4
  %v7472 = vadd.f32 %v7470, %v7471
  %v7473 = vrot.slane %v7472, 2
  %v7474 = vadd.f32 %v7472, %v7473
  %v7475 = vrot.slane %v7474, 1
  %v7476 = vadd.f32 %v7474, %v7475
  %v7477 = vsel %vm61, %v7439, 0.0
  %v7478 = vrot.slane %v7477, 4
  %v7479 = vadd.f32 %v7477, %v7478
  %v7480 = vrot.slane %v7479, 2
  %v7481 = vadd.f32 %v7479, %v7480
  %v7482 = vrot.slane %v7481, 1
  %v7483 = vadd.f32 %v7481, %v7482
  %v7484 = vsel %vm61, %v7440, 0.0
  %v7485 = vrot.slane %v7484, 4
  %v7486 = vadd.f32 %v7484, %v7485
  %v7487 = vrot.slane %v7486, 2
  %v7488 = vadd.f32 %v7486, %v7487
  %v7489 = vrot.slane %v7488, 1
  %v7490 = vadd.f32 %v7488, %v7489
  %v7491 = vsel %vm61, %v7441, 0.0
  %v7492 = vrot.slane %v7491, 4
  %v7493 = vadd.f32 %v7491, %v7492
  %v7494 = vrot.slane %v7493, 2
  %v7495 = vadd.f32 %v7493, %v7494
  %v7496 = vrot.slane %v7495, 1
  %v7497 = vadd.f32 %v7495, %v7496
  %v7506 = vsel %vm638, %v7455, %v7448
  %v7507 = vsel %vm641, %v7462, %v7506
  %v7508 = vsel %vm644, %v7469, %v7507
  %v7509 = vsel %vm647, %v7476, %v7508
  %v7510 = vsel %vm650, %v7483, %v7509
  %v7511 = vsel %vm653, %v7490, %v7510
  %v7512 = vsel %vm656, %v7497, %v7511
  %v7513 = vsel %vm61, %v7512, 0
  %7515 = vmatprep.subr.mxu0 0.0
  %7516 = vmatpush1.msra.mxu0 0.0
  %7517 = vmatprep.subr.mxu0 0.0
  %7518 = vmatpush1.msra.mxu0 0.0
  %7519 = vmatprep.subr.mxu0 0.0
  %7520 = vmatpush1.msra.mxu0 0.0
  %7521 = vmatprep.subr.mxu0 0.0
  %7522 = vmatpush1.msra.mxu0 0.0
  %7523 = vmatprep.subr.mxu0 0.0
  %7524 = vmatpush1.msra.mxu0 0.0
  %7525 = vmatprep.subr.mxu0 0.0
  %7526 = vmatpush1.msra.mxu0 0.0
  %7527 = vmatprep.subr.mxu0 0.0
  %7528 = vmatpush1.msra.mxu0 0.0
  %7529 = vmatprep.subr.mxu0 0.0
  %7530 = vmatpush1.msra.mxu0 0.0
  %7531 = vmatprep.subr.mxu0 0.0
  %7532 = vmatpush1.msra.mxu0 0.0
  %7533 = vmatprep.subr.mxu0 0.0
  %7534 = vmatpush1.msra.mxu0 0.0
  %7535 = vmatprep.subr.mxu0 0.0
  %7536 = vmatpush1.msra.mxu0 0.0
  %7537 = vmatprep.subr.mxu0 0.0
  %7538 = vmatpush1.msra.mxu0 0.0
  %7539 = vmatprep.subr.mxu0 0.0
  %7540 = vmatpush1.msra.mxu0 0.0
  %7541 = vmatprep.subr.mxu0 0.0
  %7542 = vmatpush1.msra.mxu0 0.0
  %7543 = vmatprep.subr.mxu0 0.0
  %7544 = vmatpush1.msra.mxu0 0.0
  %7545 = vmatprep.subr.mxu0 0.0
  %7546 = vmatpush1.msra.mxu0 %v88
  %7547 = vmatprep.subr.mxu0 0.0
  %7548 = vmatpush2.msra.mxu0 0.0
  %7549 = vmatprep.subr.mxu0 0.0
  %7550 = vmatpush2.msra.mxu0 0.0
  %7551 = vmatprep.subr.mxu0 0.0
  %7552 = vmatpush2.msra.mxu0 0.0
  %7553 = vmatprep.subr.mxu0 0.0
  %7554 = vmatpush2.msra.mxu0 0.0
  %7555 = vmatprep.subr.mxu0 0.0
  %7556 = vmatpush2.msra.mxu0 0.0
  %7557 = vmatprep.subr.mxu0 0.0
  %7558 = vmatpush2.msra.mxu0 0.0
  %7559 = vmatprep.subr.mxu0 0.0
  %7560 = vmatpush2.msra.mxu0 0.0
  %7561 = vmatprep.subr.mxu0 0.0
  %7562 = vmatpush2.msra.mxu0 0.0
  %7563 = vmatprep.subr.mxu0 0.0
  %7564 = vmatpush2.msra.mxu0 0.0
  %7565 = vmatprep.subr.mxu0 0.0
  %7566 = vmatpush2.msra.mxu0 0.0
  %7567 = vmatprep.subr.mxu0 0.0
  %7568 = vmatpush2.msra.mxu0 0.0
  %7569 = vmatprep.subr.mxu0 0.0
  %7570 = vmatpush2.msra.mxu0 0.0
  %7571 = vmatprep.subr.mxu0 0.0
  %7572 = vmatpush2.msra.mxu0 0.0
  %7573 = vmatprep.subr.mxu0 0.0
  %7574 = vmatpush2.msra.mxu0 0.0
  %7575 = vmatprep.subr.mxu0 0.0
  %7576 = vmatpush2.msra.mxu0 0.0
  %7577 = vmatprep.subr.mxu0 0.0
  %7578 = vmatpush2.msra.mxu0 0.0
  %7579 = vmatprep.mubr.f32.mxu0 0.0
  %7580 = vmatmul.mubr.f32.gmra.mxu0 %v7513
  %v7581 = vpop.f32.mrf.mxu0
  %v7582 = vadd.f32 0.0, %v7581
  %v7583 = vpop.f32.mrf.mxu0
  %7584 = vdwg.mxu0
  %v7585 = vmul.f32 %v7337, %v7376
  %v7586 = vsel %vm3761, %v7585, 0.0
  %7587 = vadd.xlane.f32.xlu0 %v7586
  %v7588 = vpop.xlane.xlu0 %7587
  %7589 = vmatprep.subr.mxu0 0.0
  %7590 = vmatpush1.msra.mxu0 0.0
  %7591 = vmatprep.subr.mxu0 0.0
  %7592 = vmatpush1.msra.mxu0 0.0
  %7593 = vmatprep.subr.mxu0 0.0
  %7594 = vmatpush1.msra.mxu0 0.0
  %7595 = vmatprep.subr.mxu0 0.0
  %7596 = vmatpush1.msra.mxu0 0.0
  %7597 = vmatprep.subr.mxu0 0.0
  %7598 = vmatpush1.msra.mxu0 0.0
  %7599 = vmatprep.subr.mxu0 0.0
  %7600 = vmatpush1.msra.mxu0 0.0
  %7601 = vmatprep.subr.mxu0 0.0
  %7602 = vmatpush1.msra.mxu0 0.0
  %7603 = vmatprep.subr.mxu0 0.0
  %7604 = vmatpush1.msra.mxu0 0.0
  %7605 = vmatprep.subr.mxu0 0.0
  %7606 = vmatpush1.msra.mxu0 0.0
  %7607 = vmatprep.subr.mxu0 0.0
  %7608 = vmatpush1.msra.mxu0 0.0
  %7609 = vmatprep.subr.mxu0 0.0
  %7610 = vmatpush1.msra.mxu0 0.0
  %7611 = vmatprep.subr.mxu0 0.0
  %7612 = vmatpush1.msra.mxu0 0.0
  %7613 = vmatprep.subr.mxu0 0.0
  %7614 = vmatpush1.msra.mxu0 %v3218
  %7615 = vmatprep.subr.mxu0 0.0
  %7616 = vmatpush1.msra.mxu0 %v3217
  %7617 = vmatprep.subr.mxu0 0.0
  %7618 = vmatpush1.msra.mxu0 %v3216
  %7619 = vmatprep.subr.mxu0 0.0
  %7620 = vmatpush1.msra.mxu0 %v3215
  %7621 = vmatprep.subr.mxu0 0.0
  %7622 = vmatpush2.msra.mxu0 0.0
  %7623 = vmatprep.subr.mxu0 0.0
  %7624 = vmatpush2.msra.mxu0 0.0
  %7625 = vmatprep.subr.mxu0 0.0
  %7626 = vmatpush2.msra.mxu0 0.0
  %7627 = vmatprep.subr.mxu0 0.0
  %7628 = vmatpush2.msra.mxu0 0.0
  %7629 = vmatprep.subr.mxu0 0.0
  %7630 = vmatpush2.msra.mxu0 0.0
  %7631 = vmatprep.subr.mxu0 0.0
  %7632 = vmatpush2.msra.mxu0 0.0
  %7633 = vmatprep.subr.mxu0 0.0
  %7634 = vmatpush2.msra.mxu0 0.0
  %7635 = vmatprep.subr.mxu0 0.0
  %7636 = vmatpush2.msra.mxu0 0.0
  %7637 = vmatprep.subr.mxu0 0.0
  %7638 = vmatpush2.msra.mxu0 0.0
  %7639 = vmatprep.subr.mxu0 0.0
  %7640 = vmatpush2.msra.mxu0 0.0
  %7641 = vmatprep.subr.mxu0 0.0
  %7642 = vmatpush2.msra.mxu0 0.0
  %7643 = vmatprep.subr.mxu0 0.0
  %7644 = vmatpush2.msra.mxu0 0.0
  %7645 = vmatprep.subr.mxu0 0.0
  %7646 = vmatpush2.msra.mxu0 0.0
  %7647 = vmatprep.subr.mxu0 0.0
  %7648 = vmatpush2.msra.mxu0 0.0
  %7649 = vmatprep.subr.mxu0 0.0
  %7650 = vmatpush2.msra.mxu0 0.0
  %7651 = vmatprep.subr.mxu0 0.0
  %7652 = vmatpush2.msra.mxu0 0.0
  %7653 = vmatprep.mubr.f32.mxu0 0.0
  %7654 = vmatmul.mubr.f32.gmra.mxu0 %v7049
  %v7655 = vpop.f32.mrf.mxu0
  %v7656 = vadd.f32 0.0, %v7655
  %v7657 = vpop.f32.mrf.mxu0
  %7658 = vdwg.mxu0
  %v7660 = vsel %vm206, %v7582, 0
  %7662 = vmatprep.subr.mxu0 0.0
  %7663 = vmatpush1.msra.mxu0 0.0
  %7664 = vmatprep.subr.mxu0 0.0
  %7665 = vmatpush1.msra.mxu0 0.0
  %7666 = vmatprep.subr.mxu0 0.0
  %7667 = vmatpush1.msra.mxu0 0.0
  %7668 = vmatprep.subr.mxu0 0.0
  %7669 = vmatpush1.msra.mxu0 0.0
  %7670 = vmatprep.subr.mxu0 0.0
  %7671 = vmatpush1.msra.mxu0 0.0
  %7672 = vmatprep.subr.mxu0 0.0
  %7673 = vmatpush1.msra.mxu0 0.0
  %7674 = vmatprep.subr.mxu0 0.0
  %7675 = vmatpush1.msra.mxu0 0.0
  %7676 = vmatprep.subr.mxu0 0.0
  %7677 = vmatpush1.msra.mxu0 0.0
  %7678 = vmatprep.subr.mxu0 0.0
  %7679 = vmatpush1.msra.mxu0 0.0
  %7680 = vmatprep.subr.mxu0 0.0
  %7681 = vmatpush1.msra.mxu0 0.0
  %7682 = vmatprep.subr.mxu0 0.0
  %7683 = vmatpush1.msra.mxu0 0.0
  %7684 = vmatprep.subr.mxu0 0.0
  %7685 = vmatpush1.msra.mxu0 0.0
  %7686 = vmatprep.subr.mxu0 0.0
  %7687 = vmatpush1.msra.mxu0 %v3214
  %7688 = vmatprep.subr.mxu0 0.0
  %7689 = vmatpush1.msra.mxu0 %v3213
  %7690 = vmatprep.subr.mxu0 0.0
  %7691 = vmatpush1.msra.mxu0 %v3212
  %7692 = vmatprep.subr.mxu0 0.0
  %7693 = vmatpush1.msra.mxu0 %v3211
  %7694 = vmatprep.subr.mxu0 0.0
  %7695 = vmatpush2.msra.mxu0 0.0
  %7696 = vmatprep.subr.mxu0 0.0
  %7697 = vmatpush2.msra.mxu0 0.0
  %7698 = vmatprep.subr.mxu0 0.0
  %7699 = vmatpush2.msra.mxu0 0.0
  %7700 = vmatprep.subr.mxu0 0.0
  %7701 = vmatpush2.msra.mxu0 0.0
  %7702 = vmatprep.subr.mxu0 0.0
  %7703 = vmatpush2.msra.mxu0 0.0
  %7704 = vmatprep.subr.mxu0 0.0
  %7705 = vmatpush2.msra.mxu0 0.0
  %7706 = vmatprep.subr.mxu0 0.0
  %7707 = vmatpush2.msra.mxu0 0.0
  %7708 = vmatprep.subr.mxu0 0.0
  %7709 = vmatpush2.msra.mxu0 0.0
  %7710 = vmatprep.subr.mxu0 0.0
  %7711 = vmatpush2.msra.mxu0 0.0
  %7712 = vmatprep.subr.mxu0 0.0
  %7713 = vmatpush2.msra.mxu0 0.0
  %7714 = vmatprep.subr.mxu0 0.0
  %7715 = vmatpush2.msra.mxu0 0.0
  %7716 = vmatprep.subr.mxu0 0.0
  %7717 = vmatpush2.msra.mxu0 0.0
  %7718 = vmatprep.subr.mxu0 0.0
  %7719 = vmatpush2.msra.mxu0 0.0
  %7720 = vmatprep.subr.mxu0 0.0
  %7721 = vmatpush2.msra.mxu0 0.0
  %7722 = vmatprep.subr.mxu0 0.0
  %7723 = vmatpush2.msra.mxu0 0.0
  %7724 = vmatprep.subr.mxu0 0.0
  %7725 = vmatpush2.msra.mxu0 0.0
  %7726 = vmatprep.mubr.f32.mxu0 0.0
  %7727 = vmatmul.mubr.f32.gmra.mxu0 %v7660
  %v7728 = vpop.f32.mrf.mxu0
  %v7729 = vadd.f32 %v7656, %v7728
  %v7730 = vpop.f32.mrf.mxu0
  %7731 = vdwg.mxu0
  %v7732 = vadd.f32 %v7729, %v3420
  %v7733 = vxor.u32 %v7732, 2147483648
  %v7734 = vmul.f32 %v7733, 1.442695
  %v7735 = vpow.pop %v7734
  %v7736 = vadd.f32 %v7735, 1.0
  %v7737 = vrcp.pop %v7736
  %v7738 = vmul.f32 1.0, %v7737
  %v7739 = vtanh.pop %v7732
  %v7740 = vmul.f32 %v7738, %v7039
  %7742 = vrot.lane.b32.xlu0 %v7739, 64
  %v7743 = vpop.permute.xlu0 %7742
  %v7745 = vmul.f32 %v7738, %v7743
  %7747 = vrot.lane.b32.xlu0 %v7745, 32
  %v7748 = vpop.permute.xlu0 %7747
  %v7750 = vadd.f32 %v7740, %v7748
  %v7751 = vtanh.pop %v7750
  %7753 = vrot.lane.b32.xlu0 %v7751, 64
  %v7754 = vpop.permute.xlu0 %7753
  %v7756 = vmul.f32 %v7738, %v7754
  %7758 = vrot.lane.b32.xlu0 %v7756, 32
  %v7759 = vpop.permute.xlu0 %7758
  %v7760 = vsel %vm206, %v7759, 0
  %7762 = vmatprep.subr.mxu0 0.0
  %7763 = vmatpush1.msra.mxu0 0.0
  %7764 = vmatprep.subr.mxu0 0.0
  %7765 = vmatpush1.msra.mxu0 0.0
  %7766 = vmatprep.subr.mxu0 0.0
  %7767 = vmatpush1.msra.mxu0 0.0
  %7768 = vmatprep.subr.mxu0 0.0
  %7769 = vmatpush1.msra.mxu0 0.0
  %7770 = vmatprep.subr.mxu0 0.0
  %7771 = vmatpush1.msra.mxu0 0.0
  %7772 = vmatprep.subr.mxu0 0.0
  %7773 = vmatpush1.msra.mxu0 0.0
  %7774 = vmatprep.subr.mxu0 0.0
  %7775 = vmatpush1.msra.mxu0 0.0
  %7776 = vmatprep.subr.mxu0 0.0
  %7777 = vmatpush1.msra.mxu0 0.0
  %7778 = vmatprep.subr.mxu0 0.0
  %7779 = vmatpush1.msra.mxu0 0.0
  %7780 = vmatprep.subr.mxu0 0.0
  %7781 = vmatpush1.msra.mxu0 0.0
  %7782 = vmatprep.subr.mxu0 0.0
  %7783 = vmatpush1.msra.mxu0 0.0
  %7784 = vmatprep.subr.mxu0 0.0
  %7785 = vmatpush1.msra.mxu0 0.0
  %7786 = vmatprep.subr.mxu0 0.0
  %7787 = vmatpush1.msra.mxu0 %v3223
  %7788 = vmatprep.subr.mxu0 0.0
  %7789 = vmatpush1.msra.mxu0 %v3222
  %7790 = vmatprep.subr.mxu0 0.0
  %7791 = vmatpush1.msra.mxu0 %v3221
  %7792 = vmatprep.subr.mxu0 0.0
  %7793 = vmatpush1.msra.mxu0 %v3220
  %7794 = vmatprep.subr.mxu0 0.0
  %7795 = vmatpush2.msra.mxu0 0.0
  %7796 = vmatprep.subr.mxu0 0.0
  %7797 = vmatpush2.msra.mxu0 0.0
  %7798 = vmatprep.subr.mxu0 0.0
  %7799 = vmatpush2.msra.mxu0 0.0
  %7800 = vmatprep.subr.mxu0 0.0
  %7801 = vmatpush2.msra.mxu0 0.0
  %7802 = vmatprep.subr.mxu0 0.0
  %7803 = vmatpush2.msra.mxu0 0.0
  %7804 = vmatprep.subr.mxu0 0.0
  %7805 = vmatpush2.msra.mxu0 0.0
  %7806 = vmatprep.subr.mxu0 0.0
  %7807 = vmatpush2.msra.mxu0 0.0
  %7808 = vmatprep.subr.mxu0 0.0
  %7809 = vmatpush2.msra.mxu0 0.0
  %7810 = vmatprep.subr.mxu0 0.0
  %7811 = vmatpush2.msra.mxu0 0.0
  %7812 = vmatprep.subr.mxu0 0.0
  %7813 = vmatpush2.msra.mxu0 0.0
  %7814 = vmatprep.subr.mxu0 0.0
  %7815 = vmatpush2.msra.mxu0 0.0
  %7816 = vmatprep.subr.mxu0 0.0
  %7817 = vmatpush2.msra.mxu0 0.0
  %7818 = vmatprep.subr.mxu0 0.0
  %7819 = vmatpush2.msra.mxu0 0.0
  %7820 = vmatprep.subr.mxu0 0.0
  %7821 = vmatpush2.msra.mxu0 0.0
  %7822 = vmatprep.subr.mxu0 0.0
  %7823 = vmatpush2.msra.mxu0 0.0
  %7824 = vmatprep.subr.mxu0 0.0
  %7825 = vmatpush2.msra.mxu0 0.0
  %7826 = vmatprep.mubr.f32.mxu0 0.0
  %7827 = vmatmul.mubr.f32.gmra.mxu0 %v7760
  %v7828 = vpop.f32.mrf.mxu0
  %v7829 = vadd.f32 %v3474, %v7828
  %v7830 = vpop.f32.mrf.mxu0
  %7831 = vdwg.mxu0
  %v7833 = vcombine.high %v7829, %v7829
  %v7835 = vunpack.c.l.s4 1966171168
  %v7836 = vunpack.c.0.s8 %v7835
  %v7837 = vlaneseq
  %v7838 = vshrl.u32 %v7837, 7
  %v7839 = vsub.s32 %v7836, %v7838
  %v7840 = vrot.slane %v7829, %v7839
  %v7842 = vunpack.c.l.s4 1966171168
  %v7843 = vunpack.c.0.s8 %v7842
  %v7844 = vlaneseq
  %v7845 = vshrl.u32 %v7844, 7
  %v7846 = vsub.s32 %v7843, %v7845
  %v7847 = vrot.slane %v7833, %v7846
  %v7848 = vcombine.high %v7840, %v7840
  %v7849 = vcombine.high %v7847, %v7847
  %v7851 = vunpack.c.l.s4 1966171168
  %v7852 = vunpack.c.0.s8 %v7851
  %v7853 = vlaneseq
  %v7854 = vshrl.u32 %v7853, 7
  %v7855 = vsub.s32 %v7852, %v7854
  %v7856 = vrot.slane %v7840, %v7855
  %v7858 = vunpack.c.l.s4 1966171168
  %v7859 = vunpack.c.0.s8 %v7858
  %v7860 = vlaneseq
  %v7861 = vshrl.u32 %v7860, 7
  %v7862 = vsub.s32 %v7859, %v7861
  %v7863 = vrot.slane %v7847, %v7862
  %v7865 = vunpack.c.l.s4 1966171168
  %v7866 = vunpack.c.0.s8 %v7865
  %v7867 = vlaneseq
  %v7868 = vshrl.u32 %v7867, 7
  %v7869 = vsub.s32 %v7866, %v7868
  %v7870 = vrot.slane %v7848, %v7869
  %v7872 = vunpack.c.l.s4 1966171168
  %v7873 = vunpack.c.0.s8 %v7872
  %v7874 = vlaneseq
  %v7875 = vshrl.u32 %v7874, 7
  %v7876 = vsub.s32 %v7873, %v7875
  %v7877 = vrot.slane %v7849, %v7876
  %v7878 = vcombine.high %v7856, %v7856
  %v7879 = vcombine.high %v7863, %v7863
  %v7880 = vcombine.high %v7870, %v7870
  %v7881 = vcombine.high %v7877, %v7877
  %v7882 = vlaneseq
  %v7883 = vshrl.u32 %v7882, 7
  %v7884 = vsub.s32 0, %v7883
  %v7885 = vrot.slane %v7856, %v7884
  %v7886 = vlaneseq
  %v7887 = vshrl.u32 %v7886, 7
  %v7888 = vsub.s32 0, %v7887
  %v7889 = vrot.slane %v7870, %v7888
  %v7890 = vlaneseq
  %v7891 = vshrl.u32 %v7890, 7
  %v7892 = vsub.s32 0, %v7891
  %v7893 = vrot.slane %v7878, %v7892
  %v7894 = vlaneseq
  %v7895 = vshrl.u32 %v7894, 7
  %v7896 = vsub.s32 0, %v7895
  %v7897 = vrot.slane %v7880, %v7896
  %v7898 = vlaneseq
  %v7899 = vshrl.u32 %v7898, 7
  %v7900 = vsub.s32 0, %v7899
  %v7901 = vrot.slane %v7863, %v7900
  %v7902 = vlaneseq
  %v7903 = vshrl.u32 %v7902, 7
  %v7904 = vsub.s32 0, %v7903
  %v7905 = vrot.slane %v7877, %v7904
  %v7906 = vlaneseq
  %v7907 = vshrl.u32 %v7906, 7
  %v7908 = vsub.s32 0, %v7907
  %v7909 = vrot.slane %v7879, %v7908
  %v7910 = vlaneseq
  %v7911 = vshrl.u32 %v7910, 7
  %v7912 = vsub.s32 0, %v7911
  %v7913 = vrot.slane %v7881, %v7912
  %v7922 = vadd.f32 %v7885, %v3168
  %v7923 = vadd.f32 %v7889, %v3173
  %v7924 = vadd.f32 %v7893, %v3178
  %v7925 = vadd.f32 %v7897, %v3183
  %v7926 = vadd.f32 %v7901, %v3188
  %v7927 = vadd.f32 %v7905, %v3193
  %v7928 = vadd.f32 %v7909, %v3198
  %v7929 = vadd.f32 %v7913, %v3203
  %v7930 = vtanh.pop %v7922
  %v7931 = vtanh.pop %v7923
  %v7932 = vtanh.pop %v7924
  %v7933 = vtanh.pop %v7925
  %v7934 = vtanh.pop %v7926
  %v7935 = vtanh.pop %v7927
  %v7936 = vtanh.pop %v7928
  %v7937 = vtanh.pop %v7929
  %v7938 = vmul.f32 %v7930, %v3661
  %v7939 = vmul.f32 %v7931, %v3661
  %v7940 = vmul.f32 %v7932, %v3661
  %v7941 = vmul.f32 %v7933, %v3661
  %v7942 = vmul.f32 %v7934, %v3661
  %v7943 = vmul.f32 %v7935, %v3661
  %v7944 = vmul.f32 %v7936, %v3661
  %v7945 = vmul.f32 %v7937, %v3661
  %v7946 = vsel %vm206, %v7938, 0.0
  %7947 = vadd.xlane.f32.xlu0 %v7946
  %v7948 = vpop.xlane.xlu0 %7947
  %v7949 = vsel %vm206, %v7939, 0.0
  %7950 = vadd.xlane.f32.xlu0 %v7949
  %v7951 = vpop.xlane.xlu0 %7950
  %v7952 = vsel %vm206, %v7940, 0.0
  %7953 = vadd.xlane.f32.xlu0 %v7952
  %v7954 = vpop.xlane.xlu0 %7953
  %v7955 = vsel %vm206, %v7941, 0.0
  %7956 = vadd.xlane.f32.xlu0 %v7955
  %v7957 = vpop.xlane.xlu0 %7956
  %v7958 = vsel %vm206, %v7942, 0.0
  %7959 = vadd.xlane.f32.xlu0 %v7958
  %v7960 = vpop.xlane.xlu0 %7959
  %v7961 = vsel %vm206, %v7943, 0.0
  %7962 = vadd.xlane.f32.xlu0 %v7961
  %v7963 = vpop.xlane.xlu0 %7962
  %v7964 = vsel %vm206, %v7944, 0.0
  %7965 = vadd.xlane.f32.xlu0 %v7964
  %v7966 = vpop.xlane.xlu0 %7965
  %v7967 = vsel %vm206, %v7945, 0.0
  %7968 = vadd.xlane.f32.xlu0 %v7967
  %v7969 = vpop.xlane.xlu0 %7968
  %v7970 = vtanh.pop %v7948
  %v7971 = vtanh.pop %v7951
  %v7972 = vtanh.pop %v7954
  %v7973 = vtanh.pop %v7957
  %v7974 = vtanh.pop %v7960
  %v7975 = vtanh.pop %v7963
  %v7976 = vtanh.pop %v7966
  %v7977 = vtanh.pop %v7969
  %v7978 = vmul.f32 %v7970, 10.0
  %v7979 = vmul.f32 %v7971, 10.0
  %v7980 = vmul.f32 %v7972, 10.0
  %v7981 = vmul.f32 %v7973, 10.0
  %v7982 = vmul.f32 %v7974, 10.0
  %v7983 = vmul.f32 %v7975, 10.0
  %v7984 = vmul.f32 %v7976, 10.0
  %v7985 = vmul.f32 %v7977, 10.0
  %vm7986 = vcmp.gt.f32.partialorder %v7377, 0.5
  %v7995 = vlaneseq
  %v7996 = vshrl.u32 %v7995, 7
  %v7997 = vsub.s32 %v3207, %v7996
  %v7998 = vrot.slane %v7978, %v7997
  %v7999 = vlaneseq
  %v8000 = vshrl.u32 %v7999, 7
  %v8001 = vsub.s32 %v3207, %v8000
  %v8002 = vrot.slane %v7979, %v8001
  %v8003 = vlaneseq
  %v8004 = vshrl.u32 %v8003, 7
  %v8005 = vsub.s32 %v3207, %v8004
  %v8006 = vrot.slane %v7980, %v8005
  %v8007 = vlaneseq
  %v8008 = vshrl.u32 %v8007, 7
  %v8009 = vsub.s32 %v3207, %v8008
  %v8010 = vrot.slane %v7981, %v8009
  %v8011 = vlaneseq
  %v8012 = vshrl.u32 %v8011, 7
  %v8013 = vsub.s32 %v3207, %v8012
  %v8014 = vrot.slane %v7982, %v8013
  %v8015 = vlaneseq
  %v8016 = vshrl.u32 %v8015, 7
  %v8017 = vsub.s32 %v3207, %v8016
  %v8018 = vrot.slane %v7983, %v8017
  %v8019 = vlaneseq
  %v8020 = vshrl.u32 %v8019, 7
  %v8021 = vsub.s32 %v3207, %v8020
  %v8022 = vrot.slane %v7984, %v8021
  %v8023 = vlaneseq
  %v8024 = vshrl.u32 %v8023, 7
  %v8025 = vsub.s32 %v3207, %v8024
  %v8026 = vrot.slane %v7985, %v8025
  %v8027 = vsel %vm638, %v8002, %v7998
  %v8028 = vsel %vm641, %v8006, %v8027
  %v8029 = vsel %vm644, %v8010, %v8028
  %v8030 = vsel %vm647, %v8014, %v8029
  %v8031 = vsel %vm650, %v8018, %v8030
  %v8032 = vsel %vm653, %v8022, %v8031
  %v8033 = vsel %vm656, %v8026, %v8032
  %v8035 = vsel %vm7986, -100000.0, %v8033
  %v8036 = vsel %vm3761, %v8035, -inf
  %8037 = vmax.xlane.f32.xlu0 %v8036
  %v8038 = vpop.xlane.xlu0 %8037
  %v8039 = vsub.f32 %v8035, %v8038
  %v8040 = vmul.f32 %v8039, 1.442695
  %v8041 = vpow.pop %v8040
  %v8042 = vsel %vm3761, %v8041, 0.0
  %8043 = vadd.xlane.f32.xlu0 %v8042
  %v8044 = vpop.xlane.xlu0 %8043
  %v8045 = vlog2.pop %v8044
  %v8046 = vmul.f32 %v8045, 0.6931472
  %v8047 = vadd.f32 %v8038, %v8046
  %v8048 = vsub.f32 %v8035, %v8047
  %v8049 = vrot.slane %v3226, 6
  %v8050 = vrot.slane %v3227, 5
  %v8051 = vsel %vm638, %v8050, %v8049
  %v8052 = vrot.slane %v3228, 4
  %v8053 = vsel %vm641, %v8052, %v8051
  %v8054 = vrot.slane %v3229, 3
  %v8055 = vsel %vm644, %v8054, %v8053
  %v8056 = vrot.slane %v3230, 2
  %v8057 = vsel %vm647, %v8056, %v8055
  %v8058 = vrot.slane %v3231, 1
  %v8059 = vsel %vm650, %v8058, %v8057
  %v8060 = vsel %vm653, %v3232, %v8059
  %v8061 = vrot.slane %v3233, 7
  %v8062 = vsel %vm656, %v8061, %v8060
  %v8064 = vadd.f32 %v8035, %v8062
  %v8065 = vsel %vm3761, %v8064, -inf
  %8066 = vmax.xlane.f32.xlu0 %v8065
  %v8067 = vpop.xlane.xlu0 %8066
  %vm8068 = vcmp.ge.f32.partialorder %v8064, %v8067
  %v8069 = vsel %vm8068, %v3207, 8
  %v8070 = vsel %vm3761, %v8069, 2147483647
  %v8071 = vand.u32 %v8070, 65535
  %v8072 = vshra.s32 %v8070, 16
  %v8073 = vcvt.s32.f32 %v8071
  %v8074 = vcvt.s32.f32 %v8072
  %8075 = vmin.xlane.f32.xlu0 %v8074
  %v8076 = vpop.xlane.xlu0 %8075
  %vm8077 = vcmp.eq.f32.partialorder %v8074, %v8076
  %v8078 = vsel %vm8077, %v8073, inf
  %8079 = vmin.xlane.f32.xlu0 %v8078
  %v8080 = vpop.xlane.xlu0 %8079
  %v8081 = vcvt.f32.s32 %v8080
  %v8082 = vcvt.f32.s32 %v8076
  %v8083 = vshll.u32 %v8082, 16
  %v8084 = vadd.s32 %v8083, %v8081
  %vm8085 = vcmp.eq.s32.totalorder %v3207, %v8084
  %v8086 = vsel %vm8085, 1, 0
  %v8087 = vcvt.s32.f32 %v8086
  %v8088 = vmul.f32 %v8048, %v8087
  %v8089 = vsel %vm3761, %v8088, 0.0
  %8090 = vadd.xlane.f32.xlu0 %v8089
  %v8091 = vpop.xlane.xlu0 %8090
  %vm8092 = vcmask 7168
  %v8093 = vsel %vm8092, %v4033, %v4744
  %v8094 = vsel %vm61, %v8093, %v5455
  %vm8095 = vcmask 23552
  %v8096 = vsel %vm8095, %v8094, %v6166
  %vm8097 = vcmask 31744
  %v8098 = vsel %vm8097, %v8096, %v6877
  %vm8099 = vcmask 39936
  %v8100 = vsel %vm8099, %v8098, %v7588
  %vm8101 = vcmask 48128
  %v8102 = vsel %vm8101, %v8100, %v8091
  %vm8103 = vcmask 56320
  %8104 = vst.msk [vmem:[%s15] sm:$0xff] %vm8103, %v8102
  %v8105 = vsel %vm8092, %v3818, %v4529
  %v8106 = vsel %vm61, %v8105, %v5240
  %v8107 = vsel %vm8095, %v8106, %v5951
  %v8108 = vsel %vm8097, %v8107, %v6662
  %v8109 = vsel %vm8099, %v8108, %v7373
  %v8110 = vsel %vm8101, %v8109, %v8084
  %8111 = vst.msk [vmem:[%s16] sm:$0xff] %vm8103, %v8110
  // Predicated region
  $region62: #{lstm_tsp_forward.1} parent=0 // pred_check
    _
  $region63: #{lstm_tsp_forward.1} parent=0 // pred_check_branch
    %8113 = sbr.rel (0) target = $region65
  $region64: #{lstm_tsp_forward.1} parent=0 // pred_region
    _
  $region65: #{lstm_tsp_forward.1} parent=0 // pred_fallthru
    _
  // Predicated region
  $region66: #{lstm_tsp_forward.1} parent=0 // pred_check
    _
  $region67: #{lstm_tsp_forward.1} parent=0 // pred_check_branch
    %8115 = sbr.rel (0) target = $region69
  $region68: #{lstm_tsp_forward.1} parent=0 // pred_region
    _
  $region69: #{lstm_tsp_forward.1} parent=0 // pred_fallthru
    _
  // Predicated region
  $region70: #{lstm_tsp_forward.1} parent=0 // pred_check
    _
  $region71: #{lstm_tsp_forward.1} parent=0 // pred_check_branch
    %8117 = sbr.rel (0) target = $region73
  $region72: #{lstm_tsp_forward.1} parent=0 // pred_region
    _
  $region73: #{lstm_tsp_forward.1} parent=0 // pred_fallthru
    _
  // Predicated region
  $region74: #{lstm_tsp_forward.1} parent=0 // pred_check
    _
  $region75: #{lstm_tsp_forward.1} parent=0 // pred_check_branch
    %8119 = sbr.rel (0) target = $region77
  $region76: #{lstm_tsp_forward.1} parent=0 // pred_region
    _
  $region77: #{lstm_tsp_forward.1} parent=0 // pred_fallthru
    _

</llo_original>
